<compile_context>
chip_gen: v5e
topology: v5e:2x2
jax: 0.10.0
libtpu: 0.0.40
codegen_flags: <defaults>
</compile_context>

<pallas_src>
import functools

import numpy as np
import jax
import jax.numpy as jnp
from jax.experimental import pallas as pl
from jax.experimental.pallas import tpu as pltpu

LANES = 128  # pad every channel axis to one full lane width


# ----------------------------------------------------------------------------
# Fused kernel factory.  `layer_specs` is a static tuple of per-layer specs
# (k, win, L, relu):
#   k    : conv kernel side (for the FC layer: the full remaining map width)
#   win  : spatial width of this layer's input feature map
#   L    : number of "full resolution" rows produced by the shifted matmuls
#          (= rows_in - ((k-1)*win + (k-1)))
#   relu : apply ReLU after the bias add
# ----------------------------------------------------------------------------
def _make_fused_kernel(layer_specs):
    n_layers = len(layer_specs)

    def kernel(*refs):
        x_ref = refs[0]
        param_refs = refs[1:1 + 3 * n_layers]      # (taps, bias, sel) per layer
        out_ref = refs[1 + 3 * n_layers]
        act_refs = refs[2 + 3 * n_layers:]          # VMEM scratch per hidden layer

        cur = x_ref                                 # flat [rows, 128] activation
        for li, (k, win, L, relu) in enumerate(layer_specs):
            taps_ref = param_refs[3 * li]           # [k*k, 128, 128]
            bias_ref = param_refs[3 * li + 1]       # [1, 128]
            sel_ref = param_refs[3 * li + 2]        # [rows_out, L] 0/1 gather

            # In-kernel im2col: conv == sum of k*k shifted matmuls on the MXU.
            # All slice offsets are static, all operands stay lane-dense.
            acc = None
            for di in range(k):
                for dj in range(k):
                    d = di * win + dj               # static row shift
                    lhs = cur[pl.ds(d, L), :]       # [L, 128]
                    contrib = jnp.dot(lhs, taps_ref[di * k + dj],
                                      preferred_element_type=jnp.float32)
                    acc = contrib if acc is None else acc + contrib

            # Stride / valid-window row gather as one constant matmul (keeps
            # everything on the MXU, avoids strided sublane access), then bias
            # (+ ReLU).  Output rows are dense; lanes are a full 128 wide.
            # (bf16 MXU ingest would be a free further win on v6e/v7x; kept in
            # f32 here to match the PyTorch numerics exactly.)
            y = jnp.dot(sel_ref[...], acc, preferred_element_type=jnp.float32)
            y = y + bias_ref[...]
            if relu:
                y = jnp.maximum(y, 0.0)

            if li == n_layers - 1:
                out_ref[...] = y
            else:
                act_refs[li][...] = y
                cur = act_refs[li]

    return kernel


# ----------------------------------------------------------------------------
# One-time (host-side) parameter packing.
# ----------------------------------------------------------------------------
def _selection_matrix(batch, hin, win, k, stride, hout, wout):
    """0/1 matrix gathering the valid, strided output rows of a conv layer.

    Dense output row m = (b, oh, ow) selects "full resolution" row
    p = b*hin*win + (oh*stride)*win + (ow*stride) of the shifted-matmul
    accumulator (which lives in the input's flat row-index space).
    """
    L = batch * hin * win - ((k - 1) * win + (k - 1))
    sel = np.zeros((batch * hout * wout, L), np.float32)
    for b in range(batch):
        for oh in range(hout):
            for ow in range(wout):
                m = (b * hout + oh) * wout + ow
                p = b * hin * win + (oh * stride) * win + (ow * stride)
                sel[m, p] = 1.0
    return jnp.asarray(sel)


def prepare_fused_params(conv_params, fc_w, fc_b, *, batch, in_channels, image_width):
    """Pack PyTorch-layout parameters for the fused kernel (done once).

    Conv2d weights [OC, CI, k, k] -> k*k per-tap [128, 128] matrices; the
    Linear over the NCHW flatten becomes one more 'conv' whose kernel covers
    the whole remaining feature map.  Also builds the constant 0/1 gather
    matrices.  Everything is zero-padded to 128 lanes.
    """
    flat, specs, scratch = [], [], []
    cin, width = in_channels, image_width
    for (w, b, stride) in conv_params:
        oc, wc, k, _ = w.shape
        assert wc == cin and k <= width and max(cin, oc) <= LANES
        hout = (width - k) // stride + 1
        L = batch * width * width - ((k - 1) * width + (k - 1))
        taps = jnp.transpose(w, (2, 3, 1, 0)).reshape(k * k, cin, oc)
        taps = jnp.pad(taps, ((0, 0), (0, LANES - cin), (0, LANES - oc)))
        bias = jnp.pad(b, (0, LANES - oc)).reshape(1, LANES)
        sel = _selection_matrix(batch, width, width, k, stride, hout, hout)
        flat += [taps, bias, sel]
        specs.append((k, width, L, True))
        scratch.append((batch * hout * hout, LANES))
        cin, width = oc, hout

    n_out, fc_in = fc_w.shape
    assert fc_in == cin * width * width and n_out <= LANES
    L = batch * width * width - ((width - 1) * width + (width - 1))
    taps = fc_w.reshape(n_out, cin, width, width).transpose(2, 3, 1, 0)
    taps = taps.reshape(width * width, cin, n_out)
    taps = jnp.pad(taps, ((0, 0), (0, LANES - cin), (0, LANES - n_out)))
    bias = jnp.pad(fc_b, (0, LANES - n_out)).reshape(1, LANES)
    sel = _selection_matrix(batch, width, width, width, 1, 1, 1)
    flat += [taps, bias, sel]
    specs.append((width, width, L, False))

    return tuple(flat), tuple(specs), tuple(scratch)


# ----------------------------------------------------------------------------
# Forward pass: one transpose/pad of the tiny input, one fused pallas_call,
# one output slice.
# ----------------------------------------------------------------------------
@functools.partial(jax.jit, static_argnums=(2, 3, 4))
def net_forward(x_nchw, flat_params, specs, scratch_shapes, out_classes):
    b, c, h, w = x_nchw.shape
    x_flat = jnp.transpose(x_nchw, (0, 2, 3, 1)).reshape(b * h * w, c)
    x_flat = jnp.pad(x_flat, ((0, 0), (0, LANES - c)))
    out = pl.pallas_call(
        _make_fused_kernel(specs),
        out_shape=jax.ShapeDtypeStruct((b, LANES), jnp.float32),
        scratch_shapes=[pltpu.VMEM(s, jnp.float32) for s in scratch_shapes],
        compiler_params=pltpu.CompilerParams(vmem_limit_bytes=32 * 1024 * 1024),
    )(x_flat, *flat_params)
    return out[:, :out_classes]


# Pure-JAX reference (matches PyTorch Conv2d/ReLU/Linear semantics).
def _reference_forward(x, conv_params, fc_w, fc_b):
    out = x
    for (w, b, s) in conv_params:
        out = jax.lax.conv_general_dilated(
            out, w, window_strides=(s, s), padding="VALID",
            dimension_numbers=("NCHW", "OIHW", "NCHW"))
        out = jnp.maximum(out + b.reshape(1, -1, 1, 1), 0.0)
    out = out.reshape(out.shape[0], -1)
    return out @ fc_w.T + fc_b


if __name__ == "__main__":
    # Deterministic architecture sampled from the (reduced) search space:
    #   layer 1: 24 filters, k=3, stride=1, padding=0
    #   layer 2: 36 filters, k=3, stride=2, padding=0
    # in_channels=3, imagewidth=16, out_channels=10, batch=2.
    key = jax.random.PRNGKey(0)
    B, IC, IW = 2, 3, 16
    OUT_CLASSES = 10
    layers = [dict(n=24, w=3, s=1), dict(n=36, w=3, s=2)]

    keys = jax.random.split(key, 2 * len(layers) + 3)
    conv_params = []
    in_c, img_w = IC, IW
    ki = 0
    for layer in layers:
        n, kw, s = layer["n"], layer["w"], layer["s"]
        w = 0.05 * jax.random.normal(keys[ki], (n, in_c, kw, kw), jnp.float32)
        b = 0.01 * jax.random.normal(keys[ki + 1], (n,), jnp.float32)
        ki += 2
        conv_params.append((w, b, s))
        in_c = n
        img_w = (img_w - kw) // s + 1

    fc_in = in_c * img_w * img_w
    fc_w = 0.05 * jax.random.normal(keys[ki], (OUT_CLASSES, fc_in), jnp.float32)
    fc_b = 0.01 * jax.random.normal(keys[ki + 1], (OUT_CLASSES,), jnp.float32)
    x = jax.random.normal(keys[ki + 2], (B, IC, IW, IW), jnp.float32)

    # Parameter packing is hoisted out of the forward path (done once).
    flat_params, specs, scratch_shapes = prepare_fused_params(
        conv_params, fc_w, fc_b, batch=B, in_channels=IC, image_width=IW)

    out = net_forward(x, flat_params, specs, scratch_shapes, OUT_CLASSES)
    ref = _reference_forward(x, conv_params, fc_w, fc_b)
    out, ref = jax.block_until_ready((out, ref))

    assert out.shape == (B, OUT_CLASSES), out.shape
    max_err = float(jnp.max(jnp.abs(out - ref)))
    assert max_err < 3e-4, f"fused kernel mismatch vs reference: {max_err}"
    print("KERNEL_OK")
</pallas_src>

<mosaic_0001>
module attributes {stable_mosaic.version = 11 : i64} {
  func.func @kernel(%arg0: memref<512x128xf32, #tpu.memory_space<vmem>>, %arg1: memref<9x128x128xf32, #tpu.memory_space<vmem>>, %arg2: memref<1x128xf32, #tpu.memory_space<vmem>>, %arg3: memref<392x478xf32, #tpu.memory_space<vmem>>, %arg4: memref<9x128x128xf32, #tpu.memory_space<vmem>>, %arg5: memref<1x128xf32, #tpu.memory_space<vmem>>, %arg6: memref<72x362xf32, #tpu.memory_space<vmem>>, %arg7: memref<36x128x128xf32, #tpu.memory_space<vmem>>, %arg8: memref<1x128xf32, #tpu.memory_space<vmem>>, %arg9: memref<2x37xf32, #tpu.memory_space<vmem>>, %arg10: memref<2x128xf32, #tpu.memory_space<vmem>>, %arg11: memref<392x128xf32, #tpu.memory_space<vmem>>, %arg12: memref<72x128xf32, #tpu.memory_space<vmem>>) attributes {dimension_semantics = [], scalar_prefetch = 0 : i64, scratch_operands = 2 : i64, tpu.core_type = #tpu.core_type<tc>} {
    %c0 = arith.constant 0 : index
    %c0_0 = arith.constant 0 : index
    %0 = vector.load %arg0[%c0, %c0_0] : memref<512x128xf32, #tpu.memory_space<vmem>>, vector<478x128xf32>
    %c0_1 = arith.constant 0 : index
    %c0_2 = arith.constant 0 : index
    %c0_3 = arith.constant 0 : index
    %1 = vector.load %arg1[%c0_1, %c0_2, %c0_3] : memref<9x128x128xf32, #tpu.memory_space<vmem>>, vector<1x128x128xf32>
    %2 = vector.shape_cast %1 : vector<1x128x128xf32> to vector<128x128xf32>
    %cst = arith.constant dense<0.000000e+00> : vector<478x128xf32>
    %3 = tpu.matmul %0, %2, %cst {dimension_numbers = #tpu.dot_dimension_numbers<[1], [0], [0], [1], [0, 0, 1, 1], [], []>} : vector<478x128xf32>, vector<128x128xf32>, vector<478x128xf32> -> vector<478x128xf32>
    %c1 = arith.constant 1 : index
    %c0_4 = arith.constant 0 : index
    %4 = vector.load %arg0[%c1, %c0_4] : memref<512x128xf32, #tpu.memory_space<vmem>>, vector<478x128xf32>
    %c1_5 = arith.constant 1 : index
    %c0_6 = arith.constant 0 : index
    %c0_7 = arith.constant 0 : index
    %5 = vector.load %arg1[%c1_5, %c0_6, %c0_7] : memref<9x128x128xf32, #tpu.memory_space<vmem>>, vector<1x128x128xf32>
    %6 = vector.shape_cast %5 : vector<1x128x128xf32> to vector<128x128xf32>
    %cst_8 = arith.constant dense<0.000000e+00> : vector<478x128xf32>
    %7 = tpu.matmul %4, %6, %cst_8 {dimension_numbers = #tpu.dot_dimension_numbers<[1], [0], [0], [1], [0, 0, 1, 1], [], []>} : vector<478x128xf32>, vector<128x128xf32>, vector<478x128xf32> -> vector<478x128xf32>
    %8 = arith.addf %3, %7 : vector<478x128xf32>
    %c2 = arith.constant 2 : index
    %c0_9 = arith.constant 0 : index
    %9 = vector.load %arg0[%c2, %c0_9] : memref<512x128xf32, #tpu.memory_space<vmem>>, vector<478x128xf32>
    %c2_10 = arith.constant 2 : index
    %c0_11 = arith.constant 0 : index
    %c0_12 = arith.constant 0 : index
    %10 = vector.load %arg1[%c2_10, %c0_11, %c0_12] : memref<9x128x128xf32, #tpu.memory_space<vmem>>, vector<1x128x128xf32>
    %11 = vector.shape_cast %10 : vector<1x128x128xf32> to vector<128x128xf32>
    %cst_13 = arith.constant dense<0.000000e+00> : vector<478x128xf32>
    %12 = tpu.matmul %9, %11, %cst_13 {dimension_numbers = #tpu.dot_dimension_numbers<[1], [0], [0], [1], [0, 0, 1, 1], [], []>} : vector<478x128xf32>, vector<128x128xf32>, vector<478x128xf32> -> vector<478x128xf32>
    %13 = arith.addf %8, %12 : vector<478x128xf32>
    %c16 = arith.constant 16 : index
    %c0_14 = arith.constant 0 : index
    %14 = vector.load %arg0[%c16, %c0_14] : memref<512x128xf32, #tpu.memory_space<vmem>>, vector<478x128xf32>
    %c3 = arith.constant 3 : index
    %c0_15 = arith.constant 0 : index
    %c0_16 = arith.constant 0 : index
    %15 = vector.load %arg1[%c3, %c0_15, %c0_16] : memref<9x128x128xf32, #tpu.memory_space<vmem>>, vector<1x128x128xf32>
    %16 = vector.shape_cast %15 : vector<1x128x128xf32> to vector<128x128xf32>
    %cst_17 = arith.constant dense<0.000000e+00> : vector<478x128xf32>
    %17 = tpu.matmul %14, %16, %cst_17 {dimension_numbers = #tpu.dot_dimension_numbers<[1], [0], [0], [1], [0, 0, 1, 1], [], []>} : vector<478x128xf32>, vector<128x128xf32>, vector<478x128xf32> -> vector<478x128xf32>
    %18 = arith.addf %13, %17 : vector<478x128xf32>
    %c17 = arith.constant 17 : index
    %c0_18 = arith.constant 0 : index
    %19 = vector.load %arg0[%c17, %c0_18] : memref<512x128xf32, #tpu.memory_space<vmem>>, vector<478x128xf32>
    %c4 = arith.constant 4 : index
    %c0_19 = arith.constant 0 : index
    %c0_20 = arith.constant 0 : index
    %20 = vector.load %arg1[%c4, %c0_19, %c0_20] : memref<9x128x128xf32, #tpu.memory_space<vmem>>, vector<1x128x128xf32>
    %21 = vector.shape_cast %20 : vector<1x128x128xf32> to vector<128x128xf32>
    %cst_21 = arith.constant dense<0.000000e+00> : vector<478x128xf32>
    %22 = tpu.matmul %19, %21, %cst_21 {dimension_numbers = #tpu.dot_dimension_numbers<[1], [0], [0], [1], [0, 0, 1, 1], [], []>} : vector<478x128xf32>, vector<128x128xf32>, vector<478x128xf32> -> vector<478x128xf32>
    %23 = arith.addf %18, %22 : vector<478x128xf32>
    %c18 = arith.constant 18 : index
    %c0_22 = arith.constant 0 : index
    %24 = vector.load %arg0[%c18, %c0_22] : memref<512x128xf32, #tpu.memory_space<vmem>>, vector<478x128xf32>
    %c5 = arith.constant 5 : index
    %c0_23 = arith.constant 0 : index
    %c0_24 = arith.constant 0 : index
    %25 = vector.load %arg1[%c5, %c0_23, %c0_24] : memref<9x128x128xf32, #tpu.memory_space<vmem>>, vector<1x128x128xf32>
    %26 = vector.shape_cast %25 : vector<1x128x128xf32> to vector<128x128xf32>
    %cst_25 = arith.constant dense<0.000000e+00> : vector<478x128xf32>
    %27 = tpu.matmul %24, %26, %cst_25 {dimension_numbers = #tpu.dot_dimension_numbers<[1], [0], [0], [1], [0, 0, 1, 1], [], []>} : vector<478x128xf32>, vector<128x128xf32>, vector<478x128xf32> -> vector<478x128xf32>
    %28 = arith.addf %23, %27 : vector<478x128xf32>
    %c32 = arith.constant 32 : index
    %c0_26 = arith.constant 0 : index
    %29 = vector.load %arg0[%c32, %c0_26] : memref<512x128xf32, #tpu.memory_space<vmem>>, vector<478x128xf32>
    %c6 = arith.constant 6 : index
    %c0_27 = arith.constant 0 : index
    %c0_28 = arith.constant 0 : index
    %30 = vector.load %arg1[%c6, %c0_27, %c0_28] : memref<9x128x128xf32, #tpu.memory_space<vmem>>, vector<1x128x128xf32>
    %31 = vector.shape_cast %30 : vector<1x128x128xf32> to vector<128x128xf32>
    %cst_29 = arith.constant dense<0.000000e+00> : vector<478x128xf32>
    %32 = tpu.matmul %29, %31, %cst_29 {dimension_numbers = #tpu.dot_dimension_numbers<[1], [0], [0], [1], [0, 0, 1, 1], [], []>} : vector<478x128xf32>, vector<128x128xf32>, vector<478x128xf32> -> vector<478x128xf32>
    %33 = arith.addf %28, %32 : vector<478x128xf32>
    %c33 = arith.constant 33 : index
    %c0_30 = arith.constant 0 : index
    %34 = vector.load %arg0[%c33, %c0_30] : memref<512x128xf32, #tpu.memory_space<vmem>>, vector<478x128xf32>
    %c7 = arith.constant 7 : index
    %c0_31 = arith.constant 0 : index
    %c0_32 = arith.constant 0 : index
    %35 = vector.load %arg1[%c7, %c0_31, %c0_32] : memref<9x128x128xf32, #tpu.memory_space<vmem>>, vector<1x128x128xf32>
    %36 = vector.shape_cast %35 : vector<1x128x128xf32> to vector<128x128xf32>
    %cst_33 = arith.constant dense<0.000000e+00> : vector<478x128xf32>
    %37 = tpu.matmul %34, %36, %cst_33 {dimension_numbers = #tpu.dot_dimension_numbers<[1], [0], [0], [1], [0, 0, 1, 1], [], []>} : vector<478x128xf32>, vector<128x128xf32>, vector<478x128xf32> -> vector<478x128xf32>
    %38 = arith.addf %33, %37 : vector<478x128xf32>
    %c34 = arith.constant 34 : index
    %c0_34 = arith.constant 0 : index
    %39 = vector.load %arg0[%c34, %c0_34] : memref<512x128xf32, #tpu.memory_space<vmem>>, vector<478x128xf32>
    %c8 = arith.constant 8 : index
    %c0_35 = arith.constant 0 : index
    %c0_36 = arith.constant 0 : index
    %40 = vector.load %arg1[%c8, %c0_35, %c0_36] : memref<9x128x128xf32, #tpu.memory_space<vmem>>, vector<1x128x128xf32>
    %41 = vector.shape_cast %40 : vector<1x128x128xf32> to vector<128x128xf32>
    %cst_37 = arith.constant dense<0.000000e+00> : vector<478x128xf32>
    %42 = tpu.matmul %39, %41, %cst_37 {dimension_numbers = #tpu.dot_dimension_numbers<[1], [0], [0], [1], [0, 0, 1, 1], [], []>} : vector<478x128xf32>, vector<128x128xf32>, vector<478x128xf32> -> vector<478x128xf32>
    %43 = arith.addf %38, %42 : vector<478x128xf32>
    %c0_38 = arith.constant 0 : index
    %c0_39 = arith.constant 0 : index
    %44 = vector.load %arg3[%c0_38, %c0_39] : memref<392x478xf32, #tpu.memory_space<vmem>>, vector<392x478xf32>
    %cst_40 = arith.constant dense<0.000000e+00> : vector<392x128xf32>
    %45 = tpu.matmul %44, %43, %cst_40 {dimension_numbers = #tpu.dot_dimension_numbers<[1], [0], [0], [1], [0, 0, 1, 1], [], []>} : vector<392x478xf32>, vector<478x128xf32>, vector<392x128xf32> -> vector<392x128xf32>
    %c0_41 = arith.constant 0 : index
    %c0_42 = arith.constant 0 : index
    %46 = vector.load %arg2[%c0_41, %c0_42] : memref<1x128xf32, #tpu.memory_space<vmem>>, vector<1x128xf32>
    %47 = vector.broadcast %46 : vector<1x128xf32> to vector<392x128xf32>
    %48 = arith.addf %45, %47 : vector<392x128xf32>
    %cst_43 = arith.constant 0.000000e+00 : f32
    %49 = vector.broadcast %cst_43 : f32 to vector<392x128xf32>
    %50 = arith.maximumf %48, %49 : vector<392x128xf32>
    %c0_44 = arith.constant 0 : index
    %c0_45 = arith.constant 0 : index
    %51 = vector.load %arg11[%c0_44, %c0_45] : memref<392x128xf32, #tpu.memory_space<vmem>>, vector<392x128xf32>
    tpu.vector_store %arg11[%c0_44, %c0_45], %50 {strides = array<i32>} : memref<392x128xf32, #tpu.memory_space<vmem>>, vector<392x128xf32>,
    %c0_46 = arith.constant 0 : index
    %c0_47 = arith.constant 0 : index
    %52 = vector.load %arg11[%c0_46, %c0_47] : memref<392x128xf32, #tpu.memory_space<vmem>>, vector<362x128xf32>
    %c0_48 = arith.constant 0 : index
    %c0_49 = arith.constant 0 : index
    %c0_50 = arith.constant 0 : index
    %53 = vector.load %arg4[%c0_48, %c0_49, %c0_50] : memref<9x128x128xf32, #tpu.memory_space<vmem>>, vector<1x128x128xf32>
    %54 = vector.shape_cast %53 : vector<1x128x128xf32> to vector<128x128xf32>
    %cst_51 = arith.constant dense<0.000000e+00> : vector<362x128xf32>
    %55 = tpu.matmul %52, %54, %cst_51 {dimension_numbers = #tpu.dot_dimension_numbers<[1], [0], [0], [1], [0, 0, 1, 1], [], []>} : vector<362x128xf32>, vector<128x128xf32>, vector<362x128xf32> -> vector<362x128xf32>
    %c1_52 = arith.constant 1 : index
    %c0_53 = arith.constant 0 : index
    %56 = vector.load %arg11[%c1_52, %c0_53] : memref<392x128xf32, #tpu.memory_space<vmem>>, vector<362x128xf32>
    %c1_54 = arith.constant 1 : index
    %c0_55 = arith.constant 0 : index
    %c0_56 = arith.constant 0 : index
    %57 = vector.load %arg4[%c1_54, %c0_55, %c0_56] : memref<9x128x128xf32, #tpu.memory_space<vmem>>, vector<1x128x128xf32>
    %58 = vector.shape_cast %57 : vector<1x128x128xf32> to vector<128x128xf32>
    %cst_57 = arith.constant dense<0.000000e+00> : vector<362x128xf32>
    %59 = tpu.matmul %56, %58, %cst_57 {dimension_numbers = #tpu.dot_dimension_numbers<[1], [0], [0], [1], [0, 0, 1, 1], [], []>} : vector<362x128xf32>, vector<128x128xf32>, vector<362x128xf32> -> vector<362x128xf32>
    %60 = arith.addf %55, %59 : vector<362x128xf32>
    %c2_58 = arith.constant 2 : index
    %c0_59 = arith.constant 0 : index
    %61 = vector.load %arg11[%c2_58, %c0_59] : memref<392x128xf32, #tpu.memory_space<vmem>>, vector<362x128xf32>
    %c2_60 = arith.constant 2 : index
    %c0_61 = arith.constant 0 : index
    %c0_62 = arith.constant 0 : index
    %62 = vector.load %arg4[%c2_60, %c0_61, %c0_62] : memref<9x128x128xf32, #tpu.memory_space<vmem>>, vector<1x128x128xf32>
    %63 = vector.shape_cast %62 : vector<1x128x128xf32> to vector<128x128xf32>
    %cst_63 = arith.constant dense<0.000000e+00> : vector<362x128xf32>
    %64 = tpu.matmul %61, %63, %cst_63 {dimension_numbers = #tpu.dot_dimension_numbers<[1], [0], [0], [1], [0, 0, 1, 1], [], []>} : vector<362x128xf32>, vector<128x128xf32>, vector<362x128xf32> -> vector<362x128xf32>
    %65 = arith.addf %60, %64 : vector<362x128xf32>
    %c14 = arith.constant 14 : index
    %c0_64 = arith.constant 0 : index
    %66 = vector.load %arg11[%c14, %c0_64] : memref<392x128xf32, #tpu.memory_space<vmem>>, vector<362x128xf32>
    %c3_65 = arith.constant 3 : index
    %c0_66 = arith.constant 0 : index
    %c0_67 = arith.constant 0 : index
    %67 = vector.load %arg4[%c3_65, %c0_66, %c0_67] : memref<9x128x128xf32, #tpu.memory_space<vmem>>, vector<1x128x128xf32>
    %68 = vector.shape_cast %67 : vector<1x128x128xf32> to vector<128x128xf32>
    %cst_68 = arith.constant dense<0.000000e+00> : vector<362x128xf32>
    %69 = tpu.matmul %66, %68, %cst_68 {dimension_numbers = #tpu.dot_dimension_numbers<[1], [0], [0], [1], [0, 0, 1, 1], [], []>} : vector<362x128xf32>, vector<128x128xf32>, vector<362x128xf32> -> vector<362x128xf32>
    %70 = arith.addf %65, %69 : vector<362x128xf32>
    %c15 = arith.constant 15 : index
    %c0_69 = arith.constant 0 : index
    %71 = vector.load %arg11[%c15, %c0_69] : memref<392x128xf32, #tpu.memory_space<vmem>>, vector<362x128xf32>
    %c4_70 = arith.constant 4 : index
    %c0_71 = arith.constant 0 : index
    %c0_72 = arith.constant 0 : index
    %72 = vector.load %arg4[%c4_70, %c0_71, %c0_72] : memref<9x128x128xf32, #tpu.memory_space<vmem>>, vector<1x128x128xf32>
    %73 = vector.shape_cast %72 : vector<1x128x128xf32> to vector<128x128xf32>
    %cst_73 = arith.constant dense<0.000000e+00> : vector<362x128xf32>
    %74 = tpu.matmul %71, %73, %cst_73 {dimension_numbers = #tpu.dot_dimension_numbers<[1], [0], [0], [1], [0, 0, 1, 1], [], []>} : vector<362x128xf32>, vector<128x128xf32>, vector<362x128xf32> -> vector<362x128xf32>
    %75 = arith.addf %70, %74 : vector<362x128xf32>
    %c16_74 = arith.constant 16 : index
    %c0_75 = arith.constant 0 : index
    %76 = vector.load %arg11[%c16_74, %c0_75] : memref<392x128xf32, #tpu.memory_space<vmem>>, vector<362x128xf32>
    %c5_76 = arith.constant 5 : index
    %c0_77 = arith.constant 0 : index
    %c0_78 = arith.constant 0 : index
    %77 = vector.load %arg4[%c5_76, %c0_77, %c0_78] : memref<9x128x128xf32, #tpu.memory_space<vmem>>, vector<1x128x128xf32>
    %78 = vector.shape_cast %77 : vector<1x128x128xf32> to vector<128x128xf32>
    %cst_79 = arith.constant dense<0.000000e+00> : vector<362x128xf32>
    %79 = tpu.matmul %76, %78, %cst_79 {dimension_numbers = #tpu.dot_dimension_numbers<[1], [0], [0], [1], [0, 0, 1, 1], [], []>} : vector<362x128xf32>, vector<128x128xf32>, vector<362x128xf32> -> vector<362x128xf32>
    %80 = arith.addf %75, %79 : vector<362x128xf32>
    %c28 = arith.constant 28 : index
    %c0_80 = arith.constant 0 : index
    %81 = vector.load %arg11[%c28, %c0_80] : memref<392x128xf32, #tpu.memory_space<vmem>>, vector<362x128xf32>
    %c6_81 = arith.constant 6 : index
    %c0_82 = arith.constant 0 : index
    %c0_83 = arith.constant 0 : index
    %82 = vector.load %arg4[%c6_81, %c0_82, %c0_83] : memref<9x128x128xf32, #tpu.memory_space<vmem>>, vector<1x128x128xf32>
    %83 = vector.shape_cast %82 : vector<1x128x128xf32> to vector<128x128xf32>
    %cst_84 = arith.constant dense<0.000000e+00> : vector<362x128xf32>
    %84 = tpu.matmul %81, %83, %cst_84 {dimension_numbers = #tpu.dot_dimension_numbers<[1], [0], [0], [1], [0, 0, 1, 1], [], []>} : vector<362x128xf32>, vector<128x128xf32>, vector<362x128xf32> -> vector<362x128xf32>
    %85 = arith.addf %80, %84 : vector<362x128xf32>
    %c29 = arith.constant 29 : index
    %c0_85 = arith.constant 0 : index
    %86 = vector.load %arg11[%c29, %c0_85] : memref<392x128xf32, #tpu.memory_space<vmem>>, vector<362x128xf32>
    %c7_86 = arith.constant 7 : index
    %c0_87 = arith.constant 0 : index
    %c0_88 = arith.constant 0 : index
    %87 = vector.load %arg4[%c7_86, %c0_87, %c0_88] : memref<9x128x128xf32, #tpu.memory_space<vmem>>, vector<1x128x128xf32>
    %88 = vector.shape_cast %87 : vector<1x128x128xf32> to vector<128x128xf32>
    %cst_89 = arith.constant dense<0.000000e+00> : vector<362x128xf32>
    %89 = tpu.matmul %86, %88, %cst_89 {dimension_numbers = #tpu.dot_dimension_numbers<[1], [0], [0], [1], [0, 0, 1, 1], [], []>} : vector<362x128xf32>, vector<128x128xf32>, vector<362x128xf32> -> vector<362x128xf32>
    %90 = arith.addf %85, %89 : vector<362x128xf32>
    %c30 = arith.constant 30 : index
    %c0_90 = arith.constant 0 : index
    %91 = vector.load %arg11[%c30, %c0_90] : memref<392x128xf32, #tpu.memory_space<vmem>>, vector<362x128xf32>
    %c8_91 = arith.constant 8 : index
    %c0_92 = arith.constant 0 : index
    %c0_93 = arith.constant 0 : index
    %92 = vector.load %arg4[%c8_91, %c0_92, %c0_93] : memref<9x128x128xf32, #tpu.memory_space<vmem>>, vector<1x128x128xf32>
    %93 = vector.shape_cast %92 : vector<1x128x128xf32> to vector<128x128xf32>
    %cst_94 = arith.constant dense<0.000000e+00> : vector<362x128xf32>
    %94 = tpu.matmul %91, %93, %cst_94 {dimension_numbers = #tpu.dot_dimension_numbers<[1], [0], [0], [1], [0, 0, 1, 1], [], []>} : vector<362x128xf32>, vector<128x128xf32>, vector<362x128xf32> -> vector<362x128xf32>
    %95 = arith.addf %90, %94 : vector<362x128xf32>
    %c0_95 = arith.constant 0 : index
    %c0_96 = arith.constant 0 : index
    %96 = vector.load %arg6[%c0_95, %c0_96] : memref<72x362xf32, #tpu.memory_space<vmem>>, vector<72x362xf32>
    %cst_97 = arith.constant dense<0.000000e+00> : vector<72x128xf32>
    %97 = tpu.matmul %96, %95, %cst_97 {dimension_numbers = #tpu.dot_dimension_numbers<[1], [0], [0], [1], [0, 0, 1, 1], [], []>} : vector<72x362xf32>, vector<362x128xf32>, vector<72x128xf32> -> vector<72x128xf32>
    %c0_98 = arith.constant 0 : index
    %c0_99 = arith.constant 0 : index
    %98 = vector.load %arg5[%c0_98, %c0_99] : memref<1x128xf32, #tpu.memory_space<vmem>>, vector<1x128xf32>
    %99 = vector.broadcast %98 : vector<1x128xf32> to vector<72x128xf32>
    %100 = arith.addf %97, %99 : vector<72x128xf32>
    %cst_100 = arith.constant 0.000000e+00 : f32
    %101 = vector.broadcast %cst_100 : f32 to vector<72x128xf32>
    %102 = arith.maximumf %100, %101 : vector<72x128xf32>
    %c0_101 = arith.constant 0 : index
    %c0_102 = arith.constant 0 : index
    %103 = vector.load %arg12[%c0_101, %c0_102] : memref<72x128xf32, #tpu.memory_space<vmem>>, vector<72x128xf32>
    tpu.vector_store %arg12[%c0_101, %c0_102], %102 {strides = array<i32>} : memref<72x128xf32, #tpu.memory_space<vmem>>, vector<72x128xf32>,
    %c0_103 = arith.constant 0 : index
    %c0_104 = arith.constant 0 : index
    %104 = vector.load %arg12[%c0_103, %c0_104] : memref<72x128xf32, #tpu.memory_space<vmem>>, vector<37x128xf32>
    %c0_105 = arith.constant 0 : index
    %c0_106 = arith.constant 0 : index
    %c0_107 = arith.constant 0 : index
    %105 = vector.load %arg7[%c0_105, %c0_106, %c0_107] : memref<36x128x128xf32, #tpu.memory_space<vmem>>, vector<1x128x128xf32>
    %106 = vector.shape_cast %105 : vector<1x128x128xf32> to vector<128x128xf32>
    %cst_108 = arith.constant dense<0.000000e+00> : vector<37x128xf32>
    %107 = tpu.matmul %104, %106, %cst_108 {dimension_numbers = #tpu.dot_dimension_numbers<[1], [0], [0], [1], [0, 0, 1, 1], [], []>} : vector<37x128xf32>, vector<128x128xf32>, vector<37x128xf32> -> vector<37x128xf32>
    %c1_109 = arith.constant 1 : index
    %c0_110 = arith.constant 0 : index
    %108 = vector.load %arg12[%c1_109, %c0_110] : memref<72x128xf32, #tpu.memory_space<vmem>>, vector<37x128xf32>
    %c1_111 = arith.constant 1 : index
    %c0_112 = arith.constant 0 : index
    %c0_113 = arith.constant 0 : index
    %109 = vector.load %arg7[%c1_111, %c0_112, %c0_113] : memref<36x128x128xf32, #tpu.memory_space<vmem>>, vector<1x128x128xf32>
    %110 = vector.shape_cast %109 : vector<1x128x128xf32> to vector<128x128xf32>
    %cst_114 = arith.constant dense<0.000000e+00> : vector<37x128xf32>
    %111 = tpu.matmul %108, %110, %cst_114 {dimension_numbers = #tpu.dot_dimension_numbers<[1], [0], [0], [1], [0, 0, 1, 1], [], []>} : vector<37x128xf32>, vector<128x128xf32>, vector<37x128xf32> -> vector<37x128xf32>
    %112 = arith.addf %107, %111 : vector<37x128xf32>
    %c2_115 = arith.constant 2 : index
    %c0_116 = arith.constant 0 : index
    %113 = vector.load %arg12[%c2_115, %c0_116] : memref<72x128xf32, #tpu.memory_space<vmem>>, vector<37x128xf32>
    %c2_117 = arith.constant 2 : index
    %c0_118 = arith.constant 0 : index
    %c0_119 = arith.constant 0 : index
    %114 = vector.load %arg7[%c2_117, %c0_118, %c0_119] : memref<36x128x128xf32, #tpu.memory_space<vmem>>, vector<1x128x128xf32>
    %115 = vector.shape_cast %114 : vector<1x128x128xf32> to vector<128x128xf32>
    %cst_120 = arith.constant dense<0.000000e+00> : vector<37x128xf32>
    %116 = tpu.matmul %113, %115, %cst_120 {dimension_numbers = #tpu.dot_dimension_numbers<[1], [0], [0], [1], [0, 0, 1, 1], [], []>} : vector<37x128xf32>, vector<128x128xf32>, vector<37x128xf32> -> vector<37x128xf32>
    %117 = arith.addf %112, %116 : vector<37x128xf32>
    %c3_121 = arith.constant 3 : index
    %c0_122 = arith.constant 0 : index
    %118 = vector.load %arg12[%c3_121, %c0_122] : memref<72x128xf32, #tpu.memory_space<vmem>>, vector<37x128xf32>
    %c3_123 = arith.constant 3 : index
    %c0_124 = arith.constant 0 : index
    %c0_125 = arith.constant 0 : index
    %119 = vector.load %arg7[%c3_123, %c0_124, %c0_125] : memref<36x128x128xf32, #tpu.memory_space<vmem>>, vector<1x128x128xf32>
    %120 = vector.shape_cast %119 : vector<1x128x128xf32> to vector<128x128xf32>
    %cst_126 = arith.constant dense<0.000000e+00> : vector<37x128xf32>
    %121 = tpu.matmul %118, %120, %cst_126 {dimension_numbers = #tpu.dot_dimension_numbers<[1], [0], [0], [1], [0, 0, 1, 1], [], []>} : vector<37x128xf32>, vector<128x128xf32>, vector<37x128xf32> -> vector<37x128xf32>
    %122 = arith.addf %117, %121 : vector<37x128xf32>
    %c4_127 = arith.constant 4 : index
    %c0_128 = arith.constant 0 : index
    %123 = vector.load %arg12[%c4_127, %c0_128] : memref<72x128xf32, #tpu.memory_space<vmem>>, vector<37x128xf32>
    %c4_129 = arith.constant 4 : index
    %c0_130 = arith.constant 0 : index
    %c0_131 = arith.constant 0 : index
    %124 = vector.load %arg7[%c4_129, %c0_130, %c0_131] : memref<36x128x128xf32, #tpu.memory_space<vmem>>, vector<1x128x128xf32>
    %125 = vector.shape_cast %124 : vector<1x128x128xf32> to vector<128x128xf32>
    %cst_132 = arith.constant dense<0.000000e+00> : vector<37x128xf32>
    %126 = tpu.matmul %123, %125, %cst_132 {dimension_numbers = #tpu.dot_dimension_numbers<[1], [0], [0], [1], [0, 0, 1, 1], [], []>} : vector<37x128xf32>, vector<128x128xf32>, vector<37x128xf32> -> vector<37x128xf32>
    %127 = arith.addf %122, %126 : vector<37x128xf32>
    %c5_133 = arith.constant 5 : index
    %c0_134 = arith.constant 0 : index
    %128 = vector.load %arg12[%c5_133, %c0_134] : memref<72x128xf32, #tpu.memory_space<vmem>>, vector<37x128xf32>
    %c5_135 = arith.constant 5 : index
    %c0_136 = arith.constant 0 : index
    %c0_137 = arith.constant 0 : index
    %129 = vector.load %arg7[%c5_135, %c0_136, %c0_137] : memref<36x128x128xf32, #tpu.memory_space<vmem>>, vector<1x128x128xf32>
    %130 = vector.shape_cast %129 : vector<1x128x128xf32> to vector<128x128xf32>
    %cst_138 = arith.constant dense<0.000000e+00> : vector<37x128xf32>
    %131 = tpu.matmul %128, %130, %cst_138 {dimension_numbers = #tpu.dot_dimension_numbers<[1], [0], [0], [1], [0, 0, 1, 1], [], []>} : vector<37x128xf32>, vector<128x128xf32>, vector<37x128xf32> -> vector<37x128xf32>
    %132 = arith.addf %127, %131 : vector<37x128xf32>
    %c6_139 = arith.constant 6 : index
    %c0_140 = arith.constant 0 : index
    %133 = vector.load %arg12[%c6_139, %c0_140] : memref<72x128xf32, #tpu.memory_space<vmem>>, vector<37x128xf32>
    %c6_141 = arith.constant 6 : index
    %c0_142 = arith.constant 0 : index
    %c0_143 = arith.constant 0 : index
    %134 = vector.load %arg7[%c6_141, %c0_142, %c0_143] : memref<36x128x128xf32, #tpu.memory_space<vmem>>, vector<1x128x128xf32>
    %135 = vector.shape_cast %134 : vector<1x128x128xf32> to vector<128x128xf32>
    %cst_144 = arith.constant dense<0.000000e+00> : vector<37x128xf32>
    %136 = tpu.matmul %133, %135, %cst_144 {dimension_numbers = #tpu.dot_dimension_numbers<[1], [0], [0], [1], [0, 0, 1, 1], [], []>} : vector<37x128xf32>, vector<128x128xf32>, vector<37x128xf32> -> vector<37x128xf32>
    %137 = arith.addf %132, %136 : vector<37x128xf32>
    %c7_145 = arith.constant 7 : index
    %c0_146 = arith.constant 0 : index
    %138 = vector.load %arg12[%c7_145, %c0_146] : memref<72x128xf32, #tpu.memory_space<vmem>>, vector<37x128xf32>
    %c7_147 = arith.constant 7 : index
    %c0_148 = arith.constant 0 : index
    %c0_149 = arith.constant 0 : index
    %139 = vector.load %arg7[%c7_147, %c0_148, %c0_149] : memref<36x128x128xf32, #tpu.memory_space<vmem>>, vector<1x128x128xf32>
    %140 = vector.shape_cast %139 : vector<1x128x128xf32> to vector<128x128xf32>
    %cst_150 = arith.constant dense<0.000000e+00> : vector<37x128xf32>
    %141 = tpu.matmul %138, %140, %cst_150 {dimension_numbers = #tpu.dot_dimension_numbers<[1], [0], [0], [1], [0, 0, 1, 1], [], []>} : vector<37x128xf32>, vector<128x128xf32>, vector<37x128xf32> -> vector<37x128xf32>
    %142 = arith.addf %137, %141 : vector<37x128xf32>
    %c8_151 = arith.constant 8 : index
    %c0_152 = arith.constant 0 : index
    %143 = vector.load %arg12[%c8_151, %c0_152] : memref<72x128xf32, #tpu.memory_space<vmem>>, vector<37x128xf32>
    %c8_153 = arith.constant 8 : index
    %c0_154 = arith.constant 0 : index
    %c0_155 = arith.constant 0 : index
    %144 = vector.load %arg7[%c8_153, %c0_154, %c0_155] : memref<36x128x128xf32, #tpu.memory_space<vmem>>, vector<1x128x128xf32>
    %145 = vector.shape_cast %144 : vector<1x128x128xf32> to vector<128x128xf32>
    %cst_156 = arith.constant dense<0.000000e+00> : vector<37x128xf32>
    %146 = tpu.matmul %143, %145, %cst_156 {dimension_numbers = #tpu.dot_dimension_numbers<[1], [0], [0], [1], [0, 0, 1, 1], [], []>} : vector<37x128xf32>, vector<128x128xf32>, vector<37x128xf32> -> vector<37x128xf32>
    %147 = arith.addf %142, %146 : vector<37x128xf32>
    %c9 = arith.constant 9 : index
    %c0_157 = arith.constant 0 : index
    %148 = vector.load %arg12[%c9, %c0_157] : memref<72x128xf32, #tpu.memory_space<vmem>>, vector<37x128xf32>
    %c9_158 = arith.constant 9 : index
    %c0_159 = arith.constant 0 : index
    %c0_160 = arith.constant 0 : index
    %149 = vector.load %arg7[%c9_158, %c0_159, %c0_160] : memref<36x128x128xf32, #tpu.memory_space<vmem>>, vector<1x128x128xf32>
    %150 = vector.shape_cast %149 : vector<1x128x128xf32> to vector<128x128xf32>
    %cst_161 = arith.constant dense<0.000000e+00> : vector<37x128xf32>
    %151 = tpu.matmul %148, %150, %cst_161 {dimension_numbers = #tpu.dot_dimension_numbers<[1], [0], [0], [1], [0, 0, 1, 1], [], []>} : vector<37x128xf32>, vector<128x128xf32>, vector<37x128xf32> -> vector<37x128xf32>
    %152 = arith.addf %147, %151 : vector<37x128xf32>
    %c10 = arith.constant 10 : index
    %c0_162 = arith.constant 0 : index
    %153 = vector.load %arg12[%c10, %c0_162] : memref<72x128xf32, #tpu.memory_space<vmem>>, vector<37x128xf32>
    %c10_163 = arith.constant 10 : index
    %c0_164 = arith.constant 0 : index
    %c0_165 = arith.constant 0 : index
    %154 = vector.load %arg7[%c10_163, %c0_164, %c0_165] : memref<36x128x128xf32, #tpu.memory_space<vmem>>, vector<1x128x128xf32>
    %155 = vector.shape_cast %154 : vector<1x128x128xf32> to vector<128x128xf32>
    %cst_166 = arith.constant dense<0.000000e+00> : vector<37x128xf32>
    %156 = tpu.matmul %153, %155, %cst_166 {dimension_numbers = #tpu.dot_dimension_numbers<[1], [0], [0], [1], [0, 0, 1, 1], [], []>} : vector<37x128xf32>, vector<128x128xf32>, vector<37x128xf32> -> vector<37x128xf32>
    %157 = arith.addf %152, %156 : vector<37x128xf32>
    %c11 = arith.constant 11 : index
    %c0_167 = arith.constant 0 : index
    %158 = vector.load %arg12[%c11, %c0_167] : memref<72x128xf32, #tpu.memory_space<vmem>>, vector<37x128xf32>
    %c11_168 = arith.constant 11 : index
    %c0_169 = arith.constant 0 : index
    %c0_170 = arith.constant 0 : index
    %159 = vector.load %arg7[%c11_168, %c0_169, %c0_170] : memref<36x128x128xf32, #tpu.memory_space<vmem>>, vector<1x128x128xf32>
    %160 = vector.shape_cast %159 : vector<1x128x128xf32> to vector<128x128xf32>
    %cst_171 = arith.constant dense<0.000000e+00> : vector<37x128xf32>
    %161 = tpu.matmul %158, %160, %cst_171 {dimension_numbers = #tpu.dot_dimension_numbers<[1], [0], [0], [1], [0, 0, 1, 1], [], []>} : vector<37x128xf32>, vector<128x128xf32>, vector<37x128xf32> -> vector<37x128xf32>
    %162 = arith.addf %157, %161 : vector<37x128xf32>
    %c12 = arith.constant 12 : index
    %c0_172 = arith.constant 0 : index
    %163 = vector.load %arg12[%c12, %c0_172] : memref<72x128xf32, #tpu.memory_space<vmem>>, vector<37x128xf32>
    %c12_173 = arith.constant 12 : index
    %c0_174 = arith.constant 0 : index
    %c0_175 = arith.constant 0 : index
    %164 = vector.load %arg7[%c12_173, %c0_174, %c0_175] : memref<36x128x128xf32, #tpu.memory_space<vmem>>, vector<1x128x128xf32>
    %165 = vector.shape_cast %164 : vector<1x128x128xf32> to vector<128x128xf32>
    %cst_176 = arith.constant dense<0.000000e+00> : vector<37x128xf32>
    %166 = tpu.matmul %163, %165, %cst_176 {dimension_numbers = #tpu.dot_dimension_numbers<[1], [0], [0], [1], [0, 0, 1, 1], [], []>} : vector<37x128xf32>, vector<128x128xf32>, vector<37x128xf32> -> vector<37x128xf32>
    %167 = arith.addf %162, %166 : vector<37x128xf32>
    %c13 = arith.constant 13 : index
    %c0_177 = arith.constant 0 : index
    %168 = vector.load %arg12[%c13, %c0_177] : memref<72x128xf32, #tpu.memory_space<vmem>>, vector<37x128xf32>
    %c13_178 = arith.constant 13 : index
    %c0_179 = arith.constant 0 : index
    %c0_180 = arith.constant 0 : index
    %169 = vector.load %arg7[%c13_178, %c0_179, %c0_180] : memref<36x128x128xf32, #tpu.memory_space<vmem>>, vector<1x128x128xf32>
    %170 = vector.shape_cast %169 : vector<1x128x128xf32> to vector<128x128xf32>
    %cst_181 = arith.constant dense<0.000000e+00> : vector<37x128xf32>
    %171 = tpu.matmul %168, %170, %cst_181 {dimension_numbers = #tpu.dot_dimension_numbers<[1], [0], [0], [1], [0, 0, 1, 1], [], []>} : vector<37x128xf32>, vector<128x128xf32>, vector<37x128xf32> -> vector<37x128xf32>
    %172 = arith.addf %167, %171 : vector<37x128xf32>
    %c14_182 = arith.constant 14 : index
    %c0_183 = arith.constant 0 : index
    %173 = vector.load %arg12[%c14_182, %c0_183] : memref<72x128xf32, #tpu.memory_space<vmem>>, vector<37x128xf32>
    %c14_184 = arith.constant 14 : index
    %c0_185 = arith.constant 0 : index
    %c0_186 = arith.constant 0 : index
    %174 = vector.load %arg7[%c14_184, %c0_185, %c0_186] : memref<36x128x128xf32, #tpu.memory_space<vmem>>, vector<1x128x128xf32>
    %175 = vector.shape_cast %174 : vector<1x128x128xf32> to vector<128x128xf32>
    %cst_187 = arith.constant dense<0.000000e+00> : vector<37x128xf32>
    %176 = tpu.matmul %173, %175, %cst_187 {dimension_numbers = #tpu.dot_dimension_numbers<[1], [0], [0], [1], [0, 0, 1, 1], [], []>} : vector<37x128xf32>, vector<128x128xf32>, vector<37x128xf32> -> vector<37x128xf32>
    %177 = arith.addf %172, %176 : vector<37x128xf32>
    %c15_188 = arith.constant 15 : index
    %c0_189 = arith.constant 0 : index
    %178 = vector.load %arg12[%c15_188, %c0_189] : memref<72x128xf32, #tpu.memory_space<vmem>>, vector<37x128xf32>
    %c15_190 = arith.constant 15 : index
    %c0_191 = arith.constant 0 : index
    %c0_192 = arith.constant 0 : index
    %179 = vector.load %arg7[%c15_190, %c0_191, %c0_192] : memref<36x128x128xf32, #tpu.memory_space<vmem>>, vector<1x128x128xf32>
    %180 = vector.shape_cast %179 : vector<1x128x128xf32> to vector<128x128xf32>
    %cst_193 = arith.constant dense<0.000000e+00> : vector<37x128xf32>
    %181 = tpu.matmul %178, %180, %cst_193 {dimension_numbers = #tpu.dot_dimension_numbers<[1], [0], [0], [1], [0, 0, 1, 1], [], []>} : vector<37x128xf32>, vector<128x128xf32>, vector<37x128xf32> -> vector<37x128xf32>
    %182 = arith.addf %177, %181 : vector<37x128xf32>
    %c16_194 = arith.constant 16 : index
    %c0_195 = arith.constant 0 : index
    %183 = vector.load %arg12[%c16_194, %c0_195] : memref<72x128xf32, #tpu.memory_space<vmem>>, vector<37x128xf32>
    %c16_196 = arith.constant 16 : index
    %c0_197 = arith.constant 0 : index
    %c0_198 = arith.constant 0 : index
    %184 = vector.load %arg7[%c16_196, %c0_197, %c0_198] : memref<36x128x128xf32, #tpu.memory_space<vmem>>, vector<1x128x128xf32>
    %185 = vector.shape_cast %184 : vector<1x128x128xf32> to vector<128x128xf32>
    %cst_199 = arith.constant dense<0.000000e+00> : vector<37x128xf32>
    %186 = tpu.matmul %183, %185, %cst_199 {dimension_numbers = #tpu.dot_dimension_numbers<[1], [0], [0], [1], [0, 0, 1, 1], [], []>} : vector<37x128xf32>, vector<128x128xf32>, vector<37x128xf32> -> vector<37x128xf32>
    %187 = arith.addf %182, %186 : vector<37x128xf32>
    %c17_200 = arith.constant 17 : index
    %c0_201 = arith.constant 0 : index
    %188 = vector.load %arg12[%c17_200, %c0_201] : memref<72x128xf32, #tpu.memory_space<vmem>>, vector<37x128xf32>
    %c17_202 = arith.constant 17 : index
    %c0_203 = arith.constant 0 : index
    %c0_204 = arith.constant 0 : index
    %189 = vector.load %arg7[%c17_202, %c0_203, %c0_204] : memref<36x128x128xf32, #tpu.memory_space<vmem>>, vector<1x128x128xf32>
    %190 = vector.shape_cast %189 : vector<1x128x128xf32> to vector<128x128xf32>
    %cst_205 = arith.constant dense<0.000000e+00> : vector<37x128xf32>
    %191 = tpu.matmul %188, %190, %cst_205 {dimension_numbers = #tpu.dot_dimension_numbers<[1], [0], [0], [1], [0, 0, 1, 1], [], []>} : vector<37x128xf32>, vector<128x128xf32>, vector<37x128xf32> -> vector<37x128xf32>
    %192 = arith.addf %187, %191 : vector<37x128xf32>
    %c18_206 = arith.constant 18 : index
    %c0_207 = arith.constant 0 : index
    %193 = vector.load %arg12[%c18_206, %c0_207] : memref<72x128xf32, #tpu.memory_space<vmem>>, vector<37x128xf32>
    %c18_208 = arith.constant 18 : index
    %c0_209 = arith.constant 0 : index
    %c0_210 = arith.constant 0 : index
    %194 = vector.load %arg7[%c18_208, %c0_209, %c0_210] : memref<36x128x128xf32, #tpu.memory_space<vmem>>, vector<1x128x128xf32>
    %195 = vector.shape_cast %194 : vector<1x128x128xf32> to vector<128x128xf32>
    %cst_211 = arith.constant dense<0.000000e+00> : vector<37x128xf32>
    %196 = tpu.matmul %193, %195, %cst_211 {dimension_numbers = #tpu.dot_dimension_numbers<[1], [0], [0], [1], [0, 0, 1, 1], [], []>} : vector<37x128xf32>, vector<128x128xf32>, vector<37x128xf32> -> vector<37x128xf32>
    %197 = arith.addf %192, %196 : vector<37x128xf32>
    %c19 = arith.constant 19 : index
    %c0_212 = arith.constant 0 : index
    %198 = vector.load %arg12[%c19, %c0_212] : memref<72x128xf32, #tpu.memory_space<vmem>>, vector<37x128xf32>
    %c19_213 = arith.constant 19 : index
    %c0_214 = arith.constant 0 : index
    %c0_215 = arith.constant 0 : index
    %199 = vector.load %arg7[%c19_213, %c0_214, %c0_215] : memref<36x128x128xf32, #tpu.memory_space<vmem>>, vector<1x128x128xf32>
    %200 = vector.shape_cast %199 : vector<1x128x128xf32> to vector<128x128xf32>
    %cst_216 = arith.constant dense<0.000000e+00> : vector<37x128xf32>
    %201 = tpu.matmul %198, %200, %cst_216 {dimension_numbers = #tpu.dot_dimension_numbers<[1], [0], [0], [1], [0, 0, 1, 1], [], []>} : vector<37x128xf32>, vector<128x128xf32>, vector<37x128xf32> -> vector<37x128xf32>
    %202 = arith.addf %197, %201 : vector<37x128xf32>
    %c20 = arith.constant 20 : index
    %c0_217 = arith.constant 0 : index
    %203 = vector.load %arg12[%c20, %c0_217] : memref<72x128xf32, #tpu.memory_space<vmem>>, vector<37x128xf32>
    %c20_218 = arith.constant 20 : index
    %c0_219 = arith.constant 0 : index
    %c0_220 = arith.constant 0 : index
    %204 = vector.load %arg7[%c20_218, %c0_219, %c0_220] : memref<36x128x128xf32, #tpu.memory_space<vmem>>, vector<1x128x128xf32>
    %205 = vector.shape_cast %204 : vector<1x128x128xf32> to vector<128x128xf32>
    %cst_221 = arith.constant dense<0.000000e+00> : vector<37x128xf32>
    %206 = tpu.matmul %203, %205, %cst_221 {dimension_numbers = #tpu.dot_dimension_numbers<[1], [0], [0], [1], [0, 0, 1, 1], [], []>} : vector<37x128xf32>, vector<128x128xf32>, vector<37x128xf32> -> vector<37x128xf32>
    %207 = arith.addf %202, %206 : vector<37x128xf32>
    %c21 = arith.constant 21 : index
    %c0_222 = arith.constant 0 : index
    %208 = vector.load %arg12[%c21, %c0_222] : memref<72x128xf32, #tpu.memory_space<vmem>>, vector<37x128xf32>
    %c21_223 = arith.constant 21 : index
    %c0_224 = arith.constant 0 : index
    %c0_225 = arith.constant 0 : index
    %209 = vector.load %arg7[%c21_223, %c0_224, %c0_225] : memref<36x128x128xf32, #tpu.memory_space<vmem>>, vector<1x128x128xf32>
    %210 = vector.shape_cast %209 : vector<1x128x128xf32> to vector<128x128xf32>
    %cst_226 = arith.constant dense<0.000000e+00> : vector<37x128xf32>
    %211 = tpu.matmul %208, %210, %cst_226 {dimension_numbers = #tpu.dot_dimension_numbers<[1], [0], [0], [1], [0, 0, 1, 1], [], []>} : vector<37x128xf32>, vector<128x128xf32>, vector<37x128xf32> -> vector<37x128xf32>
    %212 = arith.addf %207, %211 : vector<37x128xf32>
    %c22 = arith.constant 22 : index
    %c0_227 = arith.constant 0 : index
    %213 = vector.load %arg12[%c22, %c0_227] : memref<72x128xf32, #tpu.memory_space<vmem>>, vector<37x128xf32>
    %c22_228 = arith.constant 22 : index
    %c0_229 = arith.constant 0 : index
    %c0_230 = arith.constant 0 : index
    %214 = vector.load %arg7[%c22_228, %c0_229, %c0_230] : memref<36x128x128xf32, #tpu.memory_space<vmem>>, vector<1x128x128xf32>
    %215 = vector.shape_cast %214 : vector<1x128x128xf32> to vector<128x128xf32>
    %cst_231 = arith.constant dense<0.000000e+00> : vector<37x128xf32>
    %216 = tpu.matmul %213, %215, %cst_231 {dimension_numbers = #tpu.dot_dimension_numbers<[1], [0], [0], [1], [0, 0, 1, 1], [], []>} : vector<37x128xf32>, vector<128x128xf32>, vector<37x128xf32> -> vector<37x128xf32>
    %217 = arith.addf %212, %216 : vector<37x128xf32>
    %c23 = arith.constant 23 : index
    %c0_232 = arith.constant 0 : index
    %218 = vector.load %arg12[%c23, %c0_232] : memref<72x128xf32, #tpu.memory_space<vmem>>, vector<37x128xf32>
    %c23_233 = arith.constant 23 : index
    %c0_234 = arith.constant 0 : index
    %c0_235 = arith.constant 0 : index
    %219 = vector.load %arg7[%c23_233, %c0_234, %c0_235] : memref<36x128x128xf32, #tpu.memory_space<vmem>>, vector<1x128x128xf32>
    %220 = vector.shape_cast %219 : vector<1x128x128xf32> to vector<128x128xf32>
    %cst_236 = arith.constant dense<0.000000e+00> : vector<37x128xf32>
    %221 = tpu.matmul %218, %220, %cst_236 {dimension_numbers = #tpu.dot_dimension_numbers<[1], [0], [0], [1], [0, 0, 1, 1], [], []>} : vector<37x128xf32>, vector<128x128xf32>, vector<37x128xf32> -> vector<37x128xf32>
    %222 = arith.addf %217, %221 : vector<37x128xf32>
    %c24 = arith.constant 24 : index
    %c0_237 = arith.constant 0 : index
    %223 = vector.load %arg12[%c24, %c0_237] : memref<72x128xf32, #tpu.memory_space<vmem>>, vector<37x128xf32>
    %c24_238 = arith.constant 24 : index
    %c0_239 = arith.constant 0 : index
    %c0_240 = arith.constant 0 : index
    %224 = vector.load %arg7[%c24_238, %c0_239, %c0_240] : memref<36x128x128xf32, #tpu.memory_space<vmem>>, vector<1x128x128xf32>
    %225 = vector.shape_cast %224 : vector<1x128x128xf32> to vector<128x128xf32>
    %cst_241 = arith.constant dense<0.000000e+00> : vector<37x128xf32>
    %226 = tpu.matmul %223, %225, %cst_241 {dimension_numbers = #tpu.dot_dimension_numbers<[1], [0], [0], [1], [0, 0, 1, 1], [], []>} : vector<37x128xf32>, vector<128x128xf32>, vector<37x128xf32> -> vector<37x128xf32>
    %227 = arith.addf %222, %226 : vector<37x128xf32>
    %c25 = arith.constant 25 : index
    %c0_242 = arith.constant 0 : index
    %228 = vector.load %arg12[%c25, %c0_242] : memref<72x128xf32, #tpu.memory_space<vmem>>, vector<37x128xf32>
    %c25_243 = arith.constant 25 : index
    %c0_244 = arith.constant 0 : index
    %c0_245 = arith.constant 0 : index
    %229 = vector.load %arg7[%c25_243, %c0_244, %c0_245] : memref<36x128x128xf32, #tpu.memory_space<vmem>>, vector<1x128x128xf32>
    %230 = vector.shape_cast %229 : vector<1x128x128xf32> to vector<128x128xf32>
    %cst_246 = arith.constant dense<0.000000e+00> : vector<37x128xf32>
    %231 = tpu.matmul %228, %230, %cst_246 {dimension_numbers = #tpu.dot_dimension_numbers<[1], [0], [0], [1], [0, 0, 1, 1], [], []>} : vector<37x128xf32>, vector<128x128xf32>, vector<37x128xf32> -> vector<37x128xf32>
    %232 = arith.addf %227, %231 : vector<37x128xf32>
    %c26 = arith.constant 26 : index
    %c0_247 = arith.constant 0 : index
    %233 = vector.load %arg12[%c26, %c0_247] : memref<72x128xf32, #tpu.memory_space<vmem>>, vector<37x128xf32>
    %c26_248 = arith.constant 26 : index
    %c0_249 = arith.constant 0 : index
    %c0_250 = arith.constant 0 : index
    %234 = vector.load %arg7[%c26_248, %c0_249, %c0_250] : memref<36x128x128xf32, #tpu.memory_space<vmem>>, vector<1x128x128xf32>
    %235 = vector.shape_cast %234 : vector<1x128x128xf32> to vector<128x128xf32>
    %cst_251 = arith.constant dense<0.000000e+00> : vector<37x128xf32>
    %236 = tpu.matmul %233, %235, %cst_251 {dimension_numbers = #tpu.dot_dimension_numbers<[1], [0], [0], [1], [0, 0, 1, 1], [], []>} : vector<37x128xf32>, vector<128x128xf32>, vector<37x128xf32> -> vector<37x128xf32>
    %237 = arith.addf %232, %236 : vector<37x128xf32>
    %c27 = arith.constant 27 : index
    %c0_252 = arith.constant 0 : index
    %238 = vector.load %arg12[%c27, %c0_252] : memref<72x128xf32, #tpu.memory_space<vmem>>, vector<37x128xf32>
    %c27_253 = arith.constant 27 : index
    %c0_254 = arith.constant 0 : index
    %c0_255 = arith.constant 0 : index
    %239 = vector.load %arg7[%c27_253, %c0_254, %c0_255] : memref<36x128x128xf32, #tpu.memory_space<vmem>>, vector<1x128x128xf32>
    %240 = vector.shape_cast %239 : vector<1x128x128xf32> to vector<128x128xf32>
    %cst_256 = arith.constant dense<0.000000e+00> : vector<37x128xf32>
    %241 = tpu.matmul %238, %240, %cst_256 {dimension_numbers = #tpu.dot_dimension_numbers<[1], [0], [0], [1], [0, 0, 1, 1], [], []>} : vector<37x128xf32>, vector<128x128xf32>, vector<37x128xf32> -> vector<37x128xf32>
    %242 = arith.addf %237, %241 : vector<37x128xf32>
    %c28_257 = arith.constant 28 : index
    %c0_258 = arith.constant 0 : index
    %243 = vector.load %arg12[%c28_257, %c0_258] : memref<72x128xf32, #tpu.memory_space<vmem>>, vector<37x128xf32>
    %c28_259 = arith.constant 28 : index
    %c0_260 = arith.constant 0 : index
    %c0_261 = arith.constant 0 : index
    %244 = vector.load %arg7[%c28_259, %c0_260, %c0_261] : memref<36x128x128xf32, #tpu.memory_space<vmem>>, vector<1x128x128xf32>
    %245 = vector.shape_cast %244 : vector<1x128x128xf32> to vector<128x128xf32>
    %cst_262 = arith.constant dense<0.000000e+00> : vector<37x128xf32>
    %246 = tpu.matmul %243, %245, %cst_262 {dimension_numbers = #tpu.dot_dimension_numbers<[1], [0], [0], [1], [0, 0, 1, 1], [], []>} : vector<37x128xf32>, vector<128x128xf32>, vector<37x128xf32> -> vector<37x128xf32>
    %247 = arith.addf %242, %246 : vector<37x128xf32>
    %c29_263 = arith.constant 29 : index
    %c0_264 = arith.constant 0 : index
    %248 = vector.load %arg12[%c29_263, %c0_264] : memref<72x128xf32, #tpu.memory_space<vmem>>, vector<37x128xf32>
    %c29_265 = arith.constant 29 : index
    %c0_266 = arith.constant 0 : index
    %c0_267 = arith.constant 0 : index
    %249 = vector.load %arg7[%c29_265, %c0_266, %c0_267] : memref<36x128x128xf32, #tpu.memory_space<vmem>>, vector<1x128x128xf32>
    %250 = vector.shape_cast %249 : vector<1x128x128xf32> to vector<128x128xf32>
    %cst_268 = arith.constant dense<0.000000e+00> : vector<37x128xf32>
    %251 = tpu.matmul %248, %250, %cst_268 {dimension_numbers = #tpu.dot_dimension_numbers<[1], [0], [0], [1], [0, 0, 1, 1], [], []>} : vector<37x128xf32>, vector<128x128xf32>, vector<37x128xf32> -> vector<37x128xf32>
    %252 = arith.addf %247, %251 : vector<37x128xf32>
    %c30_269 = arith.constant 30 : index
    %c0_270 = arith.constant 0 : index
    %253 = vector.load %arg12[%c30_269, %c0_270] : memref<72x128xf32, #tpu.memory_space<vmem>>, vector<37x128xf32>
    %c30_271 = arith.constant 30 : index
    %c0_272 = arith.constant 0 : index
    %c0_273 = arith.constant 0 : index
    %254 = vector.load %arg7[%c30_271, %c0_272, %c0_273] : memref<36x128x128xf32, #tpu.memory_space<vmem>>, vector<1x128x128xf32>
    %255 = vector.shape_cast %254 : vector<1x128x128xf32> to vector<128x128xf32>
    %cst_274 = arith.constant dense<0.000000e+00> : vector<37x128xf32>
    %256 = tpu.matmul %253, %255, %cst_274 {dimension_numbers = #tpu.dot_dimension_numbers<[1], [0], [0], [1], [0, 0, 1, 1], [], []>} : vector<37x128xf32>, vector<128x128xf32>, vector<37x128xf32> -> vector<37x128xf32>
    %257 = arith.addf %252, %256 : vector<37x128xf32>
    %c31 = arith.constant 31 : index
    %c0_275 = arith.constant 0 : index
    %258 = vector.load %arg12[%c31, %c0_275] : memref<72x128xf32, #tpu.memory_space<vmem>>, vector<37x128xf32>
    %c31_276 = arith.constant 31 : index
    %c0_277 = arith.constant 0 : index
    %c0_278 = arith.constant 0 : index
    %259 = vector.load %arg7[%c31_276, %c0_277, %c0_278] : memref<36x128x128xf32, #tpu.memory_space<vmem>>, vector<1x128x128xf32>
    %260 = vector.shape_cast %259 : vector<1x128x128xf32> to vector<128x128xf32>
    %cst_279 = arith.constant dense<0.000000e+00> : vector<37x128xf32>
    %261 = tpu.matmul %258, %260, %cst_279 {dimension_numbers = #tpu.dot_dimension_numbers<[1], [0], [0], [1], [0, 0, 1, 1], [], []>} : vector<37x128xf32>, vector<128x128xf32>, vector<37x128xf32> -> vector<37x128xf32>
    %262 = arith.addf %257, %261 : vector<37x128xf32>
    %c32_280 = arith.constant 32 : index
    %c0_281 = arith.constant 0 : index
    %263 = vector.load %arg12[%c32_280, %c0_281] : memref<72x128xf32, #tpu.memory_space<vmem>>, vector<37x128xf32>
    %c32_282 = arith.constant 32 : index
    %c0_283 = arith.constant 0 : index
    %c0_284 = arith.constant 0 : index
    %264 = vector.load %arg7[%c32_282, %c0_283, %c0_284] : memref<36x128x128xf32, #tpu.memory_space<vmem>>, vector<1x128x128xf32>
    %265 = vector.shape_cast %264 : vector<1x128x128xf32> to vector<128x128xf32>
    %cst_285 = arith.constant dense<0.000000e+00> : vector<37x128xf32>
    %266 = tpu.matmul %263, %265, %cst_285 {dimension_numbers = #tpu.dot_dimension_numbers<[1], [0], [0], [1], [0, 0, 1, 1], [], []>} : vector<37x128xf32>, vector<128x128xf32>, vector<37x128xf32> -> vector<37x128xf32>
    %267 = arith.addf %262, %266 : vector<37x128xf32>
    %c33_286 = arith.constant 33 : index
    %c0_287 = arith.constant 0 : index
    %268 = vector.load %arg12[%c33_286, %c0_287] : memref<72x128xf32, #tpu.memory_space<vmem>>, vector<37x128xf32>
    %c33_288 = arith.constant 33 : index
    %c0_289 = arith.constant 0 : index
    %c0_290 = arith.constant 0 : index
    %269 = vector.load %arg7[%c33_288, %c0_289, %c0_290] : memref<36x128x128xf32, #tpu.memory_space<vmem>>, vector<1x128x128xf32>
    %270 = vector.shape_cast %269 : vector<1x128x128xf32> to vector<128x128xf32>
    %cst_291 = arith.constant dense<0.000000e+00> : vector<37x128xf32>
    %271 = tpu.matmul %268, %270, %cst_291 {dimension_numbers = #tpu.dot_dimension_numbers<[1], [0], [0], [1], [0, 0, 1, 1], [], []>} : vector<37x128xf32>, vector<128x128xf32>, vector<37x128xf32> -> vector<37x128xf32>
    %272 = arith.addf %267, %271 : vector<37x128xf32>
    %c34_292 = arith.constant 34 : index
    %c0_293 = arith.constant 0 : index
    %273 = vector.load %arg12[%c34_292, %c0_293] : memref<72x128xf32, #tpu.memory_space<vmem>>, vector<37x128xf32>
    %c34_294 = arith.constant 34 : index
    %c0_295 = arith.constant 0 : index
    %c0_296 = arith.constant 0 : index
    %274 = vector.load %arg7[%c34_294, %c0_295, %c0_296] : memref<36x128x128xf32, #tpu.memory_space<vmem>>, vector<1x128x128xf32>
    %275 = vector.shape_cast %274 : vector<1x128x128xf32> to vector<128x128xf32>
    %cst_297 = arith.constant dense<0.000000e+00> : vector<37x128xf32>
    %276 = tpu.matmul %273, %275, %cst_297 {dimension_numbers = #tpu.dot_dimension_numbers<[1], [0], [0], [1], [0, 0, 1, 1], [], []>} : vector<37x128xf32>, vector<128x128xf32>, vector<37x128xf32> -> vector<37x128xf32>
    %277 = arith.addf %272, %276 : vector<37x128xf32>
    %c35 = arith.constant 35 : index
    %c0_298 = arith.constant 0 : index
    %278 = vector.load %arg12[%c35, %c0_298] : memref<72x128xf32, #tpu.memory_space<vmem>>, vector<37x128xf32>
    %c35_299 = arith.constant 35 : index
    %c0_300 = arith.constant 0 : index
    %c0_301 = arith.constant 0 : index
    %279 = vector.load %arg7[%c35_299, %c0_300, %c0_301] : memref<36x128x128xf32, #tpu.memory_space<vmem>>, vector<1x128x128xf32>
    %280 = vector.shape_cast %279 : vector<1x128x128xf32> to vector<128x128xf32>
    %cst_302 = arith.constant dense<0.000000e+00> : vector<37x128xf32>
    %281 = tpu.matmul %278, %280, %cst_302 {dimension_numbers = #tpu.dot_dimension_numbers<[1], [0], [0], [1], [0, 0, 1, 1], [], []>} : vector<37x128xf32>, vector<128x128xf32>, vector<37x128xf32> -> vector<37x128xf32>
    %282 = arith.addf %277, %281 : vector<37x128xf32>
    %c0_303 = arith.constant 0 : index
    %c0_304 = arith.constant 0 : index
    %283 = vector.load %arg9[%c0_303, %c0_304] : memref<2x37xf32, #tpu.memory_space<vmem>>, vector<2x37xf32>
    %cst_305 = arith.constant dense<0.000000e+00> : vector<2x128xf32>
    %284 = tpu.matmul %283, %282, %cst_305 {dimension_numbers = #tpu.dot_dimension_numbers<[1], [0], [0], [1], [0, 0, 1, 1], [], []>} : vector<2x37xf32>, vector<37x128xf32>, vector<2x128xf32> -> vector<2x128xf32>
    %c0_306 = arith.constant 0 : index
    %c0_307 = arith.constant 0 : index
    %285 = vector.load %arg8[%c0_306, %c0_307] : memref<1x128xf32, #tpu.memory_space<vmem>>, vector<1x128xf32>
    %286 = vector.broadcast %285 : vector<1x128xf32> to vector<2x128xf32>
    %287 = arith.addf %284, %286 : vector<2x128xf32>
    %c0_308 = arith.constant 0 : index
    %c0_309 = arith.constant 0 : index
    %288 = vector.load %arg10[%c0_308, %c0_309] : memref<2x128xf32, #tpu.memory_space<vmem>>, vector<2x128xf32>
    tpu.vector_store %arg10[%c0_308, %c0_309], %287 {strides = array<i32>} : memref<2x128xf32, #tpu.memory_space<vmem>>, vector<2x128xf32>,
    return
  }
}

</mosaic_0001>

<llo_original>
// kernel: net_forward.1
$region0: #{net_forward.1}
  #allocation0 [shape = 'u32[]', space=smem, size = 0x4, offset = 0x4, fixed_abs, tag = 'smem constant byte address 0x4 - core index']
  #allocation1 [shape = 'u32[72,128]{1,0:T(1,128)}', space=vmem, size = 0x9000, scoped, tag = 'internal scratch']
  #allocation2 [shape = 'f32[392,128]{1,0:T(8,128)}', space=vmem, size = 0x31000, scoped, tag = 'scratch operand']
  #allocation3 [shape = 'f32[72,128]{1,0:T(8,128)}', space=vmem, size = 0x9000, scoped, tag = 'scratch operand']
  %s0 = inlined_call_operand.vmem [shape: f32[512,128], index: 0, kind: input, shape index: {}]
  %s1 = inlined_call_operand.hbm [shape: f32[9,128,128], index: 1, kind: input, shape index: {}]
  %s2 = inlined_call_operand.hbm [shape: f32[1,128], index: 2, kind: input, shape index: {}]
  %s3 = inlined_call_operand.hbm [shape: f32[392,478], index: 3, kind: input, shape index: {}]
  %s4 = inlined_call_operand.hbm [shape: f32[9,128,128], index: 4, kind: input, shape index: {}]
  %s5 = inlined_call_operand.hbm [shape: f32[1,128], index: 5, kind: input, shape index: {}]
  %s6 = inlined_call_operand.hbm [shape: f32[72,362], index: 6, kind: input, shape index: {}]
  %s7 = inlined_call_operand.hbm [shape: f32[36,128,128], index: 7, kind: input, shape index: {}]
  %s8 = inlined_call_operand.hbm [shape: f32[1,128], index: 8, kind: input, shape index: {}]
  %s9 = inlined_call_operand.hbm [shape: f32[2,37], index: 9, kind: input, shape index: {}]
  %s10 = inlined_call_operand.hbm [shape: f32[2,128], index: 10, kind: output, shape index: {}]
  %s11 = sld [smem:[#allocation0]]
  $region86: #{net_forward.1} parent=0
    _
  %s13 = ssub.s32 1, %s11
  %s14 = scalar_select 0, %s13, %s11
  $region1: #{net_forward.1} parent=0
    #allocation4 [shape = 'u8[589824]{0}', space=vmem, size = 0x90000, scoped, tag = 'input window, operand 1, single buffered']
    #allocation5 [shape = 's32[1]{0}', space=sflag, size = 0x4, scoped, tag = 'scoped memory for net_forward.1']
    #allocation6 [shape = 's32[1]{0}', space=sflag, size = 0x4, scoped, tag = 'scoped memory for net_forward.1']
    #allocation7 [shape = 'u8[512]{0}', space=vmem, size = 0x400, scoped, tag = 'input window, operand 2, single buffered']
    #allocation8 [shape = 's32[1]{0}', space=sflag, size = 0x4, scoped, tag = 'scoped memory for net_forward.1']
    #allocation9 [shape = 'u8[802816]{0}', space=vmem, size = 0xc4000, scoped, tag = 'input window, operand 3, single buffered']
    #allocation10 [shape = 'u8[589824]{0}', space=vmem, size = 0x90000, scoped, tag = 'input window, operand 4, single buffered']
    #allocation11 [shape = 's32[1]{0}', space=sflag, size = 0x4, scoped, tag = 'scoped memory for net_forward.1']
    #allocation12 [shape = 'u8[512]{0}', space=vmem, size = 0x400, scoped, tag = 'input window, operand 5, single buffered']
    #allocation13 [shape = 'u8[110592]{0}', space=vmem, size = 0x1b000, scoped, tag = 'input window, operand 6, single buffered']
    #allocation14 [shape = 's32[1]{0}', space=sflag, size = 0x4, scoped, tag = 'scoped memory for net_forward.1']
    #allocation15 [shape = 'u8[2359296]{0}', space=vmem, size = 0x240000, scoped, tag = 'input window, operand 7, single buffered']
    #allocation16 [shape = 'u8[512]{0}', space=vmem, size = 0x400, scoped, tag = 'input window, operand 8, single buffered']
    #allocation17 [shape = 's32[1]{0}', space=sflag, size = 0x4, scoped, tag = 'scoped memory for net_forward.1']
    #allocation18 [shape = 'u8[1024]{0}', space=vmem, size = 0x400, scoped, tag = 'input window, operand 9, single buffered']
    #allocation19 [shape = 'u8[1024]{0}', space=vmem, size = 0x400, scoped, tag = 'output window, operand 0, single buffered']
    %15 = vsyncpa [#allocation5], 0
    %16 = vsyncpa [#allocation8], 0
    %17 = vsyncpa [#allocation11], 0
    %18 = vsyncpa [#allocation14], 0
    %19 = vsyncpa [#allocation17], 0
    %20 = vsyncpa [#allocation6], 0
    // Predicated region
    $region2: #{net_forward.1} parent=1 // pred_check
      _
    $region3: #{net_forward.1} parent=1 // pred_check_branch
      %22 = sbr.rel (0) target = $region5
    $region4: #{net_forward.1} parent=1 // pred_region
      _
    $region5: #{net_forward.1} parent=1 // pred_fallthru
      _
    // Predicated region
    $region6: #{net_forward.1} parent=1 // pred_check
      _
    $region7: #{net_forward.1} parent=1 // pred_check_branch
      %24 = sbr.rel (0) target = $region9
    $region8: #{net_forward.1} parent=1 // pred_region
      %26 = vsyncadd [#allocation5], 0
      %s27 = sshll.u32 %s1, 4
      %s28 = int_to_ptr.hbm [resolvable:$true] %s27
      %s29 = sshll.u32 [#allocation4], 4
      %s30 = int_to_ptr.vmem [resolvable:$true] %s29
      %35 = dma.hbm_to_vmem [thread:$0]  %s28, 18432, %s30, [#allocation5], 128, 128, 8
    $region9: #{net_forward.1} parent=1 // pred_fallthru
      _
    // Predicated region
    $region10: #{net_forward.1} parent=1 // pred_check
      _
    $region11: #{net_forward.1} parent=1 // pred_check_branch
      %37 = sbr.rel (0) target = $region13
    $region12: #{net_forward.1} parent=1 // pred_region
      %39 = vsyncadd [#allocation8], 0
      %s41 = sshll.u32 %s2, 4
      %s42 = int_to_ptr.hbm [resolvable:$true] %s41
      %s43 = sshll.u32 [#allocation7], 4
      %s44 = int_to_ptr.vmem [resolvable:$true] %s43
      %46 = dma.hbm_to_vmem [thread:$0]  %s42, 16, %s44, [#allocation8]
    $region13: #{net_forward.1} parent=1 // pred_fallthru
      _
    // Predicated region
    $region14: #{net_forward.1} parent=1 // pred_check
      _
    $region15: #{net_forward.1} parent=1 // pred_check_branch
      %48 = sbr.rel (0) target = $region17
    $region16: #{net_forward.1} parent=1 // pred_region
      %50 = vsyncadd [#allocation8], 0
      %s51 = sshll.u32 %s3, 4
      %s52 = int_to_ptr.hbm [resolvable:$true] %s51
      %s53 = sshll.u32 [#allocation9], 4
      %s54 = int_to_ptr.vmem [resolvable:$true] %s53
      %59 = dma.hbm_to_vmem [thread:$0]  %s52, 25088, %s54, [#allocation8], 512, 512, 32
    $region17: #{net_forward.1} parent=1 // pred_fallthru
      _
    // Predicated region
    $region18: #{net_forward.1} parent=1 // pred_check
      _
    $region19: #{net_forward.1} parent=1 // pred_check_branch
      %61 = sbr.rel (0) target = $region21
    $region20: #{net_forward.1} parent=1 // pred_region
      %63 = vsyncadd [#allocation11], 0
      %s64 = sshll.u32 %s4, 4
      %s65 = int_to_ptr.hbm [resolvable:$true] %s64
      %s66 = sshll.u32 [#allocation10], 4
      %s67 = int_to_ptr.vmem [resolvable:$true] %s66
      %72 = dma.hbm_to_vmem [thread:$0]  %s65, 18432, %s67, [#allocation11], 128, 128, 8
    $region21: #{net_forward.1} parent=1 // pred_fallthru
      _
    // Predicated region
    $region22: #{net_forward.1} parent=1 // pred_check
      _
    $region23: #{net_forward.1} parent=1 // pred_check_branch
      %74 = sbr.rel (0) target = $region25
    $region24: #{net_forward.1} parent=1 // pred_region
      %76 = vsyncadd [#allocation11], 0
      %s78 = sshll.u32 %s5, 4
      %s79 = int_to_ptr.hbm [resolvable:$true] %s78
      %s80 = sshll.u32 [#allocation12], 4
      %s81 = int_to_ptr.vmem [resolvable:$true] %s80
      %83 = dma.hbm_to_vmem [thread:$0]  %s79, 16, %s81, [#allocation11]
    $region25: #{net_forward.1} parent=1 // pred_fallthru
      _
    // Predicated region
    $region26: #{net_forward.1} parent=1 // pred_check
      _
    $region27: #{net_forward.1} parent=1 // pred_check_branch
      %85 = sbr.rel (0) target = $region29
    $region28: #{net_forward.1} parent=1 // pred_region
      %87 = vsyncadd [#allocation14], 0
      %s88 = sshll.u32 %s6, 4
      %s89 = int_to_ptr.hbm [resolvable:$true] %s88
      %s90 = sshll.u32 [#allocation13], 4
      %s91 = int_to_ptr.vmem [resolvable:$true] %s90
      %96 = dma.hbm_to_vmem [thread:$0]  %s89, 3456, %s91, [#allocation14], 384, 384, 24
    $region29: #{net_forward.1} parent=1 // pred_fallthru
      _
    // Predicated region
    $region30: #{net_forward.1} parent=1 // pred_check
      _
    $region31: #{net_forward.1} parent=1 // pred_check_branch
      %98 = sbr.rel (0) target = $region33
    $region32: #{net_forward.1} parent=1 // pred_region
      %100 = vsyncadd [#allocation14], 0
      %s101 = sshll.u32 %s7, 4
      %s102 = int_to_ptr.hbm [resolvable:$true] %s101
      %s103 = sshll.u32 [#allocation15], 4
      %s104 = int_to_ptr.vmem [resolvable:$true] %s103
      %109 = dma.hbm_to_vmem [thread:$0]  %s102, 73728, %s104, [#allocation14], 128, 128, 8
    $region33: #{net_forward.1} parent=1 // pred_fallthru
      _
    // Predicated region
    $region34: #{net_forward.1} parent=1 // pred_check
      _
    $region35: #{net_forward.1} parent=1 // pred_check_branch
      %111 = sbr.rel (0) target = $region37
    $region36: #{net_forward.1} parent=1 // pred_region
      %113 = vsyncadd [#allocation17], 0
      %s115 = sshll.u32 %s8, 4
      %s116 = int_to_ptr.hbm [resolvable:$true] %s115
      %s117 = sshll.u32 [#allocation16], 4
      %s118 = int_to_ptr.vmem [resolvable:$true] %s117
      %120 = dma.hbm_to_vmem [thread:$0]  %s116, 16, %s118, [#allocation17]
    $region37: #{net_forward.1} parent=1 // pred_fallthru
      _
    // Predicated region
    $region38: #{net_forward.1} parent=1 // pred_check
      _
    $region39: #{net_forward.1} parent=1 // pred_check_branch
      %122 = sbr.rel (0) target = $region41
    $region40: #{net_forward.1} parent=1 // pred_region
      %124 = vsyncadd [#allocation17], 0
      %s126 = sshll.u32 %s9, 4
      %s127 = int_to_ptr.hbm [resolvable:$true] %s126
      %s128 = sshll.u32 [#allocation18], 4
      %s129 = int_to_ptr.vmem [resolvable:$true] %s128
      %131 = dma.hbm_to_vmem [thread:$0]  %s127, 32, %s129, [#allocation17]
    $region41: #{net_forward.1} parent=1 // pred_fallthru
      _
    // Predicated region
    $region42: #{net_forward.1} parent=1 // pred_check
      _
    $region43: #{net_forward.1} parent=1 // pred_check_branch
      %133 = sbr.rel (0) target = $region45
    $region44: #{net_forward.1} parent=1 // pred_region
      %135 = dma.done [#allocation5], 18432
    $region45: #{net_forward.1} parent=1 // pred_fallthru
      _
    // Predicated region
    $region46: #{net_forward.1} parent=1 // pred_check
      _
    $region47: #{net_forward.1} parent=1 // pred_check_branch
      %137 = sbr.rel (0) target = $region49
    $region48: #{net_forward.1} parent=1 // pred_region
      %139 = dma.done [#allocation8], 16
    $region49: #{net_forward.1} parent=1 // pred_fallthru
      _
    // Predicated region
    $region50: #{net_forward.1} parent=1 // pred_check
      _
    $region51: #{net_forward.1} parent=1 // pred_check_branch
      %141 = sbr.rel (0) target = $region53
    $region52: #{net_forward.1} parent=1 // pred_region
      %143 = dma.done [#allocation8], 25088
    $region53: #{net_forward.1} parent=1 // pred_fallthru
      _
    // Predicated region
    $region54: #{net_forward.1} parent=1 // pred_check
      _
    $region55: #{net_forward.1} parent=1 // pred_check_branch
      %145 = sbr.rel (0) target = $region57
    $region56: #{net_forward.1} parent=1 // pred_region
      %147 = dma.done [#allocation11], 18432
    $region57: #{net_forward.1} parent=1 // pred_fallthru
      _
    // Predicated region
    $region58: #{net_forward.1} parent=1 // pred_check
      _
    $region59: #{net_forward.1} parent=1 // pred_check_branch
      %149 = sbr.rel (0) target = $region61
    $region60: #{net_forward.1} parent=1 // pred_region
      %151 = dma.done [#allocation11], 16
    $region61: #{net_forward.1} parent=1 // pred_fallthru
      _
    // Predicated region
    $region62: #{net_forward.1} parent=1 // pred_check
      _
    $region63: #{net_forward.1} parent=1 // pred_check_branch
      %153 = sbr.rel (0) target = $region65
    $region64: #{net_forward.1} parent=1 // pred_region
      %155 = dma.done [#allocation14], 3456
    $region65: #{net_forward.1} parent=1 // pred_fallthru
      _
    // Predicated region
    $region66: #{net_forward.1} parent=1 // pred_check
      _
    $region67: #{net_forward.1} parent=1 // pred_check_branch
      %157 = sbr.rel (0) target = $region69
    $region68: #{net_forward.1} parent=1 // pred_region
      %159 = dma.done [#allocation14], 73728
    $region69: #{net_forward.1} parent=1 // pred_fallthru
      _
    // Predicated region
    $region70: #{net_forward.1} parent=1 // pred_check
      _
    $region71: #{net_forward.1} parent=1 // pred_check_branch
      %161 = sbr.rel (0) target = $region73
    $region72: #{net_forward.1} parent=1 // pred_region
      %163 = dma.done [#allocation17], 16
    $region73: #{net_forward.1} parent=1 // pred_fallthru
      _
    // Predicated region
    $region74: #{net_forward.1} parent=1 // pred_check
      _
    $region75: #{net_forward.1} parent=1 // pred_check_branch
      %165 = sbr.rel (0) target = $region77
    $region76: #{net_forward.1} parent=1 // pred_region
      %167 = dma.done [#allocation17], 32
    $region77: #{net_forward.1} parent=1 // pred_fallthru
      _
    %v168 = vld [vmem:[%s0] sm:$0xff]
    %v169 = vld [vmem:[%s0 + $0x8] sm:$0xff]
    %v170 = vld [vmem:[%s0 + $0x10] sm:$0xff]
    %v171 = vld [vmem:[%s0 + $0x18] sm:$0xff]
    %v172 = vld [vmem:[%s0 + $0x20] sm:$0xff]
    %v173 = vld [vmem:[%s0 + $0x28] sm:$0xff]
    %v174 = vld [vmem:[%s0 + $0x30] sm:$0xff]
    %v175 = vld [vmem:[%s0 + $0x38] sm:$0xff]
    %v176 = vld [vmem:[%s0 + $0x40] sm:$0xff]
    %v177 = vld [vmem:[%s0 + $0x48] sm:$0xff]
    %v178 = vld [vmem:[%s0 + $0x50] sm:$0xff]
    %v179 = vld [vmem:[%s0 + $0x58] sm:$0xff]
    %v180 = vld [vmem:[%s0 + $0x60] sm:$0xff]
    %v181 = vld [vmem:[%s0 + $0x68] sm:$0xff]
    %v182 = vld [vmem:[%s0 + $0x70] sm:$0xff]
    %v183 = vld [vmem:[%s0 + $0x78] sm:$0xff]
    %v184 = vld [vmem:[%s0 + $0x80] sm:$0xff]
    %v185 = vld [vmem:[%s0 + $0x88] sm:$0xff]
    %v186 = vld [vmem:[%s0 + $0x90] sm:$0xff]
    %v187 = vld [vmem:[%s0 + $0x98] sm:$0xff]
    %v188 = vld [vmem:[%s0 + $0xa0] sm:$0xff]
    %v189 = vld [vmem:[%s0 + $0xa8] sm:$0xff]
    %v190 = vld [vmem:[%s0 + $0xb0] sm:$0xff]
    %v191 = vld [vmem:[%s0 + $0xb8] sm:$0xff]
    %v192 = vld [vmem:[%s0 + $0xc0] sm:$0xff]
    %v193 = vld [vmem:[%s0 + $0xc8] sm:$0xff]
    %v194 = vld [vmem:[%s0 + $0xd0] sm:$0xff]
    %v195 = vld [vmem:[%s0 + $0xd8] sm:$0xff]
    %v196 = vld [vmem:[%s0 + $0xe0] sm:$0xff]
    %v197 = vld [vmem:[%s0 + $0xe8] sm:$0xff]
    %v198 = vld [vmem:[%s0 + $0xf0] sm:$0xff]
    %v199 = vld [vmem:[%s0 + $0xf8] sm:$0xff]
    %v200 = vld [vmem:[%s0 + $0x100] sm:$0xff]
    %v201 = vld [vmem:[%s0 + $0x108] sm:$0xff]
    %v202 = vld [vmem:[%s0 + $0x110] sm:$0xff]
    %v203 = vld [vmem:[%s0 + $0x118] sm:$0xff]
    %v204 = vld [vmem:[%s0 + $0x120] sm:$0xff]
    %v205 = vld [vmem:[%s0 + $0x128] sm:$0xff]
    %v206 = vld [vmem:[%s0 + $0x130] sm:$0xff]
    %v207 = vld [vmem:[%s0 + $0x138] sm:$0xff]
    %v208 = vld [vmem:[%s0 + $0x140] sm:$0xff]
    %v209 = vld [vmem:[%s0 + $0x148] sm:$0xff]
    %v210 = vld [vmem:[%s0 + $0x150] sm:$0xff]
    %v211 = vld [vmem:[%s0 + $0x158] sm:$0xff]
    %v212 = vld [vmem:[%s0 + $0x160] sm:$0xff]
    %v213 = vld [vmem:[%s0 + $0x168] sm:$0xff]
    %v214 = vld [vmem:[%s0 + $0x170] sm:$0xff]
    %v215 = vld [vmem:[%s0 + $0x178] sm:$0xff]
    %v216 = vld [vmem:[%s0 + $0x180] sm:$0xff]
    %v217 = vld [vmem:[%s0 + $0x188] sm:$0xff]
    %v218 = vld [vmem:[%s0 + $0x190] sm:$0xff]
    %v219 = vld [vmem:[%s0 + $0x198] sm:$0xff]
    %v220 = vld [vmem:[%s0 + $0x1a0] sm:$0xff]
    %v221 = vld [vmem:[%s0 + $0x1a8] sm:$0xff]
    %v222 = vld [vmem:[%s0 + $0x1b0] sm:$0xff]
    %v223 = vld [vmem:[%s0 + $0x1b8] sm:$0xff]
    %v224 = vld [vmem:[%s0 + $0x1c0] sm:$0xff]
    %v225 = vld [vmem:[%s0 + $0x1c8] sm:$0xff]
    %v226 = vld [vmem:[%s0 + $0x1d0] sm:$0xff]
    %v227 = vld [vmem:[%s0 + $0x1d8] sm:$0x3f]
    %v228 = vld [vmem:[#allocation4] sm:$0xff]
    %v229 = vld [vmem:[#allocation4 + $0x8] sm:$0xff]
    %v230 = vld [vmem:[#allocation4 + $0x10] sm:$0xff]
    %v231 = vld [vmem:[#allocation4 + $0x18] sm:$0xff]
    %v232 = vld [vmem:[#allocation4 + $0x20] sm:$0xff]
    %v233 = vld [vmem:[#allocation4 + $0x28] sm:$0xff]
    %v234 = vld [vmem:[#allocation4 + $0x30] sm:$0xff]
    %v235 = vld [vmem:[#allocation4 + $0x38] sm:$0xff]
    %v236 = vld [vmem:[#allocation4 + $0x40] sm:$0xff]
    %v237 = vld [vmem:[#allocation4 + $0x48] sm:$0xff]
    %v238 = vld [vmem:[#allocation4 + $0x50] sm:$0xff]
    %v239 = vld [vmem:[#allocation4 + $0x58] sm:$0xff]
    %v240 = vld [vmem:[#allocation4 + $0x60] sm:$0xff]
    %v241 = vld [vmem:[#allocation4 + $0x68] sm:$0xff]
    %v242 = vld [vmem:[#allocation4 + $0x70] sm:$0xff]
    %v243 = vld [vmem:[#allocation4 + $0x78] sm:$0xff]
    %v244 = vld [vmem:[%s0 + $0x1] sm:$0xff]
    %v245 = vld [vmem:[%s0 + $0x9] sm:$0xff]
    %v246 = vld [vmem:[%s0 + $0x11] sm:$0xff]
    %v247 = vld [vmem:[%s0 + $0x19] sm:$0xff]
    %v248 = vld [vmem:[%s0 + $0x21] sm:$0xff]
    %v249 = vld [vmem:[%s0 + $0x29] sm:$0xff]
    %v250 = vld [vmem:[%s0 + $0x31] sm:$0xff]
    %v251 = vld [vmem:[%s0 + $0x39] sm:$0xff]
    %v252 = vld [vmem:[%s0 + $0x41] sm:$0xff]
    %v253 = vld [vmem:[%s0 + $0x49] sm:$0xff]
    %v254 = vld [vmem:[%s0 + $0x51] sm:$0xff]
    %v255 = vld [vmem:[%s0 + $0x59] sm:$0xff]
    %v256 = vld [vmem:[%s0 + $0x61] sm:$0xff]
    %v257 = vld [vmem:[%s0 + $0x69] sm:$0xff]
    %v258 = vld [vmem:[%s0 + $0x71] sm:$0xff]
    %v259 = vld [vmem:[%s0 + $0x79] sm:$0xff]
    %v260 = vld [vmem:[%s0 + $0x81] sm:$0xff]
    %v261 = vld [vmem:[%s0 + $0x89] sm:$0xff]
    %v262 = vld [vmem:[%s0 + $0x91] sm:$0xff]
    %v263 = vld [vmem:[%s0 + $0x99] sm:$0xff]
    %v264 = vld [vmem:[%s0 + $0xa1] sm:$0xff]
    %v265 = vld [vmem:[%s0 + $0xa9] sm:$0xff]
    %v266 = vld [vmem:[%s0 + $0xb1] sm:$0xff]
    %v267 = vld [vmem:[%s0 + $0xb9] sm:$0xff]
    %v268 = vld [vmem:[%s0 + $0xc1] sm:$0xff]
    %v269 = vld [vmem:[%s0 + $0xc9] sm:$0xff]
    %v270 = vld [vmem:[%s0 + $0xd1] sm:$0xff]
    %v271 = vld [vmem:[%s0 + $0xd9] sm:$0xff]
    %v272 = vld [vmem:[%s0 + $0xe1] sm:$0xff]
    %v273 = vld [vmem:[%s0 + $0xe9] sm:$0xff]
    %v274 = vld [vmem:[%s0 + $0xf1] sm:$0xff]
    %v275 = vld [vmem:[%s0 + $0xf9] sm:$0xff]
    %v276 = vld [vmem:[%s0 + $0x101] sm:$0xff]
    %v277 = vld [vmem:[%s0 + $0x109] sm:$0xff]
    %v278 = vld [vmem:[%s0 + $0x111] sm:$0xff]
    %v279 = vld [vmem:[%s0 + $0x119] sm:$0xff]
    %v280 = vld [vmem:[%s0 + $0x121] sm:$0xff]
    %v281 = vld [vmem:[%s0 + $0x129] sm:$0xff]
    %v282 = vld [vmem:[%s0 + $0x131] sm:$0xff]
    %v283 = vld [vmem:[%s0 + $0x139] sm:$0xff]
    %v284 = vld [vmem:[%s0 + $0x141] sm:$0xff]
    %v285 = vld [vmem:[%s0 + $0x149] sm:$0xff]
    %v286 = vld [vmem:[%s0 + $0x151] sm:$0xff]
    %v287 = vld [vmem:[%s0 + $0x159] sm:$0xff]
    %v288 = vld [vmem:[%s0 + $0x161] sm:$0xff]
    %v289 = vld [vmem:[%s0 + $0x169] sm:$0xff]
    %v290 = vld [vmem:[%s0 + $0x171] sm:$0xff]
    %v291 = vld [vmem:[%s0 + $0x179] sm:$0xff]
    %v292 = vld [vmem:[%s0 + $0x181] sm:$0xff]
    %v293 = vld [vmem:[%s0 + $0x189] sm:$0xff]
    %v294 = vld [vmem:[%s0 + $0x191] sm:$0xff]
    %v295 = vld [vmem:[%s0 + $0x199] sm:$0xff]
    %v296 = vld [vmem:[%s0 + $0x1a1] sm:$0xff]
    %v297 = vld [vmem:[%s0 + $0x1a9] sm:$0xff]
    %v298 = vld [vmem:[%s0 + $0x1b1] sm:$0xff]
    %v299 = vld [vmem:[%s0 + $0x1b9] sm:$0xff]
    %v300 = vld [vmem:[%s0 + $0x1c1] sm:$0xff]
    %v301 = vld [vmem:[%s0 + $0x1c9] sm:$0xff]
    %v302 = vld [vmem:[%s0 + $0x1d1] sm:$0xff]
    %v303 = vld [vmem:[%s0 + $0x1d9] sm:$0x3f]
    %s304 = scalar_lea.vmem [#allocation4], 128
    %v305 = vld [vmem:[%s304] sm:$0xff]
    %v306 = vld [vmem:[%s304 + $0x8] sm:$0xff]
    %v307 = vld [vmem:[%s304 + $0x10] sm:$0xff]
    %v308 = vld [vmem:[%s304 + $0x18] sm:$0xff]
    %v309 = vld [vmem:[%s304 + $0x20] sm:$0xff]
    %v310 = vld [vmem:[%s304 + $0x28] sm:$0xff]
    %v311 = vld [vmem:[%s304 + $0x30] sm:$0xff]
    %v312 = vld [vmem:[%s304 + $0x38] sm:$0xff]
    %v313 = vld [vmem:[%s304 + $0x40] sm:$0xff]
    %v314 = vld [vmem:[%s304 + $0x48] sm:$0xff]
    %v315 = vld [vmem:[%s304 + $0x50] sm:$0xff]
    %v316 = vld [vmem:[%s304 + $0x58] sm:$0xff]
    %v317 = vld [vmem:[%s304 + $0x60] sm:$0xff]
    %v318 = vld [vmem:[%s304 + $0x68] sm:$0xff]
    %v319 = vld [vmem:[%s304 + $0x70] sm:$0xff]
    %v320 = vld [vmem:[%s304 + $0x78] sm:$0xff]
    %321 = vmatpush.msra.mxu0 %v320
    %322 = vmatpush.msra.mxu0 %v319
    %323 = vmatpush.msra.mxu0 %v318
    %324 = vmatpush.msra.mxu0 %v317
    %325 = vmatpush.msra.mxu0 %v316
    %326 = vmatpush.msra.mxu0 %v315
    %327 = vmatpush.msra.mxu0 %v314
    %328 = vmatpush.msra.mxu0 %v313
    %329 = vmatpush.msra.mxu0 %v312
    %330 = vmatpush.msra.mxu0 %v311
    %331 = vmatpush.msra.mxu0 %v310
    %332 = vmatpush.msra.mxu0 %v309
    %333 = vmatpush.msra.mxu0 %v308
    %334 = vmatpush.msra.mxu0 %v307
    %335 = vmatpush.msra.mxu0 %v306
    %336 = vmatpush.msra.mxu0 %v305
    %337 = vmatmul.f32.gmra.mxu0 %v244
    %v338 = vpop.f32.mrf.mxu0
    %v339 = vadd.f32 0.0, %v338
    %340 = vmatmul.f32.gmra.mxu0 %v245
    %v341 = vpop.f32.mrf.mxu0
    %v342 = vadd.f32 0.0, %v341
    %343 = vmatmul.f32.gmra.mxu0 %v246
    %v344 = vpop.f32.mrf.mxu0
    %v345 = vadd.f32 0.0, %v344
    %346 = vmatmul.f32.gmra.mxu0 %v247
    %v347 = vpop.f32.mrf.mxu0
    %v348 = vadd.f32 0.0, %v347
    %349 = vmatmul.f32.gmra.mxu0 %v248
    %v350 = vpop.f32.mrf.mxu0
    %v351 = vadd.f32 0.0, %v350
    %352 = vmatmul.f32.gmra.mxu0 %v249
    %v353 = vpop.f32.mrf.mxu0
    %v354 = vadd.f32 0.0, %v353
    %355 = vmatmul.f32.gmra.mxu0 %v250
    %v356 = vpop.f32.mrf.mxu0
    %v357 = vadd.f32 0.0, %v356
    %358 = vmatmul.f32.gmra.mxu0 %v251
    %v359 = vpop.f32.mrf.mxu0
    %v360 = vadd.f32 0.0, %v359
    %361 = vmatmul.f32.gmra.mxu0 %v252
    %v362 = vpop.f32.mrf.mxu0
    %v363 = vadd.f32 0.0, %v362
    %364 = vmatmul.f32.gmra.mxu0 %v253
    %v365 = vpop.f32.mrf.mxu0
    %v366 = vadd.f32 0.0, %v365
    %367 = vmatmul.f32.gmra.mxu0 %v254
    %v368 = vpop.f32.mrf.mxu0
    %v369 = vadd.f32 0.0, %v368
    %370 = vmatmul.f32.gmra.mxu0 %v255
    %v371 = vpop.f32.mrf.mxu0
    %v372 = vadd.f32 0.0, %v371
    %373 = vmatmul.f32.gmra.mxu0 %v256
    %v374 = vpop.f32.mrf.mxu0
    %v375 = vadd.f32 0.0, %v374
    %376 = vmatmul.f32.gmra.mxu0 %v257
    %v377 = vpop.f32.mrf.mxu0
    %v378 = vadd.f32 0.0, %v377
    %379 = vmatmul.f32.gmra.mxu0 %v258
    %v380 = vpop.f32.mrf.mxu0
    %v381 = vadd.f32 0.0, %v380
    %382 = vmatmul.f32.gmra.mxu0 %v259
    %v383 = vpop.f32.mrf.mxu0
    %v384 = vadd.f32 0.0, %v383
    %385 = vmatmul.f32.gmra.mxu0 %v260
    %v386 = vpop.f32.mrf.mxu0
    %v387 = vadd.f32 0.0, %v386
    %388 = vmatmul.f32.gmra.mxu0 %v261
    %v389 = vpop.f32.mrf.mxu0
    %v390 = vadd.f32 0.0, %v389
    %391 = vmatmul.f32.gmra.mxu0 %v262
    %v392 = vpop.f32.mrf.mxu0
    %v393 = vadd.f32 0.0, %v392
    %394 = vmatmul.f32.gmra.mxu0 %v263
    %v395 = vpop.f32.mrf.mxu0
    %v396 = vadd.f32 0.0, %v395
    %397 = vmatmul.f32.gmra.mxu0 %v264
    %v398 = vpop.f32.mrf.mxu0
    %v399 = vadd.f32 0.0, %v398
    %400 = vmatmul.f32.gmra.mxu0 %v265
    %v401 = vpop.f32.mrf.mxu0
    %v402 = vadd.f32 0.0, %v401
    %403 = vmatmul.f32.gmra.mxu0 %v266
    %v404 = vpop.f32.mrf.mxu0
    %v405 = vadd.f32 0.0, %v404
    %406 = vmatmul.f32.gmra.mxu0 %v267
    %v407 = vpop.f32.mrf.mxu0
    %v408 = vadd.f32 0.0, %v407
    %409 = vmatmul.f32.gmra.mxu0 %v268
    %v410 = vpop.f32.mrf.mxu0
    %v411 = vadd.f32 0.0, %v410
    %412 = vmatmul.f32.gmra.mxu0 %v269
    %v413 = vpop.f32.mrf.mxu0
    %v414 = vadd.f32 0.0, %v413
    %415 = vmatmul.f32.gmra.mxu0 %v270
    %v416 = vpop.f32.mrf.mxu0
    %v417 = vadd.f32 0.0, %v416
    %418 = vmatmul.f32.gmra.mxu0 %v271
    %v419 = vpop.f32.mrf.mxu0
    %v420 = vadd.f32 0.0, %v419
    %421 = vmatmul.f32.gmra.mxu0 %v272
    %v422 = vpop.f32.mrf.mxu0
    %v423 = vadd.f32 0.0, %v422
    %424 = vmatmul.f32.gmra.mxu0 %v273
    %v425 = vpop.f32.mrf.mxu0
    %v426 = vadd.f32 0.0, %v425
    %427 = vmatmul.f32.gmra.mxu0 %v274
    %v428 = vpop.f32.mrf.mxu0
    %v429 = vadd.f32 0.0, %v428
    %430 = vmatmul.f32.gmra.mxu0 %v275
    %v431 = vpop.f32.mrf.mxu0
    %v432 = vadd.f32 0.0, %v431
    %433 = vmatmul.f32.gmra.mxu0 %v276
    %v434 = vpop.f32.mrf.mxu0
    %v435 = vadd.f32 0.0, %v434
    %436 = vmatmul.f32.gmra.mxu0 %v277
    %v437 = vpop.f32.mrf.mxu0
    %v438 = vadd.f32 0.0, %v437
    %439 = vmatmul.f32.gmra.mxu0 %v278
    %v440 = vpop.f32.mrf.mxu0
    %v441 = vadd.f32 0.0, %v440
    %442 = vmatmul.f32.gmra.mxu0 %v279
    %v443 = vpop.f32.mrf.mxu0
    %v444 = vadd.f32 0.0, %v443
    %445 = vmatmul.f32.gmra.mxu0 %v280
    %v446 = vpop.f32.mrf.mxu0
    %v447 = vadd.f32 0.0, %v446
    %448 = vmatmul.f32.gmra.mxu0 %v281
    %v449 = vpop.f32.mrf.mxu0
    %v450 = vadd.f32 0.0, %v449
    %451 = vmatmul.f32.gmra.mxu0 %v282
    %v452 = vpop.f32.mrf.mxu0
    %v453 = vadd.f32 0.0, %v452
    %454 = vmatmul.f32.gmra.mxu0 %v283
    %v455 = vpop.f32.mrf.mxu0
    %v456 = vadd.f32 0.0, %v455
    %457 = vmatmul.f32.gmra.mxu0 %v284
    %v458 = vpop.f32.mrf.mxu0
    %v459 = vadd.f32 0.0, %v458
    %460 = vmatmul.f32.gmra.mxu0 %v285
    %v461 = vpop.f32.mrf.mxu0
    %v462 = vadd.f32 0.0, %v461
    %463 = vmatmul.f32.gmra.mxu0 %v286
    %v464 = vpop.f32.mrf.mxu0
    %v465 = vadd.f32 0.0, %v464
    %466 = vmatmul.f32.gmra.mxu0 %v287
    %v467 = vpop.f32.mrf.mxu0
    %v468 = vadd.f32 0.0, %v467
    %469 = vmatmul.f32.gmra.mxu0 %v288
    %v470 = vpop.f32.mrf.mxu0
    %v471 = vadd.f32 0.0, %v470
    %472 = vmatmul.f32.gmra.mxu0 %v289
    %v473 = vpop.f32.mrf.mxu0
    %v474 = vadd.f32 0.0, %v473
    %475 = vmatmul.f32.gmra.mxu0 %v290
    %v476 = vpop.f32.mrf.mxu0
    %v477 = vadd.f32 0.0, %v476
    %478 = vmatmul.f32.gmra.mxu0 %v291
    %v479 = vpop.f32.mrf.mxu0
    %v480 = vadd.f32 0.0, %v479
    %481 = vmatmul.f32.gmra.mxu0 %v292
    %v482 = vpop.f32.mrf.mxu0
    %v483 = vadd.f32 0.0, %v482
    %484 = vmatmul.f32.gmra.mxu0 %v293
    %v485 = vpop.f32.mrf.mxu0
    %v486 = vadd.f32 0.0, %v485
    %487 = vmatmul.f32.gmra.mxu0 %v294
    %v488 = vpop.f32.mrf.mxu0
    %v489 = vadd.f32 0.0, %v488
    %490 = vmatmul.f32.gmra.mxu0 %v295
    %v491 = vpop.f32.mrf.mxu0
    %v492 = vadd.f32 0.0, %v491
    %493 = vmatmul.f32.gmra.mxu0 %v296
    %v494 = vpop.f32.mrf.mxu0
    %v495 = vadd.f32 0.0, %v494
    %496 = vmatmul.f32.gmra.mxu0 %v297
    %v497 = vpop.f32.mrf.mxu0
    %v498 = vadd.f32 0.0, %v497
    %499 = vmatmul.f32.gmra.mxu0 %v298
    %v500 = vpop.f32.mrf.mxu0
    %v501 = vadd.f32 0.0, %v500
    %502 = vmatmul.f32.gmra.mxu0 %v299
    %v503 = vpop.f32.mrf.mxu0
    %v504 = vadd.f32 0.0, %v503
    %505 = vmatmul.f32.gmra.mxu0 %v300
    %v506 = vpop.f32.mrf.mxu0
    %v507 = vadd.f32 0.0, %v506
    %508 = vmatmul.f32.gmra.mxu0 %v301
    %v509 = vpop.f32.mrf.mxu0
    %v510 = vadd.f32 0.0, %v509
    %511 = vmatmul.f32.gmra.mxu0 %v302
    %v512 = vpop.f32.mrf.mxu0
    %v513 = vadd.f32 0.0, %v512
    %514 = vmatmul.f32.gmra.mxu0 %v303
    %v515 = vpop.f32.mrf.mxu0
    %v516 = vadd.f32 0.0, %v515
    %517 = vdwg.mxu0
    %518 = vmatpush.msra.mxu0 %v243
    %519 = vmatpush.msra.mxu0 %v242
    %520 = vmatpush.msra.mxu0 %v241
    %521 = vmatpush.msra.mxu0 %v240
    %522 = vmatpush.msra.mxu0 %v239
    %523 = vmatpush.msra.mxu0 %v238
    %524 = vmatpush.msra.mxu0 %v237
    %525 = vmatpush.msra.mxu0 %v236
    %526 = vmatpush.msra.mxu0 %v235
    %527 = vmatpush.msra.mxu0 %v234
    %528 = vmatpush.msra.mxu0 %v233
    %529 = vmatpush.msra.mxu0 %v232
    %530 = vmatpush.msra.mxu0 %v231
    %531 = vmatpush.msra.mxu0 %v230
    %532 = vmatpush.msra.mxu0 %v229
    %533 = vmatpush.msra.mxu0 %v228
    %534 = vmatmul.f32.gmra.mxu0 %v168
    %v535 = vpop.f32.mrf.mxu0
    %v536 = vadd.f32 %v339, %v535
    %537 = vmatmul.f32.gmra.mxu0 %v169
    %v538 = vpop.f32.mrf.mxu0
    %v539 = vadd.f32 %v342, %v538
    %540 = vmatmul.f32.gmra.mxu0 %v170
    %v541 = vpop.f32.mrf.mxu0
    %v542 = vadd.f32 %v345, %v541
    %543 = vmatmul.f32.gmra.mxu0 %v171
    %v544 = vpop.f32.mrf.mxu0
    %v545 = vadd.f32 %v348, %v544
    %546 = vmatmul.f32.gmra.mxu0 %v172
    %v547 = vpop.f32.mrf.mxu0
    %v548 = vadd.f32 %v351, %v547
    %549 = vmatmul.f32.gmra.mxu0 %v173
    %v550 = vpop.f32.mrf.mxu0
    %v551 = vadd.f32 %v354, %v550
    %552 = vmatmul.f32.gmra.mxu0 %v174
    %v553 = vpop.f32.mrf.mxu0
    %v554 = vadd.f32 %v357, %v553
    %555 = vmatmul.f32.gmra.mxu0 %v175
    %v556 = vpop.f32.mrf.mxu0
    %v557 = vadd.f32 %v360, %v556
    %558 = vmatmul.f32.gmra.mxu0 %v176
    %v559 = vpop.f32.mrf.mxu0
    %v560 = vadd.f32 %v363, %v559
    %561 = vmatmul.f32.gmra.mxu0 %v177
    %v562 = vpop.f32.mrf.mxu0
    %v563 = vadd.f32 %v366, %v562
    %564 = vmatmul.f32.gmra.mxu0 %v178
    %v565 = vpop.f32.mrf.mxu0
    %v566 = vadd.f32 %v369, %v565
    %567 = vmatmul.f32.gmra.mxu0 %v179
    %v568 = vpop.f32.mrf.mxu0
    %v569 = vadd.f32 %v372, %v568
    %570 = vmatmul.f32.gmra.mxu0 %v180
    %v571 = vpop.f32.mrf.mxu0
    %v572 = vadd.f32 %v375, %v571
    %573 = vmatmul.f32.gmra.mxu0 %v181
    %v574 = vpop.f32.mrf.mxu0
    %v575 = vadd.f32 %v378, %v574
    %576 = vmatmul.f32.gmra.mxu0 %v182
    %v577 = vpop.f32.mrf.mxu0
    %v578 = vadd.f32 %v381, %v577
    %579 = vmatmul.f32.gmra.mxu0 %v183
    %v580 = vpop.f32.mrf.mxu0
    %v581 = vadd.f32 %v384, %v580
    %582 = vmatmul.f32.gmra.mxu0 %v184
    %v583 = vpop.f32.mrf.mxu0
    %v584 = vadd.f32 %v387, %v583
    %585 = vmatmul.f32.gmra.mxu0 %v185
    %v586 = vpop.f32.mrf.mxu0
    %v587 = vadd.f32 %v390, %v586
    %588 = vmatmul.f32.gmra.mxu0 %v186
    %v589 = vpop.f32.mrf.mxu0
    %v590 = vadd.f32 %v393, %v589
    %591 = vmatmul.f32.gmra.mxu0 %v187
    %v592 = vpop.f32.mrf.mxu0
    %v593 = vadd.f32 %v396, %v592
    %594 = vmatmul.f32.gmra.mxu0 %v188
    %v595 = vpop.f32.mrf.mxu0
    %v596 = vadd.f32 %v399, %v595
    %597 = vmatmul.f32.gmra.mxu0 %v189
    %v598 = vpop.f32.mrf.mxu0
    %v599 = vadd.f32 %v402, %v598
    %600 = vmatmul.f32.gmra.mxu0 %v190
    %v601 = vpop.f32.mrf.mxu0
    %v602 = vadd.f32 %v405, %v601
    %603 = vmatmul.f32.gmra.mxu0 %v191
    %v604 = vpop.f32.mrf.mxu0
    %v605 = vadd.f32 %v408, %v604
    %606 = vmatmul.f32.gmra.mxu0 %v192
    %v607 = vpop.f32.mrf.mxu0
    %v608 = vadd.f32 %v411, %v607
    %609 = vmatmul.f32.gmra.mxu0 %v193
    %v610 = vpop.f32.mrf.mxu0
    %v611 = vadd.f32 %v414, %v610
    %612 = vmatmul.f32.gmra.mxu0 %v194
    %v613 = vpop.f32.mrf.mxu0
    %v614 = vadd.f32 %v417, %v613
    %615 = vmatmul.f32.gmra.mxu0 %v195
    %v616 = vpop.f32.mrf.mxu0
    %v617 = vadd.f32 %v420, %v616
    %618 = vmatmul.f32.gmra.mxu0 %v196
    %v619 = vpop.f32.mrf.mxu0
    %v620 = vadd.f32 %v423, %v619
    %621 = vmatmul.f32.gmra.mxu0 %v197
    %v622 = vpop.f32.mrf.mxu0
    %v623 = vadd.f32 %v426, %v622
    %624 = vmatmul.f32.gmra.mxu0 %v198
    %v625 = vpop.f32.mrf.mxu0
    %v626 = vadd.f32 %v429, %v625
    %627 = vmatmul.f32.gmra.mxu0 %v199
    %v628 = vpop.f32.mrf.mxu0
    %v629 = vadd.f32 %v432, %v628
    %630 = vmatmul.f32.gmra.mxu0 %v200
    %v631 = vpop.f32.mrf.mxu0
    %v632 = vadd.f32 %v435, %v631
    %633 = vmatmul.f32.gmra.mxu0 %v201
    %v634 = vpop.f32.mrf.mxu0
    %v635 = vadd.f32 %v438, %v634
    %636 = vmatmul.f32.gmra.mxu0 %v202
    %v637 = vpop.f32.mrf.mxu0
    %v638 = vadd.f32 %v441, %v637
    %639 = vmatmul.f32.gmra.mxu0 %v203
    %v640 = vpop.f32.mrf.mxu0
    %v641 = vadd.f32 %v444, %v640
    %642 = vmatmul.f32.gmra.mxu0 %v204
    %v643 = vpop.f32.mrf.mxu0
    %v644 = vadd.f32 %v447, %v643
    %645 = vmatmul.f32.gmra.mxu0 %v205
    %v646 = vpop.f32.mrf.mxu0
    %v647 = vadd.f32 %v450, %v646
    %648 = vmatmul.f32.gmra.mxu0 %v206
    %v649 = vpop.f32.mrf.mxu0
    %v650 = vadd.f32 %v453, %v649
    %651 = vmatmul.f32.gmra.mxu0 %v207
    %v652 = vpop.f32.mrf.mxu0
    %v653 = vadd.f32 %v456, %v652
    %654 = vmatmul.f32.gmra.mxu0 %v208
    %v655 = vpop.f32.mrf.mxu0
    %v656 = vadd.f32 %v459, %v655
    %657 = vmatmul.f32.gmra.mxu0 %v209
    %v658 = vpop.f32.mrf.mxu0
    %v659 = vadd.f32 %v462, %v658
    %660 = vmatmul.f32.gmra.mxu0 %v210
    %v661 = vpop.f32.mrf.mxu0
    %v662 = vadd.f32 %v465, %v661
    %663 = vmatmul.f32.gmra.mxu0 %v211
    %v664 = vpop.f32.mrf.mxu0
    %v665 = vadd.f32 %v468, %v664
    %666 = vmatmul.f32.gmra.mxu0 %v212
    %v667 = vpop.f32.mrf.mxu0
    %v668 = vadd.f32 %v471, %v667
    %669 = vmatmul.f32.gmra.mxu0 %v213
    %v670 = vpop.f32.mrf.mxu0
    %v671 = vadd.f32 %v474, %v670
    %672 = vmatmul.f32.gmra.mxu0 %v214
    %v673 = vpop.f32.mrf.mxu0
    %v674 = vadd.f32 %v477, %v673
    %675 = vmatmul.f32.gmra.mxu0 %v215
    %v676 = vpop.f32.mrf.mxu0
    %v677 = vadd.f32 %v480, %v676
    %678 = vmatmul.f32.gmra.mxu0 %v216
    %v679 = vpop.f32.mrf.mxu0
    %v680 = vadd.f32 %v483, %v679
    %681 = vmatmul.f32.gmra.mxu0 %v217
    %v682 = vpop.f32.mrf.mxu0
    %v683 = vadd.f32 %v486, %v682
    %684 = vmatmul.f32.gmra.mxu0 %v218
    %v685 = vpop.f32.mrf.mxu0
    %v686 = vadd.f32 %v489, %v685
    %687 = vmatmul.f32.gmra.mxu0 %v219
    %v688 = vpop.f32.mrf.mxu0
    %v689 = vadd.f32 %v492, %v688
    %690 = vmatmul.f32.gmra.mxu0 %v220
    %v691 = vpop.f32.mrf.mxu0
    %v692 = vadd.f32 %v495, %v691
    %693 = vmatmul.f32.gmra.mxu0 %v221
    %v694 = vpop.f32.mrf.mxu0
    %v695 = vadd.f32 %v498, %v694
    %696 = vmatmul.f32.gmra.mxu0 %v222
    %v697 = vpop.f32.mrf.mxu0
    %v698 = vadd.f32 %v501, %v697
    %699 = vmatmul.f32.gmra.mxu0 %v223
    %v700 = vpop.f32.mrf.mxu0
    %v701 = vadd.f32 %v504, %v700
    %702 = vmatmul.f32.gmra.mxu0 %v224
    %v703 = vpop.f32.mrf.mxu0
    %v704 = vadd.f32 %v507, %v703
    %705 = vmatmul.f32.gmra.mxu0 %v225
    %v706 = vpop.f32.mrf.mxu0
    %v707 = vadd.f32 %v510, %v706
    %708 = vmatmul.f32.gmra.mxu0 %v226
    %v709 = vpop.f32.mrf.mxu0
    %v710 = vadd.f32 %v513, %v709
    %711 = vmatmul.f32.gmra.mxu0 %v227
    %v712 = vpop.f32.mrf.mxu0
    %v713 = vadd.f32 %v516, %v712
    %714 = vdwg.mxu0
    %v715 = vld [vmem:[%s0 + $0x2] sm:$0xff]
    %v716 = vld [vmem:[%s0 + $0xa] sm:$0xff]
    %v717 = vld [vmem:[%s0 + $0x12] sm:$0xff]
    %v718 = vld [vmem:[%s0 + $0x1a] sm:$0xff]
    %v719 = vld [vmem:[%s0 + $0x22] sm:$0xff]
    %v720 = vld [vmem:[%s0 + $0x2a] sm:$0xff]
    %v721 = vld [vmem:[%s0 + $0x32] sm:$0xff]
    %v722 = vld [vmem:[%s0 + $0x3a] sm:$0xff]
    %v723 = vld [vmem:[%s0 + $0x42] sm:$0xff]
    %v724 = vld [vmem:[%s0 + $0x4a] sm:$0xff]
    %v725 = vld [vmem:[%s0 + $0x52] sm:$0xff]
    %v726 = vld [vmem:[%s0 + $0x5a] sm:$0xff]
    %v727 = vld [vmem:[%s0 + $0x62] sm:$0xff]
    %v728 = vld [vmem:[%s0 + $0x6a] sm:$0xff]
    %v729 = vld [vmem:[%s0 + $0x72] sm:$0xff]
    %v730 = vld [vmem:[%s0 + $0x7a] sm:$0xff]
    %v731 = vld [vmem:[%s0 + $0x82] sm:$0xff]
    %v732 = vld [vmem:[%s0 + $0x8a] sm:$0xff]
    %v733 = vld [vmem:[%s0 + $0x92] sm:$0xff]
    %v734 = vld [vmem:[%s0 + $0x9a] sm:$0xff]
    %v735 = vld [vmem:[%s0 + $0xa2] sm:$0xff]
    %v736 = vld [vmem:[%s0 + $0xaa] sm:$0xff]
    %v737 = vld [vmem:[%s0 + $0xb2] sm:$0xff]
    %v738 = vld [vmem:[%s0 + $0xba] sm:$0xff]
    %v739 = vld [vmem:[%s0 + $0xc2] sm:$0xff]
    %v740 = vld [vmem:[%s0 + $0xca] sm:$0xff]
    %v741 = vld [vmem:[%s0 + $0xd2] sm:$0xff]
    %v742 = vld [vmem:[%s0 + $0xda] sm:$0xff]
    %v743 = vld [vmem:[%s0 + $0xe2] sm:$0xff]
    %v744 = vld [vmem:[%s0 + $0xea] sm:$0xff]
    %v745 = vld [vmem:[%s0 + $0xf2] sm:$0xff]
    %v746 = vld [vmem:[%s0 + $0xfa] sm:$0xff]
    %v747 = vld [vmem:[%s0 + $0x102] sm:$0xff]
    %v748 = vld [vmem:[%s0 + $0x10a] sm:$0xff]
    %v749 = vld [vmem:[%s0 + $0x112] sm:$0xff]
    %v750 = vld [vmem:[%s0 + $0x11a] sm:$0xff]
    %v751 = vld [vmem:[%s0 + $0x122] sm:$0xff]
    %v752 = vld [vmem:[%s0 + $0x12a] sm:$0xff]
    %v753 = vld [vmem:[%s0 + $0x132] sm:$0xff]
    %v754 = vld [vmem:[%s0 + $0x13a] sm:$0xff]
    %v755 = vld [vmem:[%s0 + $0x142] sm:$0xff]
    %v756 = vld [vmem:[%s0 + $0x14a] sm:$0xff]
    %v757 = vld [vmem:[%s0 + $0x152] sm:$0xff]
    %v758 = vld [vmem:[%s0 + $0x15a] sm:$0xff]
    %v759 = vld [vmem:[%s0 + $0x162] sm:$0xff]
    %v760 = vld [vmem:[%s0 + $0x16a] sm:$0xff]
    %v761 = vld [vmem:[%s0 + $0x172] sm:$0xff]
    %v762 = vld [vmem:[%s0 + $0x17a] sm:$0xff]
    %v763 = vld [vmem:[%s0 + $0x182] sm:$0xff]
    %v764 = vld [vmem:[%s0 + $0x18a] sm:$0xff]
    %v765 = vld [vmem:[%s0 + $0x192] sm:$0xff]
    %v766 = vld [vmem:[%s0 + $0x19a] sm:$0xff]
    %v767 = vld [vmem:[%s0 + $0x1a2] sm:$0xff]
    %v768 = vld [vmem:[%s0 + $0x1aa] sm:$0xff]
    %v769 = vld [vmem:[%s0 + $0x1b2] sm:$0xff]
    %v770 = vld [vmem:[%s0 + $0x1ba] sm:$0xff]
    %v771 = vld [vmem:[%s0 + $0x1c2] sm:$0xff]
    %v772 = vld [vmem:[%s0 + $0x1ca] sm:$0xff]
    %v773 = vld [vmem:[%s0 + $0x1d2] sm:$0xff]
    %v774 = vld [vmem:[%s0 + $0x1da] sm:$0x3f]
    %s775 = scalar_lea.vmem [#allocation4], 256
    %v776 = vld [vmem:[%s775] sm:$0xff]
    %v777 = vld [vmem:[%s775 + $0x8] sm:$0xff]
    %v778 = vld [vmem:[%s775 + $0x10] sm:$0xff]
    %v779 = vld [vmem:[%s775 + $0x18] sm:$0xff]
    %v780 = vld [vmem:[%s775 + $0x20] sm:$0xff]
    %v781 = vld [vmem:[%s775 + $0x28] sm:$0xff]
    %v782 = vld [vmem:[%s775 + $0x30] sm:$0xff]
    %v783 = vld [vmem:[%s775 + $0x38] sm:$0xff]
    %v784 = vld [vmem:[%s775 + $0x40] sm:$0xff]
    %v785 = vld [vmem:[%s775 + $0x48] sm:$0xff]
    %v786 = vld [vmem:[%s775 + $0x50] sm:$0xff]
    %v787 = vld [vmem:[%s775 + $0x58] sm:$0xff]
    %v788 = vld [vmem:[%s775 + $0x60] sm:$0xff]
    %v789 = vld [vmem:[%s775 + $0x68] sm:$0xff]
    %v790 = vld [vmem:[%s775 + $0x70] sm:$0xff]
    %v791 = vld [vmem:[%s775 + $0x78] sm:$0xff]
    %792 = vmatpush.msra.mxu0 %v791
    %793 = vmatpush.msra.mxu0 %v790
    %794 = vmatpush.msra.mxu0 %v789
    %795 = vmatpush.msra.mxu0 %v788
    %796 = vmatpush.msra.mxu0 %v787
    %797 = vmatpush.msra.mxu0 %v786
    %798 = vmatpush.msra.mxu0 %v785
    %799 = vmatpush.msra.mxu0 %v784
    %800 = vmatpush.msra.mxu0 %v783
    %801 = vmatpush.msra.mxu0 %v782
    %802 = vmatpush.msra.mxu0 %v781
    %803 = vmatpush.msra.mxu0 %v780
    %804 = vmatpush.msra.mxu0 %v779
    %805 = vmatpush.msra.mxu0 %v778
    %806 = vmatpush.msra.mxu0 %v777
    %807 = vmatpush.msra.mxu0 %v776
    %808 = vmatmul.f32.gmra.mxu0 %v715
    %v809 = vpop.f32.mrf.mxu0
    %v810 = vadd.f32 0.0, %v809
    %811 = vmatmul.f32.gmra.mxu0 %v716
    %v812 = vpop.f32.mrf.mxu0
    %v813 = vadd.f32 0.0, %v812
    %814 = vmatmul.f32.gmra.mxu0 %v717
    %v815 = vpop.f32.mrf.mxu0
    %v816 = vadd.f32 0.0, %v815
    %817 = vmatmul.f32.gmra.mxu0 %v718
    %v818 = vpop.f32.mrf.mxu0
    %v819 = vadd.f32 0.0, %v818
    %820 = vmatmul.f32.gmra.mxu0 %v719
    %v821 = vpop.f32.mrf.mxu0
    %v822 = vadd.f32 0.0, %v821
    %823 = vmatmul.f32.gmra.mxu0 %v720
    %v824 = vpop.f32.mrf.mxu0
    %v825 = vadd.f32 0.0, %v824
    %826 = vmatmul.f32.gmra.mxu0 %v721
    %v827 = vpop.f32.mrf.mxu0
    %v828 = vadd.f32 0.0, %v827
    %829 = vmatmul.f32.gmra.mxu0 %v722
    %v830 = vpop.f32.mrf.mxu0
    %v831 = vadd.f32 0.0, %v830
    %832 = vmatmul.f32.gmra.mxu0 %v723
    %v833 = vpop.f32.mrf.mxu0
    %v834 = vadd.f32 0.0, %v833
    %835 = vmatmul.f32.gmra.mxu0 %v724
    %v836 = vpop.f32.mrf.mxu0
    %v837 = vadd.f32 0.0, %v836
    %838 = vmatmul.f32.gmra.mxu0 %v725
    %v839 = vpop.f32.mrf.mxu0
    %v840 = vadd.f32 0.0, %v839
    %841 = vmatmul.f32.gmra.mxu0 %v726
    %v842 = vpop.f32.mrf.mxu0
    %v843 = vadd.f32 0.0, %v842
    %844 = vmatmul.f32.gmra.mxu0 %v727
    %v845 = vpop.f32.mrf.mxu0
    %v846 = vadd.f32 0.0, %v845
    %847 = vmatmul.f32.gmra.mxu0 %v728
    %v848 = vpop.f32.mrf.mxu0
    %v849 = vadd.f32 0.0, %v848
    %850 = vmatmul.f32.gmra.mxu0 %v729
    %v851 = vpop.f32.mrf.mxu0
    %v852 = vadd.f32 0.0, %v851
    %853 = vmatmul.f32.gmra.mxu0 %v730
    %v854 = vpop.f32.mrf.mxu0
    %v855 = vadd.f32 0.0, %v854
    %856 = vmatmul.f32.gmra.mxu0 %v731
    %v857 = vpop.f32.mrf.mxu0
    %v858 = vadd.f32 0.0, %v857
    %859 = vmatmul.f32.gmra.mxu0 %v732
    %v860 = vpop.f32.mrf.mxu0
    %v861 = vadd.f32 0.0, %v860
    %862 = vmatmul.f32.gmra.mxu0 %v733
    %v863 = vpop.f32.mrf.mxu0
    %v864 = vadd.f32 0.0, %v863
    %865 = vmatmul.f32.gmra.mxu0 %v734
    %v866 = vpop.f32.mrf.mxu0
    %v867 = vadd.f32 0.0, %v866
    %868 = vmatmul.f32.gmra.mxu0 %v735
    %v869 = vpop.f32.mrf.mxu0
    %v870 = vadd.f32 0.0, %v869
    %871 = vmatmul.f32.gmra.mxu0 %v736
    %v872 = vpop.f32.mrf.mxu0
    %v873 = vadd.f32 0.0, %v872
    %874 = vmatmul.f32.gmra.mxu0 %v737
    %v875 = vpop.f32.mrf.mxu0
    %v876 = vadd.f32 0.0, %v875
    %877 = vmatmul.f32.gmra.mxu0 %v738
    %v878 = vpop.f32.mrf.mxu0
    %v879 = vadd.f32 0.0, %v878
    %880 = vmatmul.f32.gmra.mxu0 %v739
    %v881 = vpop.f32.mrf.mxu0
    %v882 = vadd.f32 0.0, %v881
    %883 = vmatmul.f32.gmra.mxu0 %v740
    %v884 = vpop.f32.mrf.mxu0
    %v885 = vadd.f32 0.0, %v884
    %886 = vmatmul.f32.gmra.mxu0 %v741
    %v887 = vpop.f32.mrf.mxu0
    %v888 = vadd.f32 0.0, %v887
    %889 = vmatmul.f32.gmra.mxu0 %v742
    %v890 = vpop.f32.mrf.mxu0
    %v891 = vadd.f32 0.0, %v890
    %892 = vmatmul.f32.gmra.mxu0 %v743
    %v893 = vpop.f32.mrf.mxu0
    %v894 = vadd.f32 0.0, %v893
    %895 = vmatmul.f32.gmra.mxu0 %v744
    %v896 = vpop.f32.mrf.mxu0
    %v897 = vadd.f32 0.0, %v896
    %898 = vmatmul.f32.gmra.mxu0 %v745
    %v899 = vpop.f32.mrf.mxu0
    %v900 = vadd.f32 0.0, %v899
    %901 = vmatmul.f32.gmra.mxu0 %v746
    %v902 = vpop.f32.mrf.mxu0
    %v903 = vadd.f32 0.0, %v902
    %904 = vmatmul.f32.gmra.mxu0 %v747
    %v905 = vpop.f32.mrf.mxu0
    %v906 = vadd.f32 0.0, %v905
    %907 = vmatmul.f32.gmra.mxu0 %v748
    %v908 = vpop.f32.mrf.mxu0
    %v909 = vadd.f32 0.0, %v908
    %910 = vmatmul.f32.gmra.mxu0 %v749
    %v911 = vpop.f32.mrf.mxu0
    %v912 = vadd.f32 0.0, %v911
    %913 = vmatmul.f32.gmra.mxu0 %v750
    %v914 = vpop.f32.mrf.mxu0
    %v915 = vadd.f32 0.0, %v914
    %916 = vmatmul.f32.gmra.mxu0 %v751
    %v917 = vpop.f32.mrf.mxu0
    %v918 = vadd.f32 0.0, %v917
    %919 = vmatmul.f32.gmra.mxu0 %v752
    %v920 = vpop.f32.mrf.mxu0
    %v921 = vadd.f32 0.0, %v920
    %922 = vmatmul.f32.gmra.mxu0 %v753
    %v923 = vpop.f32.mrf.mxu0
    %v924 = vadd.f32 0.0, %v923
    %925 = vmatmul.f32.gmra.mxu0 %v754
    %v926 = vpop.f32.mrf.mxu0
    %v927 = vadd.f32 0.0, %v926
    %928 = vmatmul.f32.gmra.mxu0 %v755
    %v929 = vpop.f32.mrf.mxu0
    %v930 = vadd.f32 0.0, %v929
    %931 = vmatmul.f32.gmra.mxu0 %v756
    %v932 = vpop.f32.mrf.mxu0
    %v933 = vadd.f32 0.0, %v932
    %934 = vmatmul.f32.gmra.mxu0 %v757
    %v935 = vpop.f32.mrf.mxu0
    %v936 = vadd.f32 0.0, %v935
    %937 = vmatmul.f32.gmra.mxu0 %v758
    %v938 = vpop.f32.mrf.mxu0
    %v939 = vadd.f32 0.0, %v938
    %940 = vmatmul.f32.gmra.mxu0 %v759
    %v941 = vpop.f32.mrf.mxu0
    %v942 = vadd.f32 0.0, %v941
    %943 = vmatmul.f32.gmra.mxu0 %v760
    %v944 = vpop.f32.mrf.mxu0
    %v945 = vadd.f32 0.0, %v944
    %946 = vmatmul.f32.gmra.mxu0 %v761
    %v947 = vpop.f32.mrf.mxu0
    %v948 = vadd.f32 0.0, %v947
    %949 = vmatmul.f32.gmra.mxu0 %v762
    %v950 = vpop.f32.mrf.mxu0
    %v951 = vadd.f32 0.0, %v950
    %952 = vmatmul.f32.gmra.mxu0 %v763
    %v953 = vpop.f32.mrf.mxu0
    %v954 = vadd.f32 0.0, %v953
    %955 = vmatmul.f32.gmra.mxu0 %v764
    %v956 = vpop.f32.mrf.mxu0
    %v957 = vadd.f32 0.0, %v956
    %958 = vmatmul.f32.gmra.mxu0 %v765
    %v959 = vpop.f32.mrf.mxu0
    %v960 = vadd.f32 0.0, %v959
    %961 = vmatmul.f32.gmra.mxu0 %v766
    %v962 = vpop.f32.mrf.mxu0
    %v963 = vadd.f32 0.0, %v962
    %964 = vmatmul.f32.gmra.mxu0 %v767
    %v965 = vpop.f32.mrf.mxu0
    %v966 = vadd.f32 0.0, %v965
    %967 = vmatmul.f32.gmra.mxu0 %v768
    %v968 = vpop.f32.mrf.mxu0
    %v969 = vadd.f32 0.0, %v968
    %970 = vmatmul.f32.gmra.mxu0 %v769
    %v971 = vpop.f32.mrf.mxu0
    %v972 = vadd.f32 0.0, %v971
    %973 = vmatmul.f32.gmra.mxu0 %v770
    %v974 = vpop.f32.mrf.mxu0
    %v975 = vadd.f32 0.0, %v974
    %976 = vmatmul.f32.gmra.mxu0 %v771
    %v977 = vpop.f32.mrf.mxu0
    %v978 = vadd.f32 0.0, %v977
    %979 = vmatmul.f32.gmra.mxu0 %v772
    %v980 = vpop.f32.mrf.mxu0
    %v981 = vadd.f32 0.0, %v980
    %982 = vmatmul.f32.gmra.mxu0 %v773
    %v983 = vpop.f32.mrf.mxu0
    %v984 = vadd.f32 0.0, %v983
    %985 = vmatmul.f32.gmra.mxu0 %v774
    %v986 = vpop.f32.mrf.mxu0
    %v987 = vadd.f32 0.0, %v986
    %988 = vdwg.mxu0
    %v989 = vadd.f32 %v536, %v810
    %v990 = vadd.f32 %v539, %v813
    %v991 = vadd.f32 %v542, %v816
    %v992 = vadd.f32 %v545, %v819
    %v993 = vadd.f32 %v548, %v822
    %v994 = vadd.f32 %v551, %v825
    %v995 = vadd.f32 %v554, %v828
    %v996 = vadd.f32 %v557, %v831
    %v997 = vadd.f32 %v560, %v834
    %v998 = vadd.f32 %v563, %v837
    %v999 = vadd.f32 %v566, %v840
    %v1000 = vadd.f32 %v569, %v843
    %v1001 = vadd.f32 %v572, %v846
    %v1002 = vadd.f32 %v575, %v849
    %v1003 = vadd.f32 %v578, %v852
    %v1004 = vadd.f32 %v581, %v855
    %v1005 = vadd.f32 %v584, %v858
    %v1006 = vadd.f32 %v587, %v861
    %v1007 = vadd.f32 %v590, %v864
    %v1008 = vadd.f32 %v593, %v867
    %v1009 = vadd.f32 %v596, %v870
    %v1010 = vadd.f32 %v599, %v873
    %v1011 = vadd.f32 %v602, %v876
    %v1012 = vadd.f32 %v605, %v879
    %v1013 = vadd.f32 %v608, %v882
    %v1014 = vadd.f32 %v611, %v885
    %v1015 = vadd.f32 %v614, %v888
    %v1016 = vadd.f32 %v617, %v891
    %v1017 = vadd.f32 %v620, %v894
    %v1018 = vadd.f32 %v623, %v897
    %v1019 = vadd.f32 %v626, %v900
    %v1020 = vadd.f32 %v629, %v903
    %v1021 = vadd.f32 %v632, %v906
    %v1022 = vadd.f32 %v635, %v909
    %v1023 = vadd.f32 %v638, %v912
    %v1024 = vadd.f32 %v641, %v915
    %v1025 = vadd.f32 %v644, %v918
    %v1026 = vadd.f32 %v647, %v921
    %v1027 = vadd.f32 %v650, %v924
    %v1028 = vadd.f32 %v653, %v927
    %v1029 = vadd.f32 %v656, %v930
    %v1030 = vadd.f32 %v659, %v933
    %v1031 = vadd.f32 %v662, %v936
    %v1032 = vadd.f32 %v665, %v939
    %v1033 = vadd.f32 %v668, %v942
    %v1034 = vadd.f32 %v671, %v945
    %v1035 = vadd.f32 %v674, %v948
    %v1036 = vadd.f32 %v677, %v951
    %v1037 = vadd.f32 %v680, %v954
    %v1038 = vadd.f32 %v683, %v957
    %v1039 = vadd.f32 %v686, %v960
    %v1040 = vadd.f32 %v689, %v963
    %v1041 = vadd.f32 %v692, %v966
    %v1042 = vadd.f32 %v695, %v969
    %v1043 = vadd.f32 %v698, %v972
    %v1044 = vadd.f32 %v701, %v975
    %v1045 = vadd.f32 %v704, %v978
    %v1046 = vadd.f32 %v707, %v981
    %v1047 = vadd.f32 %v710, %v984
    %v1048 = vadd.f32 %v713, %v987
    %v1049 = vld [vmem:[%s0 + $0x10] sm:$0xff]
    %v1050 = vld [vmem:[%s0 + $0x18] sm:$0xff]
    %v1051 = vld [vmem:[%s0 + $0x20] sm:$0xff]
    %v1052 = vld [vmem:[%s0 + $0x28] sm:$0xff]
    %v1053 = vld [vmem:[%s0 + $0x30] sm:$0xff]
    %v1054 = vld [vmem:[%s0 + $0x38] sm:$0xff]
    %v1055 = vld [vmem:[%s0 + $0x40] sm:$0xff]
    %v1056 = vld [vmem:[%s0 + $0x48] sm:$0xff]
    %v1057 = vld [vmem:[%s0 + $0x50] sm:$0xff]
    %v1058 = vld [vmem:[%s0 + $0x58] sm:$0xff]
    %v1059 = vld [vmem:[%s0 + $0x60] sm:$0xff]
    %v1060 = vld [vmem:[%s0 + $0x68] sm:$0xff]
    %v1061 = vld [vmem:[%s0 + $0x70] sm:$0xff]
    %v1062 = vld [vmem:[%s0 + $0x78] sm:$0xff]
    %v1063 = vld [vmem:[%s0 + $0x80] sm:$0xff]
    %v1064 = vld [vmem:[%s0 + $0x88] sm:$0xff]
    %v1065 = vld [vmem:[%s0 + $0x90] sm:$0xff]
    %v1066 = vld [vmem:[%s0 + $0x98] sm:$0xff]
    %v1067 = vld [vmem:[%s0 + $0xa0] sm:$0xff]
    %v1068 = vld [vmem:[%s0 + $0xa8] sm:$0xff]
    %v1069 = vld [vmem:[%s0 + $0xb0] sm:$0xff]
    %v1070 = vld [vmem:[%s0 + $0xb8] sm:$0xff]
    %v1071 = vld [vmem:[%s0 + $0xc0] sm:$0xff]
    %v1072 = vld [vmem:[%s0 + $0xc8] sm:$0xff]
    %v1073 = vld [vmem:[%s0 + $0xd0] sm:$0xff]
    %v1074 = vld [vmem:[%s0 + $0xd8] sm:$0xff]
    %v1075 = vld [vmem:[%s0 + $0xe0] sm:$0xff]
    %v1076 = vld [vmem:[%s0 + $0xe8] sm:$0xff]
    %v1077 = vld [vmem:[%s0 + $0xf0] sm:$0xff]
    %v1078 = vld [vmem:[%s0 + $0xf8] sm:$0xff]
    %v1079 = vld [vmem:[%s0 + $0x100] sm:$0xff]
    %v1080 = vld [vmem:[%s0 + $0x108] sm:$0xff]
    %v1081 = vld [vmem:[%s0 + $0x110] sm:$0xff]
    %v1082 = vld [vmem:[%s0 + $0x118] sm:$0xff]
    %v1083 = vld [vmem:[%s0 + $0x120] sm:$0xff]
    %v1084 = vld [vmem:[%s0 + $0x128] sm:$0xff]
    %v1085 = vld [vmem:[%s0 + $0x130] sm:$0xff]
    %v1086 = vld [vmem:[%s0 + $0x138] sm:$0xff]
    %v1087 = vld [vmem:[%s0 + $0x140] sm:$0xff]
    %v1088 = vld [vmem:[%s0 + $0x148] sm:$0xff]
    %v1089 = vld [vmem:[%s0 + $0x150] sm:$0xff]
    %v1090 = vld [vmem:[%s0 + $0x158] sm:$0xff]
    %v1091 = vld [vmem:[%s0 + $0x160] sm:$0xff]
    %v1092 = vld [vmem:[%s0 + $0x168] sm:$0xff]
    %v1093 = vld [vmem:[%s0 + $0x170] sm:$0xff]
    %v1094 = vld [vmem:[%s0 + $0x178] sm:$0xff]
    %v1095 = vld [vmem:[%s0 + $0x180] sm:$0xff]
    %v1096 = vld [vmem:[%s0 + $0x188] sm:$0xff]
    %v1097 = vld [vmem:[%s0 + $0x190] sm:$0xff]
    %v1098 = vld [vmem:[%s0 + $0x198] sm:$0xff]
    %v1099 = vld [vmem:[%s0 + $0x1a0] sm:$0xff]
    %v1100 = vld [vmem:[%s0 + $0x1a8] sm:$0xff]
    %v1101 = vld [vmem:[%s0 + $0x1b0] sm:$0xff]
    %v1102 = vld [vmem:[%s0 + $0x1b8] sm:$0xff]
    %v1103 = vld [vmem:[%s0 + $0x1c0] sm:$0xff]
    %v1104 = vld [vmem:[%s0 + $0x1c8] sm:$0xff]
    %v1105 = vld [vmem:[%s0 + $0x1d0] sm:$0xff]
    %v1106 = vld [vmem:[%s0 + $0x1d8] sm:$0xff]
    %v1107 = vld [vmem:[%s0 + $0x1e0] sm:$0xff]
    %v1108 = vld [vmem:[%s0 + $0x1e8] sm:$0x3f]
    %s1109 = scalar_lea.vmem [#allocation4], 384
    %v1110 = vld [vmem:[%s1109] sm:$0xff]
    %v1111 = vld [vmem:[%s1109 + $0x8] sm:$0xff]
    %v1112 = vld [vmem:[%s1109 + $0x10] sm:$0xff]
    %v1113 = vld [vmem:[%s1109 + $0x18] sm:$0xff]
    %v1114 = vld [vmem:[%s1109 + $0x20] sm:$0xff]
    %v1115 = vld [vmem:[%s1109 + $0x28] sm:$0xff]
    %v1116 = vld [vmem:[%s1109 + $0x30] sm:$0xff]
    %v1117 = vld [vmem:[%s1109 + $0x38] sm:$0xff]
    %v1118 = vld [vmem:[%s1109 + $0x40] sm:$0xff]
    %v1119 = vld [vmem:[%s1109 + $0x48] sm:$0xff]
    %v1120 = vld [vmem:[%s1109 + $0x50] sm:$0xff]
    %v1121 = vld [vmem:[%s1109 + $0x58] sm:$0xff]
    %v1122 = vld [vmem:[%s1109 + $0x60] sm:$0xff]
    %v1123 = vld [vmem:[%s1109 + $0x68] sm:$0xff]
    %v1124 = vld [vmem:[%s1109 + $0x70] sm:$0xff]
    %v1125 = vld [vmem:[%s1109 + $0x78] sm:$0xff]
    %1126 = vmatpush.msra.mxu0 %v1125
    %1127 = vmatpush.msra.mxu0 %v1124
    %1128 = vmatpush.msra.mxu0 %v1123
    %1129 = vmatpush.msra.mxu0 %v1122
    %1130 = vmatpush.msra.mxu0 %v1121
    %1131 = vmatpush.msra.mxu0 %v1120
    %1132 = vmatpush.msra.mxu0 %v1119
    %1133 = vmatpush.msra.mxu0 %v1118
    %1134 = vmatpush.msra.mxu0 %v1117
    %1135 = vmatpush.msra.mxu0 %v1116
    %1136 = vmatpush.msra.mxu0 %v1115
    %1137 = vmatpush.msra.mxu0 %v1114
    %1138 = vmatpush.msra.mxu0 %v1113
    %1139 = vmatpush.msra.mxu0 %v1112
    %1140 = vmatpush.msra.mxu0 %v1111
    %1141 = vmatpush.msra.mxu0 %v1110
    %1142 = vmatmul.f32.gmra.mxu0 %v1049
    %v1143 = vpop.f32.mrf.mxu0
    %v1144 = vadd.f32 0.0, %v1143
    %1145 = vmatmul.f32.gmra.mxu0 %v1050
    %v1146 = vpop.f32.mrf.mxu0
    %v1147 = vadd.f32 0.0, %v1146
    %1148 = vmatmul.f32.gmra.mxu0 %v1051
    %v1149 = vpop.f32.mrf.mxu0
    %v1150 = vadd.f32 0.0, %v1149
    %1151 = vmatmul.f32.gmra.mxu0 %v1052
    %v1152 = vpop.f32.mrf.mxu0
    %v1153 = vadd.f32 0.0, %v1152
    %1154 = vmatmul.f32.gmra.mxu0 %v1053
    %v1155 = vpop.f32.mrf.mxu0
    %v1156 = vadd.f32 0.0, %v1155
    %1157 = vmatmul.f32.gmra.mxu0 %v1054
    %v1158 = vpop.f32.mrf.mxu0
    %v1159 = vadd.f32 0.0, %v1158
    %1160 = vmatmul.f32.gmra.mxu0 %v1055
    %v1161 = vpop.f32.mrf.mxu0
    %v1162 = vadd.f32 0.0, %v1161
    %1163 = vmatmul.f32.gmra.mxu0 %v1056
    %v1164 = vpop.f32.mrf.mxu0
    %v1165 = vadd.f32 0.0, %v1164
    %1166 = vmatmul.f32.gmra.mxu0 %v1057
    %v1167 = vpop.f32.mrf.mxu0
    %v1168 = vadd.f32 0.0, %v1167
    %1169 = vmatmul.f32.gmra.mxu0 %v1058
    %v1170 = vpop.f32.mrf.mxu0
    %v1171 = vadd.f32 0.0, %v1170
    %1172 = vmatmul.f32.gmra.mxu0 %v1059
    %v1173 = vpop.f32.mrf.mxu0
    %v1174 = vadd.f32 0.0, %v1173
    %1175 = vmatmul.f32.gmra.mxu0 %v1060
    %v1176 = vpop.f32.mrf.mxu0
    %v1177 = vadd.f32 0.0, %v1176
    %1178 = vmatmul.f32.gmra.mxu0 %v1061
    %v1179 = vpop.f32.mrf.mxu0
    %v1180 = vadd.f32 0.0, %v1179
    %1181 = vmatmul.f32.gmra.mxu0 %v1062
    %v1182 = vpop.f32.mrf.mxu0
    %v1183 = vadd.f32 0.0, %v1182
    %1184 = vmatmul.f32.gmra.mxu0 %v1063
    %v1185 = vpop.f32.mrf.mxu0
    %v1186 = vadd.f32 0.0, %v1185
    %1187 = vmatmul.f32.gmra.mxu0 %v1064
    %v1188 = vpop.f32.mrf.mxu0
    %v1189 = vadd.f32 0.0, %v1188
    %1190 = vmatmul.f32.gmra.mxu0 %v1065
    %v1191 = vpop.f32.mrf.mxu0
    %v1192 = vadd.f32 0.0, %v1191
    %1193 = vmatmul.f32.gmra.mxu0 %v1066
    %v1194 = vpop.f32.mrf.mxu0
    %v1195 = vadd.f32 0.0, %v1194
    %1196 = vmatmul.f32.gmra.mxu0 %v1067
    %v1197 = vpop.f32.mrf.mxu0
    %v1198 = vadd.f32 0.0, %v1197
    %1199 = vmatmul.f32.gmra.mxu0 %v1068
    %v1200 = vpop.f32.mrf.mxu0
    %v1201 = vadd.f32 0.0, %v1200
    %1202 = vmatmul.f32.gmra.mxu0 %v1069
    %v1203 = vpop.f32.mrf.mxu0
    %v1204 = vadd.f32 0.0, %v1203
    %1205 = vmatmul.f32.gmra.mxu0 %v1070
    %v1206 = vpop.f32.mrf.mxu0
    %v1207 = vadd.f32 0.0, %v1206
    %1208 = vmatmul.f32.gmra.mxu0 %v1071
    %v1209 = vpop.f32.mrf.mxu0
    %v1210 = vadd.f32 0.0, %v1209
    %1211 = vmatmul.f32.gmra.mxu0 %v1072
    %v1212 = vpop.f32.mrf.mxu0
    %v1213 = vadd.f32 0.0, %v1212
    %1214 = vmatmul.f32.gmra.mxu0 %v1073
    %v1215 = vpop.f32.mrf.mxu0
    %v1216 = vadd.f32 0.0, %v1215
    %1217 = vmatmul.f32.gmra.mxu0 %v1074
    %v1218 = vpop.f32.mrf.mxu0
    %v1219 = vadd.f32 0.0, %v1218
    %1220 = vmatmul.f32.gmra.mxu0 %v1075
    %v1221 = vpop.f32.mrf.mxu0
    %v1222 = vadd.f32 0.0, %v1221
    %1223 = vmatmul.f32.gmra.mxu0 %v1076
    %v1224 = vpop.f32.mrf.mxu0
    %v1225 = vadd.f32 0.0, %v1224
    %1226 = vmatmul.f32.gmra.mxu0 %v1077
    %v1227 = vpop.f32.mrf.mxu0
    %v1228 = vadd.f32 0.0, %v1227
    %1229 = vmatmul.f32.gmra.mxu0 %v1078
    %v1230 = vpop.f32.mrf.mxu0
    %v1231 = vadd.f32 0.0, %v1230
    %1232 = vmatmul.f32.gmra.mxu0 %v1079
    %v1233 = vpop.f32.mrf.mxu0
    %v1234 = vadd.f32 0.0, %v1233
    %1235 = vmatmul.f32.gmra.mxu0 %v1080
    %v1236 = vpop.f32.mrf.mxu0
    %v1237 = vadd.f32 0.0, %v1236
    %1238 = vmatmul.f32.gmra.mxu0 %v1081
    %v1239 = vpop.f32.mrf.mxu0
    %v1240 = vadd.f32 0.0, %v1239
    %1241 = vmatmul.f32.gmra.mxu0 %v1082
    %v1242 = vpop.f32.mrf.mxu0
    %v1243 = vadd.f32 0.0, %v1242
    %1244 = vmatmul.f32.gmra.mxu0 %v1083
    %v1245 = vpop.f32.mrf.mxu0
    %v1246 = vadd.f32 0.0, %v1245
    %1247 = vmatmul.f32.gmra.mxu0 %v1084
    %v1248 = vpop.f32.mrf.mxu0
    %v1249 = vadd.f32 0.0, %v1248
    %1250 = vmatmul.f32.gmra.mxu0 %v1085
    %v1251 = vpop.f32.mrf.mxu0
    %v1252 = vadd.f32 0.0, %v1251
    %1253 = vmatmul.f32.gmra.mxu0 %v1086
    %v1254 = vpop.f32.mrf.mxu0
    %v1255 = vadd.f32 0.0, %v1254
    %1256 = vmatmul.f32.gmra.mxu0 %v1087
    %v1257 = vpop.f32.mrf.mxu0
    %v1258 = vadd.f32 0.0, %v1257
    %1259 = vmatmul.f32.gmra.mxu0 %v1088
    %v1260 = vpop.f32.mrf.mxu0
    %v1261 = vadd.f32 0.0, %v1260
    %1262 = vmatmul.f32.gmra.mxu0 %v1089
    %v1263 = vpop.f32.mrf.mxu0
    %v1264 = vadd.f32 0.0, %v1263
    %1265 = vmatmul.f32.gmra.mxu0 %v1090
    %v1266 = vpop.f32.mrf.mxu0
    %v1267 = vadd.f32 0.0, %v1266
    %1268 = vmatmul.f32.gmra.mxu0 %v1091
    %v1269 = vpop.f32.mrf.mxu0
    %v1270 = vadd.f32 0.0, %v1269
    %1271 = vmatmul.f32.gmra.mxu0 %v1092
    %v1272 = vpop.f32.mrf.mxu0
    %v1273 = vadd.f32 0.0, %v1272
    %1274 = vmatmul.f32.gmra.mxu0 %v1093
    %v1275 = vpop.f32.mrf.mxu0
    %v1276 = vadd.f32 0.0, %v1275
    %1277 = vmatmul.f32.gmra.mxu0 %v1094
    %v1278 = vpop.f32.mrf.mxu0
    %v1279 = vadd.f32 0.0, %v1278
    %1280 = vmatmul.f32.gmra.mxu0 %v1095
    %v1281 = vpop.f32.mrf.mxu0
    %v1282 = vadd.f32 0.0, %v1281
    %1283 = vmatmul.f32.gmra.mxu0 %v1096
    %v1284 = vpop.f32.mrf.mxu0
    %v1285 = vadd.f32 0.0, %v1284
    %1286 = vmatmul.f32.gmra.mxu0 %v1097
    %v1287 = vpop.f32.mrf.mxu0
    %v1288 = vadd.f32 0.0, %v1287
    %1289 = vmatmul.f32.gmra.mxu0 %v1098
    %v1290 = vpop.f32.mrf.mxu0
    %v1291 = vadd.f32 0.0, %v1290
    %1292 = vmatmul.f32.gmra.mxu0 %v1099
    %v1293 = vpop.f32.mrf.mxu0
    %v1294 = vadd.f32 0.0, %v1293
    %1295 = vmatmul.f32.gmra.mxu0 %v1100
    %v1296 = vpop.f32.mrf.mxu0
    %v1297 = vadd.f32 0.0, %v1296
    %1298 = vmatmul.f32.gmra.mxu0 %v1101
    %v1299 = vpop.f32.mrf.mxu0
    %v1300 = vadd.f32 0.0, %v1299
    %1301 = vmatmul.f32.gmra.mxu0 %v1102
    %v1302 = vpop.f32.mrf.mxu0
    %v1303 = vadd.f32 0.0, %v1302
    %1304 = vmatmul.f32.gmra.mxu0 %v1103
    %v1305 = vpop.f32.mrf.mxu0
    %v1306 = vadd.f32 0.0, %v1305
    %1307 = vmatmul.f32.gmra.mxu0 %v1104
    %v1308 = vpop.f32.mrf.mxu0
    %v1309 = vadd.f32 0.0, %v1308
    %1310 = vmatmul.f32.gmra.mxu0 %v1105
    %v1311 = vpop.f32.mrf.mxu0
    %v1312 = vadd.f32 0.0, %v1311
    %1313 = vmatmul.f32.gmra.mxu0 %v1106
    %v1314 = vpop.f32.mrf.mxu0
    %v1315 = vadd.f32 0.0, %v1314
    %1316 = vmatmul.f32.gmra.mxu0 %v1107
    %v1317 = vpop.f32.mrf.mxu0
    %v1318 = vadd.f32 0.0, %v1317
    %1319 = vmatmul.f32.gmra.mxu0 %v1108
    %v1320 = vpop.f32.mrf.mxu0
    %v1321 = vadd.f32 0.0, %v1320
    %1322 = vdwg.mxu0
    %v1323 = vadd.f32 %v989, %v1144
    %v1324 = vadd.f32 %v990, %v1147
    %v1325 = vadd.f32 %v991, %v1150
    %v1326 = vadd.f32 %v992, %v1153
    %v1327 = vadd.f32 %v993, %v1156
    %v1328 = vadd.f32 %v994, %v1159
    %v1329 = vadd.f32 %v995, %v1162
    %v1330 = vadd.f32 %v996, %v1165
    %v1331 = vadd.f32 %v997, %v1168
    %v1332 = vadd.f32 %v998, %v1171
    %v1333 = vadd.f32 %v999, %v1174
    %v1334 = vadd.f32 %v1000, %v1177
    %v1335 = vadd.f32 %v1001, %v1180
    %v1336 = vadd.f32 %v1002, %v1183
    %v1337 = vadd.f32 %v1003, %v1186
    %v1338 = vadd.f32 %v1004, %v1189
    %v1339 = vadd.f32 %v1005, %v1192
    %v1340 = vadd.f32 %v1006, %v1195
    %v1341 = vadd.f32 %v1007, %v1198
    %v1342 = vadd.f32 %v1008, %v1201
    %v1343 = vadd.f32 %v1009, %v1204
    %v1344 = vadd.f32 %v1010, %v1207
    %v1345 = vadd.f32 %v1011, %v1210
    %v1346 = vadd.f32 %v1012, %v1213
    %v1347 = vadd.f32 %v1013, %v1216
    %v1348 = vadd.f32 %v1014, %v1219
    %v1349 = vadd.f32 %v1015, %v1222
    %v1350 = vadd.f32 %v1016, %v1225
    %v1351 = vadd.f32 %v1017, %v1228
    %v1352 = vadd.f32 %v1018, %v1231
    %v1353 = vadd.f32 %v1019, %v1234
    %v1354 = vadd.f32 %v1020, %v1237
    %v1355 = vadd.f32 %v1021, %v1240
    %v1356 = vadd.f32 %v1022, %v1243
    %v1357 = vadd.f32 %v1023, %v1246
    %v1358 = vadd.f32 %v1024, %v1249
    %v1359 = vadd.f32 %v1025, %v1252
    %v1360 = vadd.f32 %v1026, %v1255
    %v1361 = vadd.f32 %v1027, %v1258
    %v1362 = vadd.f32 %v1028, %v1261
    %v1363 = vadd.f32 %v1029, %v1264
    %v1364 = vadd.f32 %v1030, %v1267
    %v1365 = vadd.f32 %v1031, %v1270
    %v1366 = vadd.f32 %v1032, %v1273
    %v1367 = vadd.f32 %v1033, %v1276
    %v1368 = vadd.f32 %v1034, %v1279
    %v1369 = vadd.f32 %v1035, %v1282
    %v1370 = vadd.f32 %v1036, %v1285
    %v1371 = vadd.f32 %v1037, %v1288
    %v1372 = vadd.f32 %v1038, %v1291
    %v1373 = vadd.f32 %v1039, %v1294
    %v1374 = vadd.f32 %v1040, %v1297
    %v1375 = vadd.f32 %v1041, %v1300
    %v1376 = vadd.f32 %v1042, %v1303
    %v1377 = vadd.f32 %v1043, %v1306
    %v1378 = vadd.f32 %v1044, %v1309
    %v1379 = vadd.f32 %v1045, %v1312
    %v1380 = vadd.f32 %v1046, %v1315
    %v1381 = vadd.f32 %v1047, %v1318
    %v1382 = vadd.f32 %v1048, %v1321
    %v1383 = vld [vmem:[%s0 + $0x11] sm:$0xff]
    %v1384 = vld [vmem:[%s0 + $0x19] sm:$0xff]
    %v1385 = vld [vmem:[%s0 + $0x21] sm:$0xff]
    %v1386 = vld [vmem:[%s0 + $0x29] sm:$0xff]
    %v1387 = vld [vmem:[%s0 + $0x31] sm:$0xff]
    %v1388 = vld [vmem:[%s0 + $0x39] sm:$0xff]
    %v1389 = vld [vmem:[%s0 + $0x41] sm:$0xff]
    %v1390 = vld [vmem:[%s0 + $0x49] sm:$0xff]
    %v1391 = vld [vmem:[%s0 + $0x51] sm:$0xff]
    %v1392 = vld [vmem:[%s0 + $0x59] sm:$0xff]
    %v1393 = vld [vmem:[%s0 + $0x61] sm:$0xff]
    %v1394 = vld [vmem:[%s0 + $0x69] sm:$0xff]
    %v1395 = vld [vmem:[%s0 + $0x71] sm:$0xff]
    %v1396 = vld [vmem:[%s0 + $0x79] sm:$0xff]
    %v1397 = vld [vmem:[%s0 + $0x81] sm:$0xff]
    %v1398 = vld [vmem:[%s0 + $0x89] sm:$0xff]
    %v1399 = vld [vmem:[%s0 + $0x91] sm:$0xff]
    %v1400 = vld [vmem:[%s0 + $0x99] sm:$0xff]
    %v1401 = vld [vmem:[%s0 + $0xa1] sm:$0xff]
    %v1402 = vld [vmem:[%s0 + $0xa9] sm:$0xff]
    %v1403 = vld [vmem:[%s0 + $0xb1] sm:$0xff]
    %v1404 = vld [vmem:[%s0 + $0xb9] sm:$0xff]
    %v1405 = vld [vmem:[%s0 + $0xc1] sm:$0xff]
    %v1406 = vld [vmem:[%s0 + $0xc9] sm:$0xff]
    %v1407 = vld [vmem:[%s0 + $0xd1] sm:$0xff]
    %v1408 = vld [vmem:[%s0 + $0xd9] sm:$0xff]
    %v1409 = vld [vmem:[%s0 + $0xe1] sm:$0xff]
    %v1410 = vld [vmem:[%s0 + $0xe9] sm:$0xff]
    %v1411 = vld [vmem:[%s0 + $0xf1] sm:$0xff]
    %v1412 = vld [vmem:[%s0 + $0xf9] sm:$0xff]
    %v1413 = vld [vmem:[%s0 + $0x101] sm:$0xff]
    %v1414 = vld [vmem:[%s0 + $0x109] sm:$0xff]
    %v1415 = vld [vmem:[%s0 + $0x111] sm:$0xff]
    %v1416 = vld [vmem:[%s0 + $0x119] sm:$0xff]
    %v1417 = vld [vmem:[%s0 + $0x121] sm:$0xff]
    %v1418 = vld [vmem:[%s0 + $0x129] sm:$0xff]
    %v1419 = vld [vmem:[%s0 + $0x131] sm:$0xff]
    %v1420 = vld [vmem:[%s0 + $0x139] sm:$0xff]
    %v1421 = vld [vmem:[%s0 + $0x141] sm:$0xff]
    %v1422 = vld [vmem:[%s0 + $0x149] sm:$0xff]
    %v1423 = vld [vmem:[%s0 + $0x151] sm:$0xff]
    %v1424 = vld [vmem:[%s0 + $0x159] sm:$0xff]
    %v1425 = vld [vmem:[%s0 + $0x161] sm:$0xff]
    %v1426 = vld [vmem:[%s0 + $0x169] sm:$0xff]
    %v1427 = vld [vmem:[%s0 + $0x171] sm:$0xff]
    %v1428 = vld [vmem:[%s0 + $0x179] sm:$0xff]
    %v1429 = vld [vmem:[%s0 + $0x181] sm:$0xff]
    %v1430 = vld [vmem:[%s0 + $0x189] sm:$0xff]
    %v1431 = vld [vmem:[%s0 + $0x191] sm:$0xff]
    %v1432 = vld [vmem:[%s0 + $0x199] sm:$0xff]
    %v1433 = vld [vmem:[%s0 + $0x1a1] sm:$0xff]
    %v1434 = vld [vmem:[%s0 + $0x1a9] sm:$0xff]
    %v1435 = vld [vmem:[%s0 + $0x1b1] sm:$0xff]
    %v1436 = vld [vmem:[%s0 + $0x1b9] sm:$0xff]
    %v1437 = vld [vmem:[%s0 + $0x1c1] sm:$0xff]
    %v1438 = vld [vmem:[%s0 + $0x1c9] sm:$0xff]
    %v1439 = vld [vmem:[%s0 + $0x1d1] sm:$0xff]
    %v1440 = vld [vmem:[%s0 + $0x1d9] sm:$0xff]
    %v1441 = vld [vmem:[%s0 + $0x1e1] sm:$0xff]
    %v1442 = vld [vmem:[%s0 + $0x1e9] sm:$0x3f]
    %s1443 = scalar_lea.vmem [#allocation4], 512
    %v1444 = vld [vmem:[%s1443] sm:$0xff]
    %v1445 = vld [vmem:[%s1443 + $0x8] sm:$0xff]
    %v1446 = vld [vmem:[%s1443 + $0x10] sm:$0xff]
    %v1447 = vld [vmem:[%s1443 + $0x18] sm:$0xff]
    %v1448 = vld [vmem:[%s1443 + $0x20] sm:$0xff]
    %v1449 = vld [vmem:[%s1443 + $0x28] sm:$0xff]
    %v1450 = vld [vmem:[%s1443 + $0x30] sm:$0xff]
    %v1451 = vld [vmem:[%s1443 + $0x38] sm:$0xff]
    %v1452 = vld [vmem:[%s1443 + $0x40] sm:$0xff]
    %v1453 = vld [vmem:[%s1443 + $0x48] sm:$0xff]
    %v1454 = vld [vmem:[%s1443 + $0x50] sm:$0xff]
    %v1455 = vld [vmem:[%s1443 + $0x58] sm:$0xff]
    %v1456 = vld [vmem:[%s1443 + $0x60] sm:$0xff]
    %v1457 = vld [vmem:[%s1443 + $0x68] sm:$0xff]
    %v1458 = vld [vmem:[%s1443 + $0x70] sm:$0xff]
    %v1459 = vld [vmem:[%s1443 + $0x78] sm:$0xff]
    %1460 = vmatpush.msra.mxu0 %v1459
    %1461 = vmatpush.msra.mxu0 %v1458
    %1462 = vmatpush.msra.mxu0 %v1457
    %1463 = vmatpush.msra.mxu0 %v1456
    %1464 = vmatpush.msra.mxu0 %v1455
    %1465 = vmatpush.msra.mxu0 %v1454
    %1466 = vmatpush.msra.mxu0 %v1453
    %1467 = vmatpush.msra.mxu0 %v1452
    %1468 = vmatpush.msra.mxu0 %v1451
    %1469 = vmatpush.msra.mxu0 %v1450
    %1470 = vmatpush.msra.mxu0 %v1449
    %1471 = vmatpush.msra.mxu0 %v1448
    %1472 = vmatpush.msra.mxu0 %v1447
    %1473 = vmatpush.msra.mxu0 %v1446
    %1474 = vmatpush.msra.mxu0 %v1445
    %1475 = vmatpush.msra.mxu0 %v1444
    %1476 = vmatmul.f32.gmra.mxu0 %v1383
    %v1477 = vpop.f32.mrf.mxu0
    %v1478 = vadd.f32 0.0, %v1477
    %1479 = vmatmul.f32.gmra.mxu0 %v1384
    %v1480 = vpop.f32.mrf.mxu0
    %v1481 = vadd.f32 0.0, %v1480
    %1482 = vmatmul.f32.gmra.mxu0 %v1385
    %v1483 = vpop.f32.mrf.mxu0
    %v1484 = vadd.f32 0.0, %v1483
    %1485 = vmatmul.f32.gmra.mxu0 %v1386
    %v1486 = vpop.f32.mrf.mxu0
    %v1487 = vadd.f32 0.0, %v1486
    %1488 = vmatmul.f32.gmra.mxu0 %v1387
    %v1489 = vpop.f32.mrf.mxu0
    %v1490 = vadd.f32 0.0, %v1489
    %1491 = vmatmul.f32.gmra.mxu0 %v1388
    %v1492 = vpop.f32.mrf.mxu0
    %v1493 = vadd.f32 0.0, %v1492
    %1494 = vmatmul.f32.gmra.mxu0 %v1389
    %v1495 = vpop.f32.mrf.mxu0
    %v1496 = vadd.f32 0.0, %v1495
    %1497 = vmatmul.f32.gmra.mxu0 %v1390
    %v1498 = vpop.f32.mrf.mxu0
    %v1499 = vadd.f32 0.0, %v1498
    %1500 = vmatmul.f32.gmra.mxu0 %v1391
    %v1501 = vpop.f32.mrf.mxu0
    %v1502 = vadd.f32 0.0, %v1501
    %1503 = vmatmul.f32.gmra.mxu0 %v1392
    %v1504 = vpop.f32.mrf.mxu0
    %v1505 = vadd.f32 0.0, %v1504
    %1506 = vmatmul.f32.gmra.mxu0 %v1393
    %v1507 = vpop.f32.mrf.mxu0
    %v1508 = vadd.f32 0.0, %v1507
    %1509 = vmatmul.f32.gmra.mxu0 %v1394
    %v1510 = vpop.f32.mrf.mxu0
    %v1511 = vadd.f32 0.0, %v1510
    %1512 = vmatmul.f32.gmra.mxu0 %v1395
    %v1513 = vpop.f32.mrf.mxu0
    %v1514 = vadd.f32 0.0, %v1513
    %1515 = vmatmul.f32.gmra.mxu0 %v1396
    %v1516 = vpop.f32.mrf.mxu0
    %v1517 = vadd.f32 0.0, %v1516
    %1518 = vmatmul.f32.gmra.mxu0 %v1397
    %v1519 = vpop.f32.mrf.mxu0
    %v1520 = vadd.f32 0.0, %v1519
    %1521 = vmatmul.f32.gmra.mxu0 %v1398
    %v1522 = vpop.f32.mrf.mxu0
    %v1523 = vadd.f32 0.0, %v1522
    %1524 = vmatmul.f32.gmra.mxu0 %v1399
    %v1525 = vpop.f32.mrf.mxu0
    %v1526 = vadd.f32 0.0, %v1525
    %1527 = vmatmul.f32.gmra.mxu0 %v1400
    %v1528 = vpop.f32.mrf.mxu0
    %v1529 = vadd.f32 0.0, %v1528
    %1530 = vmatmul.f32.gmra.mxu0 %v1401
    %v1531 = vpop.f32.mrf.mxu0
    %v1532 = vadd.f32 0.0, %v1531
    %1533 = vmatmul.f32.gmra.mxu0 %v1402
    %v1534 = vpop.f32.mrf.mxu0
    %v1535 = vadd.f32 0.0, %v1534
    %1536 = vmatmul.f32.gmra.mxu0 %v1403
    %v1537 = vpop.f32.mrf.mxu0
    %v1538 = vadd.f32 0.0, %v1537
    %1539 = vmatmul.f32.gmra.mxu0 %v1404
    %v1540 = vpop.f32.mrf.mxu0
    %v1541 = vadd.f32 0.0, %v1540
    %1542 = vmatmul.f32.gmra.mxu0 %v1405
    %v1543 = vpop.f32.mrf.mxu0
    %v1544 = vadd.f32 0.0, %v1543
    %1545 = vmatmul.f32.gmra.mxu0 %v1406
    %v1546 = vpop.f32.mrf.mxu0
    %v1547 = vadd.f32 0.0, %v1546
    %1548 = vmatmul.f32.gmra.mxu0 %v1407
    %v1549 = vpop.f32.mrf.mxu0
    %v1550 = vadd.f32 0.0, %v1549
    %1551 = vmatmul.f32.gmra.mxu0 %v1408
    %v1552 = vpop.f32.mrf.mxu0
    %v1553 = vadd.f32 0.0, %v1552
    %1554 = vmatmul.f32.gmra.mxu0 %v1409
    %v1555 = vpop.f32.mrf.mxu0
    %v1556 = vadd.f32 0.0, %v1555
    %1557 = vmatmul.f32.gmra.mxu0 %v1410
    %v1558 = vpop.f32.mrf.mxu0
    %v1559 = vadd.f32 0.0, %v1558
    %1560 = vmatmul.f32.gmra.mxu0 %v1411
    %v1561 = vpop.f32.mrf.mxu0
    %v1562 = vadd.f32 0.0, %v1561
    %1563 = vmatmul.f32.gmra.mxu0 %v1412
    %v1564 = vpop.f32.mrf.mxu0
    %v1565 = vadd.f32 0.0, %v1564
    %1566 = vmatmul.f32.gmra.mxu0 %v1413
    %v1567 = vpop.f32.mrf.mxu0
    %v1568 = vadd.f32 0.0, %v1567
    %1569 = vmatmul.f32.gmra.mxu0 %v1414
    %v1570 = vpop.f32.mrf.mxu0
    %v1571 = vadd.f32 0.0, %v1570
    %1572 = vmatmul.f32.gmra.mxu0 %v1415
    %v1573 = vpop.f32.mrf.mxu0
    %v1574 = vadd.f32 0.0, %v1573
    %1575 = vmatmul.f32.gmra.mxu0 %v1416
    %v1576 = vpop.f32.mrf.mxu0
    %v1577 = vadd.f32 0.0, %v1576
    %1578 = vmatmul.f32.gmra.mxu0 %v1417
    %v1579 = vpop.f32.mrf.mxu0
    %v1580 = vadd.f32 0.0, %v1579
    %1581 = vmatmul.f32.gmra.mxu0 %v1418
    %v1582 = vpop.f32.mrf.mxu0
    %v1583 = vadd.f32 0.0, %v1582
    %1584 = vmatmul.f32.gmra.mxu0 %v1419
    %v1585 = vpop.f32.mrf.mxu0
    %v1586 = vadd.f32 0.0, %v1585
    %1587 = vmatmul.f32.gmra.mxu0 %v1420
    %v1588 = vpop.f32.mrf.mxu0
    %v1589 = vadd.f32 0.0, %v1588
    %1590 = vmatmul.f32.gmra.mxu0 %v1421
    %v1591 = vpop.f32.mrf.mxu0
    %v1592 = vadd.f32 0.0, %v1591
    %1593 = vmatmul.f32.gmra.mxu0 %v1422
    %v1594 = vpop.f32.mrf.mxu0
    %v1595 = vadd.f32 0.0, %v1594
    %1596 = vmatmul.f32.gmra.mxu0 %v1423
    %v1597 = vpop.f32.mrf.mxu0
    %v1598 = vadd.f32 0.0, %v1597
    %1599 = vmatmul.f32.gmra.mxu0 %v1424
    %v1600 = vpop.f32.mrf.mxu0
    %v1601 = vadd.f32 0.0, %v1600
    %1602 = vmatmul.f32.gmra.mxu0 %v1425
    %v1603 = vpop.f32.mrf.mxu0
    %v1604 = vadd.f32 0.0, %v1603
    %1605 = vmatmul.f32.gmra.mxu0 %v1426
    %v1606 = vpop.f32.mrf.mxu0
    %v1607 = vadd.f32 0.0, %v1606
    %1608 = vmatmul.f32.gmra.mxu0 %v1427
    %v1609 = vpop.f32.mrf.mxu0
    %v1610 = vadd.f32 0.0, %v1609
    %1611 = vmatmul.f32.gmra.mxu0 %v1428
    %v1612 = vpop.f32.mrf.mxu0
    %v1613 = vadd.f32 0.0, %v1612
    %1614 = vmatmul.f32.gmra.mxu0 %v1429
    %v1615 = vpop.f32.mrf.mxu0
    %v1616 = vadd.f32 0.0, %v1615
    %1617 = vmatmul.f32.gmra.mxu0 %v1430
    %v1618 = vpop.f32.mrf.mxu0
    %v1619 = vadd.f32 0.0, %v1618
    %1620 = vmatmul.f32.gmra.mxu0 %v1431
    %v1621 = vpop.f32.mrf.mxu0
    %v1622 = vadd.f32 0.0, %v1621
    %1623 = vmatmul.f32.gmra.mxu0 %v1432
    %v1624 = vpop.f32.mrf.mxu0
    %v1625 = vadd.f32 0.0, %v1624
    %1626 = vmatmul.f32.gmra.mxu0 %v1433
    %v1627 = vpop.f32.mrf.mxu0
    %v1628 = vadd.f32 0.0, %v1627
    %1629 = vmatmul.f32.gmra.mxu0 %v1434
    %v1630 = vpop.f32.mrf.mxu0
    %v1631 = vadd.f32 0.0, %v1630
    %1632 = vmatmul.f32.gmra.mxu0 %v1435
    %v1633 = vpop.f32.mrf.mxu0
    %v1634 = vadd.f32 0.0, %v1633
    %1635 = vmatmul.f32.gmra.mxu0 %v1436
    %v1636 = vpop.f32.mrf.mxu0
    %v1637 = vadd.f32 0.0, %v1636
    %1638 = vmatmul.f32.gmra.mxu0 %v1437
    %v1639 = vpop.f32.mrf.mxu0
    %v1640 = vadd.f32 0.0, %v1639
    %1641 = vmatmul.f32.gmra.mxu0 %v1438
    %v1642 = vpop.f32.mrf.mxu0
    %v1643 = vadd.f32 0.0, %v1642
    %1644 = vmatmul.f32.gmra.mxu0 %v1439
    %v1645 = vpop.f32.mrf.mxu0
    %v1646 = vadd.f32 0.0, %v1645
    %1647 = vmatmul.f32.gmra.mxu0 %v1440
    %v1648 = vpop.f32.mrf.mxu0
    %v1649 = vadd.f32 0.0, %v1648
    %1650 = vmatmul.f32.gmra.mxu0 %v1441
    %v1651 = vpop.f32.mrf.mxu0
    %v1652 = vadd.f32 0.0, %v1651
    %1653 = vmatmul.f32.gmra.mxu0 %v1442
    %v1654 = vpop.f32.mrf.mxu0
    %v1655 = vadd.f32 0.0, %v1654
    %1656 = vdwg.mxu0
    %v1657 = vadd.f32 %v1323, %v1478
    %v1658 = vadd.f32 %v1324, %v1481
    %v1659 = vadd.f32 %v1325, %v1484
    %v1660 = vadd.f32 %v1326, %v1487
    %v1661 = vadd.f32 %v1327, %v1490
    %v1662 = vadd.f32 %v1328, %v1493
    %v1663 = vadd.f32 %v1329, %v1496
    %v1664 = vadd.f32 %v1330, %v1499
    %v1665 = vadd.f32 %v1331, %v1502
    %v1666 = vadd.f32 %v1332, %v1505
    %v1667 = vadd.f32 %v1333, %v1508
    %v1668 = vadd.f32 %v1334, %v1511
    %v1669 = vadd.f32 %v1335, %v1514
    %v1670 = vadd.f32 %v1336, %v1517
    %v1671 = vadd.f32 %v1337, %v1520
    %v1672 = vadd.f32 %v1338, %v1523
    %v1673 = vadd.f32 %v1339, %v1526
    %v1674 = vadd.f32 %v1340, %v1529
    %v1675 = vadd.f32 %v1341, %v1532
    %v1676 = vadd.f32 %v1342, %v1535
    %v1677 = vadd.f32 %v1343, %v1538
    %v1678 = vadd.f32 %v1344, %v1541
    %v1679 = vadd.f32 %v1345, %v1544
    %v1680 = vadd.f32 %v1346, %v1547
    %v1681 = vadd.f32 %v1347, %v1550
    %v1682 = vadd.f32 %v1348, %v1553
    %v1683 = vadd.f32 %v1349, %v1556
    %v1684 = vadd.f32 %v1350, %v1559
    %v1685 = vadd.f32 %v1351, %v1562
    %v1686 = vadd.f32 %v1352, %v1565
    %v1687 = vadd.f32 %v1353, %v1568
    %v1688 = vadd.f32 %v1354, %v1571
    %v1689 = vadd.f32 %v1355, %v1574
    %v1690 = vadd.f32 %v1356, %v1577
    %v1691 = vadd.f32 %v1357, %v1580
    %v1692 = vadd.f32 %v1358, %v1583
    %v1693 = vadd.f32 %v1359, %v1586
    %v1694 = vadd.f32 %v1360, %v1589
    %v1695 = vadd.f32 %v1361, %v1592
    %v1696 = vadd.f32 %v1362, %v1595
    %v1697 = vadd.f32 %v1363, %v1598
    %v1698 = vadd.f32 %v1364, %v1601
    %v1699 = vadd.f32 %v1365, %v1604
    %v1700 = vadd.f32 %v1366, %v1607
    %v1701 = vadd.f32 %v1367, %v1610
    %v1702 = vadd.f32 %v1368, %v1613
    %v1703 = vadd.f32 %v1369, %v1616
    %v1704 = vadd.f32 %v1370, %v1619
    %v1705 = vadd.f32 %v1371, %v1622
    %v1706 = vadd.f32 %v1372, %v1625
    %v1707 = vadd.f32 %v1373, %v1628
    %v1708 = vadd.f32 %v1374, %v1631
    %v1709 = vadd.f32 %v1375, %v1634
    %v1710 = vadd.f32 %v1376, %v1637
    %v1711 = vadd.f32 %v1377, %v1640
    %v1712 = vadd.f32 %v1378, %v1643
    %v1713 = vadd.f32 %v1379, %v1646
    %v1714 = vadd.f32 %v1380, %v1649
    %v1715 = vadd.f32 %v1381, %v1652
    %v1716 = vadd.f32 %v1382, %v1655
    %v1717 = vld [vmem:[%s0 + $0x12] sm:$0xff]
    %v1718 = vld [vmem:[%s0 + $0x1a] sm:$0xff]
    %v1719 = vld [vmem:[%s0 + $0x22] sm:$0xff]
    %v1720 = vld [vmem:[%s0 + $0x2a] sm:$0xff]
    %v1721 = vld [vmem:[%s0 + $0x32] sm:$0xff]
    %v1722 = vld [vmem:[%s0 + $0x3a] sm:$0xff]
    %v1723 = vld [vmem:[%s0 + $0x42] sm:$0xff]
    %v1724 = vld [vmem:[%s0 + $0x4a] sm:$0xff]
    %v1725 = vld [vmem:[%s0 + $0x52] sm:$0xff]
    %v1726 = vld [vmem:[%s0 + $0x5a] sm:$0xff]
    %v1727 = vld [vmem:[%s0 + $0x62] sm:$0xff]
    %v1728 = vld [vmem:[%s0 + $0x6a] sm:$0xff]
    %v1729 = vld [vmem:[%s0 + $0x72] sm:$0xff]
    %v1730 = vld [vmem:[%s0 + $0x7a] sm:$0xff]
    %v1731 = vld [vmem:[%s0 + $0x82] sm:$0xff]
    %v1732 = vld [vmem:[%s0 + $0x8a] sm:$0xff]
    %v1733 = vld [vmem:[%s0 + $0x92] sm:$0xff]
    %v1734 = vld [vmem:[%s0 + $0x9a] sm:$0xff]
    %v1735 = vld [vmem:[%s0 + $0xa2] sm:$0xff]
    %v1736 = vld [vmem:[%s0 + $0xaa] sm:$0xff]
    %v1737 = vld [vmem:[%s0 + $0xb2] sm:$0xff]
    %v1738 = vld [vmem:[%s0 + $0xba] sm:$0xff]
    %v1739 = vld [vmem:[%s0 + $0xc2] sm:$0xff]
    %v1740 = vld [vmem:[%s0 + $0xca] sm:$0xff]
    %v1741 = vld [vmem:[%s0 + $0xd2] sm:$0xff]
    %v1742 = vld [vmem:[%s0 + $0xda] sm:$0xff]
    %v1743 = vld [vmem:[%s0 + $0xe2] sm:$0xff]
    %v1744 = vld [vmem:[%s0 + $0xea] sm:$0xff]
    %v1745 = vld [vmem:[%s0 + $0xf2] sm:$0xff]
    %v1746 = vld [vmem:[%s0 + $0xfa] sm:$0xff]
    %v1747 = vld [vmem:[%s0 + $0x102] sm:$0xff]
    %v1748 = vld [vmem:[%s0 + $0x10a] sm:$0xff]
    %v1749 = vld [vmem:[%s0 + $0x112] sm:$0xff]
    %v1750 = vld [vmem:[%s0 + $0x11a] sm:$0xff]
    %v1751 = vld [vmem:[%s0 + $0x122] sm:$0xff]
    %v1752 = vld [vmem:[%s0 + $0x12a] sm:$0xff]
    %v1753 = vld [vmem:[%s0 + $0x132] sm:$0xff]
    %v1754 = vld [vmem:[%s0 + $0x13a] sm:$0xff]
    %v1755 = vld [vmem:[%s0 + $0x142] sm:$0xff]
    %v1756 = vld [vmem:[%s0 + $0x14a] sm:$0xff]
    %v1757 = vld [vmem:[%s0 + $0x152] sm:$0xff]
    %v1758 = vld [vmem:[%s0 + $0x15a] sm:$0xff]
    %v1759 = vld [vmem:[%s0 + $0x162] sm:$0xff]
    %v1760 = vld [vmem:[%s0 + $0x16a] sm:$0xff]
    %v1761 = vld [vmem:[%s0 + $0x172] sm:$0xff]
    %v1762 = vld [vmem:[%s0 + $0x17a] sm:$0xff]
    %v1763 = vld [vmem:[%s0 + $0x182] sm:$0xff]
    %v1764 = vld [vmem:[%s0 + $0x18a] sm:$0xff]
    %v1765 = vld [vmem:[%s0 + $0x192] sm:$0xff]
    %v1766 = vld [vmem:[%s0 + $0x19a] sm:$0xff]
    %v1767 = vld [vmem:[%s0 + $0x1a2] sm:$0xff]
    %v1768 = vld [vmem:[%s0 + $0x1aa] sm:$0xff]
    %v1769 = vld [vmem:[%s0 + $0x1b2] sm:$0xff]
    %v1770 = vld [vmem:[%s0 + $0x1ba] sm:$0xff]
    %v1771 = vld [vmem:[%s0 + $0x1c2] sm:$0xff]
    %v1772 = vld [vmem:[%s0 + $0x1ca] sm:$0xff]
    %v1773 = vld [vmem:[%s0 + $0x1d2] sm:$0xff]
    %v1774 = vld [vmem:[%s0 + $0x1da] sm:$0xff]
    %v1775 = vld [vmem:[%s0 + $0x1e2] sm:$0xff]
    %v1776 = vld [vmem:[%s0 + $0x1ea] sm:$0x3f]
    %s1777 = scalar_lea.vmem [#allocation4], 640
    %v1778 = vld [vmem:[%s1777] sm:$0xff]
    %v1779 = vld [vmem:[%s1777 + $0x8] sm:$0xff]
    %v1780 = vld [vmem:[%s1777 + $0x10] sm:$0xff]
    %v1781 = vld [vmem:[%s1777 + $0x18] sm:$0xff]
    %v1782 = vld [vmem:[%s1777 + $0x20] sm:$0xff]
    %v1783 = vld [vmem:[%s1777 + $0x28] sm:$0xff]
    %v1784 = vld [vmem:[%s1777 + $0x30] sm:$0xff]
    %v1785 = vld [vmem:[%s1777 + $0x38] sm:$0xff]
    %v1786 = vld [vmem:[%s1777 + $0x40] sm:$0xff]
    %v1787 = vld [vmem:[%s1777 + $0x48] sm:$0xff]
    %v1788 = vld [vmem:[%s1777 + $0x50] sm:$0xff]
    %v1789 = vld [vmem:[%s1777 + $0x58] sm:$0xff]
    %v1790 = vld [vmem:[%s1777 + $0x60] sm:$0xff]
    %v1791 = vld [vmem:[%s1777 + $0x68] sm:$0xff]
    %v1792 = vld [vmem:[%s1777 + $0x70] sm:$0xff]
    %v1793 = vld [vmem:[%s1777 + $0x78] sm:$0xff]
    %1794 = vmatpush.msra.mxu0 %v1793
    %1795 = vmatpush.msra.mxu0 %v1792
    %1796 = vmatpush.msra.mxu0 %v1791
    %1797 = vmatpush.msra.mxu0 %v1790
    %1798 = vmatpush.msra.mxu0 %v1789
    %1799 = vmatpush.msra.mxu0 %v1788
    %1800 = vmatpush.msra.mxu0 %v1787
    %1801 = vmatpush.msra.mxu0 %v1786
    %1802 = vmatpush.msra.mxu0 %v1785
    %1803 = vmatpush.msra.mxu0 %v1784
    %1804 = vmatpush.msra.mxu0 %v1783
    %1805 = vmatpush.msra.mxu0 %v1782
    %1806 = vmatpush.msra.mxu0 %v1781
    %1807 = vmatpush.msra.mxu0 %v1780
    %1808 = vmatpush.msra.mxu0 %v1779
    %1809 = vmatpush.msra.mxu0 %v1778
    %1810 = vmatmul.f32.gmra.mxu0 %v1717
    %v1811 = vpop.f32.mrf.mxu0
    %v1812 = vadd.f32 0.0, %v1811
    %1813 = vmatmul.f32.gmra.mxu0 %v1718
    %v1814 = vpop.f32.mrf.mxu0
    %v1815 = vadd.f32 0.0, %v1814
    %1816 = vmatmul.f32.gmra.mxu0 %v1719
    %v1817 = vpop.f32.mrf.mxu0
    %v1818 = vadd.f32 0.0, %v1817
    %1819 = vmatmul.f32.gmra.mxu0 %v1720
    %v1820 = vpop.f32.mrf.mxu0
    %v1821 = vadd.f32 0.0, %v1820
    %1822 = vmatmul.f32.gmra.mxu0 %v1721
    %v1823 = vpop.f32.mrf.mxu0
    %v1824 = vadd.f32 0.0, %v1823
    %1825 = vmatmul.f32.gmra.mxu0 %v1722
    %v1826 = vpop.f32.mrf.mxu0
    %v1827 = vadd.f32 0.0, %v1826
    %1828 = vmatmul.f32.gmra.mxu0 %v1723
    %v1829 = vpop.f32.mrf.mxu0
    %v1830 = vadd.f32 0.0, %v1829
    %1831 = vmatmul.f32.gmra.mxu0 %v1724
    %v1832 = vpop.f32.mrf.mxu0
    %v1833 = vadd.f32 0.0, %v1832
    %1834 = vmatmul.f32.gmra.mxu0 %v1725
    %v1835 = vpop.f32.mrf.mxu0
    %v1836 = vadd.f32 0.0, %v1835
    %1837 = vmatmul.f32.gmra.mxu0 %v1726
    %v1838 = vpop.f32.mrf.mxu0
    %v1839 = vadd.f32 0.0, %v1838
    %1840 = vmatmul.f32.gmra.mxu0 %v1727
    %v1841 = vpop.f32.mrf.mxu0
    %v1842 = vadd.f32 0.0, %v1841
    %1843 = vmatmul.f32.gmra.mxu0 %v1728
    %v1844 = vpop.f32.mrf.mxu0
    %v1845 = vadd.f32 0.0, %v1844
    %1846 = vmatmul.f32.gmra.mxu0 %v1729
    %v1847 = vpop.f32.mrf.mxu0
    %v1848 = vadd.f32 0.0, %v1847
    %1849 = vmatmul.f32.gmra.mxu0 %v1730
    %v1850 = vpop.f32.mrf.mxu0
    %v1851 = vadd.f32 0.0, %v1850
    %1852 = vmatmul.f32.gmra.mxu0 %v1731
    %v1853 = vpop.f32.mrf.mxu0
    %v1854 = vadd.f32 0.0, %v1853
    %1855 = vmatmul.f32.gmra.mxu0 %v1732
    %v1856 = vpop.f32.mrf.mxu0
    %v1857 = vadd.f32 0.0, %v1856
    %1858 = vmatmul.f32.gmra.mxu0 %v1733
    %v1859 = vpop.f32.mrf.mxu0
    %v1860 = vadd.f32 0.0, %v1859
    %1861 = vmatmul.f32.gmra.mxu0 %v1734
    %v1862 = vpop.f32.mrf.mxu0
    %v1863 = vadd.f32 0.0, %v1862
    %1864 = vmatmul.f32.gmra.mxu0 %v1735
    %v1865 = vpop.f32.mrf.mxu0
    %v1866 = vadd.f32 0.0, %v1865
    %1867 = vmatmul.f32.gmra.mxu0 %v1736
    %v1868 = vpop.f32.mrf.mxu0
    %v1869 = vadd.f32 0.0, %v1868
    %1870 = vmatmul.f32.gmra.mxu0 %v1737
    %v1871 = vpop.f32.mrf.mxu0
    %v1872 = vadd.f32 0.0, %v1871
    %1873 = vmatmul.f32.gmra.mxu0 %v1738
    %v1874 = vpop.f32.mrf.mxu0
    %v1875 = vadd.f32 0.0, %v1874
    %1876 = vmatmul.f32.gmra.mxu0 %v1739
    %v1877 = vpop.f32.mrf.mxu0
    %v1878 = vadd.f32 0.0, %v1877
    %1879 = vmatmul.f32.gmra.mxu0 %v1740
    %v1880 = vpop.f32.mrf.mxu0
    %v1881 = vadd.f32 0.0, %v1880
    %1882 = vmatmul.f32.gmra.mxu0 %v1741
    %v1883 = vpop.f32.mrf.mxu0
    %v1884 = vadd.f32 0.0, %v1883
    %1885 = vmatmul.f32.gmra.mxu0 %v1742
    %v1886 = vpop.f32.mrf.mxu0
    %v1887 = vadd.f32 0.0, %v1886
    %1888 = vmatmul.f32.gmra.mxu0 %v1743
    %v1889 = vpop.f32.mrf.mxu0
    %v1890 = vadd.f32 0.0, %v1889
    %1891 = vmatmul.f32.gmra.mxu0 %v1744
    %v1892 = vpop.f32.mrf.mxu0
    %v1893 = vadd.f32 0.0, %v1892
    %1894 = vmatmul.f32.gmra.mxu0 %v1745
    %v1895 = vpop.f32.mrf.mxu0
    %v1896 = vadd.f32 0.0, %v1895
    %1897 = vmatmul.f32.gmra.mxu0 %v1746
    %v1898 = vpop.f32.mrf.mxu0
    %v1899 = vadd.f32 0.0, %v1898
    %1900 = vmatmul.f32.gmra.mxu0 %v1747
    %v1901 = vpop.f32.mrf.mxu0
    %v1902 = vadd.f32 0.0, %v1901
    %1903 = vmatmul.f32.gmra.mxu0 %v1748
    %v1904 = vpop.f32.mrf.mxu0
    %v1905 = vadd.f32 0.0, %v1904
    %1906 = vmatmul.f32.gmra.mxu0 %v1749
    %v1907 = vpop.f32.mrf.mxu0
    %v1908 = vadd.f32 0.0, %v1907
    %1909 = vmatmul.f32.gmra.mxu0 %v1750
    %v1910 = vpop.f32.mrf.mxu0
    %v1911 = vadd.f32 0.0, %v1910
    %1912 = vmatmul.f32.gmra.mxu0 %v1751
    %v1913 = vpop.f32.mrf.mxu0
    %v1914 = vadd.f32 0.0, %v1913
    %1915 = vmatmul.f32.gmra.mxu0 %v1752
    %v1916 = vpop.f32.mrf.mxu0
    %v1917 = vadd.f32 0.0, %v1916
    %1918 = vmatmul.f32.gmra.mxu0 %v1753
    %v1919 = vpop.f32.mrf.mxu0
    %v1920 = vadd.f32 0.0, %v1919
    %1921 = vmatmul.f32.gmra.mxu0 %v1754
    %v1922 = vpop.f32.mrf.mxu0
    %v1923 = vadd.f32 0.0, %v1922
    %1924 = vmatmul.f32.gmra.mxu0 %v1755
    %v1925 = vpop.f32.mrf.mxu0
    %v1926 = vadd.f32 0.0, %v1925
    %1927 = vmatmul.f32.gmra.mxu0 %v1756
    %v1928 = vpop.f32.mrf.mxu0
    %v1929 = vadd.f32 0.0, %v1928
    %1930 = vmatmul.f32.gmra.mxu0 %v1757
    %v1931 = vpop.f32.mrf.mxu0
    %v1932 = vadd.f32 0.0, %v1931
    %1933 = vmatmul.f32.gmra.mxu0 %v1758
    %v1934 = vpop.f32.mrf.mxu0
    %v1935 = vadd.f32 0.0, %v1934
    %1936 = vmatmul.f32.gmra.mxu0 %v1759
    %v1937 = vpop.f32.mrf.mxu0
    %v1938 = vadd.f32 0.0, %v1937
    %1939 = vmatmul.f32.gmra.mxu0 %v1760
    %v1940 = vpop.f32.mrf.mxu0
    %v1941 = vadd.f32 0.0, %v1940
    %1942 = vmatmul.f32.gmra.mxu0 %v1761
    %v1943 = vpop.f32.mrf.mxu0
    %v1944 = vadd.f32 0.0, %v1943
    %1945 = vmatmul.f32.gmra.mxu0 %v1762
    %v1946 = vpop.f32.mrf.mxu0
    %v1947 = vadd.f32 0.0, %v1946
    %1948 = vmatmul.f32.gmra.mxu0 %v1763
    %v1949 = vpop.f32.mrf.mxu0
    %v1950 = vadd.f32 0.0, %v1949
    %1951 = vmatmul.f32.gmra.mxu0 %v1764
    %v1952 = vpop.f32.mrf.mxu0
    %v1953 = vadd.f32 0.0, %v1952
    %1954 = vmatmul.f32.gmra.mxu0 %v1765
    %v1955 = vpop.f32.mrf.mxu0
    %v1956 = vadd.f32 0.0, %v1955
    %1957 = vmatmul.f32.gmra.mxu0 %v1766
    %v1958 = vpop.f32.mrf.mxu0
    %v1959 = vadd.f32 0.0, %v1958
    %1960 = vmatmul.f32.gmra.mxu0 %v1767
    %v1961 = vpop.f32.mrf.mxu0
    %v1962 = vadd.f32 0.0, %v1961
    %1963 = vmatmul.f32.gmra.mxu0 %v1768
    %v1964 = vpop.f32.mrf.mxu0
    %v1965 = vadd.f32 0.0, %v1964
    %1966 = vmatmul.f32.gmra.mxu0 %v1769
    %v1967 = vpop.f32.mrf.mxu0
    %v1968 = vadd.f32 0.0, %v1967
    %1969 = vmatmul.f32.gmra.mxu0 %v1770
    %v1970 = vpop.f32.mrf.mxu0
    %v1971 = vadd.f32 0.0, %v1970
    %1972 = vmatmul.f32.gmra.mxu0 %v1771
    %v1973 = vpop.f32.mrf.mxu0
    %v1974 = vadd.f32 0.0, %v1973
    %1975 = vmatmul.f32.gmra.mxu0 %v1772
    %v1976 = vpop.f32.mrf.mxu0
    %v1977 = vadd.f32 0.0, %v1976
    %1978 = vmatmul.f32.gmra.mxu0 %v1773
    %v1979 = vpop.f32.mrf.mxu0
    %v1980 = vadd.f32 0.0, %v1979
    %1981 = vmatmul.f32.gmra.mxu0 %v1774
    %v1982 = vpop.f32.mrf.mxu0
    %v1983 = vadd.f32 0.0, %v1982
    %1984 = vmatmul.f32.gmra.mxu0 %v1775
    %v1985 = vpop.f32.mrf.mxu0
    %v1986 = vadd.f32 0.0, %v1985
    %1987 = vmatmul.f32.gmra.mxu0 %v1776
    %v1988 = vpop.f32.mrf.mxu0
    %v1989 = vadd.f32 0.0, %v1988
    %1990 = vdwg.mxu0
    %v1991 = vadd.f32 %v1657, %v1812
    %v1992 = vadd.f32 %v1658, %v1815
    %v1993 = vadd.f32 %v1659, %v1818
    %v1994 = vadd.f32 %v1660, %v1821
    %v1995 = vadd.f32 %v1661, %v1824
    %v1996 = vadd.f32 %v1662, %v1827
    %v1997 = vadd.f32 %v1663, %v1830
    %v1998 = vadd.f32 %v1664, %v1833
    %v1999 = vadd.f32 %v1665, %v1836
    %v2000 = vadd.f32 %v1666, %v1839
    %v2001 = vadd.f32 %v1667, %v1842
    %v2002 = vadd.f32 %v1668, %v1845
    %v2003 = vadd.f32 %v1669, %v1848
    %v2004 = vadd.f32 %v1670, %v1851
    %v2005 = vadd.f32 %v1671, %v1854
    %v2006 = vadd.f32 %v1672, %v1857
    %v2007 = vadd.f32 %v1673, %v1860
    %v2008 = vadd.f32 %v1674, %v1863
    %v2009 = vadd.f32 %v1675, %v1866
    %v2010 = vadd.f32 %v1676, %v1869
    %v2011 = vadd.f32 %v1677, %v1872
    %v2012 = vadd.f32 %v1678, %v1875
    %v2013 = vadd.f32 %v1679, %v1878
    %v2014 = vadd.f32 %v1680, %v1881
    %v2015 = vadd.f32 %v1681, %v1884
    %v2016 = vadd.f32 %v1682, %v1887
    %v2017 = vadd.f32 %v1683, %v1890
    %v2018 = vadd.f32 %v1684, %v1893
    %v2019 = vadd.f32 %v1685, %v1896
    %v2020 = vadd.f32 %v1686, %v1899
    %v2021 = vadd.f32 %v1687, %v1902
    %v2022 = vadd.f32 %v1688, %v1905
    %v2023 = vadd.f32 %v1689, %v1908
    %v2024 = vadd.f32 %v1690, %v1911
    %v2025 = vadd.f32 %v1691, %v1914
    %v2026 = vadd.f32 %v1692, %v1917
    %v2027 = vadd.f32 %v1693, %v1920
    %v2028 = vadd.f32 %v1694, %v1923
    %v2029 = vadd.f32 %v1695, %v1926
    %v2030 = vadd.f32 %v1696, %v1929
    %v2031 = vadd.f32 %v1697, %v1932
    %v2032 = vadd.f32 %v1698, %v1935
    %v2033 = vadd.f32 %v1699, %v1938
    %v2034 = vadd.f32 %v1700, %v1941
    %v2035 = vadd.f32 %v1701, %v1944
    %v2036 = vadd.f32 %v1702, %v1947
    %v2037 = vadd.f32 %v1703, %v1950
    %v2038 = vadd.f32 %v1704, %v1953
    %v2039 = vadd.f32 %v1705, %v1956
    %v2040 = vadd.f32 %v1706, %v1959
    %v2041 = vadd.f32 %v1707, %v1962
    %v2042 = vadd.f32 %v1708, %v1965
    %v2043 = vadd.f32 %v1709, %v1968
    %v2044 = vadd.f32 %v1710, %v1971
    %v2045 = vadd.f32 %v1711, %v1974
    %v2046 = vadd.f32 %v1712, %v1977
    %v2047 = vadd.f32 %v1713, %v1980
    %v2048 = vadd.f32 %v1714, %v1983
    %v2049 = vadd.f32 %v1715, %v1986
    %v2050 = vadd.f32 %v1716, %v1989
    %v2051 = vld [vmem:[%s0 + $0x20] sm:$0xff]
    %v2052 = vld [vmem:[%s0 + $0x28] sm:$0xff]
    %v2053 = vld [vmem:[%s0 + $0x30] sm:$0xff]
    %v2054 = vld [vmem:[%s0 + $0x38] sm:$0xff]
    %v2055 = vld [vmem:[%s0 + $0x40] sm:$0xff]
    %v2056 = vld [vmem:[%s0 + $0x48] sm:$0xff]
    %v2057 = vld [vmem:[%s0 + $0x50] sm:$0xff]
    %v2058 = vld [vmem:[%s0 + $0x58] sm:$0xff]
    %v2059 = vld [vmem:[%s0 + $0x60] sm:$0xff]
    %v2060 = vld [vmem:[%s0 + $0x68] sm:$0xff]
    %v2061 = vld [vmem:[%s0 + $0x70] sm:$0xff]
    %v2062 = vld [vmem:[%s0 + $0x78] sm:$0xff]
    %v2063 = vld [vmem:[%s0 + $0x80] sm:$0xff]
    %v2064 = vld [vmem:[%s0 + $0x88] sm:$0xff]
    %v2065 = vld [vmem:[%s0 + $0x90] sm:$0xff]
    %v2066 = vld [vmem:[%s0 + $0x98] sm:$0xff]
    %v2067 = vld [vmem:[%s0 + $0xa0] sm:$0xff]
    %v2068 = vld [vmem:[%s0 + $0xa8] sm:$0xff]
    %v2069 = vld [vmem:[%s0 + $0xb0] sm:$0xff]
    %v2070 = vld [vmem:[%s0 + $0xb8] sm:$0xff]
    %v2071 = vld [vmem:[%s0 + $0xc0] sm:$0xff]
    %v2072 = vld [vmem:[%s0 + $0xc8] sm:$0xff]
    %v2073 = vld [vmem:[%s0 + $0xd0] sm:$0xff]
    %v2074 = vld [vmem:[%s0 + $0xd8] sm:$0xff]
    %v2075 = vld [vmem:[%s0 + $0xe0] sm:$0xff]
    %v2076 = vld [vmem:[%s0 + $0xe8] sm:$0xff]
    %v2077 = vld [vmem:[%s0 + $0xf0] sm:$0xff]
    %v2078 = vld [vmem:[%s0 + $0xf8] sm:$0xff]
    %v2079 = vld [vmem:[%s0 + $0x100] sm:$0xff]
    %v2080 = vld [vmem:[%s0 + $0x108] sm:$0xff]
    %v2081 = vld [vmem:[%s0 + $0x110] sm:$0xff]
    %v2082 = vld [vmem:[%s0 + $0x118] sm:$0xff]
    %v2083 = vld [vmem:[%s0 + $0x120] sm:$0xff]
    %v2084 = vld [vmem:[%s0 + $0x128] sm:$0xff]
    %v2085 = vld [vmem:[%s0 + $0x130] sm:$0xff]
    %v2086 = vld [vmem:[%s0 + $0x138] sm:$0xff]
    %v2087 = vld [vmem:[%s0 + $0x140] sm:$0xff]
    %v2088 = vld [vmem:[%s0 + $0x148] sm:$0xff]
    %v2089 = vld [vmem:[%s0 + $0x150] sm:$0xff]
    %v2090 = vld [vmem:[%s0 + $0x158] sm:$0xff]
    %v2091 = vld [vmem:[%s0 + $0x160] sm:$0xff]
    %v2092 = vld [vmem:[%s0 + $0x168] sm:$0xff]
    %v2093 = vld [vmem:[%s0 + $0x170] sm:$0xff]
    %v2094 = vld [vmem:[%s0 + $0x178] sm:$0xff]
    %v2095 = vld [vmem:[%s0 + $0x180] sm:$0xff]
    %v2096 = vld [vmem:[%s0 + $0x188] sm:$0xff]
    %v2097 = vld [vmem:[%s0 + $0x190] sm:$0xff]
    %v2098 = vld [vmem:[%s0 + $0x198] sm:$0xff]
    %v2099 = vld [vmem:[%s0 + $0x1a0] sm:$0xff]
    %v2100 = vld [vmem:[%s0 + $0x1a8] sm:$0xff]
    %v2101 = vld [vmem:[%s0 + $0x1b0] sm:$0xff]
    %v2102 = vld [vmem:[%s0 + $0x1b8] sm:$0xff]
    %v2103 = vld [vmem:[%s0 + $0x1c0] sm:$0xff]
    %v2104 = vld [vmem:[%s0 + $0x1c8] sm:$0xff]
    %v2105 = vld [vmem:[%s0 + $0x1d0] sm:$0xff]
    %v2106 = vld [vmem:[%s0 + $0x1d8] sm:$0xff]
    %v2107 = vld [vmem:[%s0 + $0x1e0] sm:$0xff]
    %v2108 = vld [vmem:[%s0 + $0x1e8] sm:$0xff]
    %v2109 = vld [vmem:[%s0 + $0x1f0] sm:$0xff]
    %v2110 = vld [vmem:[%s0 + $0x1f8] sm:$0x3f]
    %s2111 = scalar_lea.vmem [#allocation4], 768
    %v2112 = vld [vmem:[%s2111] sm:$0xff]
    %v2113 = vld [vmem:[%s2111 + $0x8] sm:$0xff]
    %v2114 = vld [vmem:[%s2111 + $0x10] sm:$0xff]
    %v2115 = vld [vmem:[%s2111 + $0x18] sm:$0xff]
    %v2116 = vld [vmem:[%s2111 + $0x20] sm:$0xff]
    %v2117 = vld [vmem:[%s2111 + $0x28] sm:$0xff]
    %v2118 = vld [vmem:[%s2111 + $0x30] sm:$0xff]
    %v2119 = vld [vmem:[%s2111 + $0x38] sm:$0xff]
    %v2120 = vld [vmem:[%s2111 + $0x40] sm:$0xff]
    %v2121 = vld [vmem:[%s2111 + $0x48] sm:$0xff]
    %v2122 = vld [vmem:[%s2111 + $0x50] sm:$0xff]
    %v2123 = vld [vmem:[%s2111 + $0x58] sm:$0xff]
    %v2124 = vld [vmem:[%s2111 + $0x60] sm:$0xff]
    %v2125 = vld [vmem:[%s2111 + $0x68] sm:$0xff]
    %v2126 = vld [vmem:[%s2111 + $0x70] sm:$0xff]
    %v2127 = vld [vmem:[%s2111 + $0x78] sm:$0xff]
    %2128 = vmatpush.msra.mxu0 %v2127
    %2129 = vmatpush.msra.mxu0 %v2126
    %2130 = vmatpush.msra.mxu0 %v2125
    %2131 = vmatpush.msra.mxu0 %v2124
    %2132 = vmatpush.msra.mxu0 %v2123
    %2133 = vmatpush.msra.mxu0 %v2122
    %2134 = vmatpush.msra.mxu0 %v2121
    %2135 = vmatpush.msra.mxu0 %v2120
    %2136 = vmatpush.msra.mxu0 %v2119
    %2137 = vmatpush.msra.mxu0 %v2118
    %2138 = vmatpush.msra.mxu0 %v2117
    %2139 = vmatpush.msra.mxu0 %v2116
    %2140 = vmatpush.msra.mxu0 %v2115
    %2141 = vmatpush.msra.mxu0 %v2114
    %2142 = vmatpush.msra.mxu0 %v2113
    %2143 = vmatpush.msra.mxu0 %v2112
    %2144 = vmatmul.f32.gmra.mxu0 %v2051
    %v2145 = vpop.f32.mrf.mxu0
    %v2146 = vadd.f32 0.0, %v2145
    %2147 = vmatmul.f32.gmra.mxu0 %v2052
    %v2148 = vpop.f32.mrf.mxu0
    %v2149 = vadd.f32 0.0, %v2148
    %2150 = vmatmul.f32.gmra.mxu0 %v2053
    %v2151 = vpop.f32.mrf.mxu0
    %v2152 = vadd.f32 0.0, %v2151
    %2153 = vmatmul.f32.gmra.mxu0 %v2054
    %v2154 = vpop.f32.mrf.mxu0
    %v2155 = vadd.f32 0.0, %v2154
    %2156 = vmatmul.f32.gmra.mxu0 %v2055
    %v2157 = vpop.f32.mrf.mxu0
    %v2158 = vadd.f32 0.0, %v2157
    %2159 = vmatmul.f32.gmra.mxu0 %v2056
    %v2160 = vpop.f32.mrf.mxu0
    %v2161 = vadd.f32 0.0, %v2160
    %2162 = vmatmul.f32.gmra.mxu0 %v2057
    %v2163 = vpop.f32.mrf.mxu0
    %v2164 = vadd.f32 0.0, %v2163
    %2165 = vmatmul.f32.gmra.mxu0 %v2058
    %v2166 = vpop.f32.mrf.mxu0
    %v2167 = vadd.f32 0.0, %v2166
    %2168 = vmatmul.f32.gmra.mxu0 %v2059
    %v2169 = vpop.f32.mrf.mxu0
    %v2170 = vadd.f32 0.0, %v2169
    %2171 = vmatmul.f32.gmra.mxu0 %v2060
    %v2172 = vpop.f32.mrf.mxu0
    %v2173 = vadd.f32 0.0, %v2172
    %2174 = vmatmul.f32.gmra.mxu0 %v2061
    %v2175 = vpop.f32.mrf.mxu0
    %v2176 = vadd.f32 0.0, %v2175
    %2177 = vmatmul.f32.gmra.mxu0 %v2062
    %v2178 = vpop.f32.mrf.mxu0
    %v2179 = vadd.f32 0.0, %v2178
    %2180 = vmatmul.f32.gmra.mxu0 %v2063
    %v2181 = vpop.f32.mrf.mxu0
    %v2182 = vadd.f32 0.0, %v2181
    %2183 = vmatmul.f32.gmra.mxu0 %v2064
    %v2184 = vpop.f32.mrf.mxu0
    %v2185 = vadd.f32 0.0, %v2184
    %2186 = vmatmul.f32.gmra.mxu0 %v2065
    %v2187 = vpop.f32.mrf.mxu0
    %v2188 = vadd.f32 0.0, %v2187
    %2189 = vmatmul.f32.gmra.mxu0 %v2066
    %v2190 = vpop.f32.mrf.mxu0
    %v2191 = vadd.f32 0.0, %v2190
    %2192 = vmatmul.f32.gmra.mxu0 %v2067
    %v2193 = vpop.f32.mrf.mxu0
    %v2194 = vadd.f32 0.0, %v2193
    %2195 = vmatmul.f32.gmra.mxu0 %v2068
    %v2196 = vpop.f32.mrf.mxu0
    %v2197 = vadd.f32 0.0, %v2196
    %2198 = vmatmul.f32.gmra.mxu0 %v2069
    %v2199 = vpop.f32.mrf.mxu0
    %v2200 = vadd.f32 0.0, %v2199
    %2201 = vmatmul.f32.gmra.mxu0 %v2070
    %v2202 = vpop.f32.mrf.mxu0
    %v2203 = vadd.f32 0.0, %v2202
    %2204 = vmatmul.f32.gmra.mxu0 %v2071
    %v2205 = vpop.f32.mrf.mxu0
    %v2206 = vadd.f32 0.0, %v2205
    %2207 = vmatmul.f32.gmra.mxu0 %v2072
    %v2208 = vpop.f32.mrf.mxu0
    %v2209 = vadd.f32 0.0, %v2208
    %2210 = vmatmul.f32.gmra.mxu0 %v2073
    %v2211 = vpop.f32.mrf.mxu0
    %v2212 = vadd.f32 0.0, %v2211
    %2213 = vmatmul.f32.gmra.mxu0 %v2074
    %v2214 = vpop.f32.mrf.mxu0
    %v2215 = vadd.f32 0.0, %v2214
    %2216 = vmatmul.f32.gmra.mxu0 %v2075
    %v2217 = vpop.f32.mrf.mxu0
    %v2218 = vadd.f32 0.0, %v2217
    %2219 = vmatmul.f32.gmra.mxu0 %v2076
    %v2220 = vpop.f32.mrf.mxu0
    %v2221 = vadd.f32 0.0, %v2220
    %2222 = vmatmul.f32.gmra.mxu0 %v2077
    %v2223 = vpop.f32.mrf.mxu0
    %v2224 = vadd.f32 0.0, %v2223
    %2225 = vmatmul.f32.gmra.mxu0 %v2078
    %v2226 = vpop.f32.mrf.mxu0
    %v2227 = vadd.f32 0.0, %v2226
    %2228 = vmatmul.f32.gmra.mxu0 %v2079
    %v2229 = vpop.f32.mrf.mxu0
    %v2230 = vadd.f32 0.0, %v2229
    %2231 = vmatmul.f32.gmra.mxu0 %v2080
    %v2232 = vpop.f32.mrf.mxu0
    %v2233 = vadd.f32 0.0, %v2232
    %2234 = vmatmul.f32.gmra.mxu0 %v2081
    %v2235 = vpop.f32.mrf.mxu0
    %v2236 = vadd.f32 0.0, %v2235
    %2237 = vmatmul.f32.gmra.mxu0 %v2082
    %v2238 = vpop.f32.mrf.mxu0
    %v2239 = vadd.f32 0.0, %v2238
    %2240 = vmatmul.f32.gmra.mxu0 %v2083
    %v2241 = vpop.f32.mrf.mxu0
    %v2242 = vadd.f32 0.0, %v2241
    %2243 = vmatmul.f32.gmra.mxu0 %v2084
    %v2244 = vpop.f32.mrf.mxu0
    %v2245 = vadd.f32 0.0, %v2244
    %2246 = vmatmul.f32.gmra.mxu0 %v2085
    %v2247 = vpop.f32.mrf.mxu0
    %v2248 = vadd.f32 0.0, %v2247
    %2249 = vmatmul.f32.gmra.mxu0 %v2086
    %v2250 = vpop.f32.mrf.mxu0
    %v2251 = vadd.f32 0.0, %v2250
    %2252 = vmatmul.f32.gmra.mxu0 %v2087
    %v2253 = vpop.f32.mrf.mxu0
    %v2254 = vadd.f32 0.0, %v2253
    %2255 = vmatmul.f32.gmra.mxu0 %v2088
    %v2256 = vpop.f32.mrf.mxu0
    %v2257 = vadd.f32 0.0, %v2256
    %2258 = vmatmul.f32.gmra.mxu0 %v2089
    %v2259 = vpop.f32.mrf.mxu0
    %v2260 = vadd.f32 0.0, %v2259
    %2261 = vmatmul.f32.gmra.mxu0 %v2090
    %v2262 = vpop.f32.mrf.mxu0
    %v2263 = vadd.f32 0.0, %v2262
    %2264 = vmatmul.f32.gmra.mxu0 %v2091
    %v2265 = vpop.f32.mrf.mxu0
    %v2266 = vadd.f32 0.0, %v2265
    %2267 = vmatmul.f32.gmra.mxu0 %v2092
    %v2268 = vpop.f32.mrf.mxu0
    %v2269 = vadd.f32 0.0, %v2268
    %2270 = vmatmul.f32.gmra.mxu0 %v2093
    %v2271 = vpop.f32.mrf.mxu0
    %v2272 = vadd.f32 0.0, %v2271
    %2273 = vmatmul.f32.gmra.mxu0 %v2094
    %v2274 = vpop.f32.mrf.mxu0
    %v2275 = vadd.f32 0.0, %v2274
    %2276 = vmatmul.f32.gmra.mxu0 %v2095
    %v2277 = vpop.f32.mrf.mxu0
    %v2278 = vadd.f32 0.0, %v2277
    %2279 = vmatmul.f32.gmra.mxu0 %v2096
    %v2280 = vpop.f32.mrf.mxu0
    %v2281 = vadd.f32 0.0, %v2280
    %2282 = vmatmul.f32.gmra.mxu0 %v2097
    %v2283 = vpop.f32.mrf.mxu0
    %v2284 = vadd.f32 0.0, %v2283
    %2285 = vmatmul.f32.gmra.mxu0 %v2098
    %v2286 = vpop.f32.mrf.mxu0
    %v2287 = vadd.f32 0.0, %v2286
    %2288 = vmatmul.f32.gmra.mxu0 %v2099
    %v2289 = vpop.f32.mrf.mxu0
    %v2290 = vadd.f32 0.0, %v2289
    %2291 = vmatmul.f32.gmra.mxu0 %v2100
    %v2292 = vpop.f32.mrf.mxu0
    %v2293 = vadd.f32 0.0, %v2292
    %2294 = vmatmul.f32.gmra.mxu0 %v2101
    %v2295 = vpop.f32.mrf.mxu0
    %v2296 = vadd.f32 0.0, %v2295
    %2297 = vmatmul.f32.gmra.mxu0 %v2102
    %v2298 = vpop.f32.mrf.mxu0
    %v2299 = vadd.f32 0.0, %v2298
    %2300 = vmatmul.f32.gmra.mxu0 %v2103
    %v2301 = vpop.f32.mrf.mxu0
    %v2302 = vadd.f32 0.0, %v2301
    %2303 = vmatmul.f32.gmra.mxu0 %v2104
    %v2304 = vpop.f32.mrf.mxu0
    %v2305 = vadd.f32 0.0, %v2304
    %2306 = vmatmul.f32.gmra.mxu0 %v2105
    %v2307 = vpop.f32.mrf.mxu0
    %v2308 = vadd.f32 0.0, %v2307
    %2309 = vmatmul.f32.gmra.mxu0 %v2106
    %v2310 = vpop.f32.mrf.mxu0
    %v2311 = vadd.f32 0.0, %v2310
    %2312 = vmatmul.f32.gmra.mxu0 %v2107
    %v2313 = vpop.f32.mrf.mxu0
    %v2314 = vadd.f32 0.0, %v2313
    %2315 = vmatmul.f32.gmra.mxu0 %v2108
    %v2316 = vpop.f32.mrf.mxu0
    %v2317 = vadd.f32 0.0, %v2316
    %2318 = vmatmul.f32.gmra.mxu0 %v2109
    %v2319 = vpop.f32.mrf.mxu0
    %v2320 = vadd.f32 0.0, %v2319
    %2321 = vmatmul.f32.gmra.mxu0 %v2110
    %v2322 = vpop.f32.mrf.mxu0
    %v2323 = vadd.f32 0.0, %v2322
    %2324 = vdwg.mxu0
    %v2325 = vadd.f32 %v1991, %v2146
    %v2326 = vadd.f32 %v1992, %v2149
    %v2327 = vadd.f32 %v1993, %v2152
    %v2328 = vadd.f32 %v1994, %v2155
    %v2329 = vadd.f32 %v1995, %v2158
    %v2330 = vadd.f32 %v1996, %v2161
    %v2331 = vadd.f32 %v1997, %v2164
    %v2332 = vadd.f32 %v1998, %v2167
    %v2333 = vadd.f32 %v1999, %v2170
    %v2334 = vadd.f32 %v2000, %v2173
    %v2335 = vadd.f32 %v2001, %v2176
    %v2336 = vadd.f32 %v2002, %v2179
    %v2337 = vadd.f32 %v2003, %v2182
    %v2338 = vadd.f32 %v2004, %v2185
    %v2339 = vadd.f32 %v2005, %v2188
    %v2340 = vadd.f32 %v2006, %v2191
    %v2341 = vadd.f32 %v2007, %v2194
    %v2342 = vadd.f32 %v2008, %v2197
    %v2343 = vadd.f32 %v2009, %v2200
    %v2344 = vadd.f32 %v2010, %v2203
    %v2345 = vadd.f32 %v2011, %v2206
    %v2346 = vadd.f32 %v2012, %v2209
    %v2347 = vadd.f32 %v2013, %v2212
    %v2348 = vadd.f32 %v2014, %v2215
    %v2349 = vadd.f32 %v2015, %v2218
    %v2350 = vadd.f32 %v2016, %v2221
    %v2351 = vadd.f32 %v2017, %v2224
    %v2352 = vadd.f32 %v2018, %v2227
    %v2353 = vadd.f32 %v2019, %v2230
    %v2354 = vadd.f32 %v2020, %v2233
    %v2355 = vadd.f32 %v2021, %v2236
    %v2356 = vadd.f32 %v2022, %v2239
    %v2357 = vadd.f32 %v2023, %v2242
    %v2358 = vadd.f32 %v2024, %v2245
    %v2359 = vadd.f32 %v2025, %v2248
    %v2360 = vadd.f32 %v2026, %v2251
    %v2361 = vadd.f32 %v2027, %v2254
    %v2362 = vadd.f32 %v2028, %v2257
    %v2363 = vadd.f32 %v2029, %v2260
    %v2364 = vadd.f32 %v2030, %v2263
    %v2365 = vadd.f32 %v2031, %v2266
    %v2366 = vadd.f32 %v2032, %v2269
    %v2367 = vadd.f32 %v2033, %v2272
    %v2368 = vadd.f32 %v2034, %v2275
    %v2369 = vadd.f32 %v2035, %v2278
    %v2370 = vadd.f32 %v2036, %v2281
    %v2371 = vadd.f32 %v2037, %v2284
    %v2372 = vadd.f32 %v2038, %v2287
    %v2373 = vadd.f32 %v2039, %v2290
    %v2374 = vadd.f32 %v2040, %v2293
    %v2375 = vadd.f32 %v2041, %v2296
    %v2376 = vadd.f32 %v2042, %v2299
    %v2377 = vadd.f32 %v2043, %v2302
    %v2378 = vadd.f32 %v2044, %v2305
    %v2379 = vadd.f32 %v2045, %v2308
    %v2380 = vadd.f32 %v2046, %v2311
    %v2381 = vadd.f32 %v2047, %v2314
    %v2382 = vadd.f32 %v2048, %v2317
    %v2383 = vadd.f32 %v2049, %v2320
    %v2384 = vadd.f32 %v2050, %v2323
    %v2385 = vld [vmem:[%s0 + $0x21] sm:$0xff]
    %v2386 = vld [vmem:[%s0 + $0x29] sm:$0xff]
    %v2387 = vld [vmem:[%s0 + $0x31] sm:$0xff]
    %v2388 = vld [vmem:[%s0 + $0x39] sm:$0xff]
    %v2389 = vld [vmem:[%s0 + $0x41] sm:$0xff]
    %v2390 = vld [vmem:[%s0 + $0x49] sm:$0xff]
    %v2391 = vld [vmem:[%s0 + $0x51] sm:$0xff]
    %v2392 = vld [vmem:[%s0 + $0x59] sm:$0xff]
    %v2393 = vld [vmem:[%s0 + $0x61] sm:$0xff]
    %v2394 = vld [vmem:[%s0 + $0x69] sm:$0xff]
    %v2395 = vld [vmem:[%s0 + $0x71] sm:$0xff]
    %v2396 = vld [vmem:[%s0 + $0x79] sm:$0xff]
    %v2397 = vld [vmem:[%s0 + $0x81] sm:$0xff]
    %v2398 = vld [vmem:[%s0 + $0x89] sm:$0xff]
    %v2399 = vld [vmem:[%s0 + $0x91] sm:$0xff]
    %v2400 = vld [vmem:[%s0 + $0x99] sm:$0xff]
    %v2401 = vld [vmem:[%s0 + $0xa1] sm:$0xff]
    %v2402 = vld [vmem:[%s0 + $0xa9] sm:$0xff]
    %v2403 = vld [vmem:[%s0 + $0xb1] sm:$0xff]
    %v2404 = vld [vmem:[%s0 + $0xb9] sm:$0xff]
    %v2405 = vld [vmem:[%s0 + $0xc1] sm:$0xff]
    %v2406 = vld [vmem:[%s0 + $0xc9] sm:$0xff]
    %v2407 = vld [vmem:[%s0 + $0xd1] sm:$0xff]
    %v2408 = vld [vmem:[%s0 + $0xd9] sm:$0xff]
    %v2409 = vld [vmem:[%s0 + $0xe1] sm:$0xff]
    %v2410 = vld [vmem:[%s0 + $0xe9] sm:$0xff]
    %v2411 = vld [vmem:[%s0 + $0xf1] sm:$0xff]
    %v2412 = vld [vmem:[%s0 + $0xf9] sm:$0xff]
    %v2413 = vld [vmem:[%s0 + $0x101] sm:$0xff]
    %v2414 = vld [vmem:[%s0 + $0x109] sm:$0xff]
    %v2415 = vld [vmem:[%s0 + $0x111] sm:$0xff]
    %v2416 = vld [vmem:[%s0 + $0x119] sm:$0xff]
    %v2417 = vld [vmem:[%s0 + $0x121] sm:$0xff]
    %v2418 = vld [vmem:[%s0 + $0x129] sm:$0xff]
    %v2419 = vld [vmem:[%s0 + $0x131] sm:$0xff]
    %v2420 = vld [vmem:[%s0 + $0x139] sm:$0xff]
    %v2421 = vld [vmem:[%s0 + $0x141] sm:$0xff]
    %v2422 = vld [vmem:[%s0 + $0x149] sm:$0xff]
    %v2423 = vld [vmem:[%s0 + $0x151] sm:$0xff]
    %v2424 = vld [vmem:[%s0 + $0x159] sm:$0xff]
    %v2425 = vld [vmem:[%s0 + $0x161] sm:$0xff]
    %v2426 = vld [vmem:[%s0 + $0x169] sm:$0xff]
    %v2427 = vld [vmem:[%s0 + $0x171] sm:$0xff]
    %v2428 = vld [vmem:[%s0 + $0x179] sm:$0xff]
    %v2429 = vld [vmem:[%s0 + $0x181] sm:$0xff]
    %v2430 = vld [vmem:[%s0 + $0x189] sm:$0xff]
    %v2431 = vld [vmem:[%s0 + $0x191] sm:$0xff]
    %v2432 = vld [vmem:[%s0 + $0x199] sm:$0xff]
    %v2433 = vld [vmem:[%s0 + $0x1a1] sm:$0xff]
    %v2434 = vld [vmem:[%s0 + $0x1a9] sm:$0xff]
    %v2435 = vld [vmem:[%s0 + $0x1b1] sm:$0xff]
    %v2436 = vld [vmem:[%s0 + $0x1b9] sm:$0xff]
    %v2437 = vld [vmem:[%s0 + $0x1c1] sm:$0xff]
    %v2438 = vld [vmem:[%s0 + $0x1c9] sm:$0xff]
    %v2439 = vld [vmem:[%s0 + $0x1d1] sm:$0xff]
    %v2440 = vld [vmem:[%s0 + $0x1d9] sm:$0xff]
    %v2441 = vld [vmem:[%s0 + $0x1e1] sm:$0xff]
    %v2442 = vld [vmem:[%s0 + $0x1e9] sm:$0xff]
    %v2443 = vld [vmem:[%s0 + $0x1f1] sm:$0xff]
    %v2444 = vld [vmem:[%s0 + $0x1f9] sm:$0x3f]
    %s2445 = scalar_lea.vmem [#allocation4], 896
    %v2446 = vld [vmem:[%s2445] sm:$0xff]
    %v2447 = vld [vmem:[%s2445 + $0x8] sm:$0xff]
    %v2448 = vld [vmem:[%s2445 + $0x10] sm:$0xff]
    %v2449 = vld [vmem:[%s2445 + $0x18] sm:$0xff]
    %v2450 = vld [vmem:[%s2445 + $0x20] sm:$0xff]
    %v2451 = vld [vmem:[%s2445 + $0x28] sm:$0xff]
    %v2452 = vld [vmem:[%s2445 + $0x30] sm:$0xff]
    %v2453 = vld [vmem:[%s2445 + $0x38] sm:$0xff]
    %v2454 = vld [vmem:[%s2445 + $0x40] sm:$0xff]
    %v2455 = vld [vmem:[%s2445 + $0x48] sm:$0xff]
    %v2456 = vld [vmem:[%s2445 + $0x50] sm:$0xff]
    %v2457 = vld [vmem:[%s2445 + $0x58] sm:$0xff]
    %v2458 = vld [vmem:[%s2445 + $0x60] sm:$0xff]
    %v2459 = vld [vmem:[%s2445 + $0x68] sm:$0xff]
    %v2460 = vld [vmem:[%s2445 + $0x70] sm:$0xff]
    %v2461 = vld [vmem:[%s2445 + $0x78] sm:$0xff]
    %2462 = vmatpush.msra.mxu0 %v2461
    %2463 = vmatpush.msra.mxu0 %v2460
    %2464 = vmatpush.msra.mxu0 %v2459
    %2465 = vmatpush.msra.mxu0 %v2458
    %2466 = vmatpush.msra.mxu0 %v2457
    %2467 = vmatpush.msra.mxu0 %v2456
    %2468 = vmatpush.msra.mxu0 %v2455
    %2469 = vmatpush.msra.mxu0 %v2454
    %2470 = vmatpush.msra.mxu0 %v2453
    %2471 = vmatpush.msra.mxu0 %v2452
    %2472 = vmatpush.msra.mxu0 %v2451
    %2473 = vmatpush.msra.mxu0 %v2450
    %2474 = vmatpush.msra.mxu0 %v2449
    %2475 = vmatpush.msra.mxu0 %v2448
    %2476 = vmatpush.msra.mxu0 %v2447
    %2477 = vmatpush.msra.mxu0 %v2446
    %2478 = vmatmul.f32.gmra.mxu0 %v2385
    %v2479 = vpop.f32.mrf.mxu0
    %v2480 = vadd.f32 0.0, %v2479
    %2481 = vmatmul.f32.gmra.mxu0 %v2386
    %v2482 = vpop.f32.mrf.mxu0
    %v2483 = vadd.f32 0.0, %v2482
    %2484 = vmatmul.f32.gmra.mxu0 %v2387
    %v2485 = vpop.f32.mrf.mxu0
    %v2486 = vadd.f32 0.0, %v2485
    %2487 = vmatmul.f32.gmra.mxu0 %v2388
    %v2488 = vpop.f32.mrf.mxu0
    %v2489 = vadd.f32 0.0, %v2488
    %2490 = vmatmul.f32.gmra.mxu0 %v2389
    %v2491 = vpop.f32.mrf.mxu0
    %v2492 = vadd.f32 0.0, %v2491
    %2493 = vmatmul.f32.gmra.mxu0 %v2390
    %v2494 = vpop.f32.mrf.mxu0
    %v2495 = vadd.f32 0.0, %v2494
    %2496 = vmatmul.f32.gmra.mxu0 %v2391
    %v2497 = vpop.f32.mrf.mxu0
    %v2498 = vadd.f32 0.0, %v2497
    %2499 = vmatmul.f32.gmra.mxu0 %v2392
    %v2500 = vpop.f32.mrf.mxu0
    %v2501 = vadd.f32 0.0, %v2500
    %2502 = vmatmul.f32.gmra.mxu0 %v2393
    %v2503 = vpop.f32.mrf.mxu0
    %v2504 = vadd.f32 0.0, %v2503
    %2505 = vmatmul.f32.gmra.mxu0 %v2394
    %v2506 = vpop.f32.mrf.mxu0
    %v2507 = vadd.f32 0.0, %v2506
    %2508 = vmatmul.f32.gmra.mxu0 %v2395
    %v2509 = vpop.f32.mrf.mxu0
    %v2510 = vadd.f32 0.0, %v2509
    %2511 = vmatmul.f32.gmra.mxu0 %v2396
    %v2512 = vpop.f32.mrf.mxu0
    %v2513 = vadd.f32 0.0, %v2512
    %2514 = vmatmul.f32.gmra.mxu0 %v2397
    %v2515 = vpop.f32.mrf.mxu0
    %v2516 = vadd.f32 0.0, %v2515
    %2517 = vmatmul.f32.gmra.mxu0 %v2398
    %v2518 = vpop.f32.mrf.mxu0
    %v2519 = vadd.f32 0.0, %v2518
    %2520 = vmatmul.f32.gmra.mxu0 %v2399
    %v2521 = vpop.f32.mrf.mxu0
    %v2522 = vadd.f32 0.0, %v2521
    %2523 = vmatmul.f32.gmra.mxu0 %v2400
    %v2524 = vpop.f32.mrf.mxu0
    %v2525 = vadd.f32 0.0, %v2524
    %2526 = vmatmul.f32.gmra.mxu0 %v2401
    %v2527 = vpop.f32.mrf.mxu0
    %v2528 = vadd.f32 0.0, %v2527
    %2529 = vmatmul.f32.gmra.mxu0 %v2402
    %v2530 = vpop.f32.mrf.mxu0
    %v2531 = vadd.f32 0.0, %v2530
    %2532 = vmatmul.f32.gmra.mxu0 %v2403
    %v2533 = vpop.f32.mrf.mxu0
    %v2534 = vadd.f32 0.0, %v2533
    %2535 = vmatmul.f32.gmra.mxu0 %v2404
    %v2536 = vpop.f32.mrf.mxu0
    %v2537 = vadd.f32 0.0, %v2536
    %2538 = vmatmul.f32.gmra.mxu0 %v2405
    %v2539 = vpop.f32.mrf.mxu0
    %v2540 = vadd.f32 0.0, %v2539
    %2541 = vmatmul.f32.gmra.mxu0 %v2406
    %v2542 = vpop.f32.mrf.mxu0
    %v2543 = vadd.f32 0.0, %v2542
    %2544 = vmatmul.f32.gmra.mxu0 %v2407
    %v2545 = vpop.f32.mrf.mxu0
    %v2546 = vadd.f32 0.0, %v2545
    %2547 = vmatmul.f32.gmra.mxu0 %v2408
    %v2548 = vpop.f32.mrf.mxu0
    %v2549 = vadd.f32 0.0, %v2548
    %2550 = vmatmul.f32.gmra.mxu0 %v2409
    %v2551 = vpop.f32.mrf.mxu0
    %v2552 = vadd.f32 0.0, %v2551
    %2553 = vmatmul.f32.gmra.mxu0 %v2410
    %v2554 = vpop.f32.mrf.mxu0
    %v2555 = vadd.f32 0.0, %v2554
    %2556 = vmatmul.f32.gmra.mxu0 %v2411
    %v2557 = vpop.f32.mrf.mxu0
    %v2558 = vadd.f32 0.0, %v2557
    %2559 = vmatmul.f32.gmra.mxu0 %v2412
    %v2560 = vpop.f32.mrf.mxu0
    %v2561 = vadd.f32 0.0, %v2560
    %2562 = vmatmul.f32.gmra.mxu0 %v2413
    %v2563 = vpop.f32.mrf.mxu0
    %v2564 = vadd.f32 0.0, %v2563
    %2565 = vmatmul.f32.gmra.mxu0 %v2414
    %v2566 = vpop.f32.mrf.mxu0
    %v2567 = vadd.f32 0.0, %v2566
    %2568 = vmatmul.f32.gmra.mxu0 %v2415
    %v2569 = vpop.f32.mrf.mxu0
    %v2570 = vadd.f32 0.0, %v2569
    %2571 = vmatmul.f32.gmra.mxu0 %v2416
    %v2572 = vpop.f32.mrf.mxu0
    %v2573 = vadd.f32 0.0, %v2572
    %2574 = vmatmul.f32.gmra.mxu0 %v2417
    %v2575 = vpop.f32.mrf.mxu0
    %v2576 = vadd.f32 0.0, %v2575
    %2577 = vmatmul.f32.gmra.mxu0 %v2418
    %v2578 = vpop.f32.mrf.mxu0
    %v2579 = vadd.f32 0.0, %v2578
    %2580 = vmatmul.f32.gmra.mxu0 %v2419
    %v2581 = vpop.f32.mrf.mxu0
    %v2582 = vadd.f32 0.0, %v2581
    %2583 = vmatmul.f32.gmra.mxu0 %v2420
    %v2584 = vpop.f32.mrf.mxu0
    %v2585 = vadd.f32 0.0, %v2584
    %2586 = vmatmul.f32.gmra.mxu0 %v2421
    %v2587 = vpop.f32.mrf.mxu0
    %v2588 = vadd.f32 0.0, %v2587
    %2589 = vmatmul.f32.gmra.mxu0 %v2422
    %v2590 = vpop.f32.mrf.mxu0
    %v2591 = vadd.f32 0.0, %v2590
    %2592 = vmatmul.f32.gmra.mxu0 %v2423
    %v2593 = vpop.f32.mrf.mxu0
    %v2594 = vadd.f32 0.0, %v2593
    %2595 = vmatmul.f32.gmra.mxu0 %v2424
    %v2596 = vpop.f32.mrf.mxu0
    %v2597 = vadd.f32 0.0, %v2596
    %2598 = vmatmul.f32.gmra.mxu0 %v2425
    %v2599 = vpop.f32.mrf.mxu0
    %v2600 = vadd.f32 0.0, %v2599
    %2601 = vmatmul.f32.gmra.mxu0 %v2426
    %v2602 = vpop.f32.mrf.mxu0
    %v2603 = vadd.f32 0.0, %v2602
    %2604 = vmatmul.f32.gmra.mxu0 %v2427
    %v2605 = vpop.f32.mrf.mxu0
    %v2606 = vadd.f32 0.0, %v2605
    %2607 = vmatmul.f32.gmra.mxu0 %v2428
    %v2608 = vpop.f32.mrf.mxu0
    %v2609 = vadd.f32 0.0, %v2608
    %2610 = vmatmul.f32.gmra.mxu0 %v2429
    %v2611 = vpop.f32.mrf.mxu0
    %v2612 = vadd.f32 0.0, %v2611
    %2613 = vmatmul.f32.gmra.mxu0 %v2430
    %v2614 = vpop.f32.mrf.mxu0
    %v2615 = vadd.f32 0.0, %v2614
    %2616 = vmatmul.f32.gmra.mxu0 %v2431
    %v2617 = vpop.f32.mrf.mxu0
    %v2618 = vadd.f32 0.0, %v2617
    %2619 = vmatmul.f32.gmra.mxu0 %v2432
    %v2620 = vpop.f32.mrf.mxu0
    %v2621 = vadd.f32 0.0, %v2620
    %2622 = vmatmul.f32.gmra.mxu0 %v2433
    %v2623 = vpop.f32.mrf.mxu0
    %v2624 = vadd.f32 0.0, %v2623
    %2625 = vmatmul.f32.gmra.mxu0 %v2434
    %v2626 = vpop.f32.mrf.mxu0
    %v2627 = vadd.f32 0.0, %v2626
    %2628 = vmatmul.f32.gmra.mxu0 %v2435
    %v2629 = vpop.f32.mrf.mxu0
    %v2630 = vadd.f32 0.0, %v2629
    %2631 = vmatmul.f32.gmra.mxu0 %v2436
    %v2632 = vpop.f32.mrf.mxu0
    %v2633 = vadd.f32 0.0, %v2632
    %2634 = vmatmul.f32.gmra.mxu0 %v2437
    %v2635 = vpop.f32.mrf.mxu0
    %v2636 = vadd.f32 0.0, %v2635
    %2637 = vmatmul.f32.gmra.mxu0 %v2438
    %v2638 = vpop.f32.mrf.mxu0
    %v2639 = vadd.f32 0.0, %v2638
    %2640 = vmatmul.f32.gmra.mxu0 %v2439
    %v2641 = vpop.f32.mrf.mxu0
    %v2642 = vadd.f32 0.0, %v2641
    %2643 = vmatmul.f32.gmra.mxu0 %v2440
    %v2644 = vpop.f32.mrf.mxu0
    %v2645 = vadd.f32 0.0, %v2644
    %2646 = vmatmul.f32.gmra.mxu0 %v2441
    %v2647 = vpop.f32.mrf.mxu0
    %v2648 = vadd.f32 0.0, %v2647
    %2649 = vmatmul.f32.gmra.mxu0 %v2442
    %v2650 = vpop.f32.mrf.mxu0
    %v2651 = vadd.f32 0.0, %v2650
    %2652 = vmatmul.f32.gmra.mxu0 %v2443
    %v2653 = vpop.f32.mrf.mxu0
    %v2654 = vadd.f32 0.0, %v2653
    %2655 = vmatmul.f32.gmra.mxu0 %v2444
    %v2656 = vpop.f32.mrf.mxu0
    %v2657 = vadd.f32 0.0, %v2656
    %2658 = vdwg.mxu0
    %v2659 = vadd.f32 %v2325, %v2480
    %v2660 = vadd.f32 %v2326, %v2483
    %v2661 = vadd.f32 %v2327, %v2486
    %v2662 = vadd.f32 %v2328, %v2489
    %v2663 = vadd.f32 %v2329, %v2492
    %v2664 = vadd.f32 %v2330, %v2495
    %v2665 = vadd.f32 %v2331, %v2498
    %v2666 = vadd.f32 %v2332, %v2501
    %v2667 = vadd.f32 %v2333, %v2504
    %v2668 = vadd.f32 %v2334, %v2507
    %v2669 = vadd.f32 %v2335, %v2510
    %v2670 = vadd.f32 %v2336, %v2513
    %v2671 = vadd.f32 %v2337, %v2516
    %v2672 = vadd.f32 %v2338, %v2519
    %v2673 = vadd.f32 %v2339, %v2522
    %v2674 = vadd.f32 %v2340, %v2525
    %v2675 = vadd.f32 %v2341, %v2528
    %v2676 = vadd.f32 %v2342, %v2531
    %v2677 = vadd.f32 %v2343, %v2534
    %v2678 = vadd.f32 %v2344, %v2537
    %v2679 = vadd.f32 %v2345, %v2540
    %v2680 = vadd.f32 %v2346, %v2543
    %v2681 = vadd.f32 %v2347, %v2546
    %v2682 = vadd.f32 %v2348, %v2549
    %v2683 = vadd.f32 %v2349, %v2552
    %v2684 = vadd.f32 %v2350, %v2555
    %v2685 = vadd.f32 %v2351, %v2558
    %v2686 = vadd.f32 %v2352, %v2561
    %v2687 = vadd.f32 %v2353, %v2564
    %v2688 = vadd.f32 %v2354, %v2567
    %v2689 = vadd.f32 %v2355, %v2570
    %v2690 = vadd.f32 %v2356, %v2573
    %v2691 = vadd.f32 %v2357, %v2576
    %v2692 = vadd.f32 %v2358, %v2579
    %v2693 = vadd.f32 %v2359, %v2582
    %v2694 = vadd.f32 %v2360, %v2585
    %v2695 = vadd.f32 %v2361, %v2588
    %v2696 = vadd.f32 %v2362, %v2591
    %v2697 = vadd.f32 %v2363, %v2594
    %v2698 = vadd.f32 %v2364, %v2597
    %v2699 = vadd.f32 %v2365, %v2600
    %v2700 = vadd.f32 %v2366, %v2603
    %v2701 = vadd.f32 %v2367, %v2606
    %v2702 = vadd.f32 %v2368, %v2609
    %v2703 = vadd.f32 %v2369, %v2612
    %v2704 = vadd.f32 %v2370, %v2615
    %v2705 = vadd.f32 %v2371, %v2618
    %v2706 = vadd.f32 %v2372, %v2621
    %v2707 = vadd.f32 %v2373, %v2624
    %v2708 = vadd.f32 %v2374, %v2627
    %v2709 = vadd.f32 %v2375, %v2630
    %v2710 = vadd.f32 %v2376, %v2633
    %v2711 = vadd.f32 %v2377, %v2636
    %v2712 = vadd.f32 %v2378, %v2639
    %v2713 = vadd.f32 %v2379, %v2642
    %v2714 = vadd.f32 %v2380, %v2645
    %v2715 = vadd.f32 %v2381, %v2648
    %v2716 = vadd.f32 %v2382, %v2651
    %v2717 = vadd.f32 %v2383, %v2654
    %v2718 = vadd.f32 %v2384, %v2657
    %v2719 = vld [vmem:[%s0 + $0x22] sm:$0xff]
    %v2720 = vld [vmem:[%s0 + $0x2a] sm:$0xff]
    %v2721 = vld [vmem:[%s0 + $0x32] sm:$0xff]
    %v2722 = vld [vmem:[%s0 + $0x3a] sm:$0xff]
    %v2723 = vld [vmem:[%s0 + $0x42] sm:$0xff]
    %v2724 = vld [vmem:[%s0 + $0x4a] sm:$0xff]
    %v2725 = vld [vmem:[%s0 + $0x52] sm:$0xff]
    %v2726 = vld [vmem:[%s0 + $0x5a] sm:$0xff]
    %v2727 = vld [vmem:[%s0 + $0x62] sm:$0xff]
    %v2728 = vld [vmem:[%s0 + $0x6a] sm:$0xff]
    %v2729 = vld [vmem:[%s0 + $0x72] sm:$0xff]
    %v2730 = vld [vmem:[%s0 + $0x7a] sm:$0xff]
    %v2731 = vld [vmem:[%s0 + $0x82] sm:$0xff]
    %v2732 = vld [vmem:[%s0 + $0x8a] sm:$0xff]
    %v2733 = vld [vmem:[%s0 + $0x92] sm:$0xff]
    %v2734 = vld [vmem:[%s0 + $0x9a] sm:$0xff]
    %v2735 = vld [vmem:[%s0 + $0xa2] sm:$0xff]
    %v2736 = vld [vmem:[%s0 + $0xaa] sm:$0xff]
    %v2737 = vld [vmem:[%s0 + $0xb2] sm:$0xff]
    %v2738 = vld [vmem:[%s0 + $0xba] sm:$0xff]
    %v2739 = vld [vmem:[%s0 + $0xc2] sm:$0xff]
    %v2740 = vld [vmem:[%s0 + $0xca] sm:$0xff]
    %v2741 = vld [vmem:[%s0 + $0xd2] sm:$0xff]
    %v2742 = vld [vmem:[%s0 + $0xda] sm:$0xff]
    %v2743 = vld [vmem:[%s0 + $0xe2] sm:$0xff]
    %v2744 = vld [vmem:[%s0 + $0xea] sm:$0xff]
    %v2745 = vld [vmem:[%s0 + $0xf2] sm:$0xff]
    %v2746 = vld [vmem:[%s0 + $0xfa] sm:$0xff]
    %v2747 = vld [vmem:[%s0 + $0x102] sm:$0xff]
    %v2748 = vld [vmem:[%s0 + $0x10a] sm:$0xff]
    %v2749 = vld [vmem:[%s0 + $0x112] sm:$0xff]
    %v2750 = vld [vmem:[%s0 + $0x11a] sm:$0xff]
    %v2751 = vld [vmem:[%s0 + $0x122] sm:$0xff]
    %v2752 = vld [vmem:[%s0 + $0x12a] sm:$0xff]
    %v2753 = vld [vmem:[%s0 + $0x132] sm:$0xff]
    %v2754 = vld [vmem:[%s0 + $0x13a] sm:$0xff]
    %v2755 = vld [vmem:[%s0 + $0x142] sm:$0xff]
    %v2756 = vld [vmem:[%s0 + $0x14a] sm:$0xff]
    %v2757 = vld [vmem:[%s0 + $0x152] sm:$0xff]
    %v2758 = vld [vmem:[%s0 + $0x15a] sm:$0xff]
    %v2759 = vld [vmem:[%s0 + $0x162] sm:$0xff]
    %v2760 = vld [vmem:[%s0 + $0x16a] sm:$0xff]
    %v2761 = vld [vmem:[%s0 + $0x172] sm:$0xff]
    %v2762 = vld [vmem:[%s0 + $0x17a] sm:$0xff]
    %v2763 = vld [vmem:[%s0 + $0x182] sm:$0xff]
    %v2764 = vld [vmem:[%s0 + $0x18a] sm:$0xff]
    %v2765 = vld [vmem:[%s0 + $0x192] sm:$0xff]
    %v2766 = vld [vmem:[%s0 + $0x19a] sm:$0xff]
    %v2767 = vld [vmem:[%s0 + $0x1a2] sm:$0xff]
    %v2768 = vld [vmem:[%s0 + $0x1aa] sm:$0xff]
    %v2769 = vld [vmem:[%s0 + $0x1b2] sm:$0xff]
    %v2770 = vld [vmem:[%s0 + $0x1ba] sm:$0xff]
    %v2771 = vld [vmem:[%s0 + $0x1c2] sm:$0xff]
    %v2772 = vld [vmem:[%s0 + $0x1ca] sm:$0xff]
    %v2773 = vld [vmem:[%s0 + $0x1d2] sm:$0xff]
    %v2774 = vld [vmem:[%s0 + $0x1da] sm:$0xff]
    %v2775 = vld [vmem:[%s0 + $0x1e2] sm:$0xff]
    %v2776 = vld [vmem:[%s0 + $0x1ea] sm:$0xff]
    %v2777 = vld [vmem:[%s0 + $0x1f2] sm:$0xff]
    %v2778 = vld [vmem:[%s0 + $0x1fa] sm:$0x3f]
    %s2779 = scalar_lea.vmem [#allocation4], 1024
    %v2780 = vld [vmem:[%s2779] sm:$0xff]
    %v2781 = vld [vmem:[%s2779 + $0x8] sm:$0xff]
    %v2782 = vld [vmem:[%s2779 + $0x10] sm:$0xff]
    %v2783 = vld [vmem:[%s2779 + $0x18] sm:$0xff]
    %v2784 = vld [vmem:[%s2779 + $0x20] sm:$0xff]
    %v2785 = vld [vmem:[%s2779 + $0x28] sm:$0xff]
    %v2786 = vld [vmem:[%s2779 + $0x30] sm:$0xff]
    %v2787 = vld [vmem:[%s2779 + $0x38] sm:$0xff]
    %v2788 = vld [vmem:[%s2779 + $0x40] sm:$0xff]
    %v2789 = vld [vmem:[%s2779 + $0x48] sm:$0xff]
    %v2790 = vld [vmem:[%s2779 + $0x50] sm:$0xff]
    %v2791 = vld [vmem:[%s2779 + $0x58] sm:$0xff]
    %v2792 = vld [vmem:[%s2779 + $0x60] sm:$0xff]
    %v2793 = vld [vmem:[%s2779 + $0x68] sm:$0xff]
    %v2794 = vld [vmem:[%s2779 + $0x70] sm:$0xff]
    %v2795 = vld [vmem:[%s2779 + $0x78] sm:$0xff]
    %2796 = vmatpush.msra.mxu0 %v2795
    %2797 = vmatpush.msra.mxu0 %v2794
    %2798 = vmatpush.msra.mxu0 %v2793
    %2799 = vmatpush.msra.mxu0 %v2792
    %2800 = vmatpush.msra.mxu0 %v2791
    %2801 = vmatpush.msra.mxu0 %v2790
    %2802 = vmatpush.msra.mxu0 %v2789
    %2803 = vmatpush.msra.mxu0 %v2788
    %2804 = vmatpush.msra.mxu0 %v2787
    %2805 = vmatpush.msra.mxu0 %v2786
    %2806 = vmatpush.msra.mxu0 %v2785
    %2807 = vmatpush.msra.mxu0 %v2784
    %2808 = vmatpush.msra.mxu0 %v2783
    %2809 = vmatpush.msra.mxu0 %v2782
    %2810 = vmatpush.msra.mxu0 %v2781
    %2811 = vmatpush.msra.mxu0 %v2780
    %2812 = vmatmul.f32.gmra.mxu0 %v2719
    %v2813 = vpop.f32.mrf.mxu0
    %v2814 = vadd.f32 0.0, %v2813
    %2815 = vmatmul.f32.gmra.mxu0 %v2720
    %v2816 = vpop.f32.mrf.mxu0
    %v2817 = vadd.f32 0.0, %v2816
    %2818 = vmatmul.f32.gmra.mxu0 %v2721
    %v2819 = vpop.f32.mrf.mxu0
    %v2820 = vadd.f32 0.0, %v2819
    %2821 = vmatmul.f32.gmra.mxu0 %v2722
    %v2822 = vpop.f32.mrf.mxu0
    %v2823 = vadd.f32 0.0, %v2822
    %2824 = vmatmul.f32.gmra.mxu0 %v2723
    %v2825 = vpop.f32.mrf.mxu0
    %v2826 = vadd.f32 0.0, %v2825
    %2827 = vmatmul.f32.gmra.mxu0 %v2724
    %v2828 = vpop.f32.mrf.mxu0
    %v2829 = vadd.f32 0.0, %v2828
    %2830 = vmatmul.f32.gmra.mxu0 %v2725
    %v2831 = vpop.f32.mrf.mxu0
    %v2832 = vadd.f32 0.0, %v2831
    %2833 = vmatmul.f32.gmra.mxu0 %v2726
    %v2834 = vpop.f32.mrf.mxu0
    %v2835 = vadd.f32 0.0, %v2834
    %2836 = vmatmul.f32.gmra.mxu0 %v2727
    %v2837 = vpop.f32.mrf.mxu0
    %v2838 = vadd.f32 0.0, %v2837
    %2839 = vmatmul.f32.gmra.mxu0 %v2728
    %v2840 = vpop.f32.mrf.mxu0
    %v2841 = vadd.f32 0.0, %v2840
    %2842 = vmatmul.f32.gmra.mxu0 %v2729
    %v2843 = vpop.f32.mrf.mxu0
    %v2844 = vadd.f32 0.0, %v2843
    %2845 = vmatmul.f32.gmra.mxu0 %v2730
    %v2846 = vpop.f32.mrf.mxu0
    %v2847 = vadd.f32 0.0, %v2846
    %2848 = vmatmul.f32.gmra.mxu0 %v2731
    %v2849 = vpop.f32.mrf.mxu0
    %v2850 = vadd.f32 0.0, %v2849
    %2851 = vmatmul.f32.gmra.mxu0 %v2732
    %v2852 = vpop.f32.mrf.mxu0
    %v2853 = vadd.f32 0.0, %v2852
    %2854 = vmatmul.f32.gmra.mxu0 %v2733
    %v2855 = vpop.f32.mrf.mxu0
    %v2856 = vadd.f32 0.0, %v2855
    %2857 = vmatmul.f32.gmra.mxu0 %v2734
    %v2858 = vpop.f32.mrf.mxu0
    %v2859 = vadd.f32 0.0, %v2858
    %2860 = vmatmul.f32.gmra.mxu0 %v2735
    %v2861 = vpop.f32.mrf.mxu0
    %v2862 = vadd.f32 0.0, %v2861
    %2863 = vmatmul.f32.gmra.mxu0 %v2736
    %v2864 = vpop.f32.mrf.mxu0
    %v2865 = vadd.f32 0.0, %v2864
    %2866 = vmatmul.f32.gmra.mxu0 %v2737
    %v2867 = vpop.f32.mrf.mxu0
    %v2868 = vadd.f32 0.0, %v2867
    %2869 = vmatmul.f32.gmra.mxu0 %v2738
    %v2870 = vpop.f32.mrf.mxu0
    %v2871 = vadd.f32 0.0, %v2870
    %2872 = vmatmul.f32.gmra.mxu0 %v2739
    %v2873 = vpop.f32.mrf.mxu0
    %v2874 = vadd.f32 0.0, %v2873
    %2875 = vmatmul.f32.gmra.mxu0 %v2740
    %v2876 = vpop.f32.mrf.mxu0
    %v2877 = vadd.f32 0.0, %v2876
    %2878 = vmatmul.f32.gmra.mxu0 %v2741
    %v2879 = vpop.f32.mrf.mxu0
    %v2880 = vadd.f32 0.0, %v2879
    %2881 = vmatmul.f32.gmra.mxu0 %v2742
    %v2882 = vpop.f32.mrf.mxu0
    %v2883 = vadd.f32 0.0, %v2882
    %2884 = vmatmul.f32.gmra.mxu0 %v2743
    %v2885 = vpop.f32.mrf.mxu0
    %v2886 = vadd.f32 0.0, %v2885
    %2887 = vmatmul.f32.gmra.mxu0 %v2744
    %v2888 = vpop.f32.mrf.mxu0
    %v2889 = vadd.f32 0.0, %v2888
    %2890 = vmatmul.f32.gmra.mxu0 %v2745
    %v2891 = vpop.f32.mrf.mxu0
    %v2892 = vadd.f32 0.0, %v2891
    %2893 = vmatmul.f32.gmra.mxu0 %v2746
    %v2894 = vpop.f32.mrf.mxu0
    %v2895 = vadd.f32 0.0, %v2894
    %2896 = vmatmul.f32.gmra.mxu0 %v2747
    %v2897 = vpop.f32.mrf.mxu0
    %v2898 = vadd.f32 0.0, %v2897
    %2899 = vmatmul.f32.gmra.mxu0 %v2748
    %v2900 = vpop.f32.mrf.mxu0
    %v2901 = vadd.f32 0.0, %v2900
    %2902 = vmatmul.f32.gmra.mxu0 %v2749
    %v2903 = vpop.f32.mrf.mxu0
    %v2904 = vadd.f32 0.0, %v2903
    %2905 = vmatmul.f32.gmra.mxu0 %v2750
    %v2906 = vpop.f32.mrf.mxu0
    %v2907 = vadd.f32 0.0, %v2906
    %2908 = vmatmul.f32.gmra.mxu0 %v2751
    %v2909 = vpop.f32.mrf.mxu0
    %v2910 = vadd.f32 0.0, %v2909
    %2911 = vmatmul.f32.gmra.mxu0 %v2752
    %v2912 = vpop.f32.mrf.mxu0
    %v2913 = vadd.f32 0.0, %v2912
    %2914 = vmatmul.f32.gmra.mxu0 %v2753
    %v2915 = vpop.f32.mrf.mxu0
    %v2916 = vadd.f32 0.0, %v2915
    %2917 = vmatmul.f32.gmra.mxu0 %v2754
    %v2918 = vpop.f32.mrf.mxu0
    %v2919 = vadd.f32 0.0, %v2918
    %2920 = vmatmul.f32.gmra.mxu0 %v2755
    %v2921 = vpop.f32.mrf.mxu0
    %v2922 = vadd.f32 0.0, %v2921
    %2923 = vmatmul.f32.gmra.mxu0 %v2756
    %v2924 = vpop.f32.mrf.mxu0
    %v2925 = vadd.f32 0.0, %v2924
    %2926 = vmatmul.f32.gmra.mxu0 %v2757
    %v2927 = vpop.f32.mrf.mxu0
    %v2928 = vadd.f32 0.0, %v2927
    %2929 = vmatmul.f32.gmra.mxu0 %v2758
    %v2930 = vpop.f32.mrf.mxu0
    %v2931 = vadd.f32 0.0, %v2930
    %2932 = vmatmul.f32.gmra.mxu0 %v2759
    %v2933 = vpop.f32.mrf.mxu0
    %v2934 = vadd.f32 0.0, %v2933
    %2935 = vmatmul.f32.gmra.mxu0 %v2760
    %v2936 = vpop.f32.mrf.mxu0
    %v2937 = vadd.f32 0.0, %v2936
    %2938 = vmatmul.f32.gmra.mxu0 %v2761
    %v2939 = vpop.f32.mrf.mxu0
    %v2940 = vadd.f32 0.0, %v2939
    %2941 = vmatmul.f32.gmra.mxu0 %v2762
    %v2942 = vpop.f32.mrf.mxu0
    %v2943 = vadd.f32 0.0, %v2942
    %2944 = vmatmul.f32.gmra.mxu0 %v2763
    %v2945 = vpop.f32.mrf.mxu0
    %v2946 = vadd.f32 0.0, %v2945
    %2947 = vmatmul.f32.gmra.mxu0 %v2764
    %v2948 = vpop.f32.mrf.mxu0
    %v2949 = vadd.f32 0.0, %v2948
    %2950 = vmatmul.f32.gmra.mxu0 %v2765
    %v2951 = vpop.f32.mrf.mxu0
    %v2952 = vadd.f32 0.0, %v2951
    %2953 = vmatmul.f32.gmra.mxu0 %v2766
    %v2954 = vpop.f32.mrf.mxu0
    %v2955 = vadd.f32 0.0, %v2954
    %2956 = vmatmul.f32.gmra.mxu0 %v2767
    %v2957 = vpop.f32.mrf.mxu0
    %v2958 = vadd.f32 0.0, %v2957
    %2959 = vmatmul.f32.gmra.mxu0 %v2768
    %v2960 = vpop.f32.mrf.mxu0
    %v2961 = vadd.f32 0.0, %v2960
    %2962 = vmatmul.f32.gmra.mxu0 %v2769
    %v2963 = vpop.f32.mrf.mxu0
    %v2964 = vadd.f32 0.0, %v2963
    %2965 = vmatmul.f32.gmra.mxu0 %v2770
    %v2966 = vpop.f32.mrf.mxu0
    %v2967 = vadd.f32 0.0, %v2966
    %2968 = vmatmul.f32.gmra.mxu0 %v2771
    %v2969 = vpop.f32.mrf.mxu0
    %v2970 = vadd.f32 0.0, %v2969
    %2971 = vmatmul.f32.gmra.mxu0 %v2772
    %v2972 = vpop.f32.mrf.mxu0
    %v2973 = vadd.f32 0.0, %v2972
    %2974 = vmatmul.f32.gmra.mxu0 %v2773
    %v2975 = vpop.f32.mrf.mxu0
    %v2976 = vadd.f32 0.0, %v2975
    %2977 = vmatmul.f32.gmra.mxu0 %v2774
    %v2978 = vpop.f32.mrf.mxu0
    %v2979 = vadd.f32 0.0, %v2978
    %2980 = vmatmul.f32.gmra.mxu0 %v2775
    %v2981 = vpop.f32.mrf.mxu0
    %v2982 = vadd.f32 0.0, %v2981
    %2983 = vmatmul.f32.gmra.mxu0 %v2776
    %v2984 = vpop.f32.mrf.mxu0
    %v2985 = vadd.f32 0.0, %v2984
    %2986 = vmatmul.f32.gmra.mxu0 %v2777
    %v2987 = vpop.f32.mrf.mxu0
    %v2988 = vadd.f32 0.0, %v2987
    %2989 = vmatmul.f32.gmra.mxu0 %v2778
    %v2990 = vpop.f32.mrf.mxu0
    %v2991 = vadd.f32 0.0, %v2990
    %2992 = vdwg.mxu0
    %v2993 = vadd.f32 %v2659, %v2814
    %v2994 = vadd.f32 %v2660, %v2817
    %v2995 = vadd.f32 %v2661, %v2820
    %v2996 = vadd.f32 %v2662, %v2823
    %v2997 = vadd.f32 %v2663, %v2826
    %v2998 = vadd.f32 %v2664, %v2829
    %v2999 = vadd.f32 %v2665, %v2832
    %v3000 = vadd.f32 %v2666, %v2835
    %v3001 = vadd.f32 %v2667, %v2838
    %v3002 = vadd.f32 %v2668, %v2841
    %v3003 = vadd.f32 %v2669, %v2844
    %v3004 = vadd.f32 %v2670, %v2847
    %v3005 = vadd.f32 %v2671, %v2850
    %v3006 = vadd.f32 %v2672, %v2853
    %v3007 = vadd.f32 %v2673, %v2856
    %v3008 = vadd.f32 %v2674, %v2859
    %v3009 = vadd.f32 %v2675, %v2862
    %v3010 = vadd.f32 %v2676, %v2865
    %v3011 = vadd.f32 %v2677, %v2868
    %v3012 = vadd.f32 %v2678, %v2871
    %v3013 = vadd.f32 %v2679, %v2874
    %v3014 = vadd.f32 %v2680, %v2877
    %v3015 = vadd.f32 %v2681, %v2880
    %v3016 = vadd.f32 %v2682, %v2883
    %v3017 = vadd.f32 %v2683, %v2886
    %v3018 = vadd.f32 %v2684, %v2889
    %v3019 = vadd.f32 %v2685, %v2892
    %v3020 = vadd.f32 %v2686, %v2895
    %v3021 = vadd.f32 %v2687, %v2898
    %v3022 = vadd.f32 %v2688, %v2901
    %v3023 = vadd.f32 %v2689, %v2904
    %v3024 = vadd.f32 %v2690, %v2907
    %v3025 = vadd.f32 %v2691, %v2910
    %v3026 = vadd.f32 %v2692, %v2913
    %v3027 = vadd.f32 %v2693, %v2916
    %v3028 = vadd.f32 %v2694, %v2919
    %v3029 = vadd.f32 %v2695, %v2922
    %v3030 = vadd.f32 %v2696, %v2925
    %v3031 = vadd.f32 %v2697, %v2928
    %v3032 = vadd.f32 %v2698, %v2931
    %v3033 = vadd.f32 %v2699, %v2934
    %v3034 = vadd.f32 %v2700, %v2937
    %v3035 = vadd.f32 %v2701, %v2940
    %v3036 = vadd.f32 %v2702, %v2943
    %v3037 = vadd.f32 %v2703, %v2946
    %v3038 = vadd.f32 %v2704, %v2949
    %v3039 = vadd.f32 %v2705, %v2952
    %v3040 = vadd.f32 %v2706, %v2955
    %v3041 = vadd.f32 %v2707, %v2958
    %v3042 = vadd.f32 %v2708, %v2961
    %v3043 = vadd.f32 %v2709, %v2964
    %v3044 = vadd.f32 %v2710, %v2967
    %v3045 = vadd.f32 %v2711, %v2970
    %v3046 = vadd.f32 %v2712, %v2973
    %v3047 = vadd.f32 %v2713, %v2976
    %v3048 = vadd.f32 %v2714, %v2979
    %v3049 = vadd.f32 %v2715, %v2982
    %v3050 = vadd.f32 %v2716, %v2985
    %v3051 = vadd.f32 %v2717, %v2988
    %v3052 = vadd.f32 %v2718, %v2991
    %v3053 = vld [vmem:[#allocation9] sm:$0xff]
    %v3054 = vld [vmem:[#allocation9 + $0x8] sm:$0xff]
    %v3055 = vld [vmem:[#allocation9 + $0x10] sm:$0xff]
    %v3056 = vld [vmem:[#allocation9 + $0x18] sm:$0xff]
    %v3057 = vld [vmem:[#allocation9 + $0x20] sm:$0xff]
    %v3058 = vld [vmem:[#allocation9 + $0x28] sm:$0xff]
    %v3059 = vld [vmem:[#allocation9 + $0x30] sm:$0xff]
    %v3060 = vld [vmem:[#allocation9 + $0x38] sm:$0xff]
    %v3061 = vld [vmem:[#allocation9 + $0x40] sm:$0xff]
    %v3062 = vld [vmem:[#allocation9 + $0x48] sm:$0xff]
    %v3063 = vld [vmem:[#allocation9 + $0x50] sm:$0xff]
    %v3064 = vld [vmem:[#allocation9 + $0x58] sm:$0xff]
    %v3065 = vld [vmem:[#allocation9 + $0x60] sm:$0xff]
    %v3066 = vld [vmem:[#allocation9 + $0x68] sm:$0xff]
    %v3067 = vld [vmem:[#allocation9 + $0x70] sm:$0xff]
    %v3068 = vld [vmem:[#allocation9 + $0x78] sm:$0xff]
    %v3069 = vld [vmem:[#allocation9 + $0x80] sm:$0xff]
    %v3070 = vld [vmem:[#allocation9 + $0x88] sm:$0xff]
    %v3071 = vld [vmem:[#allocation9 + $0x90] sm:$0xff]
    %v3072 = vld [vmem:[#allocation9 + $0x98] sm:$0xff]
    %v3073 = vld [vmem:[#allocation9 + $0xa0] sm:$0xff]
    %v3074 = vld [vmem:[#allocation9 + $0xa8] sm:$0xff]
    %v3075 = vld [vmem:[#allocation9 + $0xb0] sm:$0xff]
    %v3076 = vld [vmem:[#allocation9 + $0xb8] sm:$0xff]
    %v3077 = vld [vmem:[#allocation9 + $0xc0] sm:$0xff]
    %v3078 = vld [vmem:[#allocation9 + $0xc8] sm:$0xff]
    %v3079 = vld [vmem:[#allocation9 + $0xd0] sm:$0xff]
    %v3080 = vld [vmem:[#allocation9 + $0xd8] sm:$0xff]
    %v3081 = vld [vmem:[#allocation9 + $0xe0] sm:$0xff]
    %v3082 = vld [vmem:[#allocation9 + $0xe8] sm:$0xff]
    %v3083 = vld [vmem:[#allocation9 + $0xf0] sm:$0xff]
    %v3084 = vld [vmem:[#allocation9 + $0xf8] sm:$0xff]
    %v3085 = vld [vmem:[#allocation9 + $0x100] sm:$0xff]
    %v3086 = vld [vmem:[#allocation9 + $0x108] sm:$0xff]
    %v3087 = vld [vmem:[#allocation9 + $0x110] sm:$0xff]
    %v3088 = vld [vmem:[#allocation9 + $0x118] sm:$0xff]
    %v3089 = vld [vmem:[#allocation9 + $0x120] sm:$0xff]
    %v3090 = vld [vmem:[#allocation9 + $0x128] sm:$0xff]
    %v3091 = vld [vmem:[#allocation9 + $0x130] sm:$0xff]
    %v3092 = vld [vmem:[#allocation9 + $0x138] sm:$0xff]
    %v3093 = vld [vmem:[#allocation9 + $0x140] sm:$0xff]
    %v3094 = vld [vmem:[#allocation9 + $0x148] sm:$0xff]
    %v3095 = vld [vmem:[#allocation9 + $0x150] sm:$0xff]
    %v3096 = vld [vmem:[#allocation9 + $0x158] sm:$0xff]
    %v3097 = vld [vmem:[#allocation9 + $0x160] sm:$0xff]
    %v3098 = vld [vmem:[#allocation9 + $0x168] sm:$0xff]
    %v3099 = vld [vmem:[#allocation9 + $0x170] sm:$0xff]
    %v3100 = vld [vmem:[#allocation9 + $0x178] sm:$0xff]
    %v3101 = vld [vmem:[#allocation9 + $0x180] sm:$0xff]
    %v3102 = vld [vmem:[#allocation9 + $0x188] sm:$0xff]
    %v3103 = vld [vmem:[#allocation9 + $0x190] sm:$0xff]
    %v3104 = vld [vmem:[#allocation9 + $0x198] sm:$0xff]
    %v3105 = vld [vmem:[#allocation9 + $0x1a0] sm:$0xff]
    %v3106 = vld [vmem:[#allocation9 + $0x1a8] sm:$0xff]
    %v3107 = vld [vmem:[#allocation9 + $0x1b0] sm:$0xff]
    %v3108 = vld [vmem:[#allocation9 + $0x1b8] sm:$0xff]
    %v3109 = vld [vmem:[#allocation9 + $0x1c0] sm:$0xff]
    %v3110 = vld [vmem:[#allocation9 + $0x1c8] sm:$0xff]
    %v3111 = vld [vmem:[#allocation9 + $0x1d0] sm:$0xff]
    %v3112 = vld [vmem:[#allocation9 + $0x1d8] sm:$0xff]
    %v3113 = vld [vmem:[#allocation9 + $0x1e0] sm:$0xff]
    %v3114 = vld [vmem:[#allocation9 + $0x1e8] sm:$0xff]
    %v3115 = vld [vmem:[#allocation9 + $0x1f0] sm:$0xff]
    %v3116 = vld [vmem:[#allocation9 + $0x1f8] sm:$0xff]
    %v3117 = vld [vmem:[#allocation9 + $0x200] sm:$0xff]
    %v3118 = vld [vmem:[#allocation9 + $0x208] sm:$0xff]
    %v3119 = vld [vmem:[#allocation9 + $0x210] sm:$0xff]
    %v3120 = vld [vmem:[#allocation9 + $0x218] sm:$0xff]
    %v3121 = vld [vmem:[#allocation9 + $0x220] sm:$0xff]
    %v3122 = vld [vmem:[#allocation9 + $0x228] sm:$0xff]
    %v3123 = vld [vmem:[#allocation9 + $0x230] sm:$0xff]
    %v3124 = vld [vmem:[#allocation9 + $0x238] sm:$0xff]
    %v3125 = vld [vmem:[#allocation9 + $0x240] sm:$0xff]
    %v3126 = vld [vmem:[#allocation9 + $0x248] sm:$0xff]
    %v3127 = vld [vmem:[#allocation9 + $0x250] sm:$0xff]
    %v3128 = vld [vmem:[#allocation9 + $0x258] sm:$0xff]
    %v3129 = vld [vmem:[#allocation9 + $0x260] sm:$0xff]
    %v3130 = vld [vmem:[#allocation9 + $0x268] sm:$0xff]
    %v3131 = vld [vmem:[#allocation9 + $0x270] sm:$0xff]
    %v3132 = vld [vmem:[#allocation9 + $0x278] sm:$0xff]
    %v3133 = vld [vmem:[#allocation9 + $0x280] sm:$0xff]
    %v3134 = vld [vmem:[#allocation9 + $0x288] sm:$0xff]
    %v3135 = vld [vmem:[#allocation9 + $0x290] sm:$0xff]
    %v3136 = vld [vmem:[#allocation9 + $0x298] sm:$0xff]
    %v3137 = vld [vmem:[#allocation9 + $0x2a0] sm:$0xff]
    %v3138 = vld [vmem:[#allocation9 + $0x2a8] sm:$0xff]
    %v3139 = vld [vmem:[#allocation9 + $0x2b0] sm:$0xff]
    %v3140 = vld [vmem:[#allocation9 + $0x2b8] sm:$0xff]
    %v3141 = vld [vmem:[#allocation9 + $0x2c0] sm:$0xff]
    %v3142 = vld [vmem:[#allocation9 + $0x2c8] sm:$0xff]
    %v3143 = vld [vmem:[#allocation9 + $0x2d0] sm:$0xff]
    %v3144 = vld [vmem:[#allocation9 + $0x2d8] sm:$0xff]
    %v3145 = vld [vmem:[#allocation9 + $0x2e0] sm:$0xff]
    %v3146 = vld [vmem:[#allocation9 + $0x2e8] sm:$0xff]
    %v3147 = vld [vmem:[#allocation9 + $0x2f0] sm:$0xff]
    %v3148 = vld [vmem:[#allocation9 + $0x2f8] sm:$0xff]
    %v3149 = vld [vmem:[#allocation9 + $0x300] sm:$0xff]
    %v3150 = vld [vmem:[#allocation9 + $0x308] sm:$0xff]
    %v3151 = vld [vmem:[#allocation9 + $0x310] sm:$0xff]
    %v3152 = vld [vmem:[#allocation9 + $0x318] sm:$0xff]
    %v3153 = vld [vmem:[#allocation9 + $0x320] sm:$0xff]
    %v3154 = vld [vmem:[#allocation9 + $0x328] sm:$0xff]
    %v3155 = vld [vmem:[#allocation9 + $0x330] sm:$0xff]
    %v3156 = vld [vmem:[#allocation9 + $0x338] sm:$0xff]
    %v3157 = vld [vmem:[#allocation9 + $0x340] sm:$0xff]
    %v3158 = vld [vmem:[#allocation9 + $0x348] sm:$0xff]
    %v3159 = vld [vmem:[#allocation9 + $0x350] sm:$0xff]
    %v3160 = vld [vmem:[#allocation9 + $0x358] sm:$0xff]
    %v3161 = vld [vmem:[#allocation9 + $0x360] sm:$0xff]
    %v3162 = vld [vmem:[#allocation9 + $0x368] sm:$0xff]
    %v3163 = vld [vmem:[#allocation9 + $0x370] sm:$0xff]
    %v3164 = vld [vmem:[#allocation9 + $0x378] sm:$0xff]
    %v3165 = vld [vmem:[#allocation9 + $0x380] sm:$0xff]
    %v3166 = vld [vmem:[#allocation9 + $0x388] sm:$0xff]
    %v3167 = vld [vmem:[#allocation9 + $0x390] sm:$0xff]
    %v3168 = vld [vmem:[#allocation9 + $0x398] sm:$0xff]
    %v3169 = vld [vmem:[#allocation9 + $0x3a0] sm:$0xff]
    %v3170 = vld [vmem:[#allocation9 + $0x3a8] sm:$0xff]
    %v3171 = vld [vmem:[#allocation9 + $0x3b0] sm:$0xff]
    %v3172 = vld [vmem:[#allocation9 + $0x3b8] sm:$0xff]
    %v3173 = vld [vmem:[#allocation9 + $0x3c0] sm:$0xff]
    %v3174 = vld [vmem:[#allocation9 + $0x3c8] sm:$0xff]
    %v3175 = vld [vmem:[#allocation9 + $0x3d0] sm:$0xff]
    %v3176 = vld [vmem:[#allocation9 + $0x3d8] sm:$0xff]
    %v3177 = vld [vmem:[#allocation9 + $0x3e0] sm:$0xff]
    %v3178 = vld [vmem:[#allocation9 + $0x3e8] sm:$0xff]
    %v3179 = vld [vmem:[#allocation9 + $0x3f0] sm:$0xff]
    %v3180 = vld [vmem:[#allocation9 + $0x3f8] sm:$0xff]
    %v3181 = vld [vmem:[#allocation9 + $0x400] sm:$0xff]
    %v3182 = vld [vmem:[#allocation9 + $0x408] sm:$0xff]
    %v3183 = vld [vmem:[#allocation9 + $0x410] sm:$0xff]
    %v3184 = vld [vmem:[#allocation9 + $0x418] sm:$0xff]
    %v3185 = vld [vmem:[#allocation9 + $0x420] sm:$0xff]
    %v3186 = vld [vmem:[#allocation9 + $0x428] sm:$0xff]
    %v3187 = vld [vmem:[#allocation9 + $0x430] sm:$0xff]
    %v3188 = vld [vmem:[#allocation9 + $0x438] sm:$0xff]
    %v3189 = vld [vmem:[#allocation9 + $0x440] sm:$0xff]
    %v3190 = vld [vmem:[#allocation9 + $0x448] sm:$0xff]
    %v3191 = vld [vmem:[#allocation9 + $0x450] sm:$0xff]
    %v3192 = vld [vmem:[#allocation9 + $0x458] sm:$0xff]
    %v3193 = vld [vmem:[#allocation9 + $0x460] sm:$0xff]
    %v3194 = vld [vmem:[#allocation9 + $0x468] sm:$0xff]
    %v3195 = vld [vmem:[#allocation9 + $0x470] sm:$0xff]
    %v3196 = vld [vmem:[#allocation9 + $0x478] sm:$0xff]
    %v3197 = vld [vmem:[#allocation9 + $0x480] sm:$0xff]
    %v3198 = vld [vmem:[#allocation9 + $0x488] sm:$0xff]
    %v3199 = vld [vmem:[#allocation9 + $0x490] sm:$0xff]
    %v3200 = vld [vmem:[#allocation9 + $0x498] sm:$0xff]
    %v3201 = vld [vmem:[#allocation9 + $0x4a0] sm:$0xff]
    %v3202 = vld [vmem:[#allocation9 + $0x4a8] sm:$0xff]
    %v3203 = vld [vmem:[#allocation9 + $0x4b0] sm:$0xff]
    %v3204 = vld [vmem:[#allocation9 + $0x4b8] sm:$0xff]
    %v3205 = vld [vmem:[#allocation9 + $0x4c0] sm:$0xff]
    %v3206 = vld [vmem:[#allocation9 + $0x4c8] sm:$0xff]
    %v3207 = vld [vmem:[#allocation9 + $0x4d0] sm:$0xff]
    %v3208 = vld [vmem:[#allocation9 + $0x4d8] sm:$0xff]
    %v3209 = vld [vmem:[#allocation9 + $0x4e0] sm:$0xff]
    %v3210 = vld [vmem:[#allocation9 + $0x4e8] sm:$0xff]
    %v3211 = vld [vmem:[#allocation9 + $0x4f0] sm:$0xff]
    %v3212 = vld [vmem:[#allocation9 + $0x4f8] sm:$0xff]
    %v3213 = vld [vmem:[#allocation9 + $0x500] sm:$0xff]
    %v3214 = vld [vmem:[#allocation9 + $0x508] sm:$0xff]
    %v3215 = vld [vmem:[#allocation9 + $0x510] sm:$0xff]
    %v3216 = vld [vmem:[#allocation9 + $0x518] sm:$0xff]
    %v3217 = vld [vmem:[#allocation9 + $0x520] sm:$0xff]
    %v3218 = vld [vmem:[#allocation9 + $0x528] sm:$0xff]
    %v3219 = vld [vmem:[#allocation9 + $0x530] sm:$0xff]
    %v3220 = vld [vmem:[#allocation9 + $0x538] sm:$0xff]
    %v3221 = vld [vmem:[#allocation9 + $0x540] sm:$0xff]
    %v3222 = vld [vmem:[#allocation9 + $0x548] sm:$0xff]
    %v3223 = vld [vmem:[#allocation9 + $0x550] sm:$0xff]
    %v3224 = vld [vmem:[#allocation9 + $0x558] sm:$0xff]
    %v3225 = vld [vmem:[#allocation9 + $0x560] sm:$0xff]
    %v3226 = vld [vmem:[#allocation9 + $0x568] sm:$0xff]
    %v3227 = vld [vmem:[#allocation9 + $0x570] sm:$0xff]
    %v3228 = vld [vmem:[#allocation9 + $0x578] sm:$0xff]
    %v3229 = vld [vmem:[#allocation9 + $0x580] sm:$0xff]
    %v3230 = vld [vmem:[#allocation9 + $0x588] sm:$0xff]
    %v3231 = vld [vmem:[#allocation9 + $0x590] sm:$0xff]
    %v3232 = vld [vmem:[#allocation9 + $0x598] sm:$0xff]
    %v3233 = vld [vmem:[#allocation9 + $0x5a0] sm:$0xff]
    %v3234 = vld [vmem:[#allocation9 + $0x5a8] sm:$0xff]
    %v3235 = vld [vmem:[#allocation9 + $0x5b0] sm:$0xff]
    %v3236 = vld [vmem:[#allocation9 + $0x5b8] sm:$0xff]
    %v3237 = vld [vmem:[#allocation9 + $0x5c0] sm:$0xff]
    %v3238 = vld [vmem:[#allocation9 + $0x5c8] sm:$0xff]
    %v3239 = vld [vmem:[#allocation9 + $0x5d0] sm:$0xff]
    %v3240 = vld [vmem:[#allocation9 + $0x5d8] sm:$0xff]
    %v3241 = vld [vmem:[#allocation9 + $0x5e0] sm:$0xff]
    %v3242 = vld [vmem:[#allocation9 + $0x5e8] sm:$0xff]
    %v3243 = vld [vmem:[#allocation9 + $0x5f0] sm:$0xff]
    %v3244 = vld [vmem:[#allocation9 + $0x5f8] sm:$0xff]
    %v3245 = vld [vmem:[#allocation9 + $0x600] sm:$0xff]
    %v3246 = vld [vmem:[#allocation9 + $0x608] sm:$0xff]
    %v3247 = vld [vmem:[#allocation9 + $0x610] sm:$0xff]
    %v3248 = vld [vmem:[#allocation9 + $0x618] sm:$0xff]
    %v3249 = vld [vmem:[#allocation7] sm:$0x1]
    %v3251 = vperm.slane %v3249, 0
    %vm3253 = vcmask 769024
    %v3255 = vsel %vm3253, %v3056, 0
    %v3258 = vsel %vm3253, %v3060, 0
    %v3261 = vsel %vm3253, %v3064, 0
    %v3264 = vsel %vm3253, %v3068, 0
    %v3267 = vsel %vm3253, %v3072, 0
    %v3270 = vsel %vm3253, %v3076, 0
    %v3273 = vsel %vm3253, %v3080, 0
    %v3276 = vsel %vm3253, %v3084, 0
    %v3279 = vsel %vm3253, %v3088, 0
    %v3282 = vsel %vm3253, %v3092, 0
    %v3285 = vsel %vm3253, %v3096, 0
    %v3288 = vsel %vm3253, %v3100, 0
    %v3291 = vsel %vm3253, %v3104, 0
    %v3294 = vsel %vm3253, %v3108, 0
    %v3297 = vsel %vm3253, %v3112, 0
    %v3300 = vsel %vm3253, %v3116, 0
    %v3303 = vsel %vm3253, %v3120, 0
    %v3306 = vsel %vm3253, %v3124, 0
    %v3309 = vsel %vm3253, %v3128, 0
    %v3312 = vsel %vm3253, %v3132, 0
    %v3315 = vsel %vm3253, %v3136, 0
    %v3318 = vsel %vm3253, %v3140, 0
    %v3321 = vsel %vm3253, %v3144, 0
    %v3324 = vsel %vm3253, %v3148, 0
    %v3327 = vsel %vm3253, %v3152, 0
    %v3330 = vsel %vm3253, %v3156, 0
    %v3333 = vsel %vm3253, %v3160, 0
    %v3336 = vsel %vm3253, %v3164, 0
    %v3339 = vsel %vm3253, %v3168, 0
    %v3342 = vsel %vm3253, %v3172, 0
    %v3345 = vsel %vm3253, %v3176, 0
    %v3348 = vsel %vm3253, %v3180, 0
    %v3351 = vsel %vm3253, %v3184, 0
    %v3354 = vsel %vm3253, %v3188, 0
    %v3357 = vsel %vm3253, %v3192, 0
    %v3360 = vsel %vm3253, %v3196, 0
    %v3363 = vsel %vm3253, %v3200, 0
    %v3366 = vsel %vm3253, %v3204, 0
    %v3369 = vsel %vm3253, %v3208, 0
    %v3372 = vsel %vm3253, %v3212, 0
    %v3375 = vsel %vm3253, %v3216, 0
    %v3378 = vsel %vm3253, %v3220, 0
    %v3381 = vsel %vm3253, %v3224, 0
    %v3384 = vsel %vm3253, %v3228, 0
    %v3387 = vsel %vm3253, %v3232, 0
    %v3390 = vsel %vm3253, %v3236, 0
    %v3393 = vsel %vm3253, %v3240, 0
    %v3396 = vsel %vm3253, %v3244, 0
    %v3399 = vsel %vm3253, %v3248, 0
    %vm3401 = vcmask 1045504
    %v3403 = vsel %vm3401, %v3052, 0
    %3405 = vmatpush.msra.mxu0 %v3008
    %3406 = vmatpush.msra.mxu0 %v3007
    %3407 = vmatpush.msra.mxu0 %v3006
    %3408 = vmatpush.msra.mxu0 %v3005
    %3409 = vmatpush.msra.mxu0 %v3004
    %3410 = vmatpush.msra.mxu0 %v3003
    %3411 = vmatpush.msra.mxu0 %v3002
    %3412 = vmatpush.msra.mxu0 %v3001
    %3413 = vmatpush.msra.mxu0 %v3000
    %3414 = vmatpush.msra.mxu0 %v2999
    %3415 = vmatpush.msra.mxu0 %v2998
    %3416 = vmatpush.msra.mxu0 %v2997
    %3417 = vmatpush.msra.mxu0 %v2996
    %3418 = vmatpush.msra.mxu0 %v2995
    %3419 = vmatpush.msra.mxu0 %v2994
    %3420 = vmatpush.msra.mxu0 %v2993
    %3421 = vmatmul.f32.gmra.mxu0 %v3053
    %v3422 = vpop.f32.mrf.mxu0
    %v3423 = vadd.f32 %v3251, %v3422
    %3424 = vmatmul.f32.gmra.mxu0 %v3057
    %v3425 = vpop.f32.mrf.mxu0
    %v3426 = vadd.f32 %v3251, %v3425
    %3427 = vmatmul.f32.gmra.mxu0 %v3061
    %v3428 = vpop.f32.mrf.mxu0
    %v3429 = vadd.f32 %v3251, %v3428
    %3430 = vmatmul.f32.gmra.mxu0 %v3065
    %v3431 = vpop.f32.mrf.mxu0
    %v3432 = vadd.f32 %v3251, %v3431
    %3433 = vmatmul.f32.gmra.mxu0 %v3069
    %v3434 = vpop.f32.mrf.mxu0
    %v3435 = vadd.f32 %v3251, %v3434
    %3436 = vmatmul.f32.gmra.mxu0 %v3073
    %v3437 = vpop.f32.mrf.mxu0
    %v3438 = vadd.f32 %v3251, %v3437
    %3439 = vmatmul.f32.gmra.mxu0 %v3077
    %v3440 = vpop.f32.mrf.mxu0
    %v3441 = vadd.f32 %v3251, %v3440
    %3442 = vmatmul.f32.gmra.mxu0 %v3081
    %v3443 = vpop.f32.mrf.mxu0
    %v3444 = vadd.f32 %v3251, %v3443
    %3445 = vmatmul.f32.gmra.mxu0 %v3085
    %v3446 = vpop.f32.mrf.mxu0
    %v3447 = vadd.f32 %v3251, %v3446
    %3448 = vmatmul.f32.gmra.mxu0 %v3089
    %v3449 = vpop.f32.mrf.mxu0
    %v3450 = vadd.f32 %v3251, %v3449
    %3451 = vmatmul.f32.gmra.mxu0 %v3093
    %v3452 = vpop.f32.mrf.mxu0
    %v3453 = vadd.f32 %v3251, %v3452
    %3454 = vmatmul.f32.gmra.mxu0 %v3097
    %v3455 = vpop.f32.mrf.mxu0
    %v3456 = vadd.f32 %v3251, %v3455
    %3457 = vmatmul.f32.gmra.mxu0 %v3101
    %v3458 = vpop.f32.mrf.mxu0
    %v3459 = vadd.f32 %v3251, %v3458
    %3460 = vmatmul.f32.gmra.mxu0 %v3105
    %v3461 = vpop.f32.mrf.mxu0
    %v3462 = vadd.f32 %v3251, %v3461
    %3463 = vmatmul.f32.gmra.mxu0 %v3109
    %v3464 = vpop.f32.mrf.mxu0
    %v3465 = vadd.f32 %v3251, %v3464
    %3466 = vmatmul.f32.gmra.mxu0 %v3113
    %v3467 = vpop.f32.mrf.mxu0
    %v3468 = vadd.f32 %v3251, %v3467
    %3469 = vmatmul.f32.gmra.mxu0 %v3117
    %v3470 = vpop.f32.mrf.mxu0
    %v3471 = vadd.f32 %v3251, %v3470
    %3472 = vmatmul.f32.gmra.mxu0 %v3121
    %v3473 = vpop.f32.mrf.mxu0
    %v3474 = vadd.f32 %v3251, %v3473
    %3475 = vmatmul.f32.gmra.mxu0 %v3125
    %v3476 = vpop.f32.mrf.mxu0
    %v3477 = vadd.f32 %v3251, %v3476
    %3478 = vmatmul.f32.gmra.mxu0 %v3129
    %v3479 = vpop.f32.mrf.mxu0
    %v3480 = vadd.f32 %v3251, %v3479
    %3481 = vmatmul.f32.gmra.mxu0 %v3133
    %v3482 = vpop.f32.mrf.mxu0
    %v3483 = vadd.f32 %v3251, %v3482
    %3484 = vmatmul.f32.gmra.mxu0 %v3137
    %v3485 = vpop.f32.mrf.mxu0
    %v3486 = vadd.f32 %v3251, %v3485
    %3487 = vmatmul.f32.gmra.mxu0 %v3141
    %v3488 = vpop.f32.mrf.mxu0
    %v3489 = vadd.f32 %v3251, %v3488
    %3490 = vmatmul.f32.gmra.mxu0 %v3145
    %v3491 = vpop.f32.mrf.mxu0
    %v3492 = vadd.f32 %v3251, %v3491
    %3493 = vmatmul.f32.gmra.mxu0 %v3149
    %v3494 = vpop.f32.mrf.mxu0
    %v3495 = vadd.f32 %v3251, %v3494
    %3496 = vmatmul.f32.gmra.mxu0 %v3153
    %v3497 = vpop.f32.mrf.mxu0
    %v3498 = vadd.f32 %v3251, %v3497
    %3499 = vmatmul.f32.gmra.mxu0 %v3157
    %v3500 = vpop.f32.mrf.mxu0
    %v3501 = vadd.f32 %v3251, %v3500
    %3502 = vmatmul.f32.gmra.mxu0 %v3161
    %v3503 = vpop.f32.mrf.mxu0
    %v3504 = vadd.f32 %v3251, %v3503
    %3505 = vmatmul.f32.gmra.mxu0 %v3165
    %v3506 = vpop.f32.mrf.mxu0
    %v3507 = vadd.f32 %v3251, %v3506
    %3508 = vmatmul.f32.gmra.mxu0 %v3169
    %v3509 = vpop.f32.mrf.mxu0
    %v3510 = vadd.f32 %v3251, %v3509
    %3511 = vmatmul.f32.gmra.mxu0 %v3173
    %v3512 = vpop.f32.mrf.mxu0
    %v3513 = vadd.f32 %v3251, %v3512
    %3514 = vmatmul.f32.gmra.mxu0 %v3177
    %v3515 = vpop.f32.mrf.mxu0
    %v3516 = vadd.f32 %v3251, %v3515
    %3517 = vmatmul.f32.gmra.mxu0 %v3181
    %v3518 = vpop.f32.mrf.mxu0
    %v3519 = vadd.f32 %v3251, %v3518
    %3520 = vmatmul.f32.gmra.mxu0 %v3185
    %v3521 = vpop.f32.mrf.mxu0
    %v3522 = vadd.f32 %v3251, %v3521
    %3523 = vmatmul.f32.gmra.mxu0 %v3189
    %v3524 = vpop.f32.mrf.mxu0
    %v3525 = vadd.f32 %v3251, %v3524
    %3526 = vmatmul.f32.gmra.mxu0 %v3193
    %v3527 = vpop.f32.mrf.mxu0
    %v3528 = vadd.f32 %v3251, %v3527
    %3529 = vmatmul.f32.gmra.mxu0 %v3197
    %v3530 = vpop.f32.mrf.mxu0
    %v3531 = vadd.f32 %v3251, %v3530
    %3532 = vmatmul.f32.gmra.mxu0 %v3201
    %v3533 = vpop.f32.mrf.mxu0
    %v3534 = vadd.f32 %v3251, %v3533
    %3535 = vmatmul.f32.gmra.mxu0 %v3205
    %v3536 = vpop.f32.mrf.mxu0
    %v3537 = vadd.f32 %v3251, %v3536
    %3538 = vmatmul.f32.gmra.mxu0 %v3209
    %v3539 = vpop.f32.mrf.mxu0
    %v3540 = vadd.f32 %v3251, %v3539
    %3541 = vmatmul.f32.gmra.mxu0 %v3213
    %v3542 = vpop.f32.mrf.mxu0
    %v3543 = vadd.f32 %v3251, %v3542
    %3544 = vmatmul.f32.gmra.mxu0 %v3217
    %v3545 = vpop.f32.mrf.mxu0
    %v3546 = vadd.f32 %v3251, %v3545
    %3547 = vmatmul.f32.gmra.mxu0 %v3221
    %v3548 = vpop.f32.mrf.mxu0
    %v3549 = vadd.f32 %v3251, %v3548
    %3550 = vmatmul.f32.gmra.mxu0 %v3225
    %v3551 = vpop.f32.mrf.mxu0
    %v3552 = vadd.f32 %v3251, %v3551
    %3553 = vmatmul.f32.gmra.mxu0 %v3229
    %v3554 = vpop.f32.mrf.mxu0
    %v3555 = vadd.f32 %v3251, %v3554
    %3556 = vmatmul.f32.gmra.mxu0 %v3233
    %v3557 = vpop.f32.mrf.mxu0
    %v3558 = vadd.f32 %v3251, %v3557
    %3559 = vmatmul.f32.gmra.mxu0 %v3237
    %v3560 = vpop.f32.mrf.mxu0
    %v3561 = vadd.f32 %v3251, %v3560
    %3562 = vmatmul.f32.gmra.mxu0 %v3241
    %v3563 = vpop.f32.mrf.mxu0
    %v3564 = vadd.f32 %v3251, %v3563
    %3565 = vmatmul.f32.gmra.mxu0 %v3245
    %v3566 = vpop.f32.mrf.mxu0
    %v3567 = vadd.f32 %v3251, %v3566
    %3568 = vdwg.mxu0
    %3569 = vmatpush.msra.mxu0 %v3024
    %3570 = vmatpush.msra.mxu0 %v3023
    %3571 = vmatpush.msra.mxu0 %v3022
    %3572 = vmatpush.msra.mxu0 %v3021
    %3573 = vmatpush.msra.mxu0 %v3020
    %3574 = vmatpush.msra.mxu0 %v3019
    %3575 = vmatpush.msra.mxu0 %v3018
    %3576 = vmatpush.msra.mxu0 %v3017
    %3577 = vmatpush.msra.mxu0 %v3016
    %3578 = vmatpush.msra.mxu0 %v3015
    %3579 = vmatpush.msra.mxu0 %v3014
    %3580 = vmatpush.msra.mxu0 %v3013
    %3581 = vmatpush.msra.mxu0 %v3012
    %3582 = vmatpush.msra.mxu0 %v3011
    %3583 = vmatpush.msra.mxu0 %v3010
    %3584 = vmatpush.msra.mxu0 %v3009
    %3585 = vmatmul.f32.gmra.mxu0 %v3054
    %v3586 = vpop.f32.mrf.mxu0
    %v3587 = vadd.f32 %v3423, %v3586
    %3588 = vmatmul.f32.gmra.mxu0 %v3058
    %v3589 = vpop.f32.mrf.mxu0
    %v3590 = vadd.f32 %v3426, %v3589
    %3591 = vmatmul.f32.gmra.mxu0 %v3062
    %v3592 = vpop.f32.mrf.mxu0
    %v3593 = vadd.f32 %v3429, %v3592
    %3594 = vmatmul.f32.gmra.mxu0 %v3066
    %v3595 = vpop.f32.mrf.mxu0
    %v3596 = vadd.f32 %v3432, %v3595
    %3597 = vmatmul.f32.gmra.mxu0 %v3070
    %v3598 = vpop.f32.mrf.mxu0
    %v3599 = vadd.f32 %v3435, %v3598
    %3600 = vmatmul.f32.gmra.mxu0 %v3074
    %v3601 = vpop.f32.mrf.mxu0
    %v3602 = vadd.f32 %v3438, %v3601
    %3603 = vmatmul.f32.gmra.mxu0 %v3078
    %v3604 = vpop.f32.mrf.mxu0
    %v3605 = vadd.f32 %v3441, %v3604
    %3606 = vmatmul.f32.gmra.mxu0 %v3082
    %v3607 = vpop.f32.mrf.mxu0
    %v3608 = vadd.f32 %v3444, %v3607
    %3609 = vmatmul.f32.gmra.mxu0 %v3086
    %v3610 = vpop.f32.mrf.mxu0
    %v3611 = vadd.f32 %v3447, %v3610
    %3612 = vmatmul.f32.gmra.mxu0 %v3090
    %v3613 = vpop.f32.mrf.mxu0
    %v3614 = vadd.f32 %v3450, %v3613
    %3615 = vmatmul.f32.gmra.mxu0 %v3094
    %v3616 = vpop.f32.mrf.mxu0
    %v3617 = vadd.f32 %v3453, %v3616
    %3618 = vmatmul.f32.gmra.mxu0 %v3098
    %v3619 = vpop.f32.mrf.mxu0
    %v3620 = vadd.f32 %v3456, %v3619
    %3621 = vmatmul.f32.gmra.mxu0 %v3102
    %v3622 = vpop.f32.mrf.mxu0
    %v3623 = vadd.f32 %v3459, %v3622
    %3624 = vmatmul.f32.gmra.mxu0 %v3106
    %v3625 = vpop.f32.mrf.mxu0
    %v3626 = vadd.f32 %v3462, %v3625
    %3627 = vmatmul.f32.gmra.mxu0 %v3110
    %v3628 = vpop.f32.mrf.mxu0
    %v3629 = vadd.f32 %v3465, %v3628
    %3630 = vmatmul.f32.gmra.mxu0 %v3114
    %v3631 = vpop.f32.mrf.mxu0
    %v3632 = vadd.f32 %v3468, %v3631
    %3633 = vmatmul.f32.gmra.mxu0 %v3118
    %v3634 = vpop.f32.mrf.mxu0
    %v3635 = vadd.f32 %v3471, %v3634
    %3636 = vmatmul.f32.gmra.mxu0 %v3122
    %v3637 = vpop.f32.mrf.mxu0
    %v3638 = vadd.f32 %v3474, %v3637
    %3639 = vmatmul.f32.gmra.mxu0 %v3126
    %v3640 = vpop.f32.mrf.mxu0
    %v3641 = vadd.f32 %v3477, %v3640
    %3642 = vmatmul.f32.gmra.mxu0 %v3130
    %v3643 = vpop.f32.mrf.mxu0
    %v3644 = vadd.f32 %v3480, %v3643
    %3645 = vmatmul.f32.gmra.mxu0 %v3134
    %v3646 = vpop.f32.mrf.mxu0
    %v3647 = vadd.f32 %v3483, %v3646
    %3648 = vmatmul.f32.gmra.mxu0 %v3138
    %v3649 = vpop.f32.mrf.mxu0
    %v3650 = vadd.f32 %v3486, %v3649
    %3651 = vmatmul.f32.gmra.mxu0 %v3142
    %v3652 = vpop.f32.mrf.mxu0
    %v3653 = vadd.f32 %v3489, %v3652
    %3654 = vmatmul.f32.gmra.mxu0 %v3146
    %v3655 = vpop.f32.mrf.mxu0
    %v3656 = vadd.f32 %v3492, %v3655
    %3657 = vmatmul.f32.gmra.mxu0 %v3150
    %v3658 = vpop.f32.mrf.mxu0
    %v3659 = vadd.f32 %v3495, %v3658
    %3660 = vmatmul.f32.gmra.mxu0 %v3154
    %v3661 = vpop.f32.mrf.mxu0
    %v3662 = vadd.f32 %v3498, %v3661
    %3663 = vmatmul.f32.gmra.mxu0 %v3158
    %v3664 = vpop.f32.mrf.mxu0
    %v3665 = vadd.f32 %v3501, %v3664
    %3666 = vmatmul.f32.gmra.mxu0 %v3162
    %v3667 = vpop.f32.mrf.mxu0
    %v3668 = vadd.f32 %v3504, %v3667
    %3669 = vmatmul.f32.gmra.mxu0 %v3166
    %v3670 = vpop.f32.mrf.mxu0
    %v3671 = vadd.f32 %v3507, %v3670
    %3672 = vmatmul.f32.gmra.mxu0 %v3170
    %v3673 = vpop.f32.mrf.mxu0
    %v3674 = vadd.f32 %v3510, %v3673
    %3675 = vmatmul.f32.gmra.mxu0 %v3174
    %v3676 = vpop.f32.mrf.mxu0
    %v3677 = vadd.f32 %v3513, %v3676
    %3678 = vmatmul.f32.gmra.mxu0 %v3178
    %v3679 = vpop.f32.mrf.mxu0
    %v3680 = vadd.f32 %v3516, %v3679
    %3681 = vmatmul.f32.gmra.mxu0 %v3182
    %v3682 = vpop.f32.mrf.mxu0
    %v3683 = vadd.f32 %v3519, %v3682
    %3684 = vmatmul.f32.gmra.mxu0 %v3186
    %v3685 = vpop.f32.mrf.mxu0
    %v3686 = vadd.f32 %v3522, %v3685
    %3687 = vmatmul.f32.gmra.mxu0 %v3190
    %v3688 = vpop.f32.mrf.mxu0
    %v3689 = vadd.f32 %v3525, %v3688
    %3690 = vmatmul.f32.gmra.mxu0 %v3194
    %v3691 = vpop.f32.mrf.mxu0
    %v3692 = vadd.f32 %v3528, %v3691
    %3693 = vmatmul.f32.gmra.mxu0 %v3198
    %v3694 = vpop.f32.mrf.mxu0
    %v3695 = vadd.f32 %v3531, %v3694
    %3696 = vmatmul.f32.gmra.mxu0 %v3202
    %v3697 = vpop.f32.mrf.mxu0
    %v3698 = vadd.f32 %v3534, %v3697
    %3699 = vmatmul.f32.gmra.mxu0 %v3206
    %v3700 = vpop.f32.mrf.mxu0
    %v3701 = vadd.f32 %v3537, %v3700
    %3702 = vmatmul.f32.gmra.mxu0 %v3210
    %v3703 = vpop.f32.mrf.mxu0
    %v3704 = vadd.f32 %v3540, %v3703
    %3705 = vmatmul.f32.gmra.mxu0 %v3214
    %v3706 = vpop.f32.mrf.mxu0
    %v3707 = vadd.f32 %v3543, %v3706
    %3708 = vmatmul.f32.gmra.mxu0 %v3218
    %v3709 = vpop.f32.mrf.mxu0
    %v3710 = vadd.f32 %v3546, %v3709
    %3711 = vmatmul.f32.gmra.mxu0 %v3222
    %v3712 = vpop.f32.mrf.mxu0
    %v3713 = vadd.f32 %v3549, %v3712
    %3714 = vmatmul.f32.gmra.mxu0 %v3226
    %v3715 = vpop.f32.mrf.mxu0
    %v3716 = vadd.f32 %v3552, %v3715
    %3717 = vmatmul.f32.gmra.mxu0 %v3230
    %v3718 = vpop.f32.mrf.mxu0
    %v3719 = vadd.f32 %v3555, %v3718
    %3720 = vmatmul.f32.gmra.mxu0 %v3234
    %v3721 = vpop.f32.mrf.mxu0
    %v3722 = vadd.f32 %v3558, %v3721
    %3723 = vmatmul.f32.gmra.mxu0 %v3238
    %v3724 = vpop.f32.mrf.mxu0
    %v3725 = vadd.f32 %v3561, %v3724
    %3726 = vmatmul.f32.gmra.mxu0 %v3242
    %v3727 = vpop.f32.mrf.mxu0
    %v3728 = vadd.f32 %v3564, %v3727
    %3729 = vmatmul.f32.gmra.mxu0 %v3246
    %v3730 = vpop.f32.mrf.mxu0
    %v3731 = vadd.f32 %v3567, %v3730
    %3732 = vdwg.mxu0
    %3733 = vmatpush.msra.mxu0 %v3040
    %3734 = vmatpush.msra.mxu0 %v3039
    %3735 = vmatpush.msra.mxu0 %v3038
    %3736 = vmatpush.msra.mxu0 %v3037
    %3737 = vmatpush.msra.mxu0 %v3036
    %3738 = vmatpush.msra.mxu0 %v3035
    %3739 = vmatpush.msra.mxu0 %v3034
    %3740 = vmatpush.msra.mxu0 %v3033
    %3741 = vmatpush.msra.mxu0 %v3032
    %3742 = vmatpush.msra.mxu0 %v3031
    %3743 = vmatpush.msra.mxu0 %v3030
    %3744 = vmatpush.msra.mxu0 %v3029
    %3745 = vmatpush.msra.mxu0 %v3028
    %3746 = vmatpush.msra.mxu0 %v3027
    %3747 = vmatpush.msra.mxu0 %v3026
    %3748 = vmatpush.msra.mxu0 %v3025
    %3749 = vmatmul.f32.gmra.mxu0 %v3055
    %v3750 = vpop.f32.mrf.mxu0
    %v3751 = vadd.f32 %v3587, %v3750
    %3752 = vmatmul.f32.gmra.mxu0 %v3059
    %v3753 = vpop.f32.mrf.mxu0
    %v3754 = vadd.f32 %v3590, %v3753
    %3755 = vmatmul.f32.gmra.mxu0 %v3063
    %v3756 = vpop.f32.mrf.mxu0
    %v3757 = vadd.f32 %v3593, %v3756
    %3758 = vmatmul.f32.gmra.mxu0 %v3067
    %v3759 = vpop.f32.mrf.mxu0
    %v3760 = vadd.f32 %v3596, %v3759
    %3761 = vmatmul.f32.gmra.mxu0 %v3071
    %v3762 = vpop.f32.mrf.mxu0
    %v3763 = vadd.f32 %v3599, %v3762
    %3764 = vmatmul.f32.gmra.mxu0 %v3075
    %v3765 = vpop.f32.mrf.mxu0
    %v3766 = vadd.f32 %v3602, %v3765
    %3767 = vmatmul.f32.gmra.mxu0 %v3079
    %v3768 = vpop.f32.mrf.mxu0
    %v3769 = vadd.f32 %v3605, %v3768
    %3770 = vmatmul.f32.gmra.mxu0 %v3083
    %v3771 = vpop.f32.mrf.mxu0
    %v3772 = vadd.f32 %v3608, %v3771
    %3773 = vmatmul.f32.gmra.mxu0 %v3087
    %v3774 = vpop.f32.mrf.mxu0
    %v3775 = vadd.f32 %v3611, %v3774
    %3776 = vmatmul.f32.gmra.mxu0 %v3091
    %v3777 = vpop.f32.mrf.mxu0
    %v3778 = vadd.f32 %v3614, %v3777
    %3779 = vmatmul.f32.gmra.mxu0 %v3095
    %v3780 = vpop.f32.mrf.mxu0
    %v3781 = vadd.f32 %v3617, %v3780
    %3782 = vmatmul.f32.gmra.mxu0 %v3099
    %v3783 = vpop.f32.mrf.mxu0
    %v3784 = vadd.f32 %v3620, %v3783
    %3785 = vmatmul.f32.gmra.mxu0 %v3103
    %v3786 = vpop.f32.mrf.mxu0
    %v3787 = vadd.f32 %v3623, %v3786
    %3788 = vmatmul.f32.gmra.mxu0 %v3107
    %v3789 = vpop.f32.mrf.mxu0
    %v3790 = vadd.f32 %v3626, %v3789
    %3791 = vmatmul.f32.gmra.mxu0 %v3111
    %v3792 = vpop.f32.mrf.mxu0
    %v3793 = vadd.f32 %v3629, %v3792
    %3794 = vmatmul.f32.gmra.mxu0 %v3115
    %v3795 = vpop.f32.mrf.mxu0
    %v3796 = vadd.f32 %v3632, %v3795
    %3797 = vmatmul.f32.gmra.mxu0 %v3119
    %v3798 = vpop.f32.mrf.mxu0
    %v3799 = vadd.f32 %v3635, %v3798
    %3800 = vmatmul.f32.gmra.mxu0 %v3123
    %v3801 = vpop.f32.mrf.mxu0
    %v3802 = vadd.f32 %v3638, %v3801
    %3803 = vmatmul.f32.gmra.mxu0 %v3127
    %v3804 = vpop.f32.mrf.mxu0
    %v3805 = vadd.f32 %v3641, %v3804
    %3806 = vmatmul.f32.gmra.mxu0 %v3131
    %v3807 = vpop.f32.mrf.mxu0
    %v3808 = vadd.f32 %v3644, %v3807
    %3809 = vmatmul.f32.gmra.mxu0 %v3135
    %v3810 = vpop.f32.mrf.mxu0
    %v3811 = vadd.f32 %v3647, %v3810
    %3812 = vmatmul.f32.gmra.mxu0 %v3139
    %v3813 = vpop.f32.mrf.mxu0
    %v3814 = vadd.f32 %v3650, %v3813
    %3815 = vmatmul.f32.gmra.mxu0 %v3143
    %v3816 = vpop.f32.mrf.mxu0
    %v3817 = vadd.f32 %v3653, %v3816
    %3818 = vmatmul.f32.gmra.mxu0 %v3147
    %v3819 = vpop.f32.mrf.mxu0
    %v3820 = vadd.f32 %v3656, %v3819
    %3821 = vmatmul.f32.gmra.mxu0 %v3151
    %v3822 = vpop.f32.mrf.mxu0
    %v3823 = vadd.f32 %v3659, %v3822
    %3824 = vmatmul.f32.gmra.mxu0 %v3155
    %v3825 = vpop.f32.mrf.mxu0
    %v3826 = vadd.f32 %v3662, %v3825
    %3827 = vmatmul.f32.gmra.mxu0 %v3159
    %v3828 = vpop.f32.mrf.mxu0
    %v3829 = vadd.f32 %v3665, %v3828
    %3830 = vmatmul.f32.gmra.mxu0 %v3163
    %v3831 = vpop.f32.mrf.mxu0
    %v3832 = vadd.f32 %v3668, %v3831
    %3833 = vmatmul.f32.gmra.mxu0 %v3167
    %v3834 = vpop.f32.mrf.mxu0
    %v3835 = vadd.f32 %v3671, %v3834
    %3836 = vmatmul.f32.gmra.mxu0 %v3171
    %v3837 = vpop.f32.mrf.mxu0
    %v3838 = vadd.f32 %v3674, %v3837
    %3839 = vmatmul.f32.gmra.mxu0 %v3175
    %v3840 = vpop.f32.mrf.mxu0
    %v3841 = vadd.f32 %v3677, %v3840
    %3842 = vmatmul.f32.gmra.mxu0 %v3179
    %v3843 = vpop.f32.mrf.mxu0
    %v3844 = vadd.f32 %v3680, %v3843
    %3845 = vmatmul.f32.gmra.mxu0 %v3183
    %v3846 = vpop.f32.mrf.mxu0
    %v3847 = vadd.f32 %v3683, %v3846
    %3848 = vmatmul.f32.gmra.mxu0 %v3187
    %v3849 = vpop.f32.mrf.mxu0
    %v3850 = vadd.f32 %v3686, %v3849
    %3851 = vmatmul.f32.gmra.mxu0 %v3191
    %v3852 = vpop.f32.mrf.mxu0
    %v3853 = vadd.f32 %v3689, %v3852
    %3854 = vmatmul.f32.gmra.mxu0 %v3195
    %v3855 = vpop.f32.mrf.mxu0
    %v3856 = vadd.f32 %v3692, %v3855
    %3857 = vmatmul.f32.gmra.mxu0 %v3199
    %v3858 = vpop.f32.mrf.mxu0
    %v3859 = vadd.f32 %v3695, %v3858
    %3860 = vmatmul.f32.gmra.mxu0 %v3203
    %v3861 = vpop.f32.mrf.mxu0
    %v3862 = vadd.f32 %v3698, %v3861
    %3863 = vmatmul.f32.gmra.mxu0 %v3207
    %v3864 = vpop.f32.mrf.mxu0
    %v3865 = vadd.f32 %v3701, %v3864
    %3866 = vmatmul.f32.gmra.mxu0 %v3211
    %v3867 = vpop.f32.mrf.mxu0
    %v3868 = vadd.f32 %v3704, %v3867
    %3869 = vmatmul.f32.gmra.mxu0 %v3215
    %v3870 = vpop.f32.mrf.mxu0
    %v3871 = vadd.f32 %v3707, %v3870
    %3872 = vmatmul.f32.gmra.mxu0 %v3219
    %v3873 = vpop.f32.mrf.mxu0
    %v3874 = vadd.f32 %v3710, %v3873
    %3875 = vmatmul.f32.gmra.mxu0 %v3223
    %v3876 = vpop.f32.mrf.mxu0
    %v3877 = vadd.f32 %v3713, %v3876
    %3878 = vmatmul.f32.gmra.mxu0 %v3227
    %v3879 = vpop.f32.mrf.mxu0
    %v3880 = vadd.f32 %v3716, %v3879
    %3881 = vmatmul.f32.gmra.mxu0 %v3231
    %v3882 = vpop.f32.mrf.mxu0
    %v3883 = vadd.f32 %v3719, %v3882
    %3884 = vmatmul.f32.gmra.mxu0 %v3235
    %v3885 = vpop.f32.mrf.mxu0
    %v3886 = vadd.f32 %v3722, %v3885
    %3887 = vmatmul.f32.gmra.mxu0 %v3239
    %v3888 = vpop.f32.mrf.mxu0
    %v3889 = vadd.f32 %v3725, %v3888
    %3890 = vmatmul.f32.gmra.mxu0 %v3243
    %v3891 = vpop.f32.mrf.mxu0
    %v3892 = vadd.f32 %v3728, %v3891
    %3893 = vmatmul.f32.gmra.mxu0 %v3247
    %v3894 = vpop.f32.mrf.mxu0
    %v3895 = vadd.f32 %v3731, %v3894
    %3896 = vdwg.mxu0
    %3897 = vmatpush.msra.mxu0 0.0
    %3898 = vmatpush.msra.mxu0 0.0
    %3899 = vmatpush.msra.mxu0 0.0
    %3900 = vmatpush.msra.mxu0 0.0
    %3901 = vmatpush.msra.mxu0 %v3403
    %3902 = vmatpush.msra.mxu0 %v3051
    %3903 = vmatpush.msra.mxu0 %v3050
    %3904 = vmatpush.msra.mxu0 %v3049
    %3905 = vmatpush.msra.mxu0 %v3048
    %3906 = vmatpush.msra.mxu0 %v3047
    %3907 = vmatpush.msra.mxu0 %v3046
    %3908 = vmatpush.msra.mxu0 %v3045
    %3909 = vmatpush.msra.mxu0 %v3044
    %3910 = vmatpush.msra.mxu0 %v3043
    %3911 = vmatpush.msra.mxu0 %v3042
    %3912 = vmatpush.msra.mxu0 %v3041
    %3913 = vmatmul.f32.gmra.mxu0 %v3255
    %v3914 = vpop.f32.mrf.mxu0
    %v3915 = vadd.f32 %v3751, %v3914
    %3916 = vmatmul.f32.gmra.mxu0 %v3258
    %v3917 = vpop.f32.mrf.mxu0
    %v3918 = vadd.f32 %v3754, %v3917
    %3919 = vmatmul.f32.gmra.mxu0 %v3261
    %v3920 = vpop.f32.mrf.mxu0
    %v3921 = vadd.f32 %v3757, %v3920
    %3922 = vmatmul.f32.gmra.mxu0 %v3264
    %v3923 = vpop.f32.mrf.mxu0
    %v3924 = vadd.f32 %v3760, %v3923
    %3925 = vmatmul.f32.gmra.mxu0 %v3267
    %v3926 = vpop.f32.mrf.mxu0
    %v3927 = vadd.f32 %v3763, %v3926
    %3928 = vmatmul.f32.gmra.mxu0 %v3270
    %v3929 = vpop.f32.mrf.mxu0
    %v3930 = vadd.f32 %v3766, %v3929
    %3931 = vmatmul.f32.gmra.mxu0 %v3273
    %v3932 = vpop.f32.mrf.mxu0
    %v3933 = vadd.f32 %v3769, %v3932
    %3934 = vmatmul.f32.gmra.mxu0 %v3276
    %v3935 = vpop.f32.mrf.mxu0
    %v3936 = vadd.f32 %v3772, %v3935
    %3937 = vmatmul.f32.gmra.mxu0 %v3279
    %v3938 = vpop.f32.mrf.mxu0
    %v3939 = vadd.f32 %v3775, %v3938
    %3940 = vmatmul.f32.gmra.mxu0 %v3282
    %v3941 = vpop.f32.mrf.mxu0
    %v3942 = vadd.f32 %v3778, %v3941
    %3943 = vmatmul.f32.gmra.mxu0 %v3285
    %v3944 = vpop.f32.mrf.mxu0
    %v3945 = vadd.f32 %v3781, %v3944
    %3946 = vmatmul.f32.gmra.mxu0 %v3288
    %v3947 = vpop.f32.mrf.mxu0
    %v3948 = vadd.f32 %v3784, %v3947
    %3949 = vmatmul.f32.gmra.mxu0 %v3291
    %v3950 = vpop.f32.mrf.mxu0
    %v3951 = vadd.f32 %v3787, %v3950
    %3952 = vmatmul.f32.gmra.mxu0 %v3294
    %v3953 = vpop.f32.mrf.mxu0
    %v3954 = vadd.f32 %v3790, %v3953
    %3955 = vmatmul.f32.gmra.mxu0 %v3297
    %v3956 = vpop.f32.mrf.mxu0
    %v3957 = vadd.f32 %v3793, %v3956
    %3958 = vmatmul.f32.gmra.mxu0 %v3300
    %v3959 = vpop.f32.mrf.mxu0
    %v3960 = vadd.f32 %v3796, %v3959
    %3961 = vmatmul.f32.gmra.mxu0 %v3303
    %v3962 = vpop.f32.mrf.mxu0
    %v3963 = vadd.f32 %v3799, %v3962
    %3964 = vmatmul.f32.gmra.mxu0 %v3306
    %v3965 = vpop.f32.mrf.mxu0
    %v3966 = vadd.f32 %v3802, %v3965
    %3967 = vmatmul.f32.gmra.mxu0 %v3309
    %v3968 = vpop.f32.mrf.mxu0
    %v3969 = vadd.f32 %v3805, %v3968
    %3970 = vmatmul.f32.gmra.mxu0 %v3312
    %v3971 = vpop.f32.mrf.mxu0
    %v3972 = vadd.f32 %v3808, %v3971
    %3973 = vmatmul.f32.gmra.mxu0 %v3315
    %v3974 = vpop.f32.mrf.mxu0
    %v3975 = vadd.f32 %v3811, %v3974
    %3976 = vmatmul.f32.gmra.mxu0 %v3318
    %v3977 = vpop.f32.mrf.mxu0
    %v3978 = vadd.f32 %v3814, %v3977
    %3979 = vmatmul.f32.gmra.mxu0 %v3321
    %v3980 = vpop.f32.mrf.mxu0
    %v3981 = vadd.f32 %v3817, %v3980
    %3982 = vmatmul.f32.gmra.mxu0 %v3324
    %v3983 = vpop.f32.mrf.mxu0
    %v3984 = vadd.f32 %v3820, %v3983
    %3985 = vmatmul.f32.gmra.mxu0 %v3327
    %v3986 = vpop.f32.mrf.mxu0
    %v3987 = vadd.f32 %v3823, %v3986
    %3988 = vmatmul.f32.gmra.mxu0 %v3330
    %v3989 = vpop.f32.mrf.mxu0
    %v3990 = vadd.f32 %v3826, %v3989
    %3991 = vmatmul.f32.gmra.mxu0 %v3333
    %v3992 = vpop.f32.mrf.mxu0
    %v3993 = vadd.f32 %v3829, %v3992
    %3994 = vmatmul.f32.gmra.mxu0 %v3336
    %v3995 = vpop.f32.mrf.mxu0
    %v3996 = vadd.f32 %v3832, %v3995
    %3997 = vmatmul.f32.gmra.mxu0 %v3339
    %v3998 = vpop.f32.mrf.mxu0
    %v3999 = vadd.f32 %v3835, %v3998
    %4000 = vmatmul.f32.gmra.mxu0 %v3342
    %v4001 = vpop.f32.mrf.mxu0
    %v4002 = vadd.f32 %v3838, %v4001
    %4003 = vmatmul.f32.gmra.mxu0 %v3345
    %v4004 = vpop.f32.mrf.mxu0
    %v4005 = vadd.f32 %v3841, %v4004
    %4006 = vmatmul.f32.gmra.mxu0 %v3348
    %v4007 = vpop.f32.mrf.mxu0
    %v4008 = vadd.f32 %v3844, %v4007
    %4009 = vmatmul.f32.gmra.mxu0 %v3351
    %v4010 = vpop.f32.mrf.mxu0
    %v4011 = vadd.f32 %v3847, %v4010
    %4012 = vmatmul.f32.gmra.mxu0 %v3354
    %v4013 = vpop.f32.mrf.mxu0
    %v4014 = vadd.f32 %v3850, %v4013
    %4015 = vmatmul.f32.gmra.mxu0 %v3357
    %v4016 = vpop.f32.mrf.mxu0
    %v4017 = vadd.f32 %v3853, %v4016
    %4018 = vmatmul.f32.gmra.mxu0 %v3360
    %v4019 = vpop.f32.mrf.mxu0
    %v4020 = vadd.f32 %v3856, %v4019
    %4021 = vmatmul.f32.gmra.mxu0 %v3363
    %v4022 = vpop.f32.mrf.mxu0
    %v4023 = vadd.f32 %v3859, %v4022
    %4024 = vmatmul.f32.gmra.mxu0 %v3366
    %v4025 = vpop.f32.mrf.mxu0
    %v4026 = vadd.f32 %v3862, %v4025
    %4027 = vmatmul.f32.gmra.mxu0 %v3369
    %v4028 = vpop.f32.mrf.mxu0
    %v4029 = vadd.f32 %v3865, %v4028
    %4030 = vmatmul.f32.gmra.mxu0 %v3372
    %v4031 = vpop.f32.mrf.mxu0
    %v4032 = vadd.f32 %v3868, %v4031
    %4033 = vmatmul.f32.gmra.mxu0 %v3375
    %v4034 = vpop.f32.mrf.mxu0
    %v4035 = vadd.f32 %v3871, %v4034
    %4036 = vmatmul.f32.gmra.mxu0 %v3378
    %v4037 = vpop.f32.mrf.mxu0
    %v4038 = vadd.f32 %v3874, %v4037
    %4039 = vmatmul.f32.gmra.mxu0 %v3381
    %v4040 = vpop.f32.mrf.mxu0
    %v4041 = vadd.f32 %v3877, %v4040
    %4042 = vmatmul.f32.gmra.mxu0 %v3384
    %v4043 = vpop.f32.mrf.mxu0
    %v4044 = vadd.f32 %v3880, %v4043
    %4045 = vmatmul.f32.gmra.mxu0 %v3387
    %v4046 = vpop.f32.mrf.mxu0
    %v4047 = vadd.f32 %v3883, %v4046
    %4048 = vmatmul.f32.gmra.mxu0 %v3390
    %v4049 = vpop.f32.mrf.mxu0
    %v4050 = vadd.f32 %v3886, %v4049
    %4051 = vmatmul.f32.gmra.mxu0 %v3393
    %v4052 = vpop.f32.mrf.mxu0
    %v4053 = vadd.f32 %v3889, %v4052
    %4054 = vmatmul.f32.gmra.mxu0 %v3396
    %v4055 = vpop.f32.mrf.mxu0
    %v4056 = vadd.f32 %v3892, %v4055
    %4057 = vmatmul.f32.gmra.mxu0 %v3399
    %v4058 = vpop.f32.mrf.mxu0
    %v4059 = vadd.f32 %v3895, %v4058
    %4060 = vdwg.mxu0
    %v4061 = vmax.f32 %v3915, 0.0
    %v4062 = vmax.f32 %v3918, 0.0
    %v4063 = vmax.f32 %v3921, 0.0
    %v4064 = vmax.f32 %v3924, 0.0
    %v4065 = vmax.f32 %v3927, 0.0
    %v4066 = vmax.f32 %v3930, 0.0
    %v4067 = vmax.f32 %v3933, 0.0
    %v4068 = vmax.f32 %v3936, 0.0
    %v4069 = vmax.f32 %v3939, 0.0
    %v4070 = vmax.f32 %v3942, 0.0
    %v4071 = vmax.f32 %v3945, 0.0
    %v4072 = vmax.f32 %v3948, 0.0
    %v4073 = vmax.f32 %v3951, 0.0
    %v4074 = vmax.f32 %v3954, 0.0
    %v4075 = vmax.f32 %v3957, 0.0
    %v4076 = vmax.f32 %v3960, 0.0
    %v4077 = vmax.f32 %v3963, 0.0
    %v4078 = vmax.f32 %v3966, 0.0
    %v4079 = vmax.f32 %v3969, 0.0
    %v4080 = vmax.f32 %v3972, 0.0
    %v4081 = vmax.f32 %v3975, 0.0
    %v4082 = vmax.f32 %v3978, 0.0
    %v4083 = vmax.f32 %v3981, 0.0
    %v4084 = vmax.f32 %v3984, 0.0
    %v4085 = vmax.f32 %v3987, 0.0
    %v4086 = vmax.f32 %v3990, 0.0
    %v4087 = vmax.f32 %v3993, 0.0
    %v4088 = vmax.f32 %v3996, 0.0
    %v4089 = vmax.f32 %v3999, 0.0
    %v4090 = vmax.f32 %v4002, 0.0
    %v4091 = vmax.f32 %v4005, 0.0
    %v4092 = vmax.f32 %v4008, 0.0
    %v4093 = vmax.f32 %v4011, 0.0
    %v4094 = vmax.f32 %v4014, 0.0
    %v4095 = vmax.f32 %v4017, 0.0
    %v4096 = vmax.f32 %v4020, 0.0
    %v4097 = vmax.f32 %v4023, 0.0
    %v4098 = vmax.f32 %v4026, 0.0
    %v4099 = vmax.f32 %v4029, 0.0
    %v4100 = vmax.f32 %v4032, 0.0
    %v4101 = vmax.f32 %v4035, 0.0
    %v4102 = vmax.f32 %v4038, 0.0
    %v4103 = vmax.f32 %v4041, 0.0
    %v4104 = vmax.f32 %v4044, 0.0
    %v4105 = vmax.f32 %v4047, 0.0
    %v4106 = vmax.f32 %v4050, 0.0
    %v4107 = vmax.f32 %v4053, 0.0
    %v4108 = vmax.f32 %v4056, 0.0
    %v4109 = vmax.f32 %v4059, 0.0
    %4110 = vst [vmem:[#allocation2] sm:$0xff] %v4061
    %4111 = vst [vmem:[#allocation2 + $0x8] sm:$0xff] %v4062
    %4112 = vst [vmem:[#allocation2 + $0x10] sm:$0xff] %v4063
    %4113 = vst [vmem:[#allocation2 + $0x18] sm:$0xff] %v4064
    %4114 = vst [vmem:[#allocation2 + $0x20] sm:$0xff] %v4065
    %4115 = vst [vmem:[#allocation2 + $0x28] sm:$0xff] %v4066
    %4116 = vst [vmem:[#allocation2 + $0x30] sm:$0xff] %v4067
    %4117 = vst [vmem:[#allocation2 + $0x38] sm:$0xff] %v4068
    %4118 = vst [vmem:[#allocation2 + $0x40] sm:$0xff] %v4069
    %4119 = vst [vmem:[#allocation2 + $0x48] sm:$0xff] %v4070
    %4120 = vst [vmem:[#allocation2 + $0x50] sm:$0xff] %v4071
    %4121 = vst [vmem:[#allocation2 + $0x58] sm:$0xff] %v4072
    %4122 = vst [vmem:[#allocation2 + $0x60] sm:$0xff] %v4073
    %4123 = vst [vmem:[#allocation2 + $0x68] sm:$0xff] %v4074
    %4124 = vst [vmem:[#allocation2 + $0x70] sm:$0xff] %v4075
    %4125 = vst [vmem:[#allocation2 + $0x78] sm:$0xff] %v4076
    %4126 = vst [vmem:[#allocation2 + $0x80] sm:$0xff] %v4077
    %4127 = vst [vmem:[#allocation2 + $0x88] sm:$0xff] %v4078
    %4128 = vst [vmem:[#allocation2 + $0x90] sm:$0xff] %v4079
    %4129 = vst [vmem:[#allocation2 + $0x98] sm:$0xff] %v4080
    %4130 = vst [vmem:[#allocation2 + $0xa0] sm:$0xff] %v4081
    %4131 = vst [vmem:[#allocation2 + $0xa8] sm:$0xff] %v4082
    %4132 = vst [vmem:[#allocation2 + $0xb0] sm:$0xff] %v4083
    %4133 = vst [vmem:[#allocation2 + $0xb8] sm:$0xff] %v4084
    %4134 = vst [vmem:[#allocation2 + $0xc0] sm:$0xff] %v4085
    %4135 = vst [vmem:[#allocation2 + $0xc8] sm:$0xff] %v4086
    %4136 = vst [vmem:[#allocation2 + $0xd0] sm:$0xff] %v4087
    %4137 = vst [vmem:[#allocation2 + $0xd8] sm:$0xff] %v4088
    %4138 = vst [vmem:[#allocation2 + $0xe0] sm:$0xff] %v4089
    %4139 = vst [vmem:[#allocation2 + $0xe8] sm:$0xff] %v4090
    %4140 = vst [vmem:[#allocation2 + $0xf0] sm:$0xff] %v4091
    %4141 = vst [vmem:[#allocation2 + $0xf8] sm:$0xff] %v4092
    %4142 = vst [vmem:[#allocation2 + $0x100] sm:$0xff] %v4093
    %4143 = vst [vmem:[#allocation2 + $0x108] sm:$0xff] %v4094
    %4144 = vst [vmem:[#allocation2 + $0x110] sm:$0xff] %v4095
    %4145 = vst [vmem:[#allocation2 + $0x118] sm:$0xff] %v4096
    %4146 = vst [vmem:[#allocation2 + $0x120] sm:$0xff] %v4097
    %4147 = vst [vmem:[#allocation2 + $0x128] sm:$0xff] %v4098
    %4148 = vst [vmem:[#allocation2 + $0x130] sm:$0xff] %v4099
    %4149 = vst [vmem:[#allocation2 + $0x138] sm:$0xff] %v4100
    %4150 = vst [vmem:[#allocation2 + $0x140] sm:$0xff] %v4101
    %4151 = vst [vmem:[#allocation2 + $0x148] sm:$0xff] %v4102
    %4152 = vst [vmem:[#allocation2 + $0x150] sm:$0xff] %v4103
    %4153 = vst [vmem:[#allocation2 + $0x158] sm:$0xff] %v4104
    %4154 = vst [vmem:[#allocation2 + $0x160] sm:$0xff] %v4105
    %4155 = vst [vmem:[#allocation2 + $0x168] sm:$0xff] %v4106
    %4156 = vst [vmem:[#allocation2 + $0x170] sm:$0xff] %v4107
    %4157 = vst [vmem:[#allocation2 + $0x178] sm:$0xff] %v4108
    %4158 = vst [vmem:[#allocation2 + $0x180] sm:$0xff] %v4109
    %v4159 = vld [vmem:[#allocation2] sm:$0xff]
    %v4160 = vld [vmem:[#allocation2 + $0x8] sm:$0xff]
    %v4161 = vld [vmem:[#allocation2 + $0x10] sm:$0xff]
    %v4162 = vld [vmem:[#allocation2 + $0x18] sm:$0xff]
    %v4163 = vld [vmem:[#allocation2 + $0x20] sm:$0xff]
    %v4164 = vld [vmem:[#allocation2 + $0x28] sm:$0xff]
    %v4165 = vld [vmem:[#allocation2 + $0x30] sm:$0xff]
    %v4166 = vld [vmem:[#allocation2 + $0x38] sm:$0xff]
    %v4167 = vld [vmem:[#allocation2 + $0x40] sm:$0xff]
    %v4168 = vld [vmem:[#allocation2 + $0x48] sm:$0xff]
    %v4169 = vld [vmem:[#allocation2 + $0x50] sm:$0xff]
    %v4170 = vld [vmem:[#allocation2 + $0x58] sm:$0xff]
    %v4171 = vld [vmem:[#allocation2 + $0x60] sm:$0xff]
    %v4172 = vld [vmem:[#allocation2 + $0x68] sm:$0xff]
    %v4173 = vld [vmem:[#allocation2 + $0x70] sm:$0xff]
    %v4174 = vld [vmem:[#allocation2 + $0x78] sm:$0xff]
    %v4175 = vld [vmem:[#allocation2 + $0x80] sm:$0xff]
    %v4176 = vld [vmem:[#allocation2 + $0x88] sm:$0xff]
    %v4177 = vld [vmem:[#allocation2 + $0x90] sm:$0xff]
    %v4178 = vld [vmem:[#allocation2 + $0x98] sm:$0xff]
    %v4179 = vld [vmem:[#allocation2 + $0xa0] sm:$0xff]
    %v4180 = vld [vmem:[#allocation2 + $0xa8] sm:$0xff]
    %v4181 = vld [vmem:[#allocation2 + $0xb0] sm:$0xff]
    %v4182 = vld [vmem:[#allocation2 + $0xb8] sm:$0xff]
    %v4183 = vld [vmem:[#allocation2 + $0xc0] sm:$0xff]
    %v4184 = vld [vmem:[#allocation2 + $0xc8] sm:$0xff]
    %v4185 = vld [vmem:[#allocation2 + $0xd0] sm:$0xff]
    %v4186 = vld [vmem:[#allocation2 + $0xd8] sm:$0xff]
    %v4187 = vld [vmem:[#allocation2 + $0xe0] sm:$0xff]
    %v4188 = vld [vmem:[#allocation2 + $0xe8] sm:$0xff]
    %v4189 = vld [vmem:[#allocation2 + $0xf0] sm:$0xff]
    %v4190 = vld [vmem:[#allocation2 + $0xf8] sm:$0xff]
    %v4191 = vld [vmem:[#allocation2 + $0x100] sm:$0xff]
    %v4192 = vld [vmem:[#allocation2 + $0x108] sm:$0xff]
    %v4193 = vld [vmem:[#allocation2 + $0x110] sm:$0xff]
    %v4194 = vld [vmem:[#allocation2 + $0x118] sm:$0xff]
    %v4195 = vld [vmem:[#allocation2 + $0x120] sm:$0xff]
    %v4196 = vld [vmem:[#allocation2 + $0x128] sm:$0xff]
    %v4197 = vld [vmem:[#allocation2 + $0x130] sm:$0xff]
    %v4198 = vld [vmem:[#allocation2 + $0x138] sm:$0xff]
    %v4199 = vld [vmem:[#allocation2 + $0x140] sm:$0xff]
    %v4200 = vld [vmem:[#allocation2 + $0x148] sm:$0xff]
    %v4201 = vld [vmem:[#allocation2 + $0x150] sm:$0xff]
    %v4202 = vld [vmem:[#allocation2 + $0x158] sm:$0xff]
    %v4203 = vld [vmem:[#allocation2 + $0x160] sm:$0xff]
    %v4204 = vld [vmem:[#allocation2 + $0x168] sm:$0x3]
    %v4205 = vld [vmem:[#allocation10] sm:$0xff]
    %v4206 = vld [vmem:[#allocation10 + $0x8] sm:$0xff]
    %v4207 = vld [vmem:[#allocation10 + $0x10] sm:$0xff]
    %v4208 = vld [vmem:[#allocation10 + $0x18] sm:$0xff]
    %v4209 = vld [vmem:[#allocation10 + $0x20] sm:$0xff]
    %v4210 = vld [vmem:[#allocation10 + $0x28] sm:$0xff]
    %v4211 = vld [vmem:[#allocation10 + $0x30] sm:$0xff]
    %v4212 = vld [vmem:[#allocation10 + $0x38] sm:$0xff]
    %v4213 = vld [vmem:[#allocation10 + $0x40] sm:$0xff]
    %v4214 = vld [vmem:[#allocation10 + $0x48] sm:$0xff]
    %v4215 = vld [vmem:[#allocation10 + $0x50] sm:$0xff]
    %v4216 = vld [vmem:[#allocation10 + $0x58] sm:$0xff]
    %v4217 = vld [vmem:[#allocation10 + $0x60] sm:$0xff]
    %v4218 = vld [vmem:[#allocation10 + $0x68] sm:$0xff]
    %v4219 = vld [vmem:[#allocation10 + $0x70] sm:$0xff]
    %v4220 = vld [vmem:[#allocation10 + $0x78] sm:$0xff]
    %v4221 = vld [vmem:[#allocation2 + $0x1] sm:$0xff]
    %v4222 = vld [vmem:[#allocation2 + $0x9] sm:$0xff]
    %v4223 = vld [vmem:[#allocation2 + $0x11] sm:$0xff]
    %v4224 = vld [vmem:[#allocation2 + $0x19] sm:$0xff]
    %v4225 = vld [vmem:[#allocation2 + $0x21] sm:$0xff]
    %v4226 = vld [vmem:[#allocation2 + $0x29] sm:$0xff]
    %v4227 = vld [vmem:[#allocation2 + $0x31] sm:$0xff]
    %v4228 = vld [vmem:[#allocation2 + $0x39] sm:$0xff]
    %v4229 = vld [vmem:[#allocation2 + $0x41] sm:$0xff]
    %v4230 = vld [vmem:[#allocation2 + $0x49] sm:$0xff]
    %v4231 = vld [vmem:[#allocation2 + $0x51] sm:$0xff]
    %v4232 = vld [vmem:[#allocation2 + $0x59] sm:$0xff]
    %v4233 = vld [vmem:[#allocation2 + $0x61] sm:$0xff]
    %v4234 = vld [vmem:[#allocation2 + $0x69] sm:$0xff]
    %v4235 = vld [vmem:[#allocation2 + $0x71] sm:$0xff]
    %v4236 = vld [vmem:[#allocation2 + $0x79] sm:$0xff]
    %v4237 = vld [vmem:[#allocation2 + $0x81] sm:$0xff]
    %v4238 = vld [vmem:[#allocation2 + $0x89] sm:$0xff]
    %v4239 = vld [vmem:[#allocation2 + $0x91] sm:$0xff]
    %v4240 = vld [vmem:[#allocation2 + $0x99] sm:$0xff]
    %v4241 = vld [vmem:[#allocation2 + $0xa1] sm:$0xff]
    %v4242 = vld [vmem:[#allocation2 + $0xa9] sm:$0xff]
    %v4243 = vld [vmem:[#allocation2 + $0xb1] sm:$0xff]
    %v4244 = vld [vmem:[#allocation2 + $0xb9] sm:$0xff]
    %v4245 = vld [vmem:[#allocation2 + $0xc1] sm:$0xff]
    %v4246 = vld [vmem:[#allocation2 + $0xc9] sm:$0xff]
    %v4247 = vld [vmem:[#allocation2 + $0xd1] sm:$0xff]
    %v4248 = vld [vmem:[#allocation2 + $0xd9] sm:$0xff]
    %v4249 = vld [vmem:[#allocation2 + $0xe1] sm:$0xff]
    %v4250 = vld [vmem:[#allocation2 + $0xe9] sm:$0xff]
    %v4251 = vld [vmem:[#allocation2 + $0xf1] sm:$0xff]
    %v4252 = vld [vmem:[#allocation2 + $0xf9] sm:$0xff]
    %v4253 = vld [vmem:[#allocation2 + $0x101] sm:$0xff]
    %v4254 = vld [vmem:[#allocation2 + $0x109] sm:$0xff]
    %v4255 = vld [vmem:[#allocation2 + $0x111] sm:$0xff]
    %v4256 = vld [vmem:[#allocation2 + $0x119] sm:$0xff]
    %v4257 = vld [vmem:[#allocation2 + $0x121] sm:$0xff]
    %v4258 = vld [vmem:[#allocation2 + $0x129] sm:$0xff]
    %v4259 = vld [vmem:[#allocation2 + $0x131] sm:$0xff]
    %v4260 = vld [vmem:[#allocation2 + $0x139] sm:$0xff]
    %v4261 = vld [vmem:[#allocation2 + $0x141] sm:$0xff]
    %v4262 = vld [vmem:[#allocation2 + $0x149] sm:$0xff]
    %v4263 = vld [vmem:[#allocation2 + $0x151] sm:$0xff]
    %v4264 = vld [vmem:[#allocation2 + $0x159] sm:$0xff]
    %v4265 = vld [vmem:[#allocation2 + $0x161] sm:$0xff]
    %v4266 = vld [vmem:[#allocation2 + $0x169] sm:$0x3]
    %s4267 = scalar_lea.vmem [#allocation10], 128
    %v4268 = vld [vmem:[%s4267] sm:$0xff]
    %v4269 = vld [vmem:[%s4267 + $0x8] sm:$0xff]
    %v4270 = vld [vmem:[%s4267 + $0x10] sm:$0xff]
    %v4271 = vld [vmem:[%s4267 + $0x18] sm:$0xff]
    %v4272 = vld [vmem:[%s4267 + $0x20] sm:$0xff]
    %v4273 = vld [vmem:[%s4267 + $0x28] sm:$0xff]
    %v4274 = vld [vmem:[%s4267 + $0x30] sm:$0xff]
    %v4275 = vld [vmem:[%s4267 + $0x38] sm:$0xff]
    %v4276 = vld [vmem:[%s4267 + $0x40] sm:$0xff]
    %v4277 = vld [vmem:[%s4267 + $0x48] sm:$0xff]
    %v4278 = vld [vmem:[%s4267 + $0x50] sm:$0xff]
    %v4279 = vld [vmem:[%s4267 + $0x58] sm:$0xff]
    %v4280 = vld [vmem:[%s4267 + $0x60] sm:$0xff]
    %v4281 = vld [vmem:[%s4267 + $0x68] sm:$0xff]
    %v4282 = vld [vmem:[%s4267 + $0x70] sm:$0xff]
    %v4283 = vld [vmem:[%s4267 + $0x78] sm:$0xff]
    %4284 = vmatpush.msra.mxu0 %v4283
    %4285 = vmatpush.msra.mxu0 %v4282
    %4286 = vmatpush.msra.mxu0 %v4281
    %4287 = vmatpush.msra.mxu0 %v4280
    %4288 = vmatpush.msra.mxu0 %v4279
    %4289 = vmatpush.msra.mxu0 %v4278
    %4290 = vmatpush.msra.mxu0 %v4277
    %4291 = vmatpush.msra.mxu0 %v4276
    %4292 = vmatpush.msra.mxu0 %v4275
    %4293 = vmatpush.msra.mxu0 %v4274
    %4294 = vmatpush.msra.mxu0 %v4273
    %4295 = vmatpush.msra.mxu0 %v4272
    %4296 = vmatpush.msra.mxu0 %v4271
    %4297 = vmatpush.msra.mxu0 %v4270
    %4298 = vmatpush.msra.mxu0 %v4269
    %4299 = vmatpush.msra.mxu0 %v4268
    %4300 = vmatmul.f32.gmra.mxu0 %v4221
    %v4301 = vpop.f32.mrf.mxu0
    %v4302 = vadd.f32 0.0, %v4301
    %4303 = vmatmul.f32.gmra.mxu0 %v4222
    %v4304 = vpop.f32.mrf.mxu0
    %v4305 = vadd.f32 0.0, %v4304
    %4306 = vmatmul.f32.gmra.mxu0 %v4223
    %v4307 = vpop.f32.mrf.mxu0
    %v4308 = vadd.f32 0.0, %v4307
    %4309 = vmatmul.f32.gmra.mxu0 %v4224
    %v4310 = vpop.f32.mrf.mxu0
    %v4311 = vadd.f32 0.0, %v4310
    %4312 = vmatmul.f32.gmra.mxu0 %v4225
    %v4313 = vpop.f32.mrf.mxu0
    %v4314 = vadd.f32 0.0, %v4313
    %4315 = vmatmul.f32.gmra.mxu0 %v4226
    %v4316 = vpop.f32.mrf.mxu0
    %v4317 = vadd.f32 0.0, %v4316
    %4318 = vmatmul.f32.gmra.mxu0 %v4227
    %v4319 = vpop.f32.mrf.mxu0
    %v4320 = vadd.f32 0.0, %v4319
    %4321 = vmatmul.f32.gmra.mxu0 %v4228
    %v4322 = vpop.f32.mrf.mxu0
    %v4323 = vadd.f32 0.0, %v4322
    %4324 = vmatmul.f32.gmra.mxu0 %v4229
    %v4325 = vpop.f32.mrf.mxu0
    %v4326 = vadd.f32 0.0, %v4325
    %4327 = vmatmul.f32.gmra.mxu0 %v4230
    %v4328 = vpop.f32.mrf.mxu0
    %v4329 = vadd.f32 0.0, %v4328
    %4330 = vmatmul.f32.gmra.mxu0 %v4231
    %v4331 = vpop.f32.mrf.mxu0
    %v4332 = vadd.f32 0.0, %v4331
    %4333 = vmatmul.f32.gmra.mxu0 %v4232
    %v4334 = vpop.f32.mrf.mxu0
    %v4335 = vadd.f32 0.0, %v4334
    %4336 = vmatmul.f32.gmra.mxu0 %v4233
    %v4337 = vpop.f32.mrf.mxu0
    %v4338 = vadd.f32 0.0, %v4337
    %4339 = vmatmul.f32.gmra.mxu0 %v4234
    %v4340 = vpop.f32.mrf.mxu0
    %v4341 = vadd.f32 0.0, %v4340
    %4342 = vmatmul.f32.gmra.mxu0 %v4235
    %v4343 = vpop.f32.mrf.mxu0
    %v4344 = vadd.f32 0.0, %v4343
    %4345 = vmatmul.f32.gmra.mxu0 %v4236
    %v4346 = vpop.f32.mrf.mxu0
    %v4347 = vadd.f32 0.0, %v4346
    %4348 = vmatmul.f32.gmra.mxu0 %v4237
    %v4349 = vpop.f32.mrf.mxu0
    %v4350 = vadd.f32 0.0, %v4349
    %4351 = vmatmul.f32.gmra.mxu0 %v4238
    %v4352 = vpop.f32.mrf.mxu0
    %v4353 = vadd.f32 0.0, %v4352
    %4354 = vmatmul.f32.gmra.mxu0 %v4239
    %v4355 = vpop.f32.mrf.mxu0
    %v4356 = vadd.f32 0.0, %v4355
    %4357 = vmatmul.f32.gmra.mxu0 %v4240
    %v4358 = vpop.f32.mrf.mxu0
    %v4359 = vadd.f32 0.0, %v4358
    %4360 = vmatmul.f32.gmra.mxu0 %v4241
    %v4361 = vpop.f32.mrf.mxu0
    %v4362 = vadd.f32 0.0, %v4361
    %4363 = vmatmul.f32.gmra.mxu0 %v4242
    %v4364 = vpop.f32.mrf.mxu0
    %v4365 = vadd.f32 0.0, %v4364
    %4366 = vmatmul.f32.gmra.mxu0 %v4243
    %v4367 = vpop.f32.mrf.mxu0
    %v4368 = vadd.f32 0.0, %v4367
    %4369 = vmatmul.f32.gmra.mxu0 %v4244
    %v4370 = vpop.f32.mrf.mxu0
    %v4371 = vadd.f32 0.0, %v4370
    %4372 = vmatmul.f32.gmra.mxu0 %v4245
    %v4373 = vpop.f32.mrf.mxu0
    %v4374 = vadd.f32 0.0, %v4373
    %4375 = vmatmul.f32.gmra.mxu0 %v4246
    %v4376 = vpop.f32.mrf.mxu0
    %v4377 = vadd.f32 0.0, %v4376
    %4378 = vmatmul.f32.gmra.mxu0 %v4247
    %v4379 = vpop.f32.mrf.mxu0
    %v4380 = vadd.f32 0.0, %v4379
    %4381 = vmatmul.f32.gmra.mxu0 %v4248
    %v4382 = vpop.f32.mrf.mxu0
    %v4383 = vadd.f32 0.0, %v4382
    %4384 = vmatmul.f32.gmra.mxu0 %v4249
    %v4385 = vpop.f32.mrf.mxu0
    %v4386 = vadd.f32 0.0, %v4385
    %4387 = vmatmul.f32.gmra.mxu0 %v4250
    %v4388 = vpop.f32.mrf.mxu0
    %v4389 = vadd.f32 0.0, %v4388
    %4390 = vmatmul.f32.gmra.mxu0 %v4251
    %v4391 = vpop.f32.mrf.mxu0
    %v4392 = vadd.f32 0.0, %v4391
    %4393 = vmatmul.f32.gmra.mxu0 %v4252
    %v4394 = vpop.f32.mrf.mxu0
    %v4395 = vadd.f32 0.0, %v4394
    %4396 = vmatmul.f32.gmra.mxu0 %v4253
    %v4397 = vpop.f32.mrf.mxu0
    %v4398 = vadd.f32 0.0, %v4397
    %4399 = vmatmul.f32.gmra.mxu0 %v4254
    %v4400 = vpop.f32.mrf.mxu0
    %v4401 = vadd.f32 0.0, %v4400
    %4402 = vmatmul.f32.gmra.mxu0 %v4255
    %v4403 = vpop.f32.mrf.mxu0
    %v4404 = vadd.f32 0.0, %v4403
    %4405 = vmatmul.f32.gmra.mxu0 %v4256
    %v4406 = vpop.f32.mrf.mxu0
    %v4407 = vadd.f32 0.0, %v4406
    %4408 = vmatmul.f32.gmra.mxu0 %v4257
    %v4409 = vpop.f32.mrf.mxu0
    %v4410 = vadd.f32 0.0, %v4409
    %4411 = vmatmul.f32.gmra.mxu0 %v4258
    %v4412 = vpop.f32.mrf.mxu0
    %v4413 = vadd.f32 0.0, %v4412
    %4414 = vmatmul.f32.gmra.mxu0 %v4259
    %v4415 = vpop.f32.mrf.mxu0
    %v4416 = vadd.f32 0.0, %v4415
    %4417 = vmatmul.f32.gmra.mxu0 %v4260
    %v4418 = vpop.f32.mrf.mxu0
    %v4419 = vadd.f32 0.0, %v4418
    %4420 = vmatmul.f32.gmra.mxu0 %v4261
    %v4421 = vpop.f32.mrf.mxu0
    %v4422 = vadd.f32 0.0, %v4421
    %4423 = vmatmul.f32.gmra.mxu0 %v4262
    %v4424 = vpop.f32.mrf.mxu0
    %v4425 = vadd.f32 0.0, %v4424
    %4426 = vmatmul.f32.gmra.mxu0 %v4263
    %v4427 = vpop.f32.mrf.mxu0
    %v4428 = vadd.f32 0.0, %v4427
    %4429 = vmatmul.f32.gmra.mxu0 %v4264
    %v4430 = vpop.f32.mrf.mxu0
    %v4431 = vadd.f32 0.0, %v4430
    %4432 = vmatmul.f32.gmra.mxu0 %v4265
    %v4433 = vpop.f32.mrf.mxu0
    %v4434 = vadd.f32 0.0, %v4433
    %4435 = vmatmul.f32.gmra.mxu0 %v4266
    %v4436 = vpop.f32.mrf.mxu0
    %v4437 = vadd.f32 0.0, %v4436
    %4438 = vdwg.mxu0
    %4439 = vmatpush.msra.mxu0 %v4220
    %4440 = vmatpush.msra.mxu0 %v4219
    %4441 = vmatpush.msra.mxu0 %v4218
    %4442 = vmatpush.msra.mxu0 %v4217
    %4443 = vmatpush.msra.mxu0 %v4216
    %4444 = vmatpush.msra.mxu0 %v4215
    %4445 = vmatpush.msra.mxu0 %v4214
    %4446 = vmatpush.msra.mxu0 %v4213
    %4447 = vmatpush.msra.mxu0 %v4212
    %4448 = vmatpush.msra.mxu0 %v4211
    %4449 = vmatpush.msra.mxu0 %v4210
    %4450 = vmatpush.msra.mxu0 %v4209
    %4451 = vmatpush.msra.mxu0 %v4208
    %4452 = vmatpush.msra.mxu0 %v4207
    %4453 = vmatpush.msra.mxu0 %v4206
    %4454 = vmatpush.msra.mxu0 %v4205
    %4455 = vmatmul.f32.gmra.mxu0 %v4159
    %v4456 = vpop.f32.mrf.mxu0
    %v4457 = vadd.f32 %v4302, %v4456
    %4458 = vmatmul.f32.gmra.mxu0 %v4160
    %v4459 = vpop.f32.mrf.mxu0
    %v4460 = vadd.f32 %v4305, %v4459
    %4461 = vmatmul.f32.gmra.mxu0 %v4161
    %v4462 = vpop.f32.mrf.mxu0
    %v4463 = vadd.f32 %v4308, %v4462
    %4464 = vmatmul.f32.gmra.mxu0 %v4162
    %v4465 = vpop.f32.mrf.mxu0
    %v4466 = vadd.f32 %v4311, %v4465
    %4467 = vmatmul.f32.gmra.mxu0 %v4163
    %v4468 = vpop.f32.mrf.mxu0
    %v4469 = vadd.f32 %v4314, %v4468
    %4470 = vmatmul.f32.gmra.mxu0 %v4164
    %v4471 = vpop.f32.mrf.mxu0
    %v4472 = vadd.f32 %v4317, %v4471
    %4473 = vmatmul.f32.gmra.mxu0 %v4165
    %v4474 = vpop.f32.mrf.mxu0
    %v4475 = vadd.f32 %v4320, %v4474
    %4476 = vmatmul.f32.gmra.mxu0 %v4166
    %v4477 = vpop.f32.mrf.mxu0
    %v4478 = vadd.f32 %v4323, %v4477
    %4479 = vmatmul.f32.gmra.mxu0 %v4167
    %v4480 = vpop.f32.mrf.mxu0
    %v4481 = vadd.f32 %v4326, %v4480
    %4482 = vmatmul.f32.gmra.mxu0 %v4168
    %v4483 = vpop.f32.mrf.mxu0
    %v4484 = vadd.f32 %v4329, %v4483
    %4485 = vmatmul.f32.gmra.mxu0 %v4169
    %v4486 = vpop.f32.mrf.mxu0
    %v4487 = vadd.f32 %v4332, %v4486
    %4488 = vmatmul.f32.gmra.mxu0 %v4170
    %v4489 = vpop.f32.mrf.mxu0
    %v4490 = vadd.f32 %v4335, %v4489
    %4491 = vmatmul.f32.gmra.mxu0 %v4171
    %v4492 = vpop.f32.mrf.mxu0
    %v4493 = vadd.f32 %v4338, %v4492
    %4494 = vmatmul.f32.gmra.mxu0 %v4172
    %v4495 = vpop.f32.mrf.mxu0
    %v4496 = vadd.f32 %v4341, %v4495
    %4497 = vmatmul.f32.gmra.mxu0 %v4173
    %v4498 = vpop.f32.mrf.mxu0
    %v4499 = vadd.f32 %v4344, %v4498
    %4500 = vmatmul.f32.gmra.mxu0 %v4174
    %v4501 = vpop.f32.mrf.mxu0
    %v4502 = vadd.f32 %v4347, %v4501
    %4503 = vmatmul.f32.gmra.mxu0 %v4175
    %v4504 = vpop.f32.mrf.mxu0
    %v4505 = vadd.f32 %v4350, %v4504
    %4506 = vmatmul.f32.gmra.mxu0 %v4176
    %v4507 = vpop.f32.mrf.mxu0
    %v4508 = vadd.f32 %v4353, %v4507
    %4509 = vmatmul.f32.gmra.mxu0 %v4177
    %v4510 = vpop.f32.mrf.mxu0
    %v4511 = vadd.f32 %v4356, %v4510
    %4512 = vmatmul.f32.gmra.mxu0 %v4178
    %v4513 = vpop.f32.mrf.mxu0
    %v4514 = vadd.f32 %v4359, %v4513
    %4515 = vmatmul.f32.gmra.mxu0 %v4179
    %v4516 = vpop.f32.mrf.mxu0
    %v4517 = vadd.f32 %v4362, %v4516
    %4518 = vmatmul.f32.gmra.mxu0 %v4180
    %v4519 = vpop.f32.mrf.mxu0
    %v4520 = vadd.f32 %v4365, %v4519
    %4521 = vmatmul.f32.gmra.mxu0 %v4181
    %v4522 = vpop.f32.mrf.mxu0
    %v4523 = vadd.f32 %v4368, %v4522
    %4524 = vmatmul.f32.gmra.mxu0 %v4182
    %v4525 = vpop.f32.mrf.mxu0
    %v4526 = vadd.f32 %v4371, %v4525
    %4527 = vmatmul.f32.gmra.mxu0 %v4183
    %v4528 = vpop.f32.mrf.mxu0
    %v4529 = vadd.f32 %v4374, %v4528
    %4530 = vmatmul.f32.gmra.mxu0 %v4184
    %v4531 = vpop.f32.mrf.mxu0
    %v4532 = vadd.f32 %v4377, %v4531
    %4533 = vmatmul.f32.gmra.mxu0 %v4185
    %v4534 = vpop.f32.mrf.mxu0
    %v4535 = vadd.f32 %v4380, %v4534
    %4536 = vmatmul.f32.gmra.mxu0 %v4186
    %v4537 = vpop.f32.mrf.mxu0
    %v4538 = vadd.f32 %v4383, %v4537
    %4539 = vmatmul.f32.gmra.mxu0 %v4187
    %v4540 = vpop.f32.mrf.mxu0
    %v4541 = vadd.f32 %v4386, %v4540
    %4542 = vmatmul.f32.gmra.mxu0 %v4188
    %v4543 = vpop.f32.mrf.mxu0
    %v4544 = vadd.f32 %v4389, %v4543
    %4545 = vmatmul.f32.gmra.mxu0 %v4189
    %v4546 = vpop.f32.mrf.mxu0
    %v4547 = vadd.f32 %v4392, %v4546
    %4548 = vmatmul.f32.gmra.mxu0 %v4190
    %v4549 = vpop.f32.mrf.mxu0
    %v4550 = vadd.f32 %v4395, %v4549
    %4551 = vmatmul.f32.gmra.mxu0 %v4191
    %v4552 = vpop.f32.mrf.mxu0
    %v4553 = vadd.f32 %v4398, %v4552
    %4554 = vmatmul.f32.gmra.mxu0 %v4192
    %v4555 = vpop.f32.mrf.mxu0
    %v4556 = vadd.f32 %v4401, %v4555
    %4557 = vmatmul.f32.gmra.mxu0 %v4193
    %v4558 = vpop.f32.mrf.mxu0
    %v4559 = vadd.f32 %v4404, %v4558
    %4560 = vmatmul.f32.gmra.mxu0 %v4194
    %v4561 = vpop.f32.mrf.mxu0
    %v4562 = vadd.f32 %v4407, %v4561
    %4563 = vmatmul.f32.gmra.mxu0 %v4195
    %v4564 = vpop.f32.mrf.mxu0
    %v4565 = vadd.f32 %v4410, %v4564
    %4566 = vmatmul.f32.gmra.mxu0 %v4196
    %v4567 = vpop.f32.mrf.mxu0
    %v4568 = vadd.f32 %v4413, %v4567
    %4569 = vmatmul.f32.gmra.mxu0 %v4197
    %v4570 = vpop.f32.mrf.mxu0
    %v4571 = vadd.f32 %v4416, %v4570
    %4572 = vmatmul.f32.gmra.mxu0 %v4198
    %v4573 = vpop.f32.mrf.mxu0
    %v4574 = vadd.f32 %v4419, %v4573
    %4575 = vmatmul.f32.gmra.mxu0 %v4199
    %v4576 = vpop.f32.mrf.mxu0
    %v4577 = vadd.f32 %v4422, %v4576
    %4578 = vmatmul.f32.gmra.mxu0 %v4200
    %v4579 = vpop.f32.mrf.mxu0
    %v4580 = vadd.f32 %v4425, %v4579
    %4581 = vmatmul.f32.gmra.mxu0 %v4201
    %v4582 = vpop.f32.mrf.mxu0
    %v4583 = vadd.f32 %v4428, %v4582
    %4584 = vmatmul.f32.gmra.mxu0 %v4202
    %v4585 = vpop.f32.mrf.mxu0
    %v4586 = vadd.f32 %v4431, %v4585
    %4587 = vmatmul.f32.gmra.mxu0 %v4203
    %v4588 = vpop.f32.mrf.mxu0
    %v4589 = vadd.f32 %v4434, %v4588
    %4590 = vmatmul.f32.gmra.mxu0 %v4204
    %v4591 = vpop.f32.mrf.mxu0
    %v4592 = vadd.f32 %v4437, %v4591
    %4593 = vdwg.mxu0
    %v4594 = vld [vmem:[#allocation2 + $0x2] sm:$0xff]
    %v4595 = vld [vmem:[#allocation2 + $0xa] sm:$0xff]
    %v4596 = vld [vmem:[#allocation2 + $0x12] sm:$0xff]
    %v4597 = vld [vmem:[#allocation2 + $0x1a] sm:$0xff]
    %v4598 = vld [vmem:[#allocation2 + $0x22] sm:$0xff]
    %v4599 = vld [vmem:[#allocation2 + $0x2a] sm:$0xff]
    %v4600 = vld [vmem:[#allocation2 + $0x32] sm:$0xff]
    %v4601 = vld [vmem:[#allocation2 + $0x3a] sm:$0xff]
    %v4602 = vld [vmem:[#allocation2 + $0x42] sm:$0xff]
    %v4603 = vld [vmem:[#allocation2 + $0x4a] sm:$0xff]
    %v4604 = vld [vmem:[#allocation2 + $0x52] sm:$0xff]
    %v4605 = vld [vmem:[#allocation2 + $0x5a] sm:$0xff]
    %v4606 = vld [vmem:[#allocation2 + $0x62] sm:$0xff]
    %v4607 = vld [vmem:[#allocation2 + $0x6a] sm:$0xff]
    %v4608 = vld [vmem:[#allocation2 + $0x72] sm:$0xff]
    %v4609 = vld [vmem:[#allocation2 + $0x7a] sm:$0xff]
    %v4610 = vld [vmem:[#allocation2 + $0x82] sm:$0xff]
    %v4611 = vld [vmem:[#allocation2 + $0x8a] sm:$0xff]
    %v4612 = vld [vmem:[#allocation2 + $0x92] sm:$0xff]
    %v4613 = vld [vmem:[#allocation2 + $0x9a] sm:$0xff]
    %v4614 = vld [vmem:[#allocation2 + $0xa2] sm:$0xff]
    %v4615 = vld [vmem:[#allocation2 + $0xaa] sm:$0xff]
    %v4616 = vld [vmem:[#allocation2 + $0xb2] sm:$0xff]
    %v4617 = vld [vmem:[#allocation2 + $0xba] sm:$0xff]
    %v4618 = vld [vmem:[#allocation2 + $0xc2] sm:$0xff]
    %v4619 = vld [vmem:[#allocation2 + $0xca] sm:$0xff]
    %v4620 = vld [vmem:[#allocation2 + $0xd2] sm:$0xff]
    %v4621 = vld [vmem:[#allocation2 + $0xda] sm:$0xff]
    %v4622 = vld [vmem:[#allocation2 + $0xe2] sm:$0xff]
    %v4623 = vld [vmem:[#allocation2 + $0xea] sm:$0xff]
    %v4624 = vld [vmem:[#allocation2 + $0xf2] sm:$0xff]
    %v4625 = vld [vmem:[#allocation2 + $0xfa] sm:$0xff]
    %v4626 = vld [vmem:[#allocation2 + $0x102] sm:$0xff]
    %v4627 = vld [vmem:[#allocation2 + $0x10a] sm:$0xff]
    %v4628 = vld [vmem:[#allocation2 + $0x112] sm:$0xff]
    %v4629 = vld [vmem:[#allocation2 + $0x11a] sm:$0xff]
    %v4630 = vld [vmem:[#allocation2 + $0x122] sm:$0xff]
    %v4631 = vld [vmem:[#allocation2 + $0x12a] sm:$0xff]
    %v4632 = vld [vmem:[#allocation2 + $0x132] sm:$0xff]
    %v4633 = vld [vmem:[#allocation2 + $0x13a] sm:$0xff]
    %v4634 = vld [vmem:[#allocation2 + $0x142] sm:$0xff]
    %v4635 = vld [vmem:[#allocation2 + $0x14a] sm:$0xff]
    %v4636 = vld [vmem:[#allocation2 + $0x152] sm:$0xff]
    %v4637 = vld [vmem:[#allocation2 + $0x15a] sm:$0xff]
    %v4638 = vld [vmem:[#allocation2 + $0x162] sm:$0xff]
    %v4639 = vld [vmem:[#allocation2 + $0x16a] sm:$0x3]
    %s4640 = scalar_lea.vmem [#allocation10], 256
    %v4641 = vld [vmem:[%s4640] sm:$0xff]
    %v4642 = vld [vmem:[%s4640 + $0x8] sm:$0xff]
    %v4643 = vld [vmem:[%s4640 + $0x10] sm:$0xff]
    %v4644 = vld [vmem:[%s4640 + $0x18] sm:$0xff]
    %v4645 = vld [vmem:[%s4640 + $0x20] sm:$0xff]
    %v4646 = vld [vmem:[%s4640 + $0x28] sm:$0xff]
    %v4647 = vld [vmem:[%s4640 + $0x30] sm:$0xff]
    %v4648 = vld [vmem:[%s4640 + $0x38] sm:$0xff]
    %v4649 = vld [vmem:[%s4640 + $0x40] sm:$0xff]
    %v4650 = vld [vmem:[%s4640 + $0x48] sm:$0xff]
    %v4651 = vld [vmem:[%s4640 + $0x50] sm:$0xff]
    %v4652 = vld [vmem:[%s4640 + $0x58] sm:$0xff]
    %v4653 = vld [vmem:[%s4640 + $0x60] sm:$0xff]
    %v4654 = vld [vmem:[%s4640 + $0x68] sm:$0xff]
    %v4655 = vld [vmem:[%s4640 + $0x70] sm:$0xff]
    %v4656 = vld [vmem:[%s4640 + $0x78] sm:$0xff]
    %4657 = vmatpush.msra.mxu0 %v4656
    %4658 = vmatpush.msra.mxu0 %v4655
    %4659 = vmatpush.msra.mxu0 %v4654
    %4660 = vmatpush.msra.mxu0 %v4653
    %4661 = vmatpush.msra.mxu0 %v4652
    %4662 = vmatpush.msra.mxu0 %v4651
    %4663 = vmatpush.msra.mxu0 %v4650
    %4664 = vmatpush.msra.mxu0 %v4649
    %4665 = vmatpush.msra.mxu0 %v4648
    %4666 = vmatpush.msra.mxu0 %v4647
    %4667 = vmatpush.msra.mxu0 %v4646
    %4668 = vmatpush.msra.mxu0 %v4645
    %4669 = vmatpush.msra.mxu0 %v4644
    %4670 = vmatpush.msra.mxu0 %v4643
    %4671 = vmatpush.msra.mxu0 %v4642
    %4672 = vmatpush.msra.mxu0 %v4641
    %4673 = vmatmul.f32.gmra.mxu0 %v4594
    %v4674 = vpop.f32.mrf.mxu0
    %v4675 = vadd.f32 0.0, %v4674
    %4676 = vmatmul.f32.gmra.mxu0 %v4595
    %v4677 = vpop.f32.mrf.mxu0
    %v4678 = vadd.f32 0.0, %v4677
    %4679 = vmatmul.f32.gmra.mxu0 %v4596
    %v4680 = vpop.f32.mrf.mxu0
    %v4681 = vadd.f32 0.0, %v4680
    %4682 = vmatmul.f32.gmra.mxu0 %v4597
    %v4683 = vpop.f32.mrf.mxu0
    %v4684 = vadd.f32 0.0, %v4683
    %4685 = vmatmul.f32.gmra.mxu0 %v4598
    %v4686 = vpop.f32.mrf.mxu0
    %v4687 = vadd.f32 0.0, %v4686
    %4688 = vmatmul.f32.gmra.mxu0 %v4599
    %v4689 = vpop.f32.mrf.mxu0
    %v4690 = vadd.f32 0.0, %v4689
    %4691 = vmatmul.f32.gmra.mxu0 %v4600
    %v4692 = vpop.f32.mrf.mxu0
    %v4693 = vadd.f32 0.0, %v4692
    %4694 = vmatmul.f32.gmra.mxu0 %v4601
    %v4695 = vpop.f32.mrf.mxu0
    %v4696 = vadd.f32 0.0, %v4695
    %4697 = vmatmul.f32.gmra.mxu0 %v4602
    %v4698 = vpop.f32.mrf.mxu0
    %v4699 = vadd.f32 0.0, %v4698
    %4700 = vmatmul.f32.gmra.mxu0 %v4603
    %v4701 = vpop.f32.mrf.mxu0
    %v4702 = vadd.f32 0.0, %v4701
    %4703 = vmatmul.f32.gmra.mxu0 %v4604
    %v4704 = vpop.f32.mrf.mxu0
    %v4705 = vadd.f32 0.0, %v4704
    %4706 = vmatmul.f32.gmra.mxu0 %v4605
    %v4707 = vpop.f32.mrf.mxu0
    %v4708 = vadd.f32 0.0, %v4707
    %4709 = vmatmul.f32.gmra.mxu0 %v4606
    %v4710 = vpop.f32.mrf.mxu0
    %v4711 = vadd.f32 0.0, %v4710
    %4712 = vmatmul.f32.gmra.mxu0 %v4607
    %v4713 = vpop.f32.mrf.mxu0
    %v4714 = vadd.f32 0.0, %v4713
    %4715 = vmatmul.f32.gmra.mxu0 %v4608
    %v4716 = vpop.f32.mrf.mxu0
    %v4717 = vadd.f32 0.0, %v4716
    %4718 = vmatmul.f32.gmra.mxu0 %v4609
    %v4719 = vpop.f32.mrf.mxu0
    %v4720 = vadd.f32 0.0, %v4719
    %4721 = vmatmul.f32.gmra.mxu0 %v4610
    %v4722 = vpop.f32.mrf.mxu0
    %v4723 = vadd.f32 0.0, %v4722
    %4724 = vmatmul.f32.gmra.mxu0 %v4611
    %v4725 = vpop.f32.mrf.mxu0
    %v4726 = vadd.f32 0.0, %v4725
    %4727 = vmatmul.f32.gmra.mxu0 %v4612
    %v4728 = vpop.f32.mrf.mxu0
    %v4729 = vadd.f32 0.0, %v4728
    %4730 = vmatmul.f32.gmra.mxu0 %v4613
    %v4731 = vpop.f32.mrf.mxu0
    %v4732 = vadd.f32 0.0, %v4731
    %4733 = vmatmul.f32.gmra.mxu0 %v4614
    %v4734 = vpop.f32.mrf.mxu0
    %v4735 = vadd.f32 0.0, %v4734
    %4736 = vmatmul.f32.gmra.mxu0 %v4615
    %v4737 = vpop.f32.mrf.mxu0
    %v4738 = vadd.f32 0.0, %v4737
    %4739 = vmatmul.f32.gmra.mxu0 %v4616
    %v4740 = vpop.f32.mrf.mxu0
    %v4741 = vadd.f32 0.0, %v4740
    %4742 = vmatmul.f32.gmra.mxu0 %v4617
    %v4743 = vpop.f32.mrf.mxu0
    %v4744 = vadd.f32 0.0, %v4743
    %4745 = vmatmul.f32.gmra.mxu0 %v4618
    %v4746 = vpop.f32.mrf.mxu0
    %v4747 = vadd.f32 0.0, %v4746
    %4748 = vmatmul.f32.gmra.mxu0 %v4619
    %v4749 = vpop.f32.mrf.mxu0
    %v4750 = vadd.f32 0.0, %v4749
    %4751 = vmatmul.f32.gmra.mxu0 %v4620
    %v4752 = vpop.f32.mrf.mxu0
    %v4753 = vadd.f32 0.0, %v4752
    %4754 = vmatmul.f32.gmra.mxu0 %v4621
    %v4755 = vpop.f32.mrf.mxu0
    %v4756 = vadd.f32 0.0, %v4755
    %4757 = vmatmul.f32.gmra.mxu0 %v4622
    %v4758 = vpop.f32.mrf.mxu0
    %v4759 = vadd.f32 0.0, %v4758
    %4760 = vmatmul.f32.gmra.mxu0 %v4623
    %v4761 = vpop.f32.mrf.mxu0
    %v4762 = vadd.f32 0.0, %v4761
    %4763 = vmatmul.f32.gmra.mxu0 %v4624
    %v4764 = vpop.f32.mrf.mxu0
    %v4765 = vadd.f32 0.0, %v4764
    %4766 = vmatmul.f32.gmra.mxu0 %v4625
    %v4767 = vpop.f32.mrf.mxu0
    %v4768 = vadd.f32 0.0, %v4767
    %4769 = vmatmul.f32.gmra.mxu0 %v4626
    %v4770 = vpop.f32.mrf.mxu0
    %v4771 = vadd.f32 0.0, %v4770
    %4772 = vmatmul.f32.gmra.mxu0 %v4627
    %v4773 = vpop.f32.mrf.mxu0
    %v4774 = vadd.f32 0.0, %v4773
    %4775 = vmatmul.f32.gmra.mxu0 %v4628
    %v4776 = vpop.f32.mrf.mxu0
    %v4777 = vadd.f32 0.0, %v4776
    %4778 = vmatmul.f32.gmra.mxu0 %v4629
    %v4779 = vpop.f32.mrf.mxu0
    %v4780 = vadd.f32 0.0, %v4779
    %4781 = vmatmul.f32.gmra.mxu0 %v4630
    %v4782 = vpop.f32.mrf.mxu0
    %v4783 = vadd.f32 0.0, %v4782
    %4784 = vmatmul.f32.gmra.mxu0 %v4631
    %v4785 = vpop.f32.mrf.mxu0
    %v4786 = vadd.f32 0.0, %v4785
    %4787 = vmatmul.f32.gmra.mxu0 %v4632
    %v4788 = vpop.f32.mrf.mxu0
    %v4789 = vadd.f32 0.0, %v4788
    %4790 = vmatmul.f32.gmra.mxu0 %v4633
    %v4791 = vpop.f32.mrf.mxu0
    %v4792 = vadd.f32 0.0, %v4791
    %4793 = vmatmul.f32.gmra.mxu0 %v4634
    %v4794 = vpop.f32.mrf.mxu0
    %v4795 = vadd.f32 0.0, %v4794
    %4796 = vmatmul.f32.gmra.mxu0 %v4635
    %v4797 = vpop.f32.mrf.mxu0
    %v4798 = vadd.f32 0.0, %v4797
    %4799 = vmatmul.f32.gmra.mxu0 %v4636
    %v4800 = vpop.f32.mrf.mxu0
    %v4801 = vadd.f32 0.0, %v4800
    %4802 = vmatmul.f32.gmra.mxu0 %v4637
    %v4803 = vpop.f32.mrf.mxu0
    %v4804 = vadd.f32 0.0, %v4803
    %4805 = vmatmul.f32.gmra.mxu0 %v4638
    %v4806 = vpop.f32.mrf.mxu0
    %v4807 = vadd.f32 0.0, %v4806
    %4808 = vmatmul.f32.gmra.mxu0 %v4639
    %v4809 = vpop.f32.mrf.mxu0
    %v4810 = vadd.f32 0.0, %v4809
    %4811 = vdwg.mxu0
    %v4812 = vadd.f32 %v4457, %v4675
    %v4813 = vadd.f32 %v4460, %v4678
    %v4814 = vadd.f32 %v4463, %v4681
    %v4815 = vadd.f32 %v4466, %v4684
    %v4816 = vadd.f32 %v4469, %v4687
    %v4817 = vadd.f32 %v4472, %v4690
    %v4818 = vadd.f32 %v4475, %v4693
    %v4819 = vadd.f32 %v4478, %v4696
    %v4820 = vadd.f32 %v4481, %v4699
    %v4821 = vadd.f32 %v4484, %v4702
    %v4822 = vadd.f32 %v4487, %v4705
    %v4823 = vadd.f32 %v4490, %v4708
    %v4824 = vadd.f32 %v4493, %v4711
    %v4825 = vadd.f32 %v4496, %v4714
    %v4826 = vadd.f32 %v4499, %v4717
    %v4827 = vadd.f32 %v4502, %v4720
    %v4828 = vadd.f32 %v4505, %v4723
    %v4829 = vadd.f32 %v4508, %v4726
    %v4830 = vadd.f32 %v4511, %v4729
    %v4831 = vadd.f32 %v4514, %v4732
    %v4832 = vadd.f32 %v4517, %v4735
    %v4833 = vadd.f32 %v4520, %v4738
    %v4834 = vadd.f32 %v4523, %v4741
    %v4835 = vadd.f32 %v4526, %v4744
    %v4836 = vadd.f32 %v4529, %v4747
    %v4837 = vadd.f32 %v4532, %v4750
    %v4838 = vadd.f32 %v4535, %v4753
    %v4839 = vadd.f32 %v4538, %v4756
    %v4840 = vadd.f32 %v4541, %v4759
    %v4841 = vadd.f32 %v4544, %v4762
    %v4842 = vadd.f32 %v4547, %v4765
    %v4843 = vadd.f32 %v4550, %v4768
    %v4844 = vadd.f32 %v4553, %v4771
    %v4845 = vadd.f32 %v4556, %v4774
    %v4846 = vadd.f32 %v4559, %v4777
    %v4847 = vadd.f32 %v4562, %v4780
    %v4848 = vadd.f32 %v4565, %v4783
    %v4849 = vadd.f32 %v4568, %v4786
    %v4850 = vadd.f32 %v4571, %v4789
    %v4851 = vadd.f32 %v4574, %v4792
    %v4852 = vadd.f32 %v4577, %v4795
    %v4853 = vadd.f32 %v4580, %v4798
    %v4854 = vadd.f32 %v4583, %v4801
    %v4855 = vadd.f32 %v4586, %v4804
    %v4856 = vadd.f32 %v4589, %v4807
    %v4857 = vadd.f32 %v4592, %v4810
    %v4858 = vld [vmem:[#allocation2 + $0xe] sm:$0xff]
    %v4859 = vld [vmem:[#allocation2 + $0x16] sm:$0xff]
    %v4860 = vld [vmem:[#allocation2 + $0x1e] sm:$0xff]
    %v4861 = vld [vmem:[#allocation2 + $0x26] sm:$0xff]
    %v4862 = vld [vmem:[#allocation2 + $0x2e] sm:$0xff]
    %v4863 = vld [vmem:[#allocation2 + $0x36] sm:$0xff]
    %v4864 = vld [vmem:[#allocation2 + $0x3e] sm:$0xff]
    %v4865 = vld [vmem:[#allocation2 + $0x46] sm:$0xff]
    %v4866 = vld [vmem:[#allocation2 + $0x4e] sm:$0xff]
    %v4867 = vld [vmem:[#allocation2 + $0x56] sm:$0xff]
    %v4868 = vld [vmem:[#allocation2 + $0x5e] sm:$0xff]
    %v4869 = vld [vmem:[#allocation2 + $0x66] sm:$0xff]
    %v4870 = vld [vmem:[#allocation2 + $0x6e] sm:$0xff]
    %v4871 = vld [vmem:[#allocation2 + $0x76] sm:$0xff]
    %v4872 = vld [vmem:[#allocation2 + $0x7e] sm:$0xff]
    %v4873 = vld [vmem:[#allocation2 + $0x86] sm:$0xff]
    %v4874 = vld [vmem:[#allocation2 + $0x8e] sm:$0xff]
    %v4875 = vld [vmem:[#allocation2 + $0x96] sm:$0xff]
    %v4876 = vld [vmem:[#allocation2 + $0x9e] sm:$0xff]
    %v4877 = vld [vmem:[#allocation2 + $0xa6] sm:$0xff]
    %v4878 = vld [vmem:[#allocation2 + $0xae] sm:$0xff]
    %v4879 = vld [vmem:[#allocation2 + $0xb6] sm:$0xff]
    %v4880 = vld [vmem:[#allocation2 + $0xbe] sm:$0xff]
    %v4881 = vld [vmem:[#allocation2 + $0xc6] sm:$0xff]
    %v4882 = vld [vmem:[#allocation2 + $0xce] sm:$0xff]
    %v4883 = vld [vmem:[#allocation2 + $0xd6] sm:$0xff]
    %v4884 = vld [vmem:[#allocation2 + $0xde] sm:$0xff]
    %v4885 = vld [vmem:[#allocation2 + $0xe6] sm:$0xff]
    %v4886 = vld [vmem:[#allocation2 + $0xee] sm:$0xff]
    %v4887 = vld [vmem:[#allocation2 + $0xf6] sm:$0xff]
    %v4888 = vld [vmem:[#allocation2 + $0xfe] sm:$0xff]
    %v4889 = vld [vmem:[#allocation2 + $0x106] sm:$0xff]
    %v4890 = vld [vmem:[#allocation2 + $0x10e] sm:$0xff]
    %v4891 = vld [vmem:[#allocation2 + $0x116] sm:$0xff]
    %v4892 = vld [vmem:[#allocation2 + $0x11e] sm:$0xff]
    %v4893 = vld [vmem:[#allocation2 + $0x126] sm:$0xff]
    %v4894 = vld [vmem:[#allocation2 + $0x12e] sm:$0xff]
    %v4895 = vld [vmem:[#allocation2 + $0x136] sm:$0xff]
    %v4896 = vld [vmem:[#allocation2 + $0x13e] sm:$0xff]
    %v4897 = vld [vmem:[#allocation2 + $0x146] sm:$0xff]
    %v4898 = vld [vmem:[#allocation2 + $0x14e] sm:$0xff]
    %v4899 = vld [vmem:[#allocation2 + $0x156] sm:$0xff]
    %v4900 = vld [vmem:[#allocation2 + $0x15e] sm:$0xff]
    %v4901 = vld [vmem:[#allocation2 + $0x166] sm:$0xff]
    %v4902 = vld [vmem:[#allocation2 + $0x16e] sm:$0xff]
    %v4903 = vld [vmem:[#allocation2 + $0x176] sm:$0x3]
    %s4904 = scalar_lea.vmem [#allocation10], 384
    %v4905 = vld [vmem:[%s4904] sm:$0xff]
    %v4906 = vld [vmem:[%s4904 + $0x8] sm:$0xff]
    %v4907 = vld [vmem:[%s4904 + $0x10] sm:$0xff]
    %v4908 = vld [vmem:[%s4904 + $0x18] sm:$0xff]
    %v4909 = vld [vmem:[%s4904 + $0x20] sm:$0xff]
    %v4910 = vld [vmem:[%s4904 + $0x28] sm:$0xff]
    %v4911 = vld [vmem:[%s4904 + $0x30] sm:$0xff]
    %v4912 = vld [vmem:[%s4904 + $0x38] sm:$0xff]
    %v4913 = vld [vmem:[%s4904 + $0x40] sm:$0xff]
    %v4914 = vld [vmem:[%s4904 + $0x48] sm:$0xff]
    %v4915 = vld [vmem:[%s4904 + $0x50] sm:$0xff]
    %v4916 = vld [vmem:[%s4904 + $0x58] sm:$0xff]
    %v4917 = vld [vmem:[%s4904 + $0x60] sm:$0xff]
    %v4918 = vld [vmem:[%s4904 + $0x68] sm:$0xff]
    %v4919 = vld [vmem:[%s4904 + $0x70] sm:$0xff]
    %v4920 = vld [vmem:[%s4904 + $0x78] sm:$0xff]
    %4921 = vmatpush.msra.mxu0 %v4920
    %4922 = vmatpush.msra.mxu0 %v4919
    %4923 = vmatpush.msra.mxu0 %v4918
    %4924 = vmatpush.msra.mxu0 %v4917
    %4925 = vmatpush.msra.mxu0 %v4916
    %4926 = vmatpush.msra.mxu0 %v4915
    %4927 = vmatpush.msra.mxu0 %v4914
    %4928 = vmatpush.msra.mxu0 %v4913
    %4929 = vmatpush.msra.mxu0 %v4912
    %4930 = vmatpush.msra.mxu0 %v4911
    %4931 = vmatpush.msra.mxu0 %v4910
    %4932 = vmatpush.msra.mxu0 %v4909
    %4933 = vmatpush.msra.mxu0 %v4908
    %4934 = vmatpush.msra.mxu0 %v4907
    %4935 = vmatpush.msra.mxu0 %v4906
    %4936 = vmatpush.msra.mxu0 %v4905
    %4937 = vmatmul.f32.gmra.mxu0 %v4858
    %v4938 = vpop.f32.mrf.mxu0
    %v4939 = vadd.f32 0.0, %v4938
    %4940 = vmatmul.f32.gmra.mxu0 %v4859
    %v4941 = vpop.f32.mrf.mxu0
    %v4942 = vadd.f32 0.0, %v4941
    %4943 = vmatmul.f32.gmra.mxu0 %v4860
    %v4944 = vpop.f32.mrf.mxu0
    %v4945 = vadd.f32 0.0, %v4944
    %4946 = vmatmul.f32.gmra.mxu0 %v4861
    %v4947 = vpop.f32.mrf.mxu0
    %v4948 = vadd.f32 0.0, %v4947
    %4949 = vmatmul.f32.gmra.mxu0 %v4862
    %v4950 = vpop.f32.mrf.mxu0
    %v4951 = vadd.f32 0.0, %v4950
    %4952 = vmatmul.f32.gmra.mxu0 %v4863
    %v4953 = vpop.f32.mrf.mxu0
    %v4954 = vadd.f32 0.0, %v4953
    %4955 = vmatmul.f32.gmra.mxu0 %v4864
    %v4956 = vpop.f32.mrf.mxu0
    %v4957 = vadd.f32 0.0, %v4956
    %4958 = vmatmul.f32.gmra.mxu0 %v4865
    %v4959 = vpop.f32.mrf.mxu0
    %v4960 = vadd.f32 0.0, %v4959
    %4961 = vmatmul.f32.gmra.mxu0 %v4866
    %v4962 = vpop.f32.mrf.mxu0
    %v4963 = vadd.f32 0.0, %v4962
    %4964 = vmatmul.f32.gmra.mxu0 %v4867
    %v4965 = vpop.f32.mrf.mxu0
    %v4966 = vadd.f32 0.0, %v4965
    %4967 = vmatmul.f32.gmra.mxu0 %v4868
    %v4968 = vpop.f32.mrf.mxu0
    %v4969 = vadd.f32 0.0, %v4968
    %4970 = vmatmul.f32.gmra.mxu0 %v4869
    %v4971 = vpop.f32.mrf.mxu0
    %v4972 = vadd.f32 0.0, %v4971
    %4973 = vmatmul.f32.gmra.mxu0 %v4870
    %v4974 = vpop.f32.mrf.mxu0
    %v4975 = vadd.f32 0.0, %v4974
    %4976 = vmatmul.f32.gmra.mxu0 %v4871
    %v4977 = vpop.f32.mrf.mxu0
    %v4978 = vadd.f32 0.0, %v4977
    %4979 = vmatmul.f32.gmra.mxu0 %v4872
    %v4980 = vpop.f32.mrf.mxu0
    %v4981 = vadd.f32 0.0, %v4980
    %4982 = vmatmul.f32.gmra.mxu0 %v4873
    %v4983 = vpop.f32.mrf.mxu0
    %v4984 = vadd.f32 0.0, %v4983
    %4985 = vmatmul.f32.gmra.mxu0 %v4874
    %v4986 = vpop.f32.mrf.mxu0
    %v4987 = vadd.f32 0.0, %v4986
    %4988 = vmatmul.f32.gmra.mxu0 %v4875
    %v4989 = vpop.f32.mrf.mxu0
    %v4990 = vadd.f32 0.0, %v4989
    %4991 = vmatmul.f32.gmra.mxu0 %v4876
    %v4992 = vpop.f32.mrf.mxu0
    %v4993 = vadd.f32 0.0, %v4992
    %4994 = vmatmul.f32.gmra.mxu0 %v4877
    %v4995 = vpop.f32.mrf.mxu0
    %v4996 = vadd.f32 0.0, %v4995
    %4997 = vmatmul.f32.gmra.mxu0 %v4878
    %v4998 = vpop.f32.mrf.mxu0
    %v4999 = vadd.f32 0.0, %v4998
    %5000 = vmatmul.f32.gmra.mxu0 %v4879
    %v5001 = vpop.f32.mrf.mxu0
    %v5002 = vadd.f32 0.0, %v5001
    %5003 = vmatmul.f32.gmra.mxu0 %v4880
    %v5004 = vpop.f32.mrf.mxu0
    %v5005 = vadd.f32 0.0, %v5004
    %5006 = vmatmul.f32.gmra.mxu0 %v4881
    %v5007 = vpop.f32.mrf.mxu0
    %v5008 = vadd.f32 0.0, %v5007
    %5009 = vmatmul.f32.gmra.mxu0 %v4882
    %v5010 = vpop.f32.mrf.mxu0
    %v5011 = vadd.f32 0.0, %v5010
    %5012 = vmatmul.f32.gmra.mxu0 %v4883
    %v5013 = vpop.f32.mrf.mxu0
    %v5014 = vadd.f32 0.0, %v5013
    %5015 = vmatmul.f32.gmra.mxu0 %v4884
    %v5016 = vpop.f32.mrf.mxu0
    %v5017 = vadd.f32 0.0, %v5016
    %5018 = vmatmul.f32.gmra.mxu0 %v4885
    %v5019 = vpop.f32.mrf.mxu0
    %v5020 = vadd.f32 0.0, %v5019
    %5021 = vmatmul.f32.gmra.mxu0 %v4886
    %v5022 = vpop.f32.mrf.mxu0
    %v5023 = vadd.f32 0.0, %v5022
    %5024 = vmatmul.f32.gmra.mxu0 %v4887
    %v5025 = vpop.f32.mrf.mxu0
    %v5026 = vadd.f32 0.0, %v5025
    %5027 = vmatmul.f32.gmra.mxu0 %v4888
    %v5028 = vpop.f32.mrf.mxu0
    %v5029 = vadd.f32 0.0, %v5028
    %5030 = vmatmul.f32.gmra.mxu0 %v4889
    %v5031 = vpop.f32.mrf.mxu0
    %v5032 = vadd.f32 0.0, %v5031
    %5033 = vmatmul.f32.gmra.mxu0 %v4890
    %v5034 = vpop.f32.mrf.mxu0
    %v5035 = vadd.f32 0.0, %v5034
    %5036 = vmatmul.f32.gmra.mxu0 %v4891
    %v5037 = vpop.f32.mrf.mxu0
    %v5038 = vadd.f32 0.0, %v5037
    %5039 = vmatmul.f32.gmra.mxu0 %v4892
    %v5040 = vpop.f32.mrf.mxu0
    %v5041 = vadd.f32 0.0, %v5040
    %5042 = vmatmul.f32.gmra.mxu0 %v4893
    %v5043 = vpop.f32.mrf.mxu0
    %v5044 = vadd.f32 0.0, %v5043
    %5045 = vmatmul.f32.gmra.mxu0 %v4894
    %v5046 = vpop.f32.mrf.mxu0
    %v5047 = vadd.f32 0.0, %v5046
    %5048 = vmatmul.f32.gmra.mxu0 %v4895
    %v5049 = vpop.f32.mrf.mxu0
    %v5050 = vadd.f32 0.0, %v5049
    %5051 = vmatmul.f32.gmra.mxu0 %v4896
    %v5052 = vpop.f32.mrf.mxu0
    %v5053 = vadd.f32 0.0, %v5052
    %5054 = vmatmul.f32.gmra.mxu0 %v4897
    %v5055 = vpop.f32.mrf.mxu0
    %v5056 = vadd.f32 0.0, %v5055
    %5057 = vmatmul.f32.gmra.mxu0 %v4898
    %v5058 = vpop.f32.mrf.mxu0
    %v5059 = vadd.f32 0.0, %v5058
    %5060 = vmatmul.f32.gmra.mxu0 %v4899
    %v5061 = vpop.f32.mrf.mxu0
    %v5062 = vadd.f32 0.0, %v5061
    %5063 = vmatmul.f32.gmra.mxu0 %v4900
    %v5064 = vpop.f32.mrf.mxu0
    %v5065 = vadd.f32 0.0, %v5064
    %5066 = vmatmul.f32.gmra.mxu0 %v4901
    %v5067 = vpop.f32.mrf.mxu0
    %v5068 = vadd.f32 0.0, %v5067
    %5069 = vmatmul.f32.gmra.mxu0 %v4902
    %v5070 = vpop.f32.mrf.mxu0
    %v5071 = vadd.f32 0.0, %v5070
    %5072 = vmatmul.f32.gmra.mxu0 %v4903
    %v5073 = vpop.f32.mrf.mxu0
    %v5074 = vadd.f32 0.0, %v5073
    %5075 = vdwg.mxu0
    %v5076 = vadd.f32 %v4812, %v4939
    %v5077 = vadd.f32 %v4813, %v4942
    %v5078 = vadd.f32 %v4814, %v4945
    %v5079 = vadd.f32 %v4815, %v4948
    %v5080 = vadd.f32 %v4816, %v4951
    %v5081 = vadd.f32 %v4817, %v4954
    %v5082 = vadd.f32 %v4818, %v4957
    %v5083 = vadd.f32 %v4819, %v4960
    %v5084 = vadd.f32 %v4820, %v4963
    %v5085 = vadd.f32 %v4821, %v4966
    %v5086 = vadd.f32 %v4822, %v4969
    %v5087 = vadd.f32 %v4823, %v4972
    %v5088 = vadd.f32 %v4824, %v4975
    %v5089 = vadd.f32 %v4825, %v4978
    %v5090 = vadd.f32 %v4826, %v4981
    %v5091 = vadd.f32 %v4827, %v4984
    %v5092 = vadd.f32 %v4828, %v4987
    %v5093 = vadd.f32 %v4829, %v4990
    %v5094 = vadd.f32 %v4830, %v4993
    %v5095 = vadd.f32 %v4831, %v4996
    %v5096 = vadd.f32 %v4832, %v4999
    %v5097 = vadd.f32 %v4833, %v5002
    %v5098 = vadd.f32 %v4834, %v5005
    %v5099 = vadd.f32 %v4835, %v5008
    %v5100 = vadd.f32 %v4836, %v5011
    %v5101 = vadd.f32 %v4837, %v5014
    %v5102 = vadd.f32 %v4838, %v5017
    %v5103 = vadd.f32 %v4839, %v5020
    %v5104 = vadd.f32 %v4840, %v5023
    %v5105 = vadd.f32 %v4841, %v5026
    %v5106 = vadd.f32 %v4842, %v5029
    %v5107 = vadd.f32 %v4843, %v5032
    %v5108 = vadd.f32 %v4844, %v5035
    %v5109 = vadd.f32 %v4845, %v5038
    %v5110 = vadd.f32 %v4846, %v5041
    %v5111 = vadd.f32 %v4847, %v5044
    %v5112 = vadd.f32 %v4848, %v5047
    %v5113 = vadd.f32 %v4849, %v5050
    %v5114 = vadd.f32 %v4850, %v5053
    %v5115 = vadd.f32 %v4851, %v5056
    %v5116 = vadd.f32 %v4852, %v5059
    %v5117 = vadd.f32 %v4853, %v5062
    %v5118 = vadd.f32 %v4854, %v5065
    %v5119 = vadd.f32 %v4855, %v5068
    %v5120 = vadd.f32 %v4856, %v5071
    %v5121 = vadd.f32 %v4857, %v5074
    %v5122 = vld [vmem:[#allocation2 + $0xf] sm:$0xff]
    %v5123 = vld [vmem:[#allocation2 + $0x17] sm:$0xff]
    %v5124 = vld [vmem:[#allocation2 + $0x1f] sm:$0xff]
    %v5125 = vld [vmem:[#allocation2 + $0x27] sm:$0xff]
    %v5126 = vld [vmem:[#allocation2 + $0x2f] sm:$0xff]
    %v5127 = vld [vmem:[#allocation2 + $0x37] sm:$0xff]
    %v5128 = vld [vmem:[#allocation2 + $0x3f] sm:$0xff]
    %v5129 = vld [vmem:[#allocation2 + $0x47] sm:$0xff]
    %v5130 = vld [vmem:[#allocation2 + $0x4f] sm:$0xff]
    %v5131 = vld [vmem:[#allocation2 + $0x57] sm:$0xff]
    %v5132 = vld [vmem:[#allocation2 + $0x5f] sm:$0xff]
    %v5133 = vld [vmem:[#allocation2 + $0x67] sm:$0xff]
    %v5134 = vld [vmem:[#allocation2 + $0x6f] sm:$0xff]
    %v5135 = vld [vmem:[#allocation2 + $0x77] sm:$0xff]
    %v5136 = vld [vmem:[#allocation2 + $0x7f] sm:$0xff]
    %v5137 = vld [vmem:[#allocation2 + $0x87] sm:$0xff]
    %v5138 = vld [vmem:[#allocation2 + $0x8f] sm:$0xff]
    %v5139 = vld [vmem:[#allocation2 + $0x97] sm:$0xff]
    %v5140 = vld [vmem:[#allocation2 + $0x9f] sm:$0xff]
    %v5141 = vld [vmem:[#allocation2 + $0xa7] sm:$0xff]
    %v5142 = vld [vmem:[#allocation2 + $0xaf] sm:$0xff]
    %v5143 = vld [vmem:[#allocation2 + $0xb7] sm:$0xff]
    %v5144 = vld [vmem:[#allocation2 + $0xbf] sm:$0xff]
    %v5145 = vld [vmem:[#allocation2 + $0xc7] sm:$0xff]
    %v5146 = vld [vmem:[#allocation2 + $0xcf] sm:$0xff]
    %v5147 = vld [vmem:[#allocation2 + $0xd7] sm:$0xff]
    %v5148 = vld [vmem:[#allocation2 + $0xdf] sm:$0xff]
    %v5149 = vld [vmem:[#allocation2 + $0xe7] sm:$0xff]
    %v5150 = vld [vmem:[#allocation2 + $0xef] sm:$0xff]
    %v5151 = vld [vmem:[#allocation2 + $0xf7] sm:$0xff]
    %v5152 = vld [vmem:[#allocation2 + $0xff] sm:$0xff]
    %v5153 = vld [vmem:[#allocation2 + $0x107] sm:$0xff]
    %v5154 = vld [vmem:[#allocation2 + $0x10f] sm:$0xff]
    %v5155 = vld [vmem:[#allocation2 + $0x117] sm:$0xff]
    %v5156 = vld [vmem:[#allocation2 + $0x11f] sm:$0xff]
    %v5157 = vld [vmem:[#allocation2 + $0x127] sm:$0xff]
    %v5158 = vld [vmem:[#allocation2 + $0x12f] sm:$0xff]
    %v5159 = vld [vmem:[#allocation2 + $0x137] sm:$0xff]
    %v5160 = vld [vmem:[#allocation2 + $0x13f] sm:$0xff]
    %v5161 = vld [vmem:[#allocation2 + $0x147] sm:$0xff]
    %v5162 = vld [vmem:[#allocation2 + $0x14f] sm:$0xff]
    %v5163 = vld [vmem:[#allocation2 + $0x157] sm:$0xff]
    %v5164 = vld [vmem:[#allocation2 + $0x15f] sm:$0xff]
    %v5165 = vld [vmem:[#allocation2 + $0x167] sm:$0xff]
    %v5166 = vld [vmem:[#allocation2 + $0x16f] sm:$0xff]
    %v5167 = vld [vmem:[#allocation2 + $0x177] sm:$0x3]
    %s5168 = scalar_lea.vmem [#allocation10], 512
    %v5169 = vld [vmem:[%s5168] sm:$0xff]
    %v5170 = vld [vmem:[%s5168 + $0x8] sm:$0xff]
    %v5171 = vld [vmem:[%s5168 + $0x10] sm:$0xff]
    %v5172 = vld [vmem:[%s5168 + $0x18] sm:$0xff]
    %v5173 = vld [vmem:[%s5168 + $0x20] sm:$0xff]
    %v5174 = vld [vmem:[%s5168 + $0x28] sm:$0xff]
    %v5175 = vld [vmem:[%s5168 + $0x30] sm:$0xff]
    %v5176 = vld [vmem:[%s5168 + $0x38] sm:$0xff]
    %v5177 = vld [vmem:[%s5168 + $0x40] sm:$0xff]
    %v5178 = vld [vmem:[%s5168 + $0x48] sm:$0xff]
    %v5179 = vld [vmem:[%s5168 + $0x50] sm:$0xff]
    %v5180 = vld [vmem:[%s5168 + $0x58] sm:$0xff]
    %v5181 = vld [vmem:[%s5168 + $0x60] sm:$0xff]
    %v5182 = vld [vmem:[%s5168 + $0x68] sm:$0xff]
    %v5183 = vld [vmem:[%s5168 + $0x70] sm:$0xff]
    %v5184 = vld [vmem:[%s5168 + $0x78] sm:$0xff]
    %5185 = vmatpush.msra.mxu0 %v5184
    %5186 = vmatpush.msra.mxu0 %v5183
    %5187 = vmatpush.msra.mxu0 %v5182
    %5188 = vmatpush.msra.mxu0 %v5181
    %5189 = vmatpush.msra.mxu0 %v5180
    %5190 = vmatpush.msra.mxu0 %v5179
    %5191 = vmatpush.msra.mxu0 %v5178
    %5192 = vmatpush.msra.mxu0 %v5177
    %5193 = vmatpush.msra.mxu0 %v5176
    %5194 = vmatpush.msra.mxu0 %v5175
    %5195 = vmatpush.msra.mxu0 %v5174
    %5196 = vmatpush.msra.mxu0 %v5173
    %5197 = vmatpush.msra.mxu0 %v5172
    %5198 = vmatpush.msra.mxu0 %v5171
    %5199 = vmatpush.msra.mxu0 %v5170
    %5200 = vmatpush.msra.mxu0 %v5169
    %5201 = vmatmul.f32.gmra.mxu0 %v5122
    %v5202 = vpop.f32.mrf.mxu0
    %v5203 = vadd.f32 0.0, %v5202
    %5204 = vmatmul.f32.gmra.mxu0 %v5123
    %v5205 = vpop.f32.mrf.mxu0
    %v5206 = vadd.f32 0.0, %v5205
    %5207 = vmatmul.f32.gmra.mxu0 %v5124
    %v5208 = vpop.f32.mrf.mxu0
    %v5209 = vadd.f32 0.0, %v5208
    %5210 = vmatmul.f32.gmra.mxu0 %v5125
    %v5211 = vpop.f32.mrf.mxu0
    %v5212 = vadd.f32 0.0, %v5211
    %5213 = vmatmul.f32.gmra.mxu0 %v5126
    %v5214 = vpop.f32.mrf.mxu0
    %v5215 = vadd.f32 0.0, %v5214
    %5216 = vmatmul.f32.gmra.mxu0 %v5127
    %v5217 = vpop.f32.mrf.mxu0
    %v5218 = vadd.f32 0.0, %v5217
    %5219 = vmatmul.f32.gmra.mxu0 %v5128
    %v5220 = vpop.f32.mrf.mxu0
    %v5221 = vadd.f32 0.0, %v5220
    %5222 = vmatmul.f32.gmra.mxu0 %v5129
    %v5223 = vpop.f32.mrf.mxu0
    %v5224 = vadd.f32 0.0, %v5223
    %5225 = vmatmul.f32.gmra.mxu0 %v5130
    %v5226 = vpop.f32.mrf.mxu0
    %v5227 = vadd.f32 0.0, %v5226
    %5228 = vmatmul.f32.gmra.mxu0 %v5131
    %v5229 = vpop.f32.mrf.mxu0
    %v5230 = vadd.f32 0.0, %v5229
    %5231 = vmatmul.f32.gmra.mxu0 %v5132
    %v5232 = vpop.f32.mrf.mxu0
    %v5233 = vadd.f32 0.0, %v5232
    %5234 = vmatmul.f32.gmra.mxu0 %v5133
    %v5235 = vpop.f32.mrf.mxu0
    %v5236 = vadd.f32 0.0, %v5235
    %5237 = vmatmul.f32.gmra.mxu0 %v5134
    %v5238 = vpop.f32.mrf.mxu0
    %v5239 = vadd.f32 0.0, %v5238
    %5240 = vmatmul.f32.gmra.mxu0 %v5135
    %v5241 = vpop.f32.mrf.mxu0
    %v5242 = vadd.f32 0.0, %v5241
    %5243 = vmatmul.f32.gmra.mxu0 %v5136
    %v5244 = vpop.f32.mrf.mxu0
    %v5245 = vadd.f32 0.0, %v5244
    %5246 = vmatmul.f32.gmra.mxu0 %v5137
    %v5247 = vpop.f32.mrf.mxu0
    %v5248 = vadd.f32 0.0, %v5247
    %5249 = vmatmul.f32.gmra.mxu0 %v5138
    %v5250 = vpop.f32.mrf.mxu0
    %v5251 = vadd.f32 0.0, %v5250
    %5252 = vmatmul.f32.gmra.mxu0 %v5139
    %v5253 = vpop.f32.mrf.mxu0
    %v5254 = vadd.f32 0.0, %v5253
    %5255 = vmatmul.f32.gmra.mxu0 %v5140
    %v5256 = vpop.f32.mrf.mxu0
    %v5257 = vadd.f32 0.0, %v5256
    %5258 = vmatmul.f32.gmra.mxu0 %v5141
    %v5259 = vpop.f32.mrf.mxu0
    %v5260 = vadd.f32 0.0, %v5259
    %5261 = vmatmul.f32.gmra.mxu0 %v5142
    %v5262 = vpop.f32.mrf.mxu0
    %v5263 = vadd.f32 0.0, %v5262
    %5264 = vmatmul.f32.gmra.mxu0 %v5143
    %v5265 = vpop.f32.mrf.mxu0
    %v5266 = vadd.f32 0.0, %v5265
    %5267 = vmatmul.f32.gmra.mxu0 %v5144
    %v5268 = vpop.f32.mrf.mxu0
    %v5269 = vadd.f32 0.0, %v5268
    %5270 = vmatmul.f32.gmra.mxu0 %v5145
    %v5271 = vpop.f32.mrf.mxu0
    %v5272 = vadd.f32 0.0, %v5271
    %5273 = vmatmul.f32.gmra.mxu0 %v5146
    %v5274 = vpop.f32.mrf.mxu0
    %v5275 = vadd.f32 0.0, %v5274
    %5276 = vmatmul.f32.gmra.mxu0 %v5147
    %v5277 = vpop.f32.mrf.mxu0
    %v5278 = vadd.f32 0.0, %v5277
    %5279 = vmatmul.f32.gmra.mxu0 %v5148
    %v5280 = vpop.f32.mrf.mxu0
    %v5281 = vadd.f32 0.0, %v5280
    %5282 = vmatmul.f32.gmra.mxu0 %v5149
    %v5283 = vpop.f32.mrf.mxu0
    %v5284 = vadd.f32 0.0, %v5283
    %5285 = vmatmul.f32.gmra.mxu0 %v5150
    %v5286 = vpop.f32.mrf.mxu0
    %v5287 = vadd.f32 0.0, %v5286
    %5288 = vmatmul.f32.gmra.mxu0 %v5151
    %v5289 = vpop.f32.mrf.mxu0
    %v5290 = vadd.f32 0.0, %v5289
    %5291 = vmatmul.f32.gmra.mxu0 %v5152
    %v5292 = vpop.f32.mrf.mxu0
    %v5293 = vadd.f32 0.0, %v5292
    %5294 = vmatmul.f32.gmra.mxu0 %v5153
    %v5295 = vpop.f32.mrf.mxu0
    %v5296 = vadd.f32 0.0, %v5295
    %5297 = vmatmul.f32.gmra.mxu0 %v5154
    %v5298 = vpop.f32.mrf.mxu0
    %v5299 = vadd.f32 0.0, %v5298
    %5300 = vmatmul.f32.gmra.mxu0 %v5155
    %v5301 = vpop.f32.mrf.mxu0
    %v5302 = vadd.f32 0.0, %v5301
    %5303 = vmatmul.f32.gmra.mxu0 %v5156
    %v5304 = vpop.f32.mrf.mxu0
    %v5305 = vadd.f32 0.0, %v5304
    %5306 = vmatmul.f32.gmra.mxu0 %v5157
    %v5307 = vpop.f32.mrf.mxu0
    %v5308 = vadd.f32 0.0, %v5307
    %5309 = vmatmul.f32.gmra.mxu0 %v5158
    %v5310 = vpop.f32.mrf.mxu0
    %v5311 = vadd.f32 0.0, %v5310
    %5312 = vmatmul.f32.gmra.mxu0 %v5159
    %v5313 = vpop.f32.mrf.mxu0
    %v5314 = vadd.f32 0.0, %v5313
    %5315 = vmatmul.f32.gmra.mxu0 %v5160
    %v5316 = vpop.f32.mrf.mxu0
    %v5317 = vadd.f32 0.0, %v5316
    %5318 = vmatmul.f32.gmra.mxu0 %v5161
    %v5319 = vpop.f32.mrf.mxu0
    %v5320 = vadd.f32 0.0, %v5319
    %5321 = vmatmul.f32.gmra.mxu0 %v5162
    %v5322 = vpop.f32.mrf.mxu0
    %v5323 = vadd.f32 0.0, %v5322
    %5324 = vmatmul.f32.gmra.mxu0 %v5163
    %v5325 = vpop.f32.mrf.mxu0
    %v5326 = vadd.f32 0.0, %v5325
    %5327 = vmatmul.f32.gmra.mxu0 %v5164
    %v5328 = vpop.f32.mrf.mxu0
    %v5329 = vadd.f32 0.0, %v5328
    %5330 = vmatmul.f32.gmra.mxu0 %v5165
    %v5331 = vpop.f32.mrf.mxu0
    %v5332 = vadd.f32 0.0, %v5331
    %5333 = vmatmul.f32.gmra.mxu0 %v5166
    %v5334 = vpop.f32.mrf.mxu0
    %v5335 = vadd.f32 0.0, %v5334
    %5336 = vmatmul.f32.gmra.mxu0 %v5167
    %v5337 = vpop.f32.mrf.mxu0
    %v5338 = vadd.f32 0.0, %v5337
    %5339 = vdwg.mxu0
    %v5340 = vadd.f32 %v5076, %v5203
    %v5341 = vadd.f32 %v5077, %v5206
    %v5342 = vadd.f32 %v5078, %v5209
    %v5343 = vadd.f32 %v5079, %v5212
    %v5344 = vadd.f32 %v5080, %v5215
    %v5345 = vadd.f32 %v5081, %v5218
    %v5346 = vadd.f32 %v5082, %v5221
    %v5347 = vadd.f32 %v5083, %v5224
    %v5348 = vadd.f32 %v5084, %v5227
    %v5349 = vadd.f32 %v5085, %v5230
    %v5350 = vadd.f32 %v5086, %v5233
    %v5351 = vadd.f32 %v5087, %v5236
    %v5352 = vadd.f32 %v5088, %v5239
    %v5353 = vadd.f32 %v5089, %v5242
    %v5354 = vadd.f32 %v5090, %v5245
    %v5355 = vadd.f32 %v5091, %v5248
    %v5356 = vadd.f32 %v5092, %v5251
    %v5357 = vadd.f32 %v5093, %v5254
    %v5358 = vadd.f32 %v5094, %v5257
    %v5359 = vadd.f32 %v5095, %v5260
    %v5360 = vadd.f32 %v5096, %v5263
    %v5361 = vadd.f32 %v5097, %v5266
    %v5362 = vadd.f32 %v5098, %v5269
    %v5363 = vadd.f32 %v5099, %v5272
    %v5364 = vadd.f32 %v5100, %v5275
    %v5365 = vadd.f32 %v5101, %v5278
    %v5366 = vadd.f32 %v5102, %v5281
    %v5367 = vadd.f32 %v5103, %v5284
    %v5368 = vadd.f32 %v5104, %v5287
    %v5369 = vadd.f32 %v5105, %v5290
    %v5370 = vadd.f32 %v5106, %v5293
    %v5371 = vadd.f32 %v5107, %v5296
    %v5372 = vadd.f32 %v5108, %v5299
    %v5373 = vadd.f32 %v5109, %v5302
    %v5374 = vadd.f32 %v5110, %v5305
    %v5375 = vadd.f32 %v5111, %v5308
    %v5376 = vadd.f32 %v5112, %v5311
    %v5377 = vadd.f32 %v5113, %v5314
    %v5378 = vadd.f32 %v5114, %v5317
    %v5379 = vadd.f32 %v5115, %v5320
    %v5380 = vadd.f32 %v5116, %v5323
    %v5381 = vadd.f32 %v5117, %v5326
    %v5382 = vadd.f32 %v5118, %v5329
    %v5383 = vadd.f32 %v5119, %v5332
    %v5384 = vadd.f32 %v5120, %v5335
    %v5385 = vadd.f32 %v5121, %v5338
    %v5386 = vld [vmem:[#allocation2 + $0x10] sm:$0xff]
    %v5387 = vld [vmem:[#allocation2 + $0x18] sm:$0xff]
    %v5388 = vld [vmem:[#allocation2 + $0x20] sm:$0xff]
    %v5389 = vld [vmem:[#allocation2 + $0x28] sm:$0xff]
    %v5390 = vld [vmem:[#allocation2 + $0x30] sm:$0xff]
    %v5391 = vld [vmem:[#allocation2 + $0x38] sm:$0xff]
    %v5392 = vld [vmem:[#allocation2 + $0x40] sm:$0xff]
    %v5393 = vld [vmem:[#allocation2 + $0x48] sm:$0xff]
    %v5394 = vld [vmem:[#allocation2 + $0x50] sm:$0xff]
    %v5395 = vld [vmem:[#allocation2 + $0x58] sm:$0xff]
    %v5396 = vld [vmem:[#allocation2 + $0x60] sm:$0xff]
    %v5397 = vld [vmem:[#allocation2 + $0x68] sm:$0xff]
    %v5398 = vld [vmem:[#allocation2 + $0x70] sm:$0xff]
    %v5399 = vld [vmem:[#allocation2 + $0x78] sm:$0xff]
    %v5400 = vld [vmem:[#allocation2 + $0x80] sm:$0xff]
    %v5401 = vld [vmem:[#allocation2 + $0x88] sm:$0xff]
    %v5402 = vld [vmem:[#allocation2 + $0x90] sm:$0xff]
    %v5403 = vld [vmem:[#allocation2 + $0x98] sm:$0xff]
    %v5404 = vld [vmem:[#allocation2 + $0xa0] sm:$0xff]
    %v5405 = vld [vmem:[#allocation2 + $0xa8] sm:$0xff]
    %v5406 = vld [vmem:[#allocation2 + $0xb0] sm:$0xff]
    %v5407 = vld [vmem:[#allocation2 + $0xb8] sm:$0xff]
    %v5408 = vld [vmem:[#allocation2 + $0xc0] sm:$0xff]
    %v5409 = vld [vmem:[#allocation2 + $0xc8] sm:$0xff]
    %v5410 = vld [vmem:[#allocation2 + $0xd0] sm:$0xff]
    %v5411 = vld [vmem:[#allocation2 + $0xd8] sm:$0xff]
    %v5412 = vld [vmem:[#allocation2 + $0xe0] sm:$0xff]
    %v5413 = vld [vmem:[#allocation2 + $0xe8] sm:$0xff]
    %v5414 = vld [vmem:[#allocation2 + $0xf0] sm:$0xff]
    %v5415 = vld [vmem:[#allocation2 + $0xf8] sm:$0xff]
    %v5416 = vld [vmem:[#allocation2 + $0x100] sm:$0xff]
    %v5417 = vld [vmem:[#allocation2 + $0x108] sm:$0xff]
    %v5418 = vld [vmem:[#allocation2 + $0x110] sm:$0xff]
    %v5419 = vld [vmem:[#allocation2 + $0x118] sm:$0xff]
    %v5420 = vld [vmem:[#allocation2 + $0x120] sm:$0xff]
    %v5421 = vld [vmem:[#allocation2 + $0x128] sm:$0xff]
    %v5422 = vld [vmem:[#allocation2 + $0x130] sm:$0xff]
    %v5423 = vld [vmem:[#allocation2 + $0x138] sm:$0xff]
    %v5424 = vld [vmem:[#allocation2 + $0x140] sm:$0xff]
    %v5425 = vld [vmem:[#allocation2 + $0x148] sm:$0xff]
    %v5426 = vld [vmem:[#allocation2 + $0x150] sm:$0xff]
    %v5427 = vld [vmem:[#allocation2 + $0x158] sm:$0xff]
    %v5428 = vld [vmem:[#allocation2 + $0x160] sm:$0xff]
    %v5429 = vld [vmem:[#allocation2 + $0x168] sm:$0xff]
    %v5430 = vld [vmem:[#allocation2 + $0x170] sm:$0xff]
    %v5431 = vld [vmem:[#allocation2 + $0x178] sm:$0x3]
    %s5432 = scalar_lea.vmem [#allocation10], 640
    %v5433 = vld [vmem:[%s5432] sm:$0xff]
    %v5434 = vld [vmem:[%s5432 + $0x8] sm:$0xff]
    %v5435 = vld [vmem:[%s5432 + $0x10] sm:$0xff]
    %v5436 = vld [vmem:[%s5432 + $0x18] sm:$0xff]
    %v5437 = vld [vmem:[%s5432 + $0x20] sm:$0xff]
    %v5438 = vld [vmem:[%s5432 + $0x28] sm:$0xff]
    %v5439 = vld [vmem:[%s5432 + $0x30] sm:$0xff]
    %v5440 = vld [vmem:[%s5432 + $0x38] sm:$0xff]
    %v5441 = vld [vmem:[%s5432 + $0x40] sm:$0xff]
    %v5442 = vld [vmem:[%s5432 + $0x48] sm:$0xff]
    %v5443 = vld [vmem:[%s5432 + $0x50] sm:$0xff]
    %v5444 = vld [vmem:[%s5432 + $0x58] sm:$0xff]
    %v5445 = vld [vmem:[%s5432 + $0x60] sm:$0xff]
    %v5446 = vld [vmem:[%s5432 + $0x68] sm:$0xff]
    %v5447 = vld [vmem:[%s5432 + $0x70] sm:$0xff]
    %v5448 = vld [vmem:[%s5432 + $0x78] sm:$0xff]
    %5449 = vmatpush.msra.mxu0 %v5448
    %5450 = vmatpush.msra.mxu0 %v5447
    %5451 = vmatpush.msra.mxu0 %v5446
    %5452 = vmatpush.msra.mxu0 %v5445
    %5453 = vmatpush.msra.mxu0 %v5444
    %5454 = vmatpush.msra.mxu0 %v5443
    %5455 = vmatpush.msra.mxu0 %v5442
    %5456 = vmatpush.msra.mxu0 %v5441
    %5457 = vmatpush.msra.mxu0 %v5440
    %5458 = vmatpush.msra.mxu0 %v5439
    %5459 = vmatpush.msra.mxu0 %v5438
    %5460 = vmatpush.msra.mxu0 %v5437
    %5461 = vmatpush.msra.mxu0 %v5436
    %5462 = vmatpush.msra.mxu0 %v5435
    %5463 = vmatpush.msra.mxu0 %v5434
    %5464 = vmatpush.msra.mxu0 %v5433
    %5465 = vmatmul.f32.gmra.mxu0 %v5386
    %v5466 = vpop.f32.mrf.mxu0
    %v5467 = vadd.f32 0.0, %v5466
    %5468 = vmatmul.f32.gmra.mxu0 %v5387
    %v5469 = vpop.f32.mrf.mxu0
    %v5470 = vadd.f32 0.0, %v5469
    %5471 = vmatmul.f32.gmra.mxu0 %v5388
    %v5472 = vpop.f32.mrf.mxu0
    %v5473 = vadd.f32 0.0, %v5472
    %5474 = vmatmul.f32.gmra.mxu0 %v5389
    %v5475 = vpop.f32.mrf.mxu0
    %v5476 = vadd.f32 0.0, %v5475
    %5477 = vmatmul.f32.gmra.mxu0 %v5390
    %v5478 = vpop.f32.mrf.mxu0
    %v5479 = vadd.f32 0.0, %v5478
    %5480 = vmatmul.f32.gmra.mxu0 %v5391
    %v5481 = vpop.f32.mrf.mxu0
    %v5482 = vadd.f32 0.0, %v5481
    %5483 = vmatmul.f32.gmra.mxu0 %v5392
    %v5484 = vpop.f32.mrf.mxu0
    %v5485 = vadd.f32 0.0, %v5484
    %5486 = vmatmul.f32.gmra.mxu0 %v5393
    %v5487 = vpop.f32.mrf.mxu0
    %v5488 = vadd.f32 0.0, %v5487
    %5489 = vmatmul.f32.gmra.mxu0 %v5394
    %v5490 = vpop.f32.mrf.mxu0
    %v5491 = vadd.f32 0.0, %v5490
    %5492 = vmatmul.f32.gmra.mxu0 %v5395
    %v5493 = vpop.f32.mrf.mxu0
    %v5494 = vadd.f32 0.0, %v5493
    %5495 = vmatmul.f32.gmra.mxu0 %v5396
    %v5496 = vpop.f32.mrf.mxu0
    %v5497 = vadd.f32 0.0, %v5496
    %5498 = vmatmul.f32.gmra.mxu0 %v5397
    %v5499 = vpop.f32.mrf.mxu0
    %v5500 = vadd.f32 0.0, %v5499
    %5501 = vmatmul.f32.gmra.mxu0 %v5398
    %v5502 = vpop.f32.mrf.mxu0
    %v5503 = vadd.f32 0.0, %v5502
    %5504 = vmatmul.f32.gmra.mxu0 %v5399
    %v5505 = vpop.f32.mrf.mxu0
    %v5506 = vadd.f32 0.0, %v5505
    %5507 = vmatmul.f32.gmra.mxu0 %v5400
    %v5508 = vpop.f32.mrf.mxu0
    %v5509 = vadd.f32 0.0, %v5508
    %5510 = vmatmul.f32.gmra.mxu0 %v5401
    %v5511 = vpop.f32.mrf.mxu0
    %v5512 = vadd.f32 0.0, %v5511
    %5513 = vmatmul.f32.gmra.mxu0 %v5402
    %v5514 = vpop.f32.mrf.mxu0
    %v5515 = vadd.f32 0.0, %v5514
    %5516 = vmatmul.f32.gmra.mxu0 %v5403
    %v5517 = vpop.f32.mrf.mxu0
    %v5518 = vadd.f32 0.0, %v5517
    %5519 = vmatmul.f32.gmra.mxu0 %v5404
    %v5520 = vpop.f32.mrf.mxu0
    %v5521 = vadd.f32 0.0, %v5520
    %5522 = vmatmul.f32.gmra.mxu0 %v5405
    %v5523 = vpop.f32.mrf.mxu0
    %v5524 = vadd.f32 0.0, %v5523
    %5525 = vmatmul.f32.gmra.mxu0 %v5406
    %v5526 = vpop.f32.mrf.mxu0
    %v5527 = vadd.f32 0.0, %v5526
    %5528 = vmatmul.f32.gmra.mxu0 %v5407
    %v5529 = vpop.f32.mrf.mxu0
    %v5530 = vadd.f32 0.0, %v5529
    %5531 = vmatmul.f32.gmra.mxu0 %v5408
    %v5532 = vpop.f32.mrf.mxu0
    %v5533 = vadd.f32 0.0, %v5532
    %5534 = vmatmul.f32.gmra.mxu0 %v5409
    %v5535 = vpop.f32.mrf.mxu0
    %v5536 = vadd.f32 0.0, %v5535
    %5537 = vmatmul.f32.gmra.mxu0 %v5410
    %v5538 = vpop.f32.mrf.mxu0
    %v5539 = vadd.f32 0.0, %v5538
    %5540 = vmatmul.f32.gmra.mxu0 %v5411
    %v5541 = vpop.f32.mrf.mxu0
    %v5542 = vadd.f32 0.0, %v5541
    %5543 = vmatmul.f32.gmra.mxu0 %v5412
    %v5544 = vpop.f32.mrf.mxu0
    %v5545 = vadd.f32 0.0, %v5544
    %5546 = vmatmul.f32.gmra.mxu0 %v5413
    %v5547 = vpop.f32.mrf.mxu0
    %v5548 = vadd.f32 0.0, %v5547
    %5549 = vmatmul.f32.gmra.mxu0 %v5414
    %v5550 = vpop.f32.mrf.mxu0
    %v5551 = vadd.f32 0.0, %v5550
    %5552 = vmatmul.f32.gmra.mxu0 %v5415
    %v5553 = vpop.f32.mrf.mxu0
    %v5554 = vadd.f32 0.0, %v5553
    %5555 = vmatmul.f32.gmra.mxu0 %v5416
    %v5556 = vpop.f32.mrf.mxu0
    %v5557 = vadd.f32 0.0, %v5556
    %5558 = vmatmul.f32.gmra.mxu0 %v5417
    %v5559 = vpop.f32.mrf.mxu0
    %v5560 = vadd.f32 0.0, %v5559
    %5561 = vmatmul.f32.gmra.mxu0 %v5418
    %v5562 = vpop.f32.mrf.mxu0
    %v5563 = vadd.f32 0.0, %v5562
    %5564 = vmatmul.f32.gmra.mxu0 %v5419
    %v5565 = vpop.f32.mrf.mxu0
    %v5566 = vadd.f32 0.0, %v5565
    %5567 = vmatmul.f32.gmra.mxu0 %v5420
    %v5568 = vpop.f32.mrf.mxu0
    %v5569 = vadd.f32 0.0, %v5568
    %5570 = vmatmul.f32.gmra.mxu0 %v5421
    %v5571 = vpop.f32.mrf.mxu0
    %v5572 = vadd.f32 0.0, %v5571
    %5573 = vmatmul.f32.gmra.mxu0 %v5422
    %v5574 = vpop.f32.mrf.mxu0
    %v5575 = vadd.f32 0.0, %v5574
    %5576 = vmatmul.f32.gmra.mxu0 %v5423
    %v5577 = vpop.f32.mrf.mxu0
    %v5578 = vadd.f32 0.0, %v5577
    %5579 = vmatmul.f32.gmra.mxu0 %v5424
    %v5580 = vpop.f32.mrf.mxu0
    %v5581 = vadd.f32 0.0, %v5580
    %5582 = vmatmul.f32.gmra.mxu0 %v5425
    %v5583 = vpop.f32.mrf.mxu0
    %v5584 = vadd.f32 0.0, %v5583
    %5585 = vmatmul.f32.gmra.mxu0 %v5426
    %v5586 = vpop.f32.mrf.mxu0
    %v5587 = vadd.f32 0.0, %v5586
    %5588 = vmatmul.f32.gmra.mxu0 %v5427
    %v5589 = vpop.f32.mrf.mxu0
    %v5590 = vadd.f32 0.0, %v5589
    %5591 = vmatmul.f32.gmra.mxu0 %v5428
    %v5592 = vpop.f32.mrf.mxu0
    %v5593 = vadd.f32 0.0, %v5592
    %5594 = vmatmul.f32.gmra.mxu0 %v5429
    %v5595 = vpop.f32.mrf.mxu0
    %v5596 = vadd.f32 0.0, %v5595
    %5597 = vmatmul.f32.gmra.mxu0 %v5430
    %v5598 = vpop.f32.mrf.mxu0
    %v5599 = vadd.f32 0.0, %v5598
    %5600 = vmatmul.f32.gmra.mxu0 %v5431
    %v5601 = vpop.f32.mrf.mxu0
    %v5602 = vadd.f32 0.0, %v5601
    %5603 = vdwg.mxu0
    %v5604 = vadd.f32 %v5340, %v5467
    %v5605 = vadd.f32 %v5341, %v5470
    %v5606 = vadd.f32 %v5342, %v5473
    %v5607 = vadd.f32 %v5343, %v5476
    %v5608 = vadd.f32 %v5344, %v5479
    %v5609 = vadd.f32 %v5345, %v5482
    %v5610 = vadd.f32 %v5346, %v5485
    %v5611 = vadd.f32 %v5347, %v5488
    %v5612 = vadd.f32 %v5348, %v5491
    %v5613 = vadd.f32 %v5349, %v5494
    %v5614 = vadd.f32 %v5350, %v5497
    %v5615 = vadd.f32 %v5351, %v5500
    %v5616 = vadd.f32 %v5352, %v5503
    %v5617 = vadd.f32 %v5353, %v5506
    %v5618 = vadd.f32 %v5354, %v5509
    %v5619 = vadd.f32 %v5355, %v5512
    %v5620 = vadd.f32 %v5356, %v5515
    %v5621 = vadd.f32 %v5357, %v5518
    %v5622 = vadd.f32 %v5358, %v5521
    %v5623 = vadd.f32 %v5359, %v5524
    %v5624 = vadd.f32 %v5360, %v5527
    %v5625 = vadd.f32 %v5361, %v5530
    %v5626 = vadd.f32 %v5362, %v5533
    %v5627 = vadd.f32 %v5363, %v5536
    %v5628 = vadd.f32 %v5364, %v5539
    %v5629 = vadd.f32 %v5365, %v5542
    %v5630 = vadd.f32 %v5366, %v5545
    %v5631 = vadd.f32 %v5367, %v5548
    %v5632 = vadd.f32 %v5368, %v5551
    %v5633 = vadd.f32 %v5369, %v5554
    %v5634 = vadd.f32 %v5370, %v5557
    %v5635 = vadd.f32 %v5371, %v5560
    %v5636 = vadd.f32 %v5372, %v5563
    %v5637 = vadd.f32 %v5373, %v5566
    %v5638 = vadd.f32 %v5374, %v5569
    %v5639 = vadd.f32 %v5375, %v5572
    %v5640 = vadd.f32 %v5376, %v5575
    %v5641 = vadd.f32 %v5377, %v5578
    %v5642 = vadd.f32 %v5378, %v5581
    %v5643 = vadd.f32 %v5379, %v5584
    %v5644 = vadd.f32 %v5380, %v5587
    %v5645 = vadd.f32 %v5381, %v5590
    %v5646 = vadd.f32 %v5382, %v5593
    %v5647 = vadd.f32 %v5383, %v5596
    %v5648 = vadd.f32 %v5384, %v5599
    %v5649 = vadd.f32 %v5385, %v5602
    %v5650 = vld [vmem:[#allocation2 + $0x1c] sm:$0xff]
    %v5651 = vld [vmem:[#allocation2 + $0x24] sm:$0xff]
    %v5652 = vld [vmem:[#allocation2 + $0x2c] sm:$0xff]
    %v5653 = vld [vmem:[#allocation2 + $0x34] sm:$0xff]
    %v5654 = vld [vmem:[#allocation2 + $0x3c] sm:$0xff]
    %v5655 = vld [vmem:[#allocation2 + $0x44] sm:$0xff]
    %v5656 = vld [vmem:[#allocation2 + $0x4c] sm:$0xff]
    %v5657 = vld [vmem:[#allocation2 + $0x54] sm:$0xff]
    %v5658 = vld [vmem:[#allocation2 + $0x5c] sm:$0xff]
    %v5659 = vld [vmem:[#allocation2 + $0x64] sm:$0xff]
    %v5660 = vld [vmem:[#allocation2 + $0x6c] sm:$0xff]
    %v5661 = vld [vmem:[#allocation2 + $0x74] sm:$0xff]
    %v5662 = vld [vmem:[#allocation2 + $0x7c] sm:$0xff]
    %v5663 = vld [vmem:[#allocation2 + $0x84] sm:$0xff]
    %v5664 = vld [vmem:[#allocation2 + $0x8c] sm:$0xff]
    %v5665 = vld [vmem:[#allocation2 + $0x94] sm:$0xff]
    %v5666 = vld [vmem:[#allocation2 + $0x9c] sm:$0xff]
    %v5667 = vld [vmem:[#allocation2 + $0xa4] sm:$0xff]
    %v5668 = vld [vmem:[#allocation2 + $0xac] sm:$0xff]
    %v5669 = vld [vmem:[#allocation2 + $0xb4] sm:$0xff]
    %v5670 = vld [vmem:[#allocation2 + $0xbc] sm:$0xff]
    %v5671 = vld [vmem:[#allocation2 + $0xc4] sm:$0xff]
    %v5672 = vld [vmem:[#allocation2 + $0xcc] sm:$0xff]
    %v5673 = vld [vmem:[#allocation2 + $0xd4] sm:$0xff]
    %v5674 = vld [vmem:[#allocation2 + $0xdc] sm:$0xff]
    %v5675 = vld [vmem:[#allocation2 + $0xe4] sm:$0xff]
    %v5676 = vld [vmem:[#allocation2 + $0xec] sm:$0xff]
    %v5677 = vld [vmem:[#allocation2 + $0xf4] sm:$0xff]
    %v5678 = vld [vmem:[#allocation2 + $0xfc] sm:$0xff]
    %v5679 = vld [vmem:[#allocation2 + $0x104] sm:$0xff]
    %v5680 = vld [vmem:[#allocation2 + $0x10c] sm:$0xff]
    %v5681 = vld [vmem:[#allocation2 + $0x114] sm:$0xff]
    %v5682 = vld [vmem:[#allocation2 + $0x11c] sm:$0xff]
    %v5683 = vld [vmem:[#allocation2 + $0x124] sm:$0xff]
    %v5684 = vld [vmem:[#allocation2 + $0x12c] sm:$0xff]
    %v5685 = vld [vmem:[#allocation2 + $0x134] sm:$0xff]
    %v5686 = vld [vmem:[#allocation2 + $0x13c] sm:$0xff]
    %v5687 = vld [vmem:[#allocation2 + $0x144] sm:$0xff]
    %v5688 = vld [vmem:[#allocation2 + $0x14c] sm:$0xff]
    %v5689 = vld [vmem:[#allocation2 + $0x154] sm:$0xff]
    %v5690 = vld [vmem:[#allocation2 + $0x15c] sm:$0xff]
    %v5691 = vld [vmem:[#allocation2 + $0x164] sm:$0xff]
    %v5692 = vld [vmem:[#allocation2 + $0x16c] sm:$0xff]
    %v5693 = vld [vmem:[#allocation2 + $0x174] sm:$0xff]
    %v5694 = vld [vmem:[#allocation2 + $0x17c] sm:$0xff]
    %v5695 = vld [vmem:[#allocation2 + $0x184] sm:$0x3]
    %s5696 = scalar_lea.vmem [#allocation10], 768
    %v5697 = vld [vmem:[%s5696] sm:$0xff]
    %v5698 = vld [vmem:[%s5696 + $0x8] sm:$0xff]
    %v5699 = vld [vmem:[%s5696 + $0x10] sm:$0xff]
    %v5700 = vld [vmem:[%s5696 + $0x18] sm:$0xff]
    %v5701 = vld [vmem:[%s5696 + $0x20] sm:$0xff]
    %v5702 = vld [vmem:[%s5696 + $0x28] sm:$0xff]
    %v5703 = vld [vmem:[%s5696 + $0x30] sm:$0xff]
    %v5704 = vld [vmem:[%s5696 + $0x38] sm:$0xff]
    %v5705 = vld [vmem:[%s5696 + $0x40] sm:$0xff]
    %v5706 = vld [vmem:[%s5696 + $0x48] sm:$0xff]
    %v5707 = vld [vmem:[%s5696 + $0x50] sm:$0xff]
    %v5708 = vld [vmem:[%s5696 + $0x58] sm:$0xff]
    %v5709 = vld [vmem:[%s5696 + $0x60] sm:$0xff]
    %v5710 = vld [vmem:[%s5696 + $0x68] sm:$0xff]
    %v5711 = vld [vmem:[%s5696 + $0x70] sm:$0xff]
    %v5712 = vld [vmem:[%s5696 + $0x78] sm:$0xff]
    %5713 = vmatpush.msra.mxu0 %v5712
    %5714 = vmatpush.msra.mxu0 %v5711
    %5715 = vmatpush.msra.mxu0 %v5710
    %5716 = vmatpush.msra.mxu0 %v5709
    %5717 = vmatpush.msra.mxu0 %v5708
    %5718 = vmatpush.msra.mxu0 %v5707
    %5719 = vmatpush.msra.mxu0 %v5706
    %5720 = vmatpush.msra.mxu0 %v5705
    %5721 = vmatpush.msra.mxu0 %v5704
    %5722 = vmatpush.msra.mxu0 %v5703
    %5723 = vmatpush.msra.mxu0 %v5702
    %5724 = vmatpush.msra.mxu0 %v5701
    %5725 = vmatpush.msra.mxu0 %v5700
    %5726 = vmatpush.msra.mxu0 %v5699
    %5727 = vmatpush.msra.mxu0 %v5698
    %5728 = vmatpush.msra.mxu0 %v5697
    %5729 = vmatmul.f32.gmra.mxu0 %v5650
    %v5730 = vpop.f32.mrf.mxu0
    %v5731 = vadd.f32 0.0, %v5730
    %5732 = vmatmul.f32.gmra.mxu0 %v5651
    %v5733 = vpop.f32.mrf.mxu0
    %v5734 = vadd.f32 0.0, %v5733
    %5735 = vmatmul.f32.gmra.mxu0 %v5652
    %v5736 = vpop.f32.mrf.mxu0
    %v5737 = vadd.f32 0.0, %v5736
    %5738 = vmatmul.f32.gmra.mxu0 %v5653
    %v5739 = vpop.f32.mrf.mxu0
    %v5740 = vadd.f32 0.0, %v5739
    %5741 = vmatmul.f32.gmra.mxu0 %v5654
    %v5742 = vpop.f32.mrf.mxu0
    %v5743 = vadd.f32 0.0, %v5742
    %5744 = vmatmul.f32.gmra.mxu0 %v5655
    %v5745 = vpop.f32.mrf.mxu0
    %v5746 = vadd.f32 0.0, %v5745
    %5747 = vmatmul.f32.gmra.mxu0 %v5656
    %v5748 = vpop.f32.mrf.mxu0
    %v5749 = vadd.f32 0.0, %v5748
    %5750 = vmatmul.f32.gmra.mxu0 %v5657
    %v5751 = vpop.f32.mrf.mxu0
    %v5752 = vadd.f32 0.0, %v5751
    %5753 = vmatmul.f32.gmra.mxu0 %v5658
    %v5754 = vpop.f32.mrf.mxu0
    %v5755 = vadd.f32 0.0, %v5754
    %5756 = vmatmul.f32.gmra.mxu0 %v5659
    %v5757 = vpop.f32.mrf.mxu0
    %v5758 = vadd.f32 0.0, %v5757
    %5759 = vmatmul.f32.gmra.mxu0 %v5660
    %v5760 = vpop.f32.mrf.mxu0
    %v5761 = vadd.f32 0.0, %v5760
    %5762 = vmatmul.f32.gmra.mxu0 %v5661
    %v5763 = vpop.f32.mrf.mxu0
    %v5764 = vadd.f32 0.0, %v5763
    %5765 = vmatmul.f32.gmra.mxu0 %v5662
    %v5766 = vpop.f32.mrf.mxu0
    %v5767 = vadd.f32 0.0, %v5766
    %5768 = vmatmul.f32.gmra.mxu0 %v5663
    %v5769 = vpop.f32.mrf.mxu0
    %v5770 = vadd.f32 0.0, %v5769
    %5771 = vmatmul.f32.gmra.mxu0 %v5664
    %v5772 = vpop.f32.mrf.mxu0
    %v5773 = vadd.f32 0.0, %v5772
    %5774 = vmatmul.f32.gmra.mxu0 %v5665
    %v5775 = vpop.f32.mrf.mxu0
    %v5776 = vadd.f32 0.0, %v5775
    %5777 = vmatmul.f32.gmra.mxu0 %v5666
    %v5778 = vpop.f32.mrf.mxu0
    %v5779 = vadd.f32 0.0, %v5778
    %5780 = vmatmul.f32.gmra.mxu0 %v5667
    %v5781 = vpop.f32.mrf.mxu0
    %v5782 = vadd.f32 0.0, %v5781
    %5783 = vmatmul.f32.gmra.mxu0 %v5668
    %v5784 = vpop.f32.mrf.mxu0
    %v5785 = vadd.f32 0.0, %v5784
    %5786 = vmatmul.f32.gmra.mxu0 %v5669
    %v5787 = vpop.f32.mrf.mxu0
    %v5788 = vadd.f32 0.0, %v5787
    %5789 = vmatmul.f32.gmra.mxu0 %v5670
    %v5790 = vpop.f32.mrf.mxu0
    %v5791 = vadd.f32 0.0, %v5790
    %5792 = vmatmul.f32.gmra.mxu0 %v5671
    %v5793 = vpop.f32.mrf.mxu0
    %v5794 = vadd.f32 0.0, %v5793
    %5795 = vmatmul.f32.gmra.mxu0 %v5672
    %v5796 = vpop.f32.mrf.mxu0
    %v5797 = vadd.f32 0.0, %v5796
    %5798 = vmatmul.f32.gmra.mxu0 %v5673
    %v5799 = vpop.f32.mrf.mxu0
    %v5800 = vadd.f32 0.0, %v5799
    %5801 = vmatmul.f32.gmra.mxu0 %v5674
    %v5802 = vpop.f32.mrf.mxu0
    %v5803 = vadd.f32 0.0, %v5802
    %5804 = vmatmul.f32.gmra.mxu0 %v5675
    %v5805 = vpop.f32.mrf.mxu0
    %v5806 = vadd.f32 0.0, %v5805
    %5807 = vmatmul.f32.gmra.mxu0 %v5676
    %v5808 = vpop.f32.mrf.mxu0
    %v5809 = vadd.f32 0.0, %v5808
    %5810 = vmatmul.f32.gmra.mxu0 %v5677
    %v5811 = vpop.f32.mrf.mxu0
    %v5812 = vadd.f32 0.0, %v5811
    %5813 = vmatmul.f32.gmra.mxu0 %v5678
    %v5814 = vpop.f32.mrf.mxu0
    %v5815 = vadd.f32 0.0, %v5814
    %5816 = vmatmul.f32.gmra.mxu0 %v5679
    %v5817 = vpop.f32.mrf.mxu0
    %v5818 = vadd.f32 0.0, %v5817
    %5819 = vmatmul.f32.gmra.mxu0 %v5680
    %v5820 = vpop.f32.mrf.mxu0
    %v5821 = vadd.f32 0.0, %v5820
    %5822 = vmatmul.f32.gmra.mxu0 %v5681
    %v5823 = vpop.f32.mrf.mxu0
    %v5824 = vadd.f32 0.0, %v5823
    %5825 = vmatmul.f32.gmra.mxu0 %v5682
    %v5826 = vpop.f32.mrf.mxu0
    %v5827 = vadd.f32 0.0, %v5826
    %5828 = vmatmul.f32.gmra.mxu0 %v5683
    %v5829 = vpop.f32.mrf.mxu0
    %v5830 = vadd.f32 0.0, %v5829
    %5831 = vmatmul.f32.gmra.mxu0 %v5684
    %v5832 = vpop.f32.mrf.mxu0
    %v5833 = vadd.f32 0.0, %v5832
    %5834 = vmatmul.f32.gmra.mxu0 %v5685
    %v5835 = vpop.f32.mrf.mxu0
    %v5836 = vadd.f32 0.0, %v5835
    %5837 = vmatmul.f32.gmra.mxu0 %v5686
    %v5838 = vpop.f32.mrf.mxu0
    %v5839 = vadd.f32 0.0, %v5838
    %5840 = vmatmul.f32.gmra.mxu0 %v5687
    %v5841 = vpop.f32.mrf.mxu0
    %v5842 = vadd.f32 0.0, %v5841
    %5843 = vmatmul.f32.gmra.mxu0 %v5688
    %v5844 = vpop.f32.mrf.mxu0
    %v5845 = vadd.f32 0.0, %v5844
    %5846 = vmatmul.f32.gmra.mxu0 %v5689
    %v5847 = vpop.f32.mrf.mxu0
    %v5848 = vadd.f32 0.0, %v5847
    %5849 = vmatmul.f32.gmra.mxu0 %v5690
    %v5850 = vpop.f32.mrf.mxu0
    %v5851 = vadd.f32 0.0, %v5850
    %5852 = vmatmul.f32.gmra.mxu0 %v5691
    %v5853 = vpop.f32.mrf.mxu0
    %v5854 = vadd.f32 0.0, %v5853
    %5855 = vmatmul.f32.gmra.mxu0 %v5692
    %v5856 = vpop.f32.mrf.mxu0
    %v5857 = vadd.f32 0.0, %v5856
    %5858 = vmatmul.f32.gmra.mxu0 %v5693
    %v5859 = vpop.f32.mrf.mxu0
    %v5860 = vadd.f32 0.0, %v5859
    %5861 = vmatmul.f32.gmra.mxu0 %v5694
    %v5862 = vpop.f32.mrf.mxu0
    %v5863 = vadd.f32 0.0, %v5862
    %5864 = vmatmul.f32.gmra.mxu0 %v5695
    %v5865 = vpop.f32.mrf.mxu0
    %v5866 = vadd.f32 0.0, %v5865
    %5867 = vdwg.mxu0
    %v5868 = vadd.f32 %v5604, %v5731
    %v5869 = vadd.f32 %v5605, %v5734
    %v5870 = vadd.f32 %v5606, %v5737
    %v5871 = vadd.f32 %v5607, %v5740
    %v5872 = vadd.f32 %v5608, %v5743
    %v5873 = vadd.f32 %v5609, %v5746
    %v5874 = vadd.f32 %v5610, %v5749
    %v5875 = vadd.f32 %v5611, %v5752
    %v5876 = vadd.f32 %v5612, %v5755
    %v5877 = vadd.f32 %v5613, %v5758
    %v5878 = vadd.f32 %v5614, %v5761
    %v5879 = vadd.f32 %v5615, %v5764
    %v5880 = vadd.f32 %v5616, %v5767
    %v5881 = vadd.f32 %v5617, %v5770
    %v5882 = vadd.f32 %v5618, %v5773
    %v5883 = vadd.f32 %v5619, %v5776
    %v5884 = vadd.f32 %v5620, %v5779
    %v5885 = vadd.f32 %v5621, %v5782
    %v5886 = vadd.f32 %v5622, %v5785
    %v5887 = vadd.f32 %v5623, %v5788
    %v5888 = vadd.f32 %v5624, %v5791
    %v5889 = vadd.f32 %v5625, %v5794
    %v5890 = vadd.f32 %v5626, %v5797
    %v5891 = vadd.f32 %v5627, %v5800
    %v5892 = vadd.f32 %v5628, %v5803
    %v5893 = vadd.f32 %v5629, %v5806
    %v5894 = vadd.f32 %v5630, %v5809
    %v5895 = vadd.f32 %v5631, %v5812
    %v5896 = vadd.f32 %v5632, %v5815
    %v5897 = vadd.f32 %v5633, %v5818
    %v5898 = vadd.f32 %v5634, %v5821
    %v5899 = vadd.f32 %v5635, %v5824
    %v5900 = vadd.f32 %v5636, %v5827
    %v5901 = vadd.f32 %v5637, %v5830
    %v5902 = vadd.f32 %v5638, %v5833
    %v5903 = vadd.f32 %v5639, %v5836
    %v5904 = vadd.f32 %v5640, %v5839
    %v5905 = vadd.f32 %v5641, %v5842
    %v5906 = vadd.f32 %v5642, %v5845
    %v5907 = vadd.f32 %v5643, %v5848
    %v5908 = vadd.f32 %v5644, %v5851
    %v5909 = vadd.f32 %v5645, %v5854
    %v5910 = vadd.f32 %v5646, %v5857
    %v5911 = vadd.f32 %v5647, %v5860
    %v5912 = vadd.f32 %v5648, %v5863
    %v5913 = vadd.f32 %v5649, %v5866
    %v5914 = vld [vmem:[#allocation2 + $0x1d] sm:$0xff]
    %v5915 = vld [vmem:[#allocation2 + $0x25] sm:$0xff]
    %v5916 = vld [vmem:[#allocation2 + $0x2d] sm:$0xff]
    %v5917 = vld [vmem:[#allocation2 + $0x35] sm:$0xff]
    %v5918 = vld [vmem:[#allocation2 + $0x3d] sm:$0xff]
    %v5919 = vld [vmem:[#allocation2 + $0x45] sm:$0xff]
    %v5920 = vld [vmem:[#allocation2 + $0x4d] sm:$0xff]
    %v5921 = vld [vmem:[#allocation2 + $0x55] sm:$0xff]
    %v5922 = vld [vmem:[#allocation2 + $0x5d] sm:$0xff]
    %v5923 = vld [vmem:[#allocation2 + $0x65] sm:$0xff]
    %v5924 = vld [vmem:[#allocation2 + $0x6d] sm:$0xff]
    %v5925 = vld [vmem:[#allocation2 + $0x75] sm:$0xff]
    %v5926 = vld [vmem:[#allocation2 + $0x7d] sm:$0xff]
    %v5927 = vld [vmem:[#allocation2 + $0x85] sm:$0xff]
    %v5928 = vld [vmem:[#allocation2 + $0x8d] sm:$0xff]
    %v5929 = vld [vmem:[#allocation2 + $0x95] sm:$0xff]
    %v5930 = vld [vmem:[#allocation2 + $0x9d] sm:$0xff]
    %v5931 = vld [vmem:[#allocation2 + $0xa5] sm:$0xff]
    %v5932 = vld [vmem:[#allocation2 + $0xad] sm:$0xff]
    %v5933 = vld [vmem:[#allocation2 + $0xb5] sm:$0xff]
    %v5934 = vld [vmem:[#allocation2 + $0xbd] sm:$0xff]
    %v5935 = vld [vmem:[#allocation2 + $0xc5] sm:$0xff]
    %v5936 = vld [vmem:[#allocation2 + $0xcd] sm:$0xff]
    %v5937 = vld [vmem:[#allocation2 + $0xd5] sm:$0xff]
    %v5938 = vld [vmem:[#allocation2 + $0xdd] sm:$0xff]
    %v5939 = vld [vmem:[#allocation2 + $0xe5] sm:$0xff]
    %v5940 = vld [vmem:[#allocation2 + $0xed] sm:$0xff]
    %v5941 = vld [vmem:[#allocation2 + $0xf5] sm:$0xff]
    %v5942 = vld [vmem:[#allocation2 + $0xfd] sm:$0xff]
    %v5943 = vld [vmem:[#allocation2 + $0x105] sm:$0xff]
    %v5944 = vld [vmem:[#allocation2 + $0x10d] sm:$0xff]
    %v5945 = vld [vmem:[#allocation2 + $0x115] sm:$0xff]
    %v5946 = vld [vmem:[#allocation2 + $0x11d] sm:$0xff]
    %v5947 = vld [vmem:[#allocation2 + $0x125] sm:$0xff]
    %v5948 = vld [vmem:[#allocation2 + $0x12d] sm:$0xff]
    %v5949 = vld [vmem:[#allocation2 + $0x135] sm:$0xff]
    %v5950 = vld [vmem:[#allocation2 + $0x13d] sm:$0xff]
    %v5951 = vld [vmem:[#allocation2 + $0x145] sm:$0xff]
    %v5952 = vld [vmem:[#allocation2 + $0x14d] sm:$0xff]
    %v5953 = vld [vmem:[#allocation2 + $0x155] sm:$0xff]
    %v5954 = vld [vmem:[#allocation2 + $0x15d] sm:$0xff]
    %v5955 = vld [vmem:[#allocation2 + $0x165] sm:$0xff]
    %v5956 = vld [vmem:[#allocation2 + $0x16d] sm:$0xff]
    %v5957 = vld [vmem:[#allocation2 + $0x175] sm:$0xff]
    %v5958 = vld [vmem:[#allocation2 + $0x17d] sm:$0xff]
    %v5959 = vld [vmem:[#allocation2 + $0x185] sm:$0x3]
    %s5960 = scalar_lea.vmem [#allocation10], 896
    %v5961 = vld [vmem:[%s5960] sm:$0xff]
    %v5962 = vld [vmem:[%s5960 + $0x8] sm:$0xff]
    %v5963 = vld [vmem:[%s5960 + $0x10] sm:$0xff]
    %v5964 = vld [vmem:[%s5960 + $0x18] sm:$0xff]
    %v5965 = vld [vmem:[%s5960 + $0x20] sm:$0xff]
    %v5966 = vld [vmem:[%s5960 + $0x28] sm:$0xff]
    %v5967 = vld [vmem:[%s5960 + $0x30] sm:$0xff]
    %v5968 = vld [vmem:[%s5960 + $0x38] sm:$0xff]
    %v5969 = vld [vmem:[%s5960 + $0x40] sm:$0xff]
    %v5970 = vld [vmem:[%s5960 + $0x48] sm:$0xff]
    %v5971 = vld [vmem:[%s5960 + $0x50] sm:$0xff]
    %v5972 = vld [vmem:[%s5960 + $0x58] sm:$0xff]
    %v5973 = vld [vmem:[%s5960 + $0x60] sm:$0xff]
    %v5974 = vld [vmem:[%s5960 + $0x68] sm:$0xff]
    %v5975 = vld [vmem:[%s5960 + $0x70] sm:$0xff]
    %v5976 = vld [vmem:[%s5960 + $0x78] sm:$0xff]
    %5977 = vmatpush.msra.mxu0 %v5976
    %5978 = vmatpush.msra.mxu0 %v5975
    %5979 = vmatpush.msra.mxu0 %v5974
    %5980 = vmatpush.msra.mxu0 %v5973
    %5981 = vmatpush.msra.mxu0 %v5972
    %5982 = vmatpush.msra.mxu0 %v5971
    %5983 = vmatpush.msra.mxu0 %v5970
    %5984 = vmatpush.msra.mxu0 %v5969
    %5985 = vmatpush.msra.mxu0 %v5968
    %5986 = vmatpush.msra.mxu0 %v5967
    %5987 = vmatpush.msra.mxu0 %v5966
    %5988 = vmatpush.msra.mxu0 %v5965
    %5989 = vmatpush.msra.mxu0 %v5964
    %5990 = vmatpush.msra.mxu0 %v5963
    %5991 = vmatpush.msra.mxu0 %v5962
    %5992 = vmatpush.msra.mxu0 %v5961
    %5993 = vmatmul.f32.gmra.mxu0 %v5914
    %v5994 = vpop.f32.mrf.mxu0
    %v5995 = vadd.f32 0.0, %v5994
    %5996 = vmatmul.f32.gmra.mxu0 %v5915
    %v5997 = vpop.f32.mrf.mxu0
    %v5998 = vadd.f32 0.0, %v5997
    %5999 = vmatmul.f32.gmra.mxu0 %v5916
    %v6000 = vpop.f32.mrf.mxu0
    %v6001 = vadd.f32 0.0, %v6000
    %6002 = vmatmul.f32.gmra.mxu0 %v5917
    %v6003 = vpop.f32.mrf.mxu0
    %v6004 = vadd.f32 0.0, %v6003
    %6005 = vmatmul.f32.gmra.mxu0 %v5918
    %v6006 = vpop.f32.mrf.mxu0
    %v6007 = vadd.f32 0.0, %v6006
    %6008 = vmatmul.f32.gmra.mxu0 %v5919
    %v6009 = vpop.f32.mrf.mxu0
    %v6010 = vadd.f32 0.0, %v6009
    %6011 = vmatmul.f32.gmra.mxu0 %v5920
    %v6012 = vpop.f32.mrf.mxu0
    %v6013 = vadd.f32 0.0, %v6012
    %6014 = vmatmul.f32.gmra.mxu0 %v5921
    %v6015 = vpop.f32.mrf.mxu0
    %v6016 = vadd.f32 0.0, %v6015
    %6017 = vmatmul.f32.gmra.mxu0 %v5922
    %v6018 = vpop.f32.mrf.mxu0
    %v6019 = vadd.f32 0.0, %v6018
    %6020 = vmatmul.f32.gmra.mxu0 %v5923
    %v6021 = vpop.f32.mrf.mxu0
    %v6022 = vadd.f32 0.0, %v6021
    %6023 = vmatmul.f32.gmra.mxu0 %v5924
    %v6024 = vpop.f32.mrf.mxu0
    %v6025 = vadd.f32 0.0, %v6024
    %6026 = vmatmul.f32.gmra.mxu0 %v5925
    %v6027 = vpop.f32.mrf.mxu0
    %v6028 = vadd.f32 0.0, %v6027
    %6029 = vmatmul.f32.gmra.mxu0 %v5926
    %v6030 = vpop.f32.mrf.mxu0
    %v6031 = vadd.f32 0.0, %v6030
    %6032 = vmatmul.f32.gmra.mxu0 %v5927
    %v6033 = vpop.f32.mrf.mxu0
    %v6034 = vadd.f32 0.0, %v6033
    %6035 = vmatmul.f32.gmra.mxu0 %v5928
    %v6036 = vpop.f32.mrf.mxu0
    %v6037 = vadd.f32 0.0, %v6036
    %6038 = vmatmul.f32.gmra.mxu0 %v5929
    %v6039 = vpop.f32.mrf.mxu0
    %v6040 = vadd.f32 0.0, %v6039
    %6041 = vmatmul.f32.gmra.mxu0 %v5930
    %v6042 = vpop.f32.mrf.mxu0
    %v6043 = vadd.f32 0.0, %v6042
    %6044 = vmatmul.f32.gmra.mxu0 %v5931
    %v6045 = vpop.f32.mrf.mxu0
    %v6046 = vadd.f32 0.0, %v6045
    %6047 = vmatmul.f32.gmra.mxu0 %v5932
    %v6048 = vpop.f32.mrf.mxu0
    %v6049 = vadd.f32 0.0, %v6048
    %6050 = vmatmul.f32.gmra.mxu0 %v5933
    %v6051 = vpop.f32.mrf.mxu0
    %v6052 = vadd.f32 0.0, %v6051
    %6053 = vmatmul.f32.gmra.mxu0 %v5934
    %v6054 = vpop.f32.mrf.mxu0
    %v6055 = vadd.f32 0.0, %v6054
    %6056 = vmatmul.f32.gmra.mxu0 %v5935
    %v6057 = vpop.f32.mrf.mxu0
    %v6058 = vadd.f32 0.0, %v6057
    %6059 = vmatmul.f32.gmra.mxu0 %v5936
    %v6060 = vpop.f32.mrf.mxu0
    %v6061 = vadd.f32 0.0, %v6060
    %6062 = vmatmul.f32.gmra.mxu0 %v5937
    %v6063 = vpop.f32.mrf.mxu0
    %v6064 = vadd.f32 0.0, %v6063
    %6065 = vmatmul.f32.gmra.mxu0 %v5938
    %v6066 = vpop.f32.mrf.mxu0
    %v6067 = vadd.f32 0.0, %v6066
    %6068 = vmatmul.f32.gmra.mxu0 %v5939
    %v6069 = vpop.f32.mrf.mxu0
    %v6070 = vadd.f32 0.0, %v6069
    %6071 = vmatmul.f32.gmra.mxu0 %v5940
    %v6072 = vpop.f32.mrf.mxu0
    %v6073 = vadd.f32 0.0, %v6072
    %6074 = vmatmul.f32.gmra.mxu0 %v5941
    %v6075 = vpop.f32.mrf.mxu0
    %v6076 = vadd.f32 0.0, %v6075
    %6077 = vmatmul.f32.gmra.mxu0 %v5942
    %v6078 = vpop.f32.mrf.mxu0
    %v6079 = vadd.f32 0.0, %v6078
    %6080 = vmatmul.f32.gmra.mxu0 %v5943
    %v6081 = vpop.f32.mrf.mxu0
    %v6082 = vadd.f32 0.0, %v6081
    %6083 = vmatmul.f32.gmra.mxu0 %v5944
    %v6084 = vpop.f32.mrf.mxu0
    %v6085 = vadd.f32 0.0, %v6084
    %6086 = vmatmul.f32.gmra.mxu0 %v5945
    %v6087 = vpop.f32.mrf.mxu0
    %v6088 = vadd.f32 0.0, %v6087
    %6089 = vmatmul.f32.gmra.mxu0 %v5946
    %v6090 = vpop.f32.mrf.mxu0
    %v6091 = vadd.f32 0.0, %v6090
    %6092 = vmatmul.f32.gmra.mxu0 %v5947
    %v6093 = vpop.f32.mrf.mxu0
    %v6094 = vadd.f32 0.0, %v6093
    %6095 = vmatmul.f32.gmra.mxu0 %v5948
    %v6096 = vpop.f32.mrf.mxu0
    %v6097 = vadd.f32 0.0, %v6096
    %6098 = vmatmul.f32.gmra.mxu0 %v5949
    %v6099 = vpop.f32.mrf.mxu0
    %v6100 = vadd.f32 0.0, %v6099
    %6101 = vmatmul.f32.gmra.mxu0 %v5950
    %v6102 = vpop.f32.mrf.mxu0
    %v6103 = vadd.f32 0.0, %v6102
    %6104 = vmatmul.f32.gmra.mxu0 %v5951
    %v6105 = vpop.f32.mrf.mxu0
    %v6106 = vadd.f32 0.0, %v6105
    %6107 = vmatmul.f32.gmra.mxu0 %v5952
    %v6108 = vpop.f32.mrf.mxu0
    %v6109 = vadd.f32 0.0, %v6108
    %6110 = vmatmul.f32.gmra.mxu0 %v5953
    %v6111 = vpop.f32.mrf.mxu0
    %v6112 = vadd.f32 0.0, %v6111
    %6113 = vmatmul.f32.gmra.mxu0 %v5954
    %v6114 = vpop.f32.mrf.mxu0
    %v6115 = vadd.f32 0.0, %v6114
    %6116 = vmatmul.f32.gmra.mxu0 %v5955
    %v6117 = vpop.f32.mrf.mxu0
    %v6118 = vadd.f32 0.0, %v6117
    %6119 = vmatmul.f32.gmra.mxu0 %v5956
    %v6120 = vpop.f32.mrf.mxu0
    %v6121 = vadd.f32 0.0, %v6120
    %6122 = vmatmul.f32.gmra.mxu0 %v5957
    %v6123 = vpop.f32.mrf.mxu0
    %v6124 = vadd.f32 0.0, %v6123
    %6125 = vmatmul.f32.gmra.mxu0 %v5958
    %v6126 = vpop.f32.mrf.mxu0
    %v6127 = vadd.f32 0.0, %v6126
    %6128 = vmatmul.f32.gmra.mxu0 %v5959
    %v6129 = vpop.f32.mrf.mxu0
    %v6130 = vadd.f32 0.0, %v6129
    %6131 = vdwg.mxu0
    %v6132 = vadd.f32 %v5868, %v5995
    %v6133 = vadd.f32 %v5869, %v5998
    %v6134 = vadd.f32 %v5870, %v6001
    %v6135 = vadd.f32 %v5871, %v6004
    %v6136 = vadd.f32 %v5872, %v6007
    %v6137 = vadd.f32 %v5873, %v6010
    %v6138 = vadd.f32 %v5874, %v6013
    %v6139 = vadd.f32 %v5875, %v6016
    %v6140 = vadd.f32 %v5876, %v6019
    %v6141 = vadd.f32 %v5877, %v6022
    %v6142 = vadd.f32 %v5878, %v6025
    %v6143 = vadd.f32 %v5879, %v6028
    %v6144 = vadd.f32 %v5880, %v6031
    %v6145 = vadd.f32 %v5881, %v6034
    %v6146 = vadd.f32 %v5882, %v6037
    %v6147 = vadd.f32 %v5883, %v6040
    %v6148 = vadd.f32 %v5884, %v6043
    %v6149 = vadd.f32 %v5885, %v6046
    %v6150 = vadd.f32 %v5886, %v6049
    %v6151 = vadd.f32 %v5887, %v6052
    %v6152 = vadd.f32 %v5888, %v6055
    %v6153 = vadd.f32 %v5889, %v6058
    %v6154 = vadd.f32 %v5890, %v6061
    %v6155 = vadd.f32 %v5891, %v6064
    %v6156 = vadd.f32 %v5892, %v6067
    %v6157 = vadd.f32 %v5893, %v6070
    %v6158 = vadd.f32 %v5894, %v6073
    %v6159 = vadd.f32 %v5895, %v6076
    %v6160 = vadd.f32 %v5896, %v6079
    %v6161 = vadd.f32 %v5897, %v6082
    %v6162 = vadd.f32 %v5898, %v6085
    %v6163 = vadd.f32 %v5899, %v6088
    %v6164 = vadd.f32 %v5900, %v6091
    %v6165 = vadd.f32 %v5901, %v6094
    %v6166 = vadd.f32 %v5902, %v6097
    %v6167 = vadd.f32 %v5903, %v6100
    %v6168 = vadd.f32 %v5904, %v6103
    %v6169 = vadd.f32 %v5905, %v6106
    %v6170 = vadd.f32 %v5906, %v6109
    %v6171 = vadd.f32 %v5907, %v6112
    %v6172 = vadd.f32 %v5908, %v6115
    %v6173 = vadd.f32 %v5909, %v6118
    %v6174 = vadd.f32 %v5910, %v6121
    %v6175 = vadd.f32 %v5911, %v6124
    %v6176 = vadd.f32 %v5912, %v6127
    %v6177 = vadd.f32 %v5913, %v6130
    %v6178 = vld [vmem:[#allocation2 + $0x1e] sm:$0xff]
    %v6179 = vld [vmem:[#allocation2 + $0x26] sm:$0xff]
    %v6180 = vld [vmem:[#allocation2 + $0x2e] sm:$0xff]
    %v6181 = vld [vmem:[#allocation2 + $0x36] sm:$0xff]
    %v6182 = vld [vmem:[#allocation2 + $0x3e] sm:$0xff]
    %v6183 = vld [vmem:[#allocation2 + $0x46] sm:$0xff]
    %v6184 = vld [vmem:[#allocation2 + $0x4e] sm:$0xff]
    %v6185 = vld [vmem:[#allocation2 + $0x56] sm:$0xff]
    %v6186 = vld [vmem:[#allocation2 + $0x5e] sm:$0xff]
    %v6187 = vld [vmem:[#allocation2 + $0x66] sm:$0xff]
    %v6188 = vld [vmem:[#allocation2 + $0x6e] sm:$0xff]
    %v6189 = vld [vmem:[#allocation2 + $0x76] sm:$0xff]
    %v6190 = vld [vmem:[#allocation2 + $0x7e] sm:$0xff]
    %v6191 = vld [vmem:[#allocation2 + $0x86] sm:$0xff]
    %v6192 = vld [vmem:[#allocation2 + $0x8e] sm:$0xff]
    %v6193 = vld [vmem:[#allocation2 + $0x96] sm:$0xff]
    %v6194 = vld [vmem:[#allocation2 + $0x9e] sm:$0xff]
    %v6195 = vld [vmem:[#allocation2 + $0xa6] sm:$0xff]
    %v6196 = vld [vmem:[#allocation2 + $0xae] sm:$0xff]
    %v6197 = vld [vmem:[#allocation2 + $0xb6] sm:$0xff]
    %v6198 = vld [vmem:[#allocation2 + $0xbe] sm:$0xff]
    %v6199 = vld [vmem:[#allocation2 + $0xc6] sm:$0xff]
    %v6200 = vld [vmem:[#allocation2 + $0xce] sm:$0xff]
    %v6201 = vld [vmem:[#allocation2 + $0xd6] sm:$0xff]
    %v6202 = vld [vmem:[#allocation2 + $0xde] sm:$0xff]
    %v6203 = vld [vmem:[#allocation2 + $0xe6] sm:$0xff]
    %v6204 = vld [vmem:[#allocation2 + $0xee] sm:$0xff]
    %v6205 = vld [vmem:[#allocation2 + $0xf6] sm:$0xff]
    %v6206 = vld [vmem:[#allocation2 + $0xfe] sm:$0xff]
    %v6207 = vld [vmem:[#allocation2 + $0x106] sm:$0xff]
    %v6208 = vld [vmem:[#allocation2 + $0x10e] sm:$0xff]
    %v6209 = vld [vmem:[#allocation2 + $0x116] sm:$0xff]
    %v6210 = vld [vmem:[#allocation2 + $0x11e] sm:$0xff]
    %v6211 = vld [vmem:[#allocation2 + $0x126] sm:$0xff]
    %v6212 = vld [vmem:[#allocation2 + $0x12e] sm:$0xff]
    %v6213 = vld [vmem:[#allocation2 + $0x136] sm:$0xff]
    %v6214 = vld [vmem:[#allocation2 + $0x13e] sm:$0xff]
    %v6215 = vld [vmem:[#allocation2 + $0x146] sm:$0xff]
    %v6216 = vld [vmem:[#allocation2 + $0x14e] sm:$0xff]
    %v6217 = vld [vmem:[#allocation2 + $0x156] sm:$0xff]
    %v6218 = vld [vmem:[#allocation2 + $0x15e] sm:$0xff]
    %v6219 = vld [vmem:[#allocation2 + $0x166] sm:$0xff]
    %v6220 = vld [vmem:[#allocation2 + $0x16e] sm:$0xff]
    %v6221 = vld [vmem:[#allocation2 + $0x176] sm:$0xff]
    %v6222 = vld [vmem:[#allocation2 + $0x17e] sm:$0xff]
    %v6223 = vld [vmem:[#allocation2 + $0x186] sm:$0x3]
    %s6224 = scalar_lea.vmem [#allocation10], 1024
    %v6225 = vld [vmem:[%s6224] sm:$0xff]
    %v6226 = vld [vmem:[%s6224 + $0x8] sm:$0xff]
    %v6227 = vld [vmem:[%s6224 + $0x10] sm:$0xff]
    %v6228 = vld [vmem:[%s6224 + $0x18] sm:$0xff]
    %v6229 = vld [vmem:[%s6224 + $0x20] sm:$0xff]
    %v6230 = vld [vmem:[%s6224 + $0x28] sm:$0xff]
    %v6231 = vld [vmem:[%s6224 + $0x30] sm:$0xff]
    %v6232 = vld [vmem:[%s6224 + $0x38] sm:$0xff]
    %v6233 = vld [vmem:[%s6224 + $0x40] sm:$0xff]
    %v6234 = vld [vmem:[%s6224 + $0x48] sm:$0xff]
    %v6235 = vld [vmem:[%s6224 + $0x50] sm:$0xff]
    %v6236 = vld [vmem:[%s6224 + $0x58] sm:$0xff]
    %v6237 = vld [vmem:[%s6224 + $0x60] sm:$0xff]
    %v6238 = vld [vmem:[%s6224 + $0x68] sm:$0xff]
    %v6239 = vld [vmem:[%s6224 + $0x70] sm:$0xff]
    %v6240 = vld [vmem:[%s6224 + $0x78] sm:$0xff]
    %6241 = vmatpush.msra.mxu0 %v6240
    %6242 = vmatpush.msra.mxu0 %v6239
    %6243 = vmatpush.msra.mxu0 %v6238
    %6244 = vmatpush.msra.mxu0 %v6237
    %6245 = vmatpush.msra.mxu0 %v6236
    %6246 = vmatpush.msra.mxu0 %v6235
    %6247 = vmatpush.msra.mxu0 %v6234
    %6248 = vmatpush.msra.mxu0 %v6233
    %6249 = vmatpush.msra.mxu0 %v6232
    %6250 = vmatpush.msra.mxu0 %v6231
    %6251 = vmatpush.msra.mxu0 %v6230
    %6252 = vmatpush.msra.mxu0 %v6229
    %6253 = vmatpush.msra.mxu0 %v6228
    %6254 = vmatpush.msra.mxu0 %v6227
    %6255 = vmatpush.msra.mxu0 %v6226
    %6256 = vmatpush.msra.mxu0 %v6225
    %6257 = vmatmul.f32.gmra.mxu0 %v6178
    %v6258 = vpop.f32.mrf.mxu0
    %v6259 = vadd.f32 0.0, %v6258
    %6260 = vmatmul.f32.gmra.mxu0 %v6179
    %v6261 = vpop.f32.mrf.mxu0
    %v6262 = vadd.f32 0.0, %v6261
    %6263 = vmatmul.f32.gmra.mxu0 %v6180
    %v6264 = vpop.f32.mrf.mxu0
    %v6265 = vadd.f32 0.0, %v6264
    %6266 = vmatmul.f32.gmra.mxu0 %v6181
    %v6267 = vpop.f32.mrf.mxu0
    %v6268 = vadd.f32 0.0, %v6267
    %6269 = vmatmul.f32.gmra.mxu0 %v6182
    %v6270 = vpop.f32.mrf.mxu0
    %v6271 = vadd.f32 0.0, %v6270
    %6272 = vmatmul.f32.gmra.mxu0 %v6183
    %v6273 = vpop.f32.mrf.mxu0
    %v6274 = vadd.f32 0.0, %v6273
    %6275 = vmatmul.f32.gmra.mxu0 %v6184
    %v6276 = vpop.f32.mrf.mxu0
    %v6277 = vadd.f32 0.0, %v6276
    %6278 = vmatmul.f32.gmra.mxu0 %v6185
    %v6279 = vpop.f32.mrf.mxu0
    %v6280 = vadd.f32 0.0, %v6279
    %6281 = vmatmul.f32.gmra.mxu0 %v6186
    %v6282 = vpop.f32.mrf.mxu0
    %v6283 = vadd.f32 0.0, %v6282
    %6284 = vmatmul.f32.gmra.mxu0 %v6187
    %v6285 = vpop.f32.mrf.mxu0
    %v6286 = vadd.f32 0.0, %v6285
    %6287 = vmatmul.f32.gmra.mxu0 %v6188
    %v6288 = vpop.f32.mrf.mxu0
    %v6289 = vadd.f32 0.0, %v6288
    %6290 = vmatmul.f32.gmra.mxu0 %v6189
    %v6291 = vpop.f32.mrf.mxu0
    %v6292 = vadd.f32 0.0, %v6291
    %6293 = vmatmul.f32.gmra.mxu0 %v6190
    %v6294 = vpop.f32.mrf.mxu0
    %v6295 = vadd.f32 0.0, %v6294
    %6296 = vmatmul.f32.gmra.mxu0 %v6191
    %v6297 = vpop.f32.mrf.mxu0
    %v6298 = vadd.f32 0.0, %v6297
    %6299 = vmatmul.f32.gmra.mxu0 %v6192
    %v6300 = vpop.f32.mrf.mxu0
    %v6301 = vadd.f32 0.0, %v6300
    %6302 = vmatmul.f32.gmra.mxu0 %v6193
    %v6303 = vpop.f32.mrf.mxu0
    %v6304 = vadd.f32 0.0, %v6303
    %6305 = vmatmul.f32.gmra.mxu0 %v6194
    %v6306 = vpop.f32.mrf.mxu0
    %v6307 = vadd.f32 0.0, %v6306
    %6308 = vmatmul.f32.gmra.mxu0 %v6195
    %v6309 = vpop.f32.mrf.mxu0
    %v6310 = vadd.f32 0.0, %v6309
    %6311 = vmatmul.f32.gmra.mxu0 %v6196
    %v6312 = vpop.f32.mrf.mxu0
    %v6313 = vadd.f32 0.0, %v6312
    %6314 = vmatmul.f32.gmra.mxu0 %v6197
    %v6315 = vpop.f32.mrf.mxu0
    %v6316 = vadd.f32 0.0, %v6315
    %6317 = vmatmul.f32.gmra.mxu0 %v6198
    %v6318 = vpop.f32.mrf.mxu0
    %v6319 = vadd.f32 0.0, %v6318
    %6320 = vmatmul.f32.gmra.mxu0 %v6199
    %v6321 = vpop.f32.mrf.mxu0
    %v6322 = vadd.f32 0.0, %v6321
    %6323 = vmatmul.f32.gmra.mxu0 %v6200
    %v6324 = vpop.f32.mrf.mxu0
    %v6325 = vadd.f32 0.0, %v6324
    %6326 = vmatmul.f32.gmra.mxu0 %v6201
    %v6327 = vpop.f32.mrf.mxu0
    %v6328 = vadd.f32 0.0, %v6327
    %6329 = vmatmul.f32.gmra.mxu0 %v6202
    %v6330 = vpop.f32.mrf.mxu0
    %v6331 = vadd.f32 0.0, %v6330
    %6332 = vmatmul.f32.gmra.mxu0 %v6203
    %v6333 = vpop.f32.mrf.mxu0
    %v6334 = vadd.f32 0.0, %v6333
    %6335 = vmatmul.f32.gmra.mxu0 %v6204
    %v6336 = vpop.f32.mrf.mxu0
    %v6337 = vadd.f32 0.0, %v6336
    %6338 = vmatmul.f32.gmra.mxu0 %v6205
    %v6339 = vpop.f32.mrf.mxu0
    %v6340 = vadd.f32 0.0, %v6339
    %6341 = vmatmul.f32.gmra.mxu0 %v6206
    %v6342 = vpop.f32.mrf.mxu0
    %v6343 = vadd.f32 0.0, %v6342
    %6344 = vmatmul.f32.gmra.mxu0 %v6207
    %v6345 = vpop.f32.mrf.mxu0
    %v6346 = vadd.f32 0.0, %v6345
    %6347 = vmatmul.f32.gmra.mxu0 %v6208
    %v6348 = vpop.f32.mrf.mxu0
    %v6349 = vadd.f32 0.0, %v6348
    %6350 = vmatmul.f32.gmra.mxu0 %v6209
    %v6351 = vpop.f32.mrf.mxu0
    %v6352 = vadd.f32 0.0, %v6351
    %6353 = vmatmul.f32.gmra.mxu0 %v6210
    %v6354 = vpop.f32.mrf.mxu0
    %v6355 = vadd.f32 0.0, %v6354
    %6356 = vmatmul.f32.gmra.mxu0 %v6211
    %v6357 = vpop.f32.mrf.mxu0
    %v6358 = vadd.f32 0.0, %v6357
    %6359 = vmatmul.f32.gmra.mxu0 %v6212
    %v6360 = vpop.f32.mrf.mxu0
    %v6361 = vadd.f32 0.0, %v6360
    %6362 = vmatmul.f32.gmra.mxu0 %v6213
    %v6363 = vpop.f32.mrf.mxu0
    %v6364 = vadd.f32 0.0, %v6363
    %6365 = vmatmul.f32.gmra.mxu0 %v6214
    %v6366 = vpop.f32.mrf.mxu0
    %v6367 = vadd.f32 0.0, %v6366
    %6368 = vmatmul.f32.gmra.mxu0 %v6215
    %v6369 = vpop.f32.mrf.mxu0
    %v6370 = vadd.f32 0.0, %v6369
    %6371 = vmatmul.f32.gmra.mxu0 %v6216
    %v6372 = vpop.f32.mrf.mxu0
    %v6373 = vadd.f32 0.0, %v6372
    %6374 = vmatmul.f32.gmra.mxu0 %v6217
    %v6375 = vpop.f32.mrf.mxu0
    %v6376 = vadd.f32 0.0, %v6375
    %6377 = vmatmul.f32.gmra.mxu0 %v6218
    %v6378 = vpop.f32.mrf.mxu0
    %v6379 = vadd.f32 0.0, %v6378
    %6380 = vmatmul.f32.gmra.mxu0 %v6219
    %v6381 = vpop.f32.mrf.mxu0
    %v6382 = vadd.f32 0.0, %v6381
    %6383 = vmatmul.f32.gmra.mxu0 %v6220
    %v6384 = vpop.f32.mrf.mxu0
    %v6385 = vadd.f32 0.0, %v6384
    %6386 = vmatmul.f32.gmra.mxu0 %v6221
    %v6387 = vpop.f32.mrf.mxu0
    %v6388 = vadd.f32 0.0, %v6387
    %6389 = vmatmul.f32.gmra.mxu0 %v6222
    %v6390 = vpop.f32.mrf.mxu0
    %v6391 = vadd.f32 0.0, %v6390
    %6392 = vmatmul.f32.gmra.mxu0 %v6223
    %v6393 = vpop.f32.mrf.mxu0
    %v6394 = vadd.f32 0.0, %v6393
    %6395 = vdwg.mxu0
    %v6396 = vadd.f32 %v6132, %v6259
    %v6397 = vadd.f32 %v6133, %v6262
    %v6398 = vadd.f32 %v6134, %v6265
    %v6399 = vadd.f32 %v6135, %v6268
    %v6400 = vadd.f32 %v6136, %v6271
    %v6401 = vadd.f32 %v6137, %v6274
    %v6402 = vadd.f32 %v6138, %v6277
    %v6403 = vadd.f32 %v6139, %v6280
    %v6404 = vadd.f32 %v6140, %v6283
    %v6405 = vadd.f32 %v6141, %v6286
    %v6406 = vadd.f32 %v6142, %v6289
    %v6407 = vadd.f32 %v6143, %v6292
    %v6408 = vadd.f32 %v6144, %v6295
    %v6409 = vadd.f32 %v6145, %v6298
    %v6410 = vadd.f32 %v6146, %v6301
    %v6411 = vadd.f32 %v6147, %v6304
    %v6412 = vadd.f32 %v6148, %v6307
    %v6413 = vadd.f32 %v6149, %v6310
    %v6414 = vadd.f32 %v6150, %v6313
    %v6415 = vadd.f32 %v6151, %v6316
    %v6416 = vadd.f32 %v6152, %v6319
    %v6417 = vadd.f32 %v6153, %v6322
    %v6418 = vadd.f32 %v6154, %v6325
    %v6419 = vadd.f32 %v6155, %v6328
    %v6420 = vadd.f32 %v6156, %v6331
    %v6421 = vadd.f32 %v6157, %v6334
    %v6422 = vadd.f32 %v6158, %v6337
    %v6423 = vadd.f32 %v6159, %v6340
    %v6424 = vadd.f32 %v6160, %v6343
    %v6425 = vadd.f32 %v6161, %v6346
    %v6426 = vadd.f32 %v6162, %v6349
    %v6427 = vadd.f32 %v6163, %v6352
    %v6428 = vadd.f32 %v6164, %v6355
    %v6429 = vadd.f32 %v6165, %v6358
    %v6430 = vadd.f32 %v6166, %v6361
    %v6431 = vadd.f32 %v6167, %v6364
    %v6432 = vadd.f32 %v6168, %v6367
    %v6433 = vadd.f32 %v6169, %v6370
    %v6434 = vadd.f32 %v6170, %v6373
    %v6435 = vadd.f32 %v6171, %v6376
    %v6436 = vadd.f32 %v6172, %v6379
    %v6437 = vadd.f32 %v6173, %v6382
    %v6438 = vadd.f32 %v6174, %v6385
    %v6439 = vadd.f32 %v6175, %v6388
    %v6440 = vadd.f32 %v6176, %v6391
    %v6441 = vadd.f32 %v6177, %v6394
    %v6442 = vld [vmem:[#allocation13] sm:$0xff]
    %v6443 = vld [vmem:[#allocation13 + $0x8] sm:$0xff]
    %v6444 = vld [vmem:[#allocation13 + $0x10] sm:$0xff]
    %v6445 = vld [vmem:[#allocation13 + $0x18] sm:$0xff]
    %v6446 = vld [vmem:[#allocation13 + $0x20] sm:$0xff]
    %v6447 = vld [vmem:[#allocation13 + $0x28] sm:$0xff]
    %v6448 = vld [vmem:[#allocation13 + $0x30] sm:$0xff]
    %v6449 = vld [vmem:[#allocation13 + $0x38] sm:$0xff]
    %v6450 = vld [vmem:[#allocation13 + $0x40] sm:$0xff]
    %v6451 = vld [vmem:[#allocation13 + $0x48] sm:$0xff]
    %v6452 = vld [vmem:[#allocation13 + $0x50] sm:$0xff]
    %v6453 = vld [vmem:[#allocation13 + $0x58] sm:$0xff]
    %v6454 = vld [vmem:[#allocation13 + $0x60] sm:$0xff]
    %v6455 = vld [vmem:[#allocation13 + $0x68] sm:$0xff]
    %v6456 = vld [vmem:[#allocation13 + $0x70] sm:$0xff]
    %v6457 = vld [vmem:[#allocation13 + $0x78] sm:$0xff]
    %v6458 = vld [vmem:[#allocation13 + $0x80] sm:$0xff]
    %v6459 = vld [vmem:[#allocation13 + $0x88] sm:$0xff]
    %v6460 = vld [vmem:[#allocation13 + $0x90] sm:$0xff]
    %v6461 = vld [vmem:[#allocation13 + $0x98] sm:$0xff]
    %v6462 = vld [vmem:[#allocation13 + $0xa0] sm:$0xff]
    %v6463 = vld [vmem:[#allocation13 + $0xa8] sm:$0xff]
    %v6464 = vld [vmem:[#allocation13 + $0xb0] sm:$0xff]
    %v6465 = vld [vmem:[#allocation13 + $0xb8] sm:$0xff]
    %v6466 = vld [vmem:[#allocation13 + $0xc0] sm:$0xff]
    %v6467 = vld [vmem:[#allocation13 + $0xc8] sm:$0xff]
    %v6468 = vld [vmem:[#allocation13 + $0xd0] sm:$0xff]
    %v6469 = vld [vmem:[#allocation12] sm:$0x1]
    %v6471 = vperm.slane %v6469, 0
    %vm6473 = vcmask 867328
    %v6475 = vsel %vm6473, %v6444, 0
    %v6478 = vsel %vm6473, %v6447, 0
    %v6481 = vsel %vm6473, %v6450, 0
    %v6484 = vsel %vm6473, %v6453, 0
    %v6487 = vsel %vm6473, %v6456, 0
    %v6490 = vsel %vm6473, %v6459, 0
    %v6493 = vsel %vm6473, %v6462, 0
    %v6496 = vsel %vm6473, %v6465, 0
    %v6499 = vsel %vm6473, %v6468, 0
    %vm6501 = vcmask 1041408
    %v6503 = vsel %vm6501, %v6441, 0
    %6505 = vmatpush.msra.mxu0 %v6411
    %6506 = vmatpush.msra.mxu0 %v6410
    %6507 = vmatpush.msra.mxu0 %v6409
    %6508 = vmatpush.msra.mxu0 %v6408
    %6509 = vmatpush.msra.mxu0 %v6407
    %6510 = vmatpush.msra.mxu0 %v6406
    %6511 = vmatpush.msra.mxu0 %v6405
    %6512 = vmatpush.msra.mxu0 %v6404
    %6513 = vmatpush.msra.mxu0 %v6403
    %6514 = vmatpush.msra.mxu0 %v6402
    %6515 = vmatpush.msra.mxu0 %v6401
    %6516 = vmatpush.msra.mxu0 %v6400
    %6517 = vmatpush.msra.mxu0 %v6399
    %6518 = vmatpush.msra.mxu0 %v6398
    %6519 = vmatpush.msra.mxu0 %v6397
    %6520 = vmatpush.msra.mxu0 %v6396
    %6521 = vmatmul.f32.gmra.mxu0 %v6442
    %v6522 = vpop.f32.mrf.mxu0
    %v6523 = vadd.f32 %v6471, %v6522
    %6524 = vmatmul.f32.gmra.mxu0 %v6445
    %v6525 = vpop.f32.mrf.mxu0
    %v6526 = vadd.f32 %v6471, %v6525
    %6527 = vmatmul.f32.gmra.mxu0 %v6448
    %v6528 = vpop.f32.mrf.mxu0
    %v6529 = vadd.f32 %v6471, %v6528
    %6530 = vmatmul.f32.gmra.mxu0 %v6451
    %v6531 = vpop.f32.mrf.mxu0
    %v6532 = vadd.f32 %v6471, %v6531
    %6533 = vmatmul.f32.gmra.mxu0 %v6454
    %v6534 = vpop.f32.mrf.mxu0
    %v6535 = vadd.f32 %v6471, %v6534
    %6536 = vmatmul.f32.gmra.mxu0 %v6457
    %v6537 = vpop.f32.mrf.mxu0
    %v6538 = vadd.f32 %v6471, %v6537
    %6539 = vmatmul.f32.gmra.mxu0 %v6460
    %v6540 = vpop.f32.mrf.mxu0
    %v6541 = vadd.f32 %v6471, %v6540
    %6542 = vmatmul.f32.gmra.mxu0 %v6463
    %v6543 = vpop.f32.mrf.mxu0
    %v6544 = vadd.f32 %v6471, %v6543
    %6545 = vmatmul.f32.gmra.mxu0 %v6466
    %v6546 = vpop.f32.mrf.mxu0
    %v6547 = vadd.f32 %v6471, %v6546
    %6548 = vdwg.mxu0
    %6549 = vmatpush.msra.mxu0 %v6427
    %6550 = vmatpush.msra.mxu0 %v6426
    %6551 = vmatpush.msra.mxu0 %v6425
    %6552 = vmatpush.msra.mxu0 %v6424
    %6553 = vmatpush.msra.mxu0 %v6423
    %6554 = vmatpush.msra.mxu0 %v6422
    %6555 = vmatpush.msra.mxu0 %v6421
    %6556 = vmatpush.msra.mxu0 %v6420
    %6557 = vmatpush.msra.mxu0 %v6419
    %6558 = vmatpush.msra.mxu0 %v6418
    %6559 = vmatpush.msra.mxu0 %v6417
    %6560 = vmatpush.msra.mxu0 %v6416
    %6561 = vmatpush.msra.mxu0 %v6415
    %6562 = vmatpush.msra.mxu0 %v6414
    %6563 = vmatpush.msra.mxu0 %v6413
    %6564 = vmatpush.msra.mxu0 %v6412
    %6565 = vmatmul.f32.gmra.mxu0 %v6443
    %v6566 = vpop.f32.mrf.mxu0
    %v6567 = vadd.f32 %v6523, %v6566
    %6568 = vmatmul.f32.gmra.mxu0 %v6446
    %v6569 = vpop.f32.mrf.mxu0
    %v6570 = vadd.f32 %v6526, %v6569
    %6571 = vmatmul.f32.gmra.mxu0 %v6449
    %v6572 = vpop.f32.mrf.mxu0
    %v6573 = vadd.f32 %v6529, %v6572
    %6574 = vmatmul.f32.gmra.mxu0 %v6452
    %v6575 = vpop.f32.mrf.mxu0
    %v6576 = vadd.f32 %v6532, %v6575
    %6577 = vmatmul.f32.gmra.mxu0 %v6455
    %v6578 = vpop.f32.mrf.mxu0
    %v6579 = vadd.f32 %v6535, %v6578
    %6580 = vmatmul.f32.gmra.mxu0 %v6458
    %v6581 = vpop.f32.mrf.mxu0
    %v6582 = vadd.f32 %v6538, %v6581
    %6583 = vmatmul.f32.gmra.mxu0 %v6461
    %v6584 = vpop.f32.mrf.mxu0
    %v6585 = vadd.f32 %v6541, %v6584
    %6586 = vmatmul.f32.gmra.mxu0 %v6464
    %v6587 = vpop.f32.mrf.mxu0
    %v6588 = vadd.f32 %v6544, %v6587
    %6589 = vmatmul.f32.gmra.mxu0 %v6467
    %v6590 = vpop.f32.mrf.mxu0
    %v6591 = vadd.f32 %v6547, %v6590
    %6592 = vdwg.mxu0
    %6593 = vmatpush.msra.mxu0 0.0
    %6594 = vmatpush.msra.mxu0 0.0
    %6595 = vmatpush.msra.mxu0 %v6503
    %6596 = vmatpush.msra.mxu0 %v6440
    %6597 = vmatpush.msra.mxu0 %v6439
    %6598 = vmatpush.msra.mxu0 %v6438
    %6599 = vmatpush.msra.mxu0 %v6437
    %6600 = vmatpush.msra.mxu0 %v6436
    %6601 = vmatpush.msra.mxu0 %v6435
    %6602 = vmatpush.msra.mxu0 %v6434
    %6603 = vmatpush.msra.mxu0 %v6433
    %6604 = vmatpush.msra.mxu0 %v6432
    %6605 = vmatpush.msra.mxu0 %v6431
    %6606 = vmatpush.msra.mxu0 %v6430
    %6607 = vmatpush.msra.mxu0 %v6429
    %6608 = vmatpush.msra.mxu0 %v6428
    %6609 = vmatmul.f32.gmra.mxu0 %v6475
    %v6610 = vpop.f32.mrf.mxu0
    %v6611 = vadd.f32 %v6567, %v6610
    %6612 = vmatmul.f32.gmra.mxu0 %v6478
    %v6613 = vpop.f32.mrf.mxu0
    %v6614 = vadd.f32 %v6570, %v6613
    %6615 = vmatmul.f32.gmra.mxu0 %v6481
    %v6616 = vpop.f32.mrf.mxu0
    %v6617 = vadd.f32 %v6573, %v6616
    %6618 = vmatmul.f32.gmra.mxu0 %v6484
    %v6619 = vpop.f32.mrf.mxu0
    %v6620 = vadd.f32 %v6576, %v6619
    %6621 = vmatmul.f32.gmra.mxu0 %v6487
    %v6622 = vpop.f32.mrf.mxu0
    %v6623 = vadd.f32 %v6579, %v6622
    %6624 = vmatmul.f32.gmra.mxu0 %v6490
    %v6625 = vpop.f32.mrf.mxu0
    %v6626 = vadd.f32 %v6582, %v6625
    %6627 = vmatmul.f32.gmra.mxu0 %v6493
    %v6628 = vpop.f32.mrf.mxu0
    %v6629 = vadd.f32 %v6585, %v6628
    %6630 = vmatmul.f32.gmra.mxu0 %v6496
    %v6631 = vpop.f32.mrf.mxu0
    %v6632 = vadd.f32 %v6588, %v6631
    %6633 = vmatmul.f32.gmra.mxu0 %v6499
    %v6634 = vpop.f32.mrf.mxu0
    %v6635 = vadd.f32 %v6591, %v6634
    %6636 = vdwg.mxu0
    %v6637 = vmax.f32 %v6611, 0.0
    %v6638 = vmax.f32 %v6614, 0.0
    %v6639 = vmax.f32 %v6617, 0.0
    %v6640 = vmax.f32 %v6620, 0.0
    %v6641 = vmax.f32 %v6623, 0.0
    %v6642 = vmax.f32 %v6626, 0.0
    %v6643 = vmax.f32 %v6629, 0.0
    %v6644 = vmax.f32 %v6632, 0.0
    %v6645 = vmax.f32 %v6635, 0.0
    %6646 = vst [vmem:[#allocation3] sm:$0xff] %v6637
    %6647 = vst [vmem:[#allocation3 + $0x8] sm:$0xff] %v6638
    %6648 = vst [vmem:[#allocation3 + $0x10] sm:$0xff] %v6639
    %6649 = vst [vmem:[#allocation3 + $0x18] sm:$0xff] %v6640
    %6650 = vst [vmem:[#allocation3 + $0x20] sm:$0xff] %v6641
    %6651 = vst [vmem:[#allocation3 + $0x28] sm:$0xff] %v6642
    %6652 = vst [vmem:[#allocation3 + $0x30] sm:$0xff] %v6643
    %6653 = vst [vmem:[#allocation3 + $0x38] sm:$0xff] %v6644
    %6654 = vst [vmem:[#allocation3 + $0x40] sm:$0xff] %v6645
    %v6655 = vld [vmem:[#allocation3] sm:$0xff]
    %v6656 = vld [vmem:[#allocation3 + $0x8] sm:$0xff]
    %v6657 = vld [vmem:[#allocation3 + $0x10] sm:$0xff]
    %v6658 = vld [vmem:[#allocation3 + $0x18] sm:$0xff]
    %v6659 = vld [vmem:[#allocation3 + $0x20] sm:$0x1f]
    %v6660 = vld [vmem:[#allocation15] sm:$0xff]
    %v6661 = vld [vmem:[#allocation15 + $0x8] sm:$0xff]
    %v6662 = vld [vmem:[#allocation15 + $0x10] sm:$0xff]
    %v6663 = vld [vmem:[#allocation15 + $0x18] sm:$0xff]
    %v6664 = vld [vmem:[#allocation15 + $0x20] sm:$0xff]
    %v6665 = vld [vmem:[#allocation15 + $0x28] sm:$0xff]
    %v6666 = vld [vmem:[#allocation15 + $0x30] sm:$0xff]
    %v6667 = vld [vmem:[#allocation15 + $0x38] sm:$0xff]
    %v6668 = vld [vmem:[#allocation15 + $0x40] sm:$0xff]
    %v6669 = vld [vmem:[#allocation15 + $0x48] sm:$0xff]
    %v6670 = vld [vmem:[#allocation15 + $0x50] sm:$0xff]
    %v6671 = vld [vmem:[#allocation15 + $0x58] sm:$0xff]
    %v6672 = vld [vmem:[#allocation15 + $0x60] sm:$0xff]
    %v6673 = vld [vmem:[#allocation15 + $0x68] sm:$0xff]
    %v6674 = vld [vmem:[#allocation15 + $0x70] sm:$0xff]
    %v6675 = vld [vmem:[#allocation15 + $0x78] sm:$0xff]
    %v6676 = vld [vmem:[#allocation3 + $0x1] sm:$0xff]
    %v6677 = vld [vmem:[#allocation3 + $0x9] sm:$0xff]
    %v6678 = vld [vmem:[#allocation3 + $0x11] sm:$0xff]
    %v6679 = vld [vmem:[#allocation3 + $0x19] sm:$0xff]
    %v6680 = vld [vmem:[#allocation3 + $0x21] sm:$0x1f]
    %s6681 = scalar_lea.vmem [#allocation15], 128
    %v6682 = vld [vmem:[%s6681] sm:$0xff]
    %v6683 = vld [vmem:[%s6681 + $0x8] sm:$0xff]
    %v6684 = vld [vmem:[%s6681 + $0x10] sm:$0xff]
    %v6685 = vld [vmem:[%s6681 + $0x18] sm:$0xff]
    %v6686 = vld [vmem:[%s6681 + $0x20] sm:$0xff]
    %v6687 = vld [vmem:[%s6681 + $0x28] sm:$0xff]
    %v6688 = vld [vmem:[%s6681 + $0x30] sm:$0xff]
    %v6689 = vld [vmem:[%s6681 + $0x38] sm:$0xff]
    %v6690 = vld [vmem:[%s6681 + $0x40] sm:$0xff]
    %v6691 = vld [vmem:[%s6681 + $0x48] sm:$0xff]
    %v6692 = vld [vmem:[%s6681 + $0x50] sm:$0xff]
    %v6693 = vld [vmem:[%s6681 + $0x58] sm:$0xff]
    %v6694 = vld [vmem:[%s6681 + $0x60] sm:$0xff]
    %v6695 = vld [vmem:[%s6681 + $0x68] sm:$0xff]
    %v6696 = vld [vmem:[%s6681 + $0x70] sm:$0xff]
    %v6697 = vld [vmem:[%s6681 + $0x78] sm:$0xff]
    %6698 = vmatpush.msra.mxu0 %v6697
    %6699 = vmatpush.msra.mxu0 %v6696
    %6700 = vmatpush.msra.mxu0 %v6695
    %6701 = vmatpush.msra.mxu0 %v6694
    %6702 = vmatpush.msra.mxu0 %v6693
    %6703 = vmatpush.msra.mxu0 %v6692
    %6704 = vmatpush.msra.mxu0 %v6691
    %6705 = vmatpush.msra.mxu0 %v6690
    %6706 = vmatpush.msra.mxu0 %v6689
    %6707 = vmatpush.msra.mxu0 %v6688
    %6708 = vmatpush.msra.mxu0 %v6687
    %6709 = vmatpush.msra.mxu0 %v6686
    %6710 = vmatpush.msra.mxu0 %v6685
    %6711 = vmatpush.msra.mxu0 %v6684
    %6712 = vmatpush.msra.mxu0 %v6683
    %6713 = vmatpush.msra.mxu0 %v6682
    %6714 = vmatmul.f32.gmra.mxu0 %v6676
    %v6715 = vpop.f32.mrf.mxu0
    %v6716 = vadd.f32 0.0, %v6715
    %6717 = vmatmul.f32.gmra.mxu0 %v6677
    %v6718 = vpop.f32.mrf.mxu0
    %v6719 = vadd.f32 0.0, %v6718
    %6720 = vmatmul.f32.gmra.mxu0 %v6678
    %v6721 = vpop.f32.mrf.mxu0
    %v6722 = vadd.f32 0.0, %v6721
    %6723 = vmatmul.f32.gmra.mxu0 %v6679
    %v6724 = vpop.f32.mrf.mxu0
    %v6725 = vadd.f32 0.0, %v6724
    %6726 = vmatmul.f32.gmra.mxu0 %v6680
    %v6727 = vpop.f32.mrf.mxu0
    %v6728 = vadd.f32 0.0, %v6727
    %6729 = vdwg.mxu0
    %6730 = vmatpush.msra.mxu0 %v6675
    %6731 = vmatpush.msra.mxu0 %v6674
    %6732 = vmatpush.msra.mxu0 %v6673
    %6733 = vmatpush.msra.mxu0 %v6672
    %6734 = vmatpush.msra.mxu0 %v6671
    %6735 = vmatpush.msra.mxu0 %v6670
    %6736 = vmatpush.msra.mxu0 %v6669
    %6737 = vmatpush.msra.mxu0 %v6668
    %6738 = vmatpush.msra.mxu0 %v6667
    %6739 = vmatpush.msra.mxu0 %v6666
    %6740 = vmatpush.msra.mxu0 %v6665
    %6741 = vmatpush.msra.mxu0 %v6664
    %6742 = vmatpush.msra.mxu0 %v6663
    %6743 = vmatpush.msra.mxu0 %v6662
    %6744 = vmatpush.msra.mxu0 %v6661
    %6745 = vmatpush.msra.mxu0 %v6660
    %6746 = vmatmul.f32.gmra.mxu0 %v6655
    %v6747 = vpop.f32.mrf.mxu0
    %v6748 = vadd.f32 %v6716, %v6747
    %6749 = vmatmul.f32.gmra.mxu0 %v6656
    %v6750 = vpop.f32.mrf.mxu0
    %v6751 = vadd.f32 %v6719, %v6750
    %6752 = vmatmul.f32.gmra.mxu0 %v6657
    %v6753 = vpop.f32.mrf.mxu0
    %v6754 = vadd.f32 %v6722, %v6753
    %6755 = vmatmul.f32.gmra.mxu0 %v6658
    %v6756 = vpop.f32.mrf.mxu0
    %v6757 = vadd.f32 %v6725, %v6756
    %6758 = vmatmul.f32.gmra.mxu0 %v6659
    %v6759 = vpop.f32.mrf.mxu0
    %v6760 = vadd.f32 %v6728, %v6759
    %6761 = vdwg.mxu0
    %v6762 = vld [vmem:[#allocation3 + $0x2] sm:$0xff]
    %v6763 = vld [vmem:[#allocation3 + $0xa] sm:$0xff]
    %v6764 = vld [vmem:[#allocation3 + $0x12] sm:$0xff]
    %v6765 = vld [vmem:[#allocation3 + $0x1a] sm:$0xff]
    %v6766 = vld [vmem:[#allocation3 + $0x22] sm:$0x1f]
    %s6767 = scalar_lea.vmem [#allocation15], 256
    %v6768 = vld [vmem:[%s6767] sm:$0xff]
    %v6769 = vld [vmem:[%s6767 + $0x8] sm:$0xff]
    %v6770 = vld [vmem:[%s6767 + $0x10] sm:$0xff]
    %v6771 = vld [vmem:[%s6767 + $0x18] sm:$0xff]
    %v6772 = vld [vmem:[%s6767 + $0x20] sm:$0xff]
    %v6773 = vld [vmem:[%s6767 + $0x28] sm:$0xff]
    %v6774 = vld [vmem:[%s6767 + $0x30] sm:$0xff]
    %v6775 = vld [vmem:[%s6767 + $0x38] sm:$0xff]
    %v6776 = vld [vmem:[%s6767 + $0x40] sm:$0xff]
    %v6777 = vld [vmem:[%s6767 + $0x48] sm:$0xff]
    %v6778 = vld [vmem:[%s6767 + $0x50] sm:$0xff]
    %v6779 = vld [vmem:[%s6767 + $0x58] sm:$0xff]
    %v6780 = vld [vmem:[%s6767 + $0x60] sm:$0xff]
    %v6781 = vld [vmem:[%s6767 + $0x68] sm:$0xff]
    %v6782 = vld [vmem:[%s6767 + $0x70] sm:$0xff]
    %v6783 = vld [vmem:[%s6767 + $0x78] sm:$0xff]
    %6784 = vmatpush.msra.mxu0 %v6783
    %6785 = vmatpush.msra.mxu0 %v6782
    %6786 = vmatpush.msra.mxu0 %v6781
    %6787 = vmatpush.msra.mxu0 %v6780
    %6788 = vmatpush.msra.mxu0 %v6779
    %6789 = vmatpush.msra.mxu0 %v6778
    %6790 = vmatpush.msra.mxu0 %v6777
    %6791 = vmatpush.msra.mxu0 %v6776
    %6792 = vmatpush.msra.mxu0 %v6775
    %6793 = vmatpush.msra.mxu0 %v6774
    %6794 = vmatpush.msra.mxu0 %v6773
    %6795 = vmatpush.msra.mxu0 %v6772
    %6796 = vmatpush.msra.mxu0 %v6771
    %6797 = vmatpush.msra.mxu0 %v6770
    %6798 = vmatpush.msra.mxu0 %v6769
    %6799 = vmatpush.msra.mxu0 %v6768
    %6800 = vmatmul.f32.gmra.mxu0 %v6762
    %v6801 = vpop.f32.mrf.mxu0
    %v6802 = vadd.f32 0.0, %v6801
    %6803 = vmatmul.f32.gmra.mxu0 %v6763
    %v6804 = vpop.f32.mrf.mxu0
    %v6805 = vadd.f32 0.0, %v6804
    %6806 = vmatmul.f32.gmra.mxu0 %v6764
    %v6807 = vpop.f32.mrf.mxu0
    %v6808 = vadd.f32 0.0, %v6807
    %6809 = vmatmul.f32.gmra.mxu0 %v6765
    %v6810 = vpop.f32.mrf.mxu0
    %v6811 = vadd.f32 0.0, %v6810
    %6812 = vmatmul.f32.gmra.mxu0 %v6766
    %v6813 = vpop.f32.mrf.mxu0
    %v6814 = vadd.f32 0.0, %v6813
    %6815 = vdwg.mxu0
    %v6816 = vadd.f32 %v6748, %v6802
    %v6817 = vadd.f32 %v6751, %v6805
    %v6818 = vadd.f32 %v6754, %v6808
    %v6819 = vadd.f32 %v6757, %v6811
    %v6820 = vadd.f32 %v6760, %v6814
    %v6821 = vld [vmem:[#allocation3 + $0x3] sm:$0xff]
    %v6822 = vld [vmem:[#allocation3 + $0xb] sm:$0xff]
    %v6823 = vld [vmem:[#allocation3 + $0x13] sm:$0xff]
    %v6824 = vld [vmem:[#allocation3 + $0x1b] sm:$0xff]
    %v6825 = vld [vmem:[#allocation3 + $0x23] sm:$0x1f]
    %s6826 = scalar_lea.vmem [#allocation15], 384
    %v6827 = vld [vmem:[%s6826] sm:$0xff]
    %v6828 = vld [vmem:[%s6826 + $0x8] sm:$0xff]
    %v6829 = vld [vmem:[%s6826 + $0x10] sm:$0xff]
    %v6830 = vld [vmem:[%s6826 + $0x18] sm:$0xff]
    %v6831 = vld [vmem:[%s6826 + $0x20] sm:$0xff]
    %v6832 = vld [vmem:[%s6826 + $0x28] sm:$0xff]
    %v6833 = vld [vmem:[%s6826 + $0x30] sm:$0xff]
    %v6834 = vld [vmem:[%s6826 + $0x38] sm:$0xff]
    %v6835 = vld [vmem:[%s6826 + $0x40] sm:$0xff]
    %v6836 = vld [vmem:[%s6826 + $0x48] sm:$0xff]
    %v6837 = vld [vmem:[%s6826 + $0x50] sm:$0xff]
    %v6838 = vld [vmem:[%s6826 + $0x58] sm:$0xff]
    %v6839 = vld [vmem:[%s6826 + $0x60] sm:$0xff]
    %v6840 = vld [vmem:[%s6826 + $0x68] sm:$0xff]
    %v6841 = vld [vmem:[%s6826 + $0x70] sm:$0xff]
    %v6842 = vld [vmem:[%s6826 + $0x78] sm:$0xff]
    %6843 = vmatpush.msra.mxu0 %v6842
    %6844 = vmatpush.msra.mxu0 %v6841
    %6845 = vmatpush.msra.mxu0 %v6840
    %6846 = vmatpush.msra.mxu0 %v6839
    %6847 = vmatpush.msra.mxu0 %v6838
    %6848 = vmatpush.msra.mxu0 %v6837
    %6849 = vmatpush.msra.mxu0 %v6836
    %6850 = vmatpush.msra.mxu0 %v6835
    %6851 = vmatpush.msra.mxu0 %v6834
    %6852 = vmatpush.msra.mxu0 %v6833
    %6853 = vmatpush.msra.mxu0 %v6832
    %6854 = vmatpush.msra.mxu0 %v6831
    %6855 = vmatpush.msra.mxu0 %v6830
    %6856 = vmatpush.msra.mxu0 %v6829
    %6857 = vmatpush.msra.mxu0 %v6828
    %6858 = vmatpush.msra.mxu0 %v6827
    %6859 = vmatmul.f32.gmra.mxu0 %v6821
    %v6860 = vpop.f32.mrf.mxu0
    %v6861 = vadd.f32 0.0, %v6860
    %6862 = vmatmul.f32.gmra.mxu0 %v6822
    %v6863 = vpop.f32.mrf.mxu0
    %v6864 = vadd.f32 0.0, %v6863
    %6865 = vmatmul.f32.gmra.mxu0 %v6823
    %v6866 = vpop.f32.mrf.mxu0
    %v6867 = vadd.f32 0.0, %v6866
    %6868 = vmatmul.f32.gmra.mxu0 %v6824
    %v6869 = vpop.f32.mrf.mxu0
    %v6870 = vadd.f32 0.0, %v6869
    %6871 = vmatmul.f32.gmra.mxu0 %v6825
    %v6872 = vpop.f32.mrf.mxu0
    %v6873 = vadd.f32 0.0, %v6872
    %6874 = vdwg.mxu0
    %v6875 = vadd.f32 %v6816, %v6861
    %v6876 = vadd.f32 %v6817, %v6864
    %v6877 = vadd.f32 %v6818, %v6867
    %v6878 = vadd.f32 %v6819, %v6870
    %v6879 = vadd.f32 %v6820, %v6873
    %v6880 = vld [vmem:[#allocation3 + $0x4] sm:$0xff]
    %v6881 = vld [vmem:[#allocation3 + $0xc] sm:$0xff]
    %v6882 = vld [vmem:[#allocation3 + $0x14] sm:$0xff]
    %v6883 = vld [vmem:[#allocation3 + $0x1c] sm:$0xff]
    %v6884 = vld [vmem:[#allocation3 + $0x24] sm:$0x1f]
    %s6885 = scalar_lea.vmem [#allocation15], 512
    %v6886 = vld [vmem:[%s6885] sm:$0xff]
    %v6887 = vld [vmem:[%s6885 + $0x8] sm:$0xff]
    %v6888 = vld [vmem:[%s6885 + $0x10] sm:$0xff]
    %v6889 = vld [vmem:[%s6885 + $0x18] sm:$0xff]
    %v6890 = vld [vmem:[%s6885 + $0x20] sm:$0xff]
    %v6891 = vld [vmem:[%s6885 + $0x28] sm:$0xff]
    %v6892 = vld [vmem:[%s6885 + $0x30] sm:$0xff]
    %v6893 = vld [vmem:[%s6885 + $0x38] sm:$0xff]
    %v6894 = vld [vmem:[%s6885 + $0x40] sm:$0xff]
    %v6895 = vld [vmem:[%s6885 + $0x48] sm:$0xff]
    %v6896 = vld [vmem:[%s6885 + $0x50] sm:$0xff]
    %v6897 = vld [vmem:[%s6885 + $0x58] sm:$0xff]
    %v6898 = vld [vmem:[%s6885 + $0x60] sm:$0xff]
    %v6899 = vld [vmem:[%s6885 + $0x68] sm:$0xff]
    %v6900 = vld [vmem:[%s6885 + $0x70] sm:$0xff]
    %v6901 = vld [vmem:[%s6885 + $0x78] sm:$0xff]
    %6902 = vmatpush.msra.mxu0 %v6901
    %6903 = vmatpush.msra.mxu0 %v6900
    %6904 = vmatpush.msra.mxu0 %v6899
    %6905 = vmatpush.msra.mxu0 %v6898
    %6906 = vmatpush.msra.mxu0 %v6897
    %6907 = vmatpush.msra.mxu0 %v6896
    %6908 = vmatpush.msra.mxu0 %v6895
    %6909 = vmatpush.msra.mxu0 %v6894
    %6910 = vmatpush.msra.mxu0 %v6893
    %6911 = vmatpush.msra.mxu0 %v6892
    %6912 = vmatpush.msra.mxu0 %v6891
    %6913 = vmatpush.msra.mxu0 %v6890
    %6914 = vmatpush.msra.mxu0 %v6889
    %6915 = vmatpush.msra.mxu0 %v6888
    %6916 = vmatpush.msra.mxu0 %v6887
    %6917 = vmatpush.msra.mxu0 %v6886
    %6918 = vmatmul.f32.gmra.mxu0 %v6880
    %v6919 = vpop.f32.mrf.mxu0
    %v6920 = vadd.f32 0.0, %v6919
    %6921 = vmatmul.f32.gmra.mxu0 %v6881
    %v6922 = vpop.f32.mrf.mxu0
    %v6923 = vadd.f32 0.0, %v6922
    %6924 = vmatmul.f32.gmra.mxu0 %v6882
    %v6925 = vpop.f32.mrf.mxu0
    %v6926 = vadd.f32 0.0, %v6925
    %6927 = vmatmul.f32.gmra.mxu0 %v6883
    %v6928 = vpop.f32.mrf.mxu0
    %v6929 = vadd.f32 0.0, %v6928
    %6930 = vmatmul.f32.gmra.mxu0 %v6884
    %v6931 = vpop.f32.mrf.mxu0
    %v6932 = vadd.f32 0.0, %v6931
    %6933 = vdwg.mxu0
    %v6934 = vadd.f32 %v6875, %v6920
    %v6935 = vadd.f32 %v6876, %v6923
    %v6936 = vadd.f32 %v6877, %v6926
    %v6937 = vadd.f32 %v6878, %v6929
    %v6938 = vadd.f32 %v6879, %v6932
    %v6939 = vld [vmem:[#allocation3 + $0x5] sm:$0xff]
    %v6940 = vld [vmem:[#allocation3 + $0xd] sm:$0xff]
    %v6941 = vld [vmem:[#allocation3 + $0x15] sm:$0xff]
    %v6942 = vld [vmem:[#allocation3 + $0x1d] sm:$0xff]
    %v6943 = vld [vmem:[#allocation3 + $0x25] sm:$0x1f]
    %s6944 = scalar_lea.vmem [#allocation15], 640
    %v6945 = vld [vmem:[%s6944] sm:$0xff]
    %v6946 = vld [vmem:[%s6944 + $0x8] sm:$0xff]
    %v6947 = vld [vmem:[%s6944 + $0x10] sm:$0xff]
    %v6948 = vld [vmem:[%s6944 + $0x18] sm:$0xff]
    %v6949 = vld [vmem:[%s6944 + $0x20] sm:$0xff]
    %v6950 = vld [vmem:[%s6944 + $0x28] sm:$0xff]
    %v6951 = vld [vmem:[%s6944 + $0x30] sm:$0xff]
    %v6952 = vld [vmem:[%s6944 + $0x38] sm:$0xff]
    %v6953 = vld [vmem:[%s6944 + $0x40] sm:$0xff]
    %v6954 = vld [vmem:[%s6944 + $0x48] sm:$0xff]
    %v6955 = vld [vmem:[%s6944 + $0x50] sm:$0xff]
    %v6956 = vld [vmem:[%s6944 + $0x58] sm:$0xff]
    %v6957 = vld [vmem:[%s6944 + $0x60] sm:$0xff]
    %v6958 = vld [vmem:[%s6944 + $0x68] sm:$0xff]
    %v6959 = vld [vmem:[%s6944 + $0x70] sm:$0xff]
    %v6960 = vld [vmem:[%s6944 + $0x78] sm:$0xff]
    %6961 = vmatpush.msra.mxu0 %v6960
    %6962 = vmatpush.msra.mxu0 %v6959
    %6963 = vmatpush.msra.mxu0 %v6958
    %6964 = vmatpush.msra.mxu0 %v6957
    %6965 = vmatpush.msra.mxu0 %v6956
    %6966 = vmatpush.msra.mxu0 %v6955
    %6967 = vmatpush.msra.mxu0 %v6954
    %6968 = vmatpush.msra.mxu0 %v6953
    %6969 = vmatpush.msra.mxu0 %v6952
    %6970 = vmatpush.msra.mxu0 %v6951
    %6971 = vmatpush.msra.mxu0 %v6950
    %6972 = vmatpush.msra.mxu0 %v6949
    %6973 = vmatpush.msra.mxu0 %v6948
    %6974 = vmatpush.msra.mxu0 %v6947
    %6975 = vmatpush.msra.mxu0 %v6946
    %6976 = vmatpush.msra.mxu0 %v6945
    %6977 = vmatmul.f32.gmra.mxu0 %v6939
    %v6978 = vpop.f32.mrf.mxu0
    %v6979 = vadd.f32 0.0, %v6978
    %6980 = vmatmul.f32.gmra.mxu0 %v6940
    %v6981 = vpop.f32.mrf.mxu0
    %v6982 = vadd.f32 0.0, %v6981
    %6983 = vmatmul.f32.gmra.mxu0 %v6941
    %v6984 = vpop.f32.mrf.mxu0
    %v6985 = vadd.f32 0.0, %v6984
    %6986 = vmatmul.f32.gmra.mxu0 %v6942
    %v6987 = vpop.f32.mrf.mxu0
    %v6988 = vadd.f32 0.0, %v6987
    %6989 = vmatmul.f32.gmra.mxu0 %v6943
    %v6990 = vpop.f32.mrf.mxu0
    %v6991 = vadd.f32 0.0, %v6990
    %6992 = vdwg.mxu0
    %v6993 = vadd.f32 %v6934, %v6979
    %v6994 = vadd.f32 %v6935, %v6982
    %v6995 = vadd.f32 %v6936, %v6985
    %v6996 = vadd.f32 %v6937, %v6988
    %v6997 = vadd.f32 %v6938, %v6991
    %v6998 = vld [vmem:[#allocation3 + $0x6] sm:$0xff]
    %v6999 = vld [vmem:[#allocation3 + $0xe] sm:$0xff]
    %v7000 = vld [vmem:[#allocation3 + $0x16] sm:$0xff]
    %v7001 = vld [vmem:[#allocation3 + $0x1e] sm:$0xff]
    %v7002 = vld [vmem:[#allocation3 + $0x26] sm:$0x1f]
    %s7003 = scalar_lea.vmem [#allocation15], 768
    %v7004 = vld [vmem:[%s7003] sm:$0xff]
    %v7005 = vld [vmem:[%s7003 + $0x8] sm:$0xff]
    %v7006 = vld [vmem:[%s7003 + $0x10] sm:$0xff]
    %v7007 = vld [vmem:[%s7003 + $0x18] sm:$0xff]
    %v7008 = vld [vmem:[%s7003 + $0x20] sm:$0xff]
    %v7009 = vld [vmem:[%s7003 + $0x28] sm:$0xff]
    %v7010 = vld [vmem:[%s7003 + $0x30] sm:$0xff]
    %v7011 = vld [vmem:[%s7003 + $0x38] sm:$0xff]
    %v7012 = vld [vmem:[%s7003 + $0x40] sm:$0xff]
    %v7013 = vld [vmem:[%s7003 + $0x48] sm:$0xff]
    %v7014 = vld [vmem:[%s7003 + $0x50] sm:$0xff]
    %v7015 = vld [vmem:[%s7003 + $0x58] sm:$0xff]
    %v7016 = vld [vmem:[%s7003 + $0x60] sm:$0xff]
    %v7017 = vld [vmem:[%s7003 + $0x68] sm:$0xff]
    %v7018 = vld [vmem:[%s7003 + $0x70] sm:$0xff]
    %v7019 = vld [vmem:[%s7003 + $0x78] sm:$0xff]
    %7020 = vmatpush.msra.mxu0 %v7019
    %7021 = vmatpush.msra.mxu0 %v7018
    %7022 = vmatpush.msra.mxu0 %v7017
    %7023 = vmatpush.msra.mxu0 %v7016
    %7024 = vmatpush.msra.mxu0 %v7015
    %7025 = vmatpush.msra.mxu0 %v7014
    %7026 = vmatpush.msra.mxu0 %v7013
    %7027 = vmatpush.msra.mxu0 %v7012
    %7028 = vmatpush.msra.mxu0 %v7011
    %7029 = vmatpush.msra.mxu0 %v7010
    %7030 = vmatpush.msra.mxu0 %v7009
    %7031 = vmatpush.msra.mxu0 %v7008
    %7032 = vmatpush.msra.mxu0 %v7007
    %7033 = vmatpush.msra.mxu0 %v7006
    %7034 = vmatpush.msra.mxu0 %v7005
    %7035 = vmatpush.msra.mxu0 %v7004
    %7036 = vmatmul.f32.gmra.mxu0 %v6998
    %v7037 = vpop.f32.mrf.mxu0
    %v7038 = vadd.f32 0.0, %v7037
    %7039 = vmatmul.f32.gmra.mxu0 %v6999
    %v7040 = vpop.f32.mrf.mxu0
    %v7041 = vadd.f32 0.0, %v7040
    %7042 = vmatmul.f32.gmra.mxu0 %v7000
    %v7043 = vpop.f32.mrf.mxu0
    %v7044 = vadd.f32 0.0, %v7043
    %7045 = vmatmul.f32.gmra.mxu0 %v7001
    %v7046 = vpop.f32.mrf.mxu0
    %v7047 = vadd.f32 0.0, %v7046
    %7048 = vmatmul.f32.gmra.mxu0 %v7002
    %v7049 = vpop.f32.mrf.mxu0
    %v7050 = vadd.f32 0.0, %v7049
    %7051 = vdwg.mxu0
    %v7052 = vadd.f32 %v6993, %v7038
    %v7053 = vadd.f32 %v6994, %v7041
    %v7054 = vadd.f32 %v6995, %v7044
    %v7055 = vadd.f32 %v6996, %v7047
    %v7056 = vadd.f32 %v6997, %v7050
    %v7057 = vld [vmem:[#allocation3 + $0x7] sm:$0xff]
    %v7058 = vld [vmem:[#allocation3 + $0xf] sm:$0xff]
    %v7059 = vld [vmem:[#allocation3 + $0x17] sm:$0xff]
    %v7060 = vld [vmem:[#allocation3 + $0x1f] sm:$0xff]
    %v7061 = vld [vmem:[#allocation3 + $0x27] sm:$0x1f]
    %s7062 = scalar_lea.vmem [#allocation15], 896
    %v7063 = vld [vmem:[%s7062] sm:$0xff]
    %v7064 = vld [vmem:[%s7062 + $0x8] sm:$0xff]
    %v7065 = vld [vmem:[%s7062 + $0x10] sm:$0xff]
    %v7066 = vld [vmem:[%s7062 + $0x18] sm:$0xff]
    %v7067 = vld [vmem:[%s7062 + $0x20] sm:$0xff]
    %v7068 = vld [vmem:[%s7062 + $0x28] sm:$0xff]
    %v7069 = vld [vmem:[%s7062 + $0x30] sm:$0xff]
    %v7070 = vld [vmem:[%s7062 + $0x38] sm:$0xff]
    %v7071 = vld [vmem:[%s7062 + $0x40] sm:$0xff]
    %v7072 = vld [vmem:[%s7062 + $0x48] sm:$0xff]
    %v7073 = vld [vmem:[%s7062 + $0x50] sm:$0xff]
    %v7074 = vld [vmem:[%s7062 + $0x58] sm:$0xff]
    %v7075 = vld [vmem:[%s7062 + $0x60] sm:$0xff]
    %v7076 = vld [vmem:[%s7062 + $0x68] sm:$0xff]
    %v7077 = vld [vmem:[%s7062 + $0x70] sm:$0xff]
    %v7078 = vld [vmem:[%s7062 + $0x78] sm:$0xff]
    %7079 = vmatpush.msra.mxu0 %v7078
    %7080 = vmatpush.msra.mxu0 %v7077
    %7081 = vmatpush.msra.mxu0 %v7076
    %7082 = vmatpush.msra.mxu0 %v7075
    %7083 = vmatpush.msra.mxu0 %v7074
    %7084 = vmatpush.msra.mxu0 %v7073
    %7085 = vmatpush.msra.mxu0 %v7072
    %7086 = vmatpush.msra.mxu0 %v7071
    %7087 = vmatpush.msra.mxu0 %v7070
    %7088 = vmatpush.msra.mxu0 %v7069
    %7089 = vmatpush.msra.mxu0 %v7068
    %7090 = vmatpush.msra.mxu0 %v7067
    %7091 = vmatpush.msra.mxu0 %v7066
    %7092 = vmatpush.msra.mxu0 %v7065
    %7093 = vmatpush.msra.mxu0 %v7064
    %7094 = vmatpush.msra.mxu0 %v7063
    %7095 = vmatmul.f32.gmra.mxu0 %v7057
    %v7096 = vpop.f32.mrf.mxu0
    %v7097 = vadd.f32 0.0, %v7096
    %7098 = vmatmul.f32.gmra.mxu0 %v7058
    %v7099 = vpop.f32.mrf.mxu0
    %v7100 = vadd.f32 0.0, %v7099
    %7101 = vmatmul.f32.gmra.mxu0 %v7059
    %v7102 = vpop.f32.mrf.mxu0
    %v7103 = vadd.f32 0.0, %v7102
    %7104 = vmatmul.f32.gmra.mxu0 %v7060
    %v7105 = vpop.f32.mrf.mxu0
    %v7106 = vadd.f32 0.0, %v7105
    %7107 = vmatmul.f32.gmra.mxu0 %v7061
    %v7108 = vpop.f32.mrf.mxu0
    %v7109 = vadd.f32 0.0, %v7108
    %7110 = vdwg.mxu0
    %v7111 = vadd.f32 %v7052, %v7097
    %v7112 = vadd.f32 %v7053, %v7100
    %v7113 = vadd.f32 %v7054, %v7103
    %v7114 = vadd.f32 %v7055, %v7106
    %v7115 = vadd.f32 %v7056, %v7109
    %v7116 = vld [vmem:[#allocation3 + $0x8] sm:$0xff]
    %v7117 = vld [vmem:[#allocation3 + $0x10] sm:$0xff]
    %v7118 = vld [vmem:[#allocation3 + $0x18] sm:$0xff]
    %v7119 = vld [vmem:[#allocation3 + $0x20] sm:$0xff]
    %v7120 = vld [vmem:[#allocation3 + $0x28] sm:$0x1f]
    %s7121 = scalar_lea.vmem [#allocation15], 1024
    %v7122 = vld [vmem:[%s7121] sm:$0xff]
    %v7123 = vld [vmem:[%s7121 + $0x8] sm:$0xff]
    %v7124 = vld [vmem:[%s7121 + $0x10] sm:$0xff]
    %v7125 = vld [vmem:[%s7121 + $0x18] sm:$0xff]
    %v7126 = vld [vmem:[%s7121 + $0x20] sm:$0xff]
    %v7127 = vld [vmem:[%s7121 + $0x28] sm:$0xff]
    %v7128 = vld [vmem:[%s7121 + $0x30] sm:$0xff]
    %v7129 = vld [vmem:[%s7121 + $0x38] sm:$0xff]
    %v7130 = vld [vmem:[%s7121 + $0x40] sm:$0xff]
    %v7131 = vld [vmem:[%s7121 + $0x48] sm:$0xff]
    %v7132 = vld [vmem:[%s7121 + $0x50] sm:$0xff]
    %v7133 = vld [vmem:[%s7121 + $0x58] sm:$0xff]
    %v7134 = vld [vmem:[%s7121 + $0x60] sm:$0xff]
    %v7135 = vld [vmem:[%s7121 + $0x68] sm:$0xff]
    %v7136 = vld [vmem:[%s7121 + $0x70] sm:$0xff]
    %v7137 = vld [vmem:[%s7121 + $0x78] sm:$0xff]
    %7138 = vmatpush.msra.mxu0 %v7137
    %7139 = vmatpush.msra.mxu0 %v7136
    %7140 = vmatpush.msra.mxu0 %v7135
    %7141 = vmatpush.msra.mxu0 %v7134
    %7142 = vmatpush.msra.mxu0 %v7133
    %7143 = vmatpush.msra.mxu0 %v7132
    %7144 = vmatpush.msra.mxu0 %v7131
    %7145 = vmatpush.msra.mxu0 %v7130
    %7146 = vmatpush.msra.mxu0 %v7129
    %7147 = vmatpush.msra.mxu0 %v7128
    %7148 = vmatpush.msra.mxu0 %v7127
    %7149 = vmatpush.msra.mxu0 %v7126
    %7150 = vmatpush.msra.mxu0 %v7125
    %7151 = vmatpush.msra.mxu0 %v7124
    %7152 = vmatpush.msra.mxu0 %v7123
    %7153 = vmatpush.msra.mxu0 %v7122
    %7154 = vmatmul.f32.gmra.mxu0 %v7116
    %v7155 = vpop.f32.mrf.mxu0
    %v7156 = vadd.f32 0.0, %v7155
    %7157 = vmatmul.f32.gmra.mxu0 %v7117
    %v7158 = vpop.f32.mrf.mxu0
    %v7159 = vadd.f32 0.0, %v7158
    %7160 = vmatmul.f32.gmra.mxu0 %v7118
    %v7161 = vpop.f32.mrf.mxu0
    %v7162 = vadd.f32 0.0, %v7161
    %7163 = vmatmul.f32.gmra.mxu0 %v7119
    %v7164 = vpop.f32.mrf.mxu0
    %v7165 = vadd.f32 0.0, %v7164
    %7166 = vmatmul.f32.gmra.mxu0 %v7120
    %v7167 = vpop.f32.mrf.mxu0
    %v7168 = vadd.f32 0.0, %v7167
    %7169 = vdwg.mxu0
    %v7170 = vadd.f32 %v7111, %v7156
    %v7171 = vadd.f32 %v7112, %v7159
    %v7172 = vadd.f32 %v7113, %v7162
    %v7173 = vadd.f32 %v7114, %v7165
    %v7174 = vadd.f32 %v7115, %v7168
    %v7175 = vld [vmem:[#allocation3 + $0x9] sm:$0xff]
    %v7176 = vld [vmem:[#allocation3 + $0x11] sm:$0xff]
    %v7177 = vld [vmem:[#allocation3 + $0x19] sm:$0xff]
    %v7178 = vld [vmem:[#allocation3 + $0x21] sm:$0xff]
    %v7179 = vld [vmem:[#allocation3 + $0x29] sm:$0x1f]
    %s7180 = scalar_lea.vmem [#allocation15], 1152
    %v7181 = vld [vmem:[%s7180] sm:$0xff]
    %v7182 = vld [vmem:[%s7180 + $0x8] sm:$0xff]
    %v7183 = vld [vmem:[%s7180 + $0x10] sm:$0xff]
    %v7184 = vld [vmem:[%s7180 + $0x18] sm:$0xff]
    %v7185 = vld [vmem:[%s7180 + $0x20] sm:$0xff]
    %v7186 = vld [vmem:[%s7180 + $0x28] sm:$0xff]
    %v7187 = vld [vmem:[%s7180 + $0x30] sm:$0xff]
    %v7188 = vld [vmem:[%s7180 + $0x38] sm:$0xff]
    %v7189 = vld [vmem:[%s7180 + $0x40] sm:$0xff]
    %v7190 = vld [vmem:[%s7180 + $0x48] sm:$0xff]
    %v7191 = vld [vmem:[%s7180 + $0x50] sm:$0xff]
    %v7192 = vld [vmem:[%s7180 + $0x58] sm:$0xff]
    %v7193 = vld [vmem:[%s7180 + $0x60] sm:$0xff]
    %v7194 = vld [vmem:[%s7180 + $0x68] sm:$0xff]
    %v7195 = vld [vmem:[%s7180 + $0x70] sm:$0xff]
    %v7196 = vld [vmem:[%s7180 + $0x78] sm:$0xff]
    %7197 = vmatpush.msra.mxu0 %v7196
    %7198 = vmatpush.msra.mxu0 %v7195
    %7199 = vmatpush.msra.mxu0 %v7194
    %7200 = vmatpush.msra.mxu0 %v7193
    %7201 = vmatpush.msra.mxu0 %v7192
    %7202 = vmatpush.msra.mxu0 %v7191
    %7203 = vmatpush.msra.mxu0 %v7190
    %7204 = vmatpush.msra.mxu0 %v7189
    %7205 = vmatpush.msra.mxu0 %v7188
    %7206 = vmatpush.msra.mxu0 %v7187
    %7207 = vmatpush.msra.mxu0 %v7186
    %7208 = vmatpush.msra.mxu0 %v7185
    %7209 = vmatpush.msra.mxu0 %v7184
    %7210 = vmatpush.msra.mxu0 %v7183
    %7211 = vmatpush.msra.mxu0 %v7182
    %7212 = vmatpush.msra.mxu0 %v7181
    %7213 = vmatmul.f32.gmra.mxu0 %v7175
    %v7214 = vpop.f32.mrf.mxu0
    %v7215 = vadd.f32 0.0, %v7214
    %7216 = vmatmul.f32.gmra.mxu0 %v7176
    %v7217 = vpop.f32.mrf.mxu0
    %v7218 = vadd.f32 0.0, %v7217
    %7219 = vmatmul.f32.gmra.mxu0 %v7177
    %v7220 = vpop.f32.mrf.mxu0
    %v7221 = vadd.f32 0.0, %v7220
    %7222 = vmatmul.f32.gmra.mxu0 %v7178
    %v7223 = vpop.f32.mrf.mxu0
    %v7224 = vadd.f32 0.0, %v7223
    %7225 = vmatmul.f32.gmra.mxu0 %v7179
    %v7226 = vpop.f32.mrf.mxu0
    %v7227 = vadd.f32 0.0, %v7226
    %7228 = vdwg.mxu0
    %v7229 = vadd.f32 %v7170, %v7215
    %v7230 = vadd.f32 %v7171, %v7218
    %v7231 = vadd.f32 %v7172, %v7221
    %v7232 = vadd.f32 %v7173, %v7224
    %v7233 = vadd.f32 %v7174, %v7227
    %v7234 = vld [vmem:[#allocation3 + $0xa] sm:$0xff]
    %v7235 = vld [vmem:[#allocation3 + $0x12] sm:$0xff]
    %v7236 = vld [vmem:[#allocation3 + $0x1a] sm:$0xff]
    %v7237 = vld [vmem:[#allocation3 + $0x22] sm:$0xff]
    %v7238 = vld [vmem:[#allocation3 + $0x2a] sm:$0x1f]
    %s7239 = scalar_lea.vmem [#allocation15], 1280
    %v7240 = vld [vmem:[%s7239] sm:$0xff]
    %v7241 = vld [vmem:[%s7239 + $0x8] sm:$0xff]
    %v7242 = vld [vmem:[%s7239 + $0x10] sm:$0xff]
    %v7243 = vld [vmem:[%s7239 + $0x18] sm:$0xff]
    %v7244 = vld [vmem:[%s7239 + $0x20] sm:$0xff]
    %v7245 = vld [vmem:[%s7239 + $0x28] sm:$0xff]
    %v7246 = vld [vmem:[%s7239 + $0x30] sm:$0xff]
    %v7247 = vld [vmem:[%s7239 + $0x38] sm:$0xff]
    %v7248 = vld [vmem:[%s7239 + $0x40] sm:$0xff]
    %v7249 = vld [vmem:[%s7239 + $0x48] sm:$0xff]
    %v7250 = vld [vmem:[%s7239 + $0x50] sm:$0xff]
    %v7251 = vld [vmem:[%s7239 + $0x58] sm:$0xff]
    %v7252 = vld [vmem:[%s7239 + $0x60] sm:$0xff]
    %v7253 = vld [vmem:[%s7239 + $0x68] sm:$0xff]
    %v7254 = vld [vmem:[%s7239 + $0x70] sm:$0xff]
    %v7255 = vld [vmem:[%s7239 + $0x78] sm:$0xff]
    %7256 = vmatpush.msra.mxu0 %v7255
    %7257 = vmatpush.msra.mxu0 %v7254
    %7258 = vmatpush.msra.mxu0 %v7253
    %7259 = vmatpush.msra.mxu0 %v7252
    %7260 = vmatpush.msra.mxu0 %v7251
    %7261 = vmatpush.msra.mxu0 %v7250
    %7262 = vmatpush.msra.mxu0 %v7249
    %7263 = vmatpush.msra.mxu0 %v7248
    %7264 = vmatpush.msra.mxu0 %v7247
    %7265 = vmatpush.msra.mxu0 %v7246
    %7266 = vmatpush.msra.mxu0 %v7245
    %7267 = vmatpush.msra.mxu0 %v7244
    %7268 = vmatpush.msra.mxu0 %v7243
    %7269 = vmatpush.msra.mxu0 %v7242
    %7270 = vmatpush.msra.mxu0 %v7241
    %7271 = vmatpush.msra.mxu0 %v7240
    %7272 = vmatmul.f32.gmra.mxu0 %v7234
    %v7273 = vpop.f32.mrf.mxu0
    %v7274 = vadd.f32 0.0, %v7273
    %7275 = vmatmul.f32.gmra.mxu0 %v7235
    %v7276 = vpop.f32.mrf.mxu0
    %v7277 = vadd.f32 0.0, %v7276
    %7278 = vmatmul.f32.gmra.mxu0 %v7236
    %v7279 = vpop.f32.mrf.mxu0
    %v7280 = vadd.f32 0.0, %v7279
    %7281 = vmatmul.f32.gmra.mxu0 %v7237
    %v7282 = vpop.f32.mrf.mxu0
    %v7283 = vadd.f32 0.0, %v7282
    %7284 = vmatmul.f32.gmra.mxu0 %v7238
    %v7285 = vpop.f32.mrf.mxu0
    %v7286 = vadd.f32 0.0, %v7285
    %7287 = vdwg.mxu0
    %v7288 = vadd.f32 %v7229, %v7274
    %v7289 = vadd.f32 %v7230, %v7277
    %v7290 = vadd.f32 %v7231, %v7280
    %v7291 = vadd.f32 %v7232, %v7283
    %v7292 = vadd.f32 %v7233, %v7286
    %v7293 = vld [vmem:[#allocation3 + $0xb] sm:$0xff]
    %v7294 = vld [vmem:[#allocation3 + $0x13] sm:$0xff]
    %v7295 = vld [vmem:[#allocation3 + $0x1b] sm:$0xff]
    %v7296 = vld [vmem:[#allocation3 + $0x23] sm:$0xff]
    %v7297 = vld [vmem:[#allocation3 + $0x2b] sm:$0x1f]
    %s7298 = scalar_lea.vmem [#allocation15], 1408
    %v7299 = vld [vmem:[%s7298] sm:$0xff]
    %v7300 = vld [vmem:[%s7298 + $0x8] sm:$0xff]
    %v7301 = vld [vmem:[%s7298 + $0x10] sm:$0xff]
    %v7302 = vld [vmem:[%s7298 + $0x18] sm:$0xff]
    %v7303 = vld [vmem:[%s7298 + $0x20] sm:$0xff]
    %v7304 = vld [vmem:[%s7298 + $0x28] sm:$0xff]
    %v7305 = vld [vmem:[%s7298 + $0x30] sm:$0xff]
    %v7306 = vld [vmem:[%s7298 + $0x38] sm:$0xff]
    %v7307 = vld [vmem:[%s7298 + $0x40] sm:$0xff]
    %v7308 = vld [vmem:[%s7298 + $0x48] sm:$0xff]
    %v7309 = vld [vmem:[%s7298 + $0x50] sm:$0xff]
    %v7310 = vld [vmem:[%s7298 + $0x58] sm:$0xff]
    %v7311 = vld [vmem:[%s7298 + $0x60] sm:$0xff]
    %v7312 = vld [vmem:[%s7298 + $0x68] sm:$0xff]
    %v7313 = vld [vmem:[%s7298 + $0x70] sm:$0xff]
    %v7314 = vld [vmem:[%s7298 + $0x78] sm:$0xff]
    %7315 = vmatpush.msra.mxu0 %v7314
    %7316 = vmatpush.msra.mxu0 %v7313
    %7317 = vmatpush.msra.mxu0 %v7312
    %7318 = vmatpush.msra.mxu0 %v7311
    %7319 = vmatpush.msra.mxu0 %v7310
    %7320 = vmatpush.msra.mxu0 %v7309
    %7321 = vmatpush.msra.mxu0 %v7308
    %7322 = vmatpush.msra.mxu0 %v7307
    %7323 = vmatpush.msra.mxu0 %v7306
    %7324 = vmatpush.msra.mxu0 %v7305
    %7325 = vmatpush.msra.mxu0 %v7304
    %7326 = vmatpush.msra.mxu0 %v7303
    %7327 = vmatpush.msra.mxu0 %v7302
    %7328 = vmatpush.msra.mxu0 %v7301
    %7329 = vmatpush.msra.mxu0 %v7300
    %7330 = vmatpush.msra.mxu0 %v7299
    %7331 = vmatmul.f32.gmra.mxu0 %v7293
    %v7332 = vpop.f32.mrf.mxu0
    %v7333 = vadd.f32 0.0, %v7332
    %7334 = vmatmul.f32.gmra.mxu0 %v7294
    %v7335 = vpop.f32.mrf.mxu0
    %v7336 = vadd.f32 0.0, %v7335
    %7337 = vmatmul.f32.gmra.mxu0 %v7295
    %v7338 = vpop.f32.mrf.mxu0
    %v7339 = vadd.f32 0.0, %v7338
    %7340 = vmatmul.f32.gmra.mxu0 %v7296
    %v7341 = vpop.f32.mrf.mxu0
    %v7342 = vadd.f32 0.0, %v7341
    %7343 = vmatmul.f32.gmra.mxu0 %v7297
    %v7344 = vpop.f32.mrf.mxu0
    %v7345 = vadd.f32 0.0, %v7344
    %7346 = vdwg.mxu0
    %v7347 = vadd.f32 %v7288, %v7333
    %v7348 = vadd.f32 %v7289, %v7336
    %v7349 = vadd.f32 %v7290, %v7339
    %v7350 = vadd.f32 %v7291, %v7342
    %v7351 = vadd.f32 %v7292, %v7345
    %v7352 = vld [vmem:[#allocation3 + $0xc] sm:$0xff]
    %v7353 = vld [vmem:[#allocation3 + $0x14] sm:$0xff]
    %v7354 = vld [vmem:[#allocation3 + $0x1c] sm:$0xff]
    %v7355 = vld [vmem:[#allocation3 + $0x24] sm:$0xff]
    %v7356 = vld [vmem:[#allocation3 + $0x2c] sm:$0x1f]
    %s7357 = scalar_lea.vmem [#allocation15], 1536
    %v7358 = vld [vmem:[%s7357] sm:$0xff]
    %v7359 = vld [vmem:[%s7357 + $0x8] sm:$0xff]
    %v7360 = vld [vmem:[%s7357 + $0x10] sm:$0xff]
    %v7361 = vld [vmem:[%s7357 + $0x18] sm:$0xff]
    %v7362 = vld [vmem:[%s7357 + $0x20] sm:$0xff]
    %v7363 = vld [vmem:[%s7357 + $0x28] sm:$0xff]
    %v7364 = vld [vmem:[%s7357 + $0x30] sm:$0xff]
    %v7365 = vld [vmem:[%s7357 + $0x38] sm:$0xff]
    %v7366 = vld [vmem:[%s7357 + $0x40] sm:$0xff]
    %v7367 = vld [vmem:[%s7357 + $0x48] sm:$0xff]
    %v7368 = vld [vmem:[%s7357 + $0x50] sm:$0xff]
    %v7369 = vld [vmem:[%s7357 + $0x58] sm:$0xff]
    %v7370 = vld [vmem:[%s7357 + $0x60] sm:$0xff]
    %v7371 = vld [vmem:[%s7357 + $0x68] sm:$0xff]
    %v7372 = vld [vmem:[%s7357 + $0x70] sm:$0xff]
    %v7373 = vld [vmem:[%s7357 + $0x78] sm:$0xff]
    %7374 = vmatpush.msra.mxu0 %v7373
    %7375 = vmatpush.msra.mxu0 %v7372
    %7376 = vmatpush.msra.mxu0 %v7371
    %7377 = vmatpush.msra.mxu0 %v7370
    %7378 = vmatpush.msra.mxu0 %v7369
    %7379 = vmatpush.msra.mxu0 %v7368
    %7380 = vmatpush.msra.mxu0 %v7367
    %7381 = vmatpush.msra.mxu0 %v7366
    %7382 = vmatpush.msra.mxu0 %v7365
    %7383 = vmatpush.msra.mxu0 %v7364
    %7384 = vmatpush.msra.mxu0 %v7363
    %7385 = vmatpush.msra.mxu0 %v7362
    %7386 = vmatpush.msra.mxu0 %v7361
    %7387 = vmatpush.msra.mxu0 %v7360
    %7388 = vmatpush.msra.mxu0 %v7359
    %7389 = vmatpush.msra.mxu0 %v7358
    %7390 = vmatmul.f32.gmra.mxu0 %v7352
    %v7391 = vpop.f32.mrf.mxu0
    %v7392 = vadd.f32 0.0, %v7391
    %7393 = vmatmul.f32.gmra.mxu0 %v7353
    %v7394 = vpop.f32.mrf.mxu0
    %v7395 = vadd.f32 0.0, %v7394
    %7396 = vmatmul.f32.gmra.mxu0 %v7354
    %v7397 = vpop.f32.mrf.mxu0
    %v7398 = vadd.f32 0.0, %v7397
    %7399 = vmatmul.f32.gmra.mxu0 %v7355
    %v7400 = vpop.f32.mrf.mxu0
    %v7401 = vadd.f32 0.0, %v7400
    %7402 = vmatmul.f32.gmra.mxu0 %v7356
    %v7403 = vpop.f32.mrf.mxu0
    %v7404 = vadd.f32 0.0, %v7403
    %7405 = vdwg.mxu0
    %v7406 = vadd.f32 %v7347, %v7392
    %v7407 = vadd.f32 %v7348, %v7395
    %v7408 = vadd.f32 %v7349, %v7398
    %v7409 = vadd.f32 %v7350, %v7401
    %v7410 = vadd.f32 %v7351, %v7404
    %v7411 = vld [vmem:[#allocation3 + $0xd] sm:$0xff]
    %v7412 = vld [vmem:[#allocation3 + $0x15] sm:$0xff]
    %v7413 = vld [vmem:[#allocation3 + $0x1d] sm:$0xff]
    %v7414 = vld [vmem:[#allocation3 + $0x25] sm:$0xff]
    %v7415 = vld [vmem:[#allocation3 + $0x2d] sm:$0x1f]
    %s7416 = scalar_lea.vmem [#allocation15], 1664
    %v7417 = vld [vmem:[%s7416] sm:$0xff]
    %v7418 = vld [vmem:[%s7416 + $0x8] sm:$0xff]
    %v7419 = vld [vmem:[%s7416 + $0x10] sm:$0xff]
    %v7420 = vld [vmem:[%s7416 + $0x18] sm:$0xff]
    %v7421 = vld [vmem:[%s7416 + $0x20] sm:$0xff]
    %v7422 = vld [vmem:[%s7416 + $0x28] sm:$0xff]
    %v7423 = vld [vmem:[%s7416 + $0x30] sm:$0xff]
    %v7424 = vld [vmem:[%s7416 + $0x38] sm:$0xff]
    %v7425 = vld [vmem:[%s7416 + $0x40] sm:$0xff]
    %v7426 = vld [vmem:[%s7416 + $0x48] sm:$0xff]
    %v7427 = vld [vmem:[%s7416 + $0x50] sm:$0xff]
    %v7428 = vld [vmem:[%s7416 + $0x58] sm:$0xff]
    %v7429 = vld [vmem:[%s7416 + $0x60] sm:$0xff]
    %v7430 = vld [vmem:[%s7416 + $0x68] sm:$0xff]
    %v7431 = vld [vmem:[%s7416 + $0x70] sm:$0xff]
    %v7432 = vld [vmem:[%s7416 + $0x78] sm:$0xff]
    %7433 = vmatpush.msra.mxu0 %v7432
    %7434 = vmatpush.msra.mxu0 %v7431
    %7435 = vmatpush.msra.mxu0 %v7430
    %7436 = vmatpush.msra.mxu0 %v7429
    %7437 = vmatpush.msra.mxu0 %v7428
    %7438 = vmatpush.msra.mxu0 %v7427
    %7439 = vmatpush.msra.mxu0 %v7426
    %7440 = vmatpush.msra.mxu0 %v7425
    %7441 = vmatpush.msra.mxu0 %v7424
    %7442 = vmatpush.msra.mxu0 %v7423
    %7443 = vmatpush.msra.mxu0 %v7422
    %7444 = vmatpush.msra.mxu0 %v7421
    %7445 = vmatpush.msra.mxu0 %v7420
    %7446 = vmatpush.msra.mxu0 %v7419
    %7447 = vmatpush.msra.mxu0 %v7418
    %7448 = vmatpush.msra.mxu0 %v7417
    %7449 = vmatmul.f32.gmra.mxu0 %v7411
    %v7450 = vpop.f32.mrf.mxu0
    %v7451 = vadd.f32 0.0, %v7450
    %7452 = vmatmul.f32.gmra.mxu0 %v7412
    %v7453 = vpop.f32.mrf.mxu0
    %v7454 = vadd.f32 0.0, %v7453
    %7455 = vmatmul.f32.gmra.mxu0 %v7413
    %v7456 = vpop.f32.mrf.mxu0
    %v7457 = vadd.f32 0.0, %v7456
    %7458 = vmatmul.f32.gmra.mxu0 %v7414
    %v7459 = vpop.f32.mrf.mxu0
    %v7460 = vadd.f32 0.0, %v7459
    %7461 = vmatmul.f32.gmra.mxu0 %v7415
    %v7462 = vpop.f32.mrf.mxu0
    %v7463 = vadd.f32 0.0, %v7462
    %7464 = vdwg.mxu0
    %v7465 = vadd.f32 %v7406, %v7451
    %v7466 = vadd.f32 %v7407, %v7454
    %v7467 = vadd.f32 %v7408, %v7457
    %v7468 = vadd.f32 %v7409, %v7460
    %v7469 = vadd.f32 %v7410, %v7463
    %v7470 = vld [vmem:[#allocation3 + $0xe] sm:$0xff]
    %v7471 = vld [vmem:[#allocation3 + $0x16] sm:$0xff]
    %v7472 = vld [vmem:[#allocation3 + $0x1e] sm:$0xff]
    %v7473 = vld [vmem:[#allocation3 + $0x26] sm:$0xff]
    %v7474 = vld [vmem:[#allocation3 + $0x2e] sm:$0x1f]
    %s7475 = scalar_lea.vmem [#allocation15], 1792
    %v7476 = vld [vmem:[%s7475] sm:$0xff]
    %v7477 = vld [vmem:[%s7475 + $0x8] sm:$0xff]
    %v7478 = vld [vmem:[%s7475 + $0x10] sm:$0xff]
    %v7479 = vld [vmem:[%s7475 + $0x18] sm:$0xff]
    %v7480 = vld [vmem:[%s7475 + $0x20] sm:$0xff]
    %v7481 = vld [vmem:[%s7475 + $0x28] sm:$0xff]
    %v7482 = vld [vmem:[%s7475 + $0x30] sm:$0xff]
    %v7483 = vld [vmem:[%s7475 + $0x38] sm:$0xff]
    %v7484 = vld [vmem:[%s7475 + $0x40] sm:$0xff]
    %v7485 = vld [vmem:[%s7475 + $0x48] sm:$0xff]
    %v7486 = vld [vmem:[%s7475 + $0x50] sm:$0xff]
    %v7487 = vld [vmem:[%s7475 + $0x58] sm:$0xff]
    %v7488 = vld [vmem:[%s7475 + $0x60] sm:$0xff]
    %v7489 = vld [vmem:[%s7475 + $0x68] sm:$0xff]
    %v7490 = vld [vmem:[%s7475 + $0x70] sm:$0xff]
    %v7491 = vld [vmem:[%s7475 + $0x78] sm:$0xff]
    %7492 = vmatpush.msra.mxu0 %v7491
    %7493 = vmatpush.msra.mxu0 %v7490
    %7494 = vmatpush.msra.mxu0 %v7489
    %7495 = vmatpush.msra.mxu0 %v7488
    %7496 = vmatpush.msra.mxu0 %v7487
    %7497 = vmatpush.msra.mxu0 %v7486
    %7498 = vmatpush.msra.mxu0 %v7485
    %7499 = vmatpush.msra.mxu0 %v7484
    %7500 = vmatpush.msra.mxu0 %v7483
    %7501 = vmatpush.msra.mxu0 %v7482
    %7502 = vmatpush.msra.mxu0 %v7481
    %7503 = vmatpush.msra.mxu0 %v7480
    %7504 = vmatpush.msra.mxu0 %v7479
    %7505 = vmatpush.msra.mxu0 %v7478
    %7506 = vmatpush.msra.mxu0 %v7477
    %7507 = vmatpush.msra.mxu0 %v7476
    %7508 = vmatmul.f32.gmra.mxu0 %v7470
    %v7509 = vpop.f32.mrf.mxu0
    %v7510 = vadd.f32 0.0, %v7509
    %7511 = vmatmul.f32.gmra.mxu0 %v7471
    %v7512 = vpop.f32.mrf.mxu0
    %v7513 = vadd.f32 0.0, %v7512
    %7514 = vmatmul.f32.gmra.mxu0 %v7472
    %v7515 = vpop.f32.mrf.mxu0
    %v7516 = vadd.f32 0.0, %v7515
    %7517 = vmatmul.f32.gmra.mxu0 %v7473
    %v7518 = vpop.f32.mrf.mxu0
    %v7519 = vadd.f32 0.0, %v7518
    %7520 = vmatmul.f32.gmra.mxu0 %v7474
    %v7521 = vpop.f32.mrf.mxu0
    %v7522 = vadd.f32 0.0, %v7521
    %7523 = vdwg.mxu0
    %v7524 = vadd.f32 %v7465, %v7510
    %v7525 = vadd.f32 %v7466, %v7513
    %v7526 = vadd.f32 %v7467, %v7516
    %v7527 = vadd.f32 %v7468, %v7519
    %v7528 = vadd.f32 %v7469, %v7522
    %v7529 = vld [vmem:[#allocation3 + $0xf] sm:$0xff]
    %v7530 = vld [vmem:[#allocation3 + $0x17] sm:$0xff]
    %v7531 = vld [vmem:[#allocation3 + $0x1f] sm:$0xff]
    %v7532 = vld [vmem:[#allocation3 + $0x27] sm:$0xff]
    %v7533 = vld [vmem:[#allocation3 + $0x2f] sm:$0x1f]
    %s7534 = scalar_lea.vmem [#allocation15], 1920
    %v7535 = vld [vmem:[%s7534] sm:$0xff]
    %v7536 = vld [vmem:[%s7534 + $0x8] sm:$0xff]
    %v7537 = vld [vmem:[%s7534 + $0x10] sm:$0xff]
    %v7538 = vld [vmem:[%s7534 + $0x18] sm:$0xff]
    %v7539 = vld [vmem:[%s7534 + $0x20] sm:$0xff]
    %v7540 = vld [vmem:[%s7534 + $0x28] sm:$0xff]
    %v7541 = vld [vmem:[%s7534 + $0x30] sm:$0xff]
    %v7542 = vld [vmem:[%s7534 + $0x38] sm:$0xff]
    %v7543 = vld [vmem:[%s7534 + $0x40] sm:$0xff]
    %v7544 = vld [vmem:[%s7534 + $0x48] sm:$0xff]
    %v7545 = vld [vmem:[%s7534 + $0x50] sm:$0xff]
    %v7546 = vld [vmem:[%s7534 + $0x58] sm:$0xff]
    %v7547 = vld [vmem:[%s7534 + $0x60] sm:$0xff]
    %v7548 = vld [vmem:[%s7534 + $0x68] sm:$0xff]
    %v7549 = vld [vmem:[%s7534 + $0x70] sm:$0xff]
    %v7550 = vld [vmem:[%s7534 + $0x78] sm:$0xff]
    %7551 = vmatpush.msra.mxu0 %v7550
    %7552 = vmatpush.msra.mxu0 %v7549
    %7553 = vmatpush.msra.mxu0 %v7548
    %7554 = vmatpush.msra.mxu0 %v7547
    %7555 = vmatpush.msra.mxu0 %v7546
    %7556 = vmatpush.msra.mxu0 %v7545
    %7557 = vmatpush.msra.mxu0 %v7544
    %7558 = vmatpush.msra.mxu0 %v7543
    %7559 = vmatpush.msra.mxu0 %v7542
    %7560 = vmatpush.msra.mxu0 %v7541
    %7561 = vmatpush.msra.mxu0 %v7540
    %7562 = vmatpush.msra.mxu0 %v7539
    %7563 = vmatpush.msra.mxu0 %v7538
    %7564 = vmatpush.msra.mxu0 %v7537
    %7565 = vmatpush.msra.mxu0 %v7536
    %7566 = vmatpush.msra.mxu0 %v7535
    %7567 = vmatmul.f32.gmra.mxu0 %v7529
    %v7568 = vpop.f32.mrf.mxu0
    %v7569 = vadd.f32 0.0, %v7568
    %7570 = vmatmul.f32.gmra.mxu0 %v7530
    %v7571 = vpop.f32.mrf.mxu0
    %v7572 = vadd.f32 0.0, %v7571
    %7573 = vmatmul.f32.gmra.mxu0 %v7531
    %v7574 = vpop.f32.mrf.mxu0
    %v7575 = vadd.f32 0.0, %v7574
    %7576 = vmatmul.f32.gmra.mxu0 %v7532
    %v7577 = vpop.f32.mrf.mxu0
    %v7578 = vadd.f32 0.0, %v7577
    %7579 = vmatmul.f32.gmra.mxu0 %v7533
    %v7580 = vpop.f32.mrf.mxu0
    %v7581 = vadd.f32 0.0, %v7580
    %7582 = vdwg.mxu0
    %v7583 = vadd.f32 %v7524, %v7569
    %v7584 = vadd.f32 %v7525, %v7572
    %v7585 = vadd.f32 %v7526, %v7575
    %v7586 = vadd.f32 %v7527, %v7578
    %v7587 = vadd.f32 %v7528, %v7581
    %v7588 = vld [vmem:[#allocation3 + $0x10] sm:$0xff]
    %v7589 = vld [vmem:[#allocation3 + $0x18] sm:$0xff]
    %v7590 = vld [vmem:[#allocation3 + $0x20] sm:$0xff]
    %v7591 = vld [vmem:[#allocation3 + $0x28] sm:$0xff]
    %v7592 = vld [vmem:[#allocation3 + $0x30] sm:$0x1f]
    %s7593 = scalar_lea.vmem [#allocation15], 2048
    %v7594 = vld [vmem:[%s7593] sm:$0xff]
    %v7595 = vld [vmem:[%s7593 + $0x8] sm:$0xff]
    %v7596 = vld [vmem:[%s7593 + $0x10] sm:$0xff]
    %v7597 = vld [vmem:[%s7593 + $0x18] sm:$0xff]
    %v7598 = vld [vmem:[%s7593 + $0x20] sm:$0xff]
    %v7599 = vld [vmem:[%s7593 + $0x28] sm:$0xff]
    %v7600 = vld [vmem:[%s7593 + $0x30] sm:$0xff]
    %v7601 = vld [vmem:[%s7593 + $0x38] sm:$0xff]
    %v7602 = vld [vmem:[%s7593 + $0x40] sm:$0xff]
    %v7603 = vld [vmem:[%s7593 + $0x48] sm:$0xff]
    %v7604 = vld [vmem:[%s7593 + $0x50] sm:$0xff]
    %v7605 = vld [vmem:[%s7593 + $0x58] sm:$0xff]
    %v7606 = vld [vmem:[%s7593 + $0x60] sm:$0xff]
    %v7607 = vld [vmem:[%s7593 + $0x68] sm:$0xff]
    %v7608 = vld [vmem:[%s7593 + $0x70] sm:$0xff]
    %v7609 = vld [vmem:[%s7593 + $0x78] sm:$0xff]
    %7610 = vmatpush.msra.mxu0 %v7609
    %7611 = vmatpush.msra.mxu0 %v7608
    %7612 = vmatpush.msra.mxu0 %v7607
    %7613 = vmatpush.msra.mxu0 %v7606
    %7614 = vmatpush.msra.mxu0 %v7605
    %7615 = vmatpush.msra.mxu0 %v7604
    %7616 = vmatpush.msra.mxu0 %v7603
    %7617 = vmatpush.msra.mxu0 %v7602
    %7618 = vmatpush.msra.mxu0 %v7601
    %7619 = vmatpush.msra.mxu0 %v7600
    %7620 = vmatpush.msra.mxu0 %v7599
    %7621 = vmatpush.msra.mxu0 %v7598
    %7622 = vmatpush.msra.mxu0 %v7597
    %7623 = vmatpush.msra.mxu0 %v7596
    %7624 = vmatpush.msra.mxu0 %v7595
    %7625 = vmatpush.msra.mxu0 %v7594
    %7626 = vmatmul.f32.gmra.mxu0 %v7588
    %v7627 = vpop.f32.mrf.mxu0
    %v7628 = vadd.f32 0.0, %v7627
    %7629 = vmatmul.f32.gmra.mxu0 %v7589
    %v7630 = vpop.f32.mrf.mxu0
    %v7631 = vadd.f32 0.0, %v7630
    %7632 = vmatmul.f32.gmra.mxu0 %v7590
    %v7633 = vpop.f32.mrf.mxu0
    %v7634 = vadd.f32 0.0, %v7633
    %7635 = vmatmul.f32.gmra.mxu0 %v7591
    %v7636 = vpop.f32.mrf.mxu0
    %v7637 = vadd.f32 0.0, %v7636
    %7638 = vmatmul.f32.gmra.mxu0 %v7592
    %v7639 = vpop.f32.mrf.mxu0
    %v7640 = vadd.f32 0.0, %v7639
    %7641 = vdwg.mxu0
    %v7642 = vadd.f32 %v7583, %v7628
    %v7643 = vadd.f32 %v7584, %v7631
    %v7644 = vadd.f32 %v7585, %v7634
    %v7645 = vadd.f32 %v7586, %v7637
    %v7646 = vadd.f32 %v7587, %v7640
    %v7647 = vld [vmem:[#allocation3 + $0x11] sm:$0xff]
    %v7648 = vld [vmem:[#allocation3 + $0x19] sm:$0xff]
    %v7649 = vld [vmem:[#allocation3 + $0x21] sm:$0xff]
    %v7650 = vld [vmem:[#allocation3 + $0x29] sm:$0xff]
    %v7651 = vld [vmem:[#allocation3 + $0x31] sm:$0x1f]
    %s7652 = scalar_lea.vmem [#allocation15], 2176
    %v7653 = vld [vmem:[%s7652] sm:$0xff]
    %v7654 = vld [vmem:[%s7652 + $0x8] sm:$0xff]
    %v7655 = vld [vmem:[%s7652 + $0x10] sm:$0xff]
    %v7656 = vld [vmem:[%s7652 + $0x18] sm:$0xff]
    %v7657 = vld [vmem:[%s7652 + $0x20] sm:$0xff]
    %v7658 = vld [vmem:[%s7652 + $0x28] sm:$0xff]
    %v7659 = vld [vmem:[%s7652 + $0x30] sm:$0xff]
    %v7660 = vld [vmem:[%s7652 + $0x38] sm:$0xff]
    %v7661 = vld [vmem:[%s7652 + $0x40] sm:$0xff]
    %v7662 = vld [vmem:[%s7652 + $0x48] sm:$0xff]
    %v7663 = vld [vmem:[%s7652 + $0x50] sm:$0xff]
    %v7664 = vld [vmem:[%s7652 + $0x58] sm:$0xff]
    %v7665 = vld [vmem:[%s7652 + $0x60] sm:$0xff]
    %v7666 = vld [vmem:[%s7652 + $0x68] sm:$0xff]
    %v7667 = vld [vmem:[%s7652 + $0x70] sm:$0xff]
    %v7668 = vld [vmem:[%s7652 + $0x78] sm:$0xff]
    %7669 = vmatpush.msra.mxu0 %v7668
    %7670 = vmatpush.msra.mxu0 %v7667
    %7671 = vmatpush.msra.mxu0 %v7666
    %7672 = vmatpush.msra.mxu0 %v7665
    %7673 = vmatpush.msra.mxu0 %v7664
    %7674 = vmatpush.msra.mxu0 %v7663
    %7675 = vmatpush.msra.mxu0 %v7662
    %7676 = vmatpush.msra.mxu0 %v7661
    %7677 = vmatpush.msra.mxu0 %v7660
    %7678 = vmatpush.msra.mxu0 %v7659
    %7679 = vmatpush.msra.mxu0 %v7658
    %7680 = vmatpush.msra.mxu0 %v7657
    %7681 = vmatpush.msra.mxu0 %v7656
    %7682 = vmatpush.msra.mxu0 %v7655
    %7683 = vmatpush.msra.mxu0 %v7654
    %7684 = vmatpush.msra.mxu0 %v7653
    %7685 = vmatmul.f32.gmra.mxu0 %v7647
    %v7686 = vpop.f32.mrf.mxu0
    %v7687 = vadd.f32 0.0, %v7686
    %7688 = vmatmul.f32.gmra.mxu0 %v7648
    %v7689 = vpop.f32.mrf.mxu0
    %v7690 = vadd.f32 0.0, %v7689
    %7691 = vmatmul.f32.gmra.mxu0 %v7649
    %v7692 = vpop.f32.mrf.mxu0
    %v7693 = vadd.f32 0.0, %v7692
    %7694 = vmatmul.f32.gmra.mxu0 %v7650
    %v7695 = vpop.f32.mrf.mxu0
    %v7696 = vadd.f32 0.0, %v7695
    %7697 = vmatmul.f32.gmra.mxu0 %v7651
    %v7698 = vpop.f32.mrf.mxu0
    %v7699 = vadd.f32 0.0, %v7698
    %7700 = vdwg.mxu0
    %v7701 = vadd.f32 %v7642, %v7687
    %v7702 = vadd.f32 %v7643, %v7690
    %v7703 = vadd.f32 %v7644, %v7693
    %v7704 = vadd.f32 %v7645, %v7696
    %v7705 = vadd.f32 %v7646, %v7699
    %v7706 = vld [vmem:[#allocation3 + $0x12] sm:$0xff]
    %v7707 = vld [vmem:[#allocation3 + $0x1a] sm:$0xff]
    %v7708 = vld [vmem:[#allocation3 + $0x22] sm:$0xff]
    %v7709 = vld [vmem:[#allocation3 + $0x2a] sm:$0xff]
    %v7710 = vld [vmem:[#allocation3 + $0x32] sm:$0x1f]
    %s7711 = scalar_lea.vmem [#allocation15], 2304
    %v7712 = vld [vmem:[%s7711] sm:$0xff]
    %v7713 = vld [vmem:[%s7711 + $0x8] sm:$0xff]
    %v7714 = vld [vmem:[%s7711 + $0x10] sm:$0xff]
    %v7715 = vld [vmem:[%s7711 + $0x18] sm:$0xff]
    %v7716 = vld [vmem:[%s7711 + $0x20] sm:$0xff]
    %v7717 = vld [vmem:[%s7711 + $0x28] sm:$0xff]
    %v7718 = vld [vmem:[%s7711 + $0x30] sm:$0xff]
    %v7719 = vld [vmem:[%s7711 + $0x38] sm:$0xff]
    %v7720 = vld [vmem:[%s7711 + $0x40] sm:$0xff]
    %v7721 = vld [vmem:[%s7711 + $0x48] sm:$0xff]
    %v7722 = vld [vmem:[%s7711 + $0x50] sm:$0xff]
    %v7723 = vld [vmem:[%s7711 + $0x58] sm:$0xff]
    %v7724 = vld [vmem:[%s7711 + $0x60] sm:$0xff]
    %v7725 = vld [vmem:[%s7711 + $0x68] sm:$0xff]
    %v7726 = vld [vmem:[%s7711 + $0x70] sm:$0xff]
    %v7727 = vld [vmem:[%s7711 + $0x78] sm:$0xff]
    %7728 = vmatpush.msra.mxu0 %v7727
    %7729 = vmatpush.msra.mxu0 %v7726
    %7730 = vmatpush.msra.mxu0 %v7725
    %7731 = vmatpush.msra.mxu0 %v7724
    %7732 = vmatpush.msra.mxu0 %v7723
    %7733 = vmatpush.msra.mxu0 %v7722
    %7734 = vmatpush.msra.mxu0 %v7721
    %7735 = vmatpush.msra.mxu0 %v7720
    %7736 = vmatpush.msra.mxu0 %v7719
    %7737 = vmatpush.msra.mxu0 %v7718
    %7738 = vmatpush.msra.mxu0 %v7717
    %7739 = vmatpush.msra.mxu0 %v7716
    %7740 = vmatpush.msra.mxu0 %v7715
    %7741 = vmatpush.msra.mxu0 %v7714
    %7742 = vmatpush.msra.mxu0 %v7713
    %7743 = vmatpush.msra.mxu0 %v7712
    %7744 = vmatmul.f32.gmra.mxu0 %v7706
    %v7745 = vpop.f32.mrf.mxu0
    %v7746 = vadd.f32 0.0, %v7745
    %7747 = vmatmul.f32.gmra.mxu0 %v7707
    %v7748 = vpop.f32.mrf.mxu0
    %v7749 = vadd.f32 0.0, %v7748
    %7750 = vmatmul.f32.gmra.mxu0 %v7708
    %v7751 = vpop.f32.mrf.mxu0
    %v7752 = vadd.f32 0.0, %v7751
    %7753 = vmatmul.f32.gmra.mxu0 %v7709
    %v7754 = vpop.f32.mrf.mxu0
    %v7755 = vadd.f32 0.0, %v7754
    %7756 = vmatmul.f32.gmra.mxu0 %v7710
    %v7757 = vpop.f32.mrf.mxu0
    %v7758 = vadd.f32 0.0, %v7757
    %7759 = vdwg.mxu0
    %v7760 = vadd.f32 %v7701, %v7746
    %v7761 = vadd.f32 %v7702, %v7749
    %v7762 = vadd.f32 %v7703, %v7752
    %v7763 = vadd.f32 %v7704, %v7755
    %v7764 = vadd.f32 %v7705, %v7758
    %v7765 = vld [vmem:[#allocation3 + $0x13] sm:$0xff]
    %v7766 = vld [vmem:[#allocation3 + $0x1b] sm:$0xff]
    %v7767 = vld [vmem:[#allocation3 + $0x23] sm:$0xff]
    %v7768 = vld [vmem:[#allocation3 + $0x2b] sm:$0xff]
    %v7769 = vld [vmem:[#allocation3 + $0x33] sm:$0x1f]
    %s7770 = scalar_lea.vmem [#allocation15], 2432
    %v7771 = vld [vmem:[%s7770] sm:$0xff]
    %v7772 = vld [vmem:[%s7770 + $0x8] sm:$0xff]
    %v7773 = vld [vmem:[%s7770 + $0x10] sm:$0xff]
    %v7774 = vld [vmem:[%s7770 + $0x18] sm:$0xff]
    %v7775 = vld [vmem:[%s7770 + $0x20] sm:$0xff]
    %v7776 = vld [vmem:[%s7770 + $0x28] sm:$0xff]
    %v7777 = vld [vmem:[%s7770 + $0x30] sm:$0xff]
    %v7778 = vld [vmem:[%s7770 + $0x38] sm:$0xff]
    %v7779 = vld [vmem:[%s7770 + $0x40] sm:$0xff]
    %v7780 = vld [vmem:[%s7770 + $0x48] sm:$0xff]
    %v7781 = vld [vmem:[%s7770 + $0x50] sm:$0xff]
    %v7782 = vld [vmem:[%s7770 + $0x58] sm:$0xff]
    %v7783 = vld [vmem:[%s7770 + $0x60] sm:$0xff]
    %v7784 = vld [vmem:[%s7770 + $0x68] sm:$0xff]
    %v7785 = vld [vmem:[%s7770 + $0x70] sm:$0xff]
    %v7786 = vld [vmem:[%s7770 + $0x78] sm:$0xff]
    %7787 = vmatpush.msra.mxu0 %v7786
    %7788 = vmatpush.msra.mxu0 %v7785
    %7789 = vmatpush.msra.mxu0 %v7784
    %7790 = vmatpush.msra.mxu0 %v7783
    %7791 = vmatpush.msra.mxu0 %v7782
    %7792 = vmatpush.msra.mxu0 %v7781
    %7793 = vmatpush.msra.mxu0 %v7780
    %7794 = vmatpush.msra.mxu0 %v7779
    %7795 = vmatpush.msra.mxu0 %v7778
    %7796 = vmatpush.msra.mxu0 %v7777
    %7797 = vmatpush.msra.mxu0 %v7776
    %7798 = vmatpush.msra.mxu0 %v7775
    %7799 = vmatpush.msra.mxu0 %v7774
    %7800 = vmatpush.msra.mxu0 %v7773
    %7801 = vmatpush.msra.mxu0 %v7772
    %7802 = vmatpush.msra.mxu0 %v7771
    %7803 = vmatmul.f32.gmra.mxu0 %v7765
    %v7804 = vpop.f32.mrf.mxu0
    %v7805 = vadd.f32 0.0, %v7804
    %7806 = vmatmul.f32.gmra.mxu0 %v7766
    %v7807 = vpop.f32.mrf.mxu0
    %v7808 = vadd.f32 0.0, %v7807
    %7809 = vmatmul.f32.gmra.mxu0 %v7767
    %v7810 = vpop.f32.mrf.mxu0
    %v7811 = vadd.f32 0.0, %v7810
    %7812 = vmatmul.f32.gmra.mxu0 %v7768
    %v7813 = vpop.f32.mrf.mxu0
    %v7814 = vadd.f32 0.0, %v7813
    %7815 = vmatmul.f32.gmra.mxu0 %v7769
    %v7816 = vpop.f32.mrf.mxu0
    %v7817 = vadd.f32 0.0, %v7816
    %7818 = vdwg.mxu0
    %v7819 = vadd.f32 %v7760, %v7805
    %v7820 = vadd.f32 %v7761, %v7808
    %v7821 = vadd.f32 %v7762, %v7811
    %v7822 = vadd.f32 %v7763, %v7814
    %v7823 = vadd.f32 %v7764, %v7817
    %v7824 = vld [vmem:[#allocation3 + $0x14] sm:$0xff]
    %v7825 = vld [vmem:[#allocation3 + $0x1c] sm:$0xff]
    %v7826 = vld [vmem:[#allocation3 + $0x24] sm:$0xff]
    %v7827 = vld [vmem:[#allocation3 + $0x2c] sm:$0xff]
    %v7828 = vld [vmem:[#allocation3 + $0x34] sm:$0x1f]
    %s7829 = scalar_lea.vmem [#allocation15], 2560
    %v7830 = vld [vmem:[%s7829] sm:$0xff]
    %v7831 = vld [vmem:[%s7829 + $0x8] sm:$0xff]
    %v7832 = vld [vmem:[%s7829 + $0x10] sm:$0xff]
    %v7833 = vld [vmem:[%s7829 + $0x18] sm:$0xff]
    %v7834 = vld [vmem:[%s7829 + $0x20] sm:$0xff]
    %v7835 = vld [vmem:[%s7829 + $0x28] sm:$0xff]
    %v7836 = vld [vmem:[%s7829 + $0x30] sm:$0xff]
    %v7837 = vld [vmem:[%s7829 + $0x38] sm:$0xff]
    %v7838 = vld [vmem:[%s7829 + $0x40] sm:$0xff]
    %v7839 = vld [vmem:[%s7829 + $0x48] sm:$0xff]
    %v7840 = vld [vmem:[%s7829 + $0x50] sm:$0xff]
    %v7841 = vld [vmem:[%s7829 + $0x58] sm:$0xff]
    %v7842 = vld [vmem:[%s7829 + $0x60] sm:$0xff]
    %v7843 = vld [vmem:[%s7829 + $0x68] sm:$0xff]
    %v7844 = vld [vmem:[%s7829 + $0x70] sm:$0xff]
    %v7845 = vld [vmem:[%s7829 + $0x78] sm:$0xff]
    %7846 = vmatpush.msra.mxu0 %v7845
    %7847 = vmatpush.msra.mxu0 %v7844
    %7848 = vmatpush.msra.mxu0 %v7843
    %7849 = vmatpush.msra.mxu0 %v7842
    %7850 = vmatpush.msra.mxu0 %v7841
    %7851 = vmatpush.msra.mxu0 %v7840
    %7852 = vmatpush.msra.mxu0 %v7839
    %7853 = vmatpush.msra.mxu0 %v7838
    %7854 = vmatpush.msra.mxu0 %v7837
    %7855 = vmatpush.msra.mxu0 %v7836
    %7856 = vmatpush.msra.mxu0 %v7835
    %7857 = vmatpush.msra.mxu0 %v7834
    %7858 = vmatpush.msra.mxu0 %v7833
    %7859 = vmatpush.msra.mxu0 %v7832
    %7860 = vmatpush.msra.mxu0 %v7831
    %7861 = vmatpush.msra.mxu0 %v7830
    %7862 = vmatmul.f32.gmra.mxu0 %v7824
    %v7863 = vpop.f32.mrf.mxu0
    %v7864 = vadd.f32 0.0, %v7863
    %7865 = vmatmul.f32.gmra.mxu0 %v7825
    %v7866 = vpop.f32.mrf.mxu0
    %v7867 = vadd.f32 0.0, %v7866
    %7868 = vmatmul.f32.gmra.mxu0 %v7826
    %v7869 = vpop.f32.mrf.mxu0
    %v7870 = vadd.f32 0.0, %v7869
    %7871 = vmatmul.f32.gmra.mxu0 %v7827
    %v7872 = vpop.f32.mrf.mxu0
    %v7873 = vadd.f32 0.0, %v7872
    %7874 = vmatmul.f32.gmra.mxu0 %v7828
    %v7875 = vpop.f32.mrf.mxu0
    %v7876 = vadd.f32 0.0, %v7875
    %7877 = vdwg.mxu0
    %v7878 = vadd.f32 %v7819, %v7864
    %v7879 = vadd.f32 %v7820, %v7867
    %v7880 = vadd.f32 %v7821, %v7870
    %v7881 = vadd.f32 %v7822, %v7873
    %v7882 = vadd.f32 %v7823, %v7876
    %v7883 = vld [vmem:[#allocation3 + $0x15] sm:$0xff]
    %v7884 = vld [vmem:[#allocation3 + $0x1d] sm:$0xff]
    %v7885 = vld [vmem:[#allocation3 + $0x25] sm:$0xff]
    %v7886 = vld [vmem:[#allocation3 + $0x2d] sm:$0xff]
    %v7887 = vld [vmem:[#allocation3 + $0x35] sm:$0x1f]
    %s7888 = scalar_lea.vmem [#allocation15], 2688
    %v7889 = vld [vmem:[%s7888] sm:$0xff]
    %v7890 = vld [vmem:[%s7888 + $0x8] sm:$0xff]
    %v7891 = vld [vmem:[%s7888 + $0x10] sm:$0xff]
    %v7892 = vld [vmem:[%s7888 + $0x18] sm:$0xff]
    %v7893 = vld [vmem:[%s7888 + $0x20] sm:$0xff]
    %v7894 = vld [vmem:[%s7888 + $0x28] sm:$0xff]
    %v7895 = vld [vmem:[%s7888 + $0x30] sm:$0xff]
    %v7896 = vld [vmem:[%s7888 + $0x38] sm:$0xff]
    %v7897 = vld [vmem:[%s7888 + $0x40] sm:$0xff]
    %v7898 = vld [vmem:[%s7888 + $0x48] sm:$0xff]
    %v7899 = vld [vmem:[%s7888 + $0x50] sm:$0xff]
    %v7900 = vld [vmem:[%s7888 + $0x58] sm:$0xff]
    %v7901 = vld [vmem:[%s7888 + $0x60] sm:$0xff]
    %v7902 = vld [vmem:[%s7888 + $0x68] sm:$0xff]
    %v7903 = vld [vmem:[%s7888 + $0x70] sm:$0xff]
    %v7904 = vld [vmem:[%s7888 + $0x78] sm:$0xff]
    %7905 = vmatpush.msra.mxu0 %v7904
    %7906 = vmatpush.msra.mxu0 %v7903
    %7907 = vmatpush.msra.mxu0 %v7902
    %7908 = vmatpush.msra.mxu0 %v7901
    %7909 = vmatpush.msra.mxu0 %v7900
    %7910 = vmatpush.msra.mxu0 %v7899
    %7911 = vmatpush.msra.mxu0 %v7898
    %7912 = vmatpush.msra.mxu0 %v7897
    %7913 = vmatpush.msra.mxu0 %v7896
    %7914 = vmatpush.msra.mxu0 %v7895
    %7915 = vmatpush.msra.mxu0 %v7894
    %7916 = vmatpush.msra.mxu0 %v7893
    %7917 = vmatpush.msra.mxu0 %v7892
    %7918 = vmatpush.msra.mxu0 %v7891
    %7919 = vmatpush.msra.mxu0 %v7890
    %7920 = vmatpush.msra.mxu0 %v7889
    %7921 = vmatmul.f32.gmra.mxu0 %v7883
    %v7922 = vpop.f32.mrf.mxu0
    %v7923 = vadd.f32 0.0, %v7922
    %7924 = vmatmul.f32.gmra.mxu0 %v7884
    %v7925 = vpop.f32.mrf.mxu0
    %v7926 = vadd.f32 0.0, %v7925
    %7927 = vmatmul.f32.gmra.mxu0 %v7885
    %v7928 = vpop.f32.mrf.mxu0
    %v7929 = vadd.f32 0.0, %v7928
    %7930 = vmatmul.f32.gmra.mxu0 %v7886
    %v7931 = vpop.f32.mrf.mxu0
    %v7932 = vadd.f32 0.0, %v7931
    %7933 = vmatmul.f32.gmra.mxu0 %v7887
    %v7934 = vpop.f32.mrf.mxu0
    %v7935 = vadd.f32 0.0, %v7934
    %7936 = vdwg.mxu0
    %v7937 = vadd.f32 %v7878, %v7923
    %v7938 = vadd.f32 %v7879, %v7926
    %v7939 = vadd.f32 %v7880, %v7929
    %v7940 = vadd.f32 %v7881, %v7932
    %v7941 = vadd.f32 %v7882, %v7935
    %v7942 = vld [vmem:[#allocation3 + $0x16] sm:$0xff]
    %v7943 = vld [vmem:[#allocation3 + $0x1e] sm:$0xff]
    %v7944 = vld [vmem:[#allocation3 + $0x26] sm:$0xff]
    %v7945 = vld [vmem:[#allocation3 + $0x2e] sm:$0xff]
    %v7946 = vld [vmem:[#allocation3 + $0x36] sm:$0x1f]
    %s7947 = scalar_lea.vmem [#allocation15], 2816
    %v7948 = vld [vmem:[%s7947] sm:$0xff]
    %v7949 = vld [vmem:[%s7947 + $0x8] sm:$0xff]
    %v7950 = vld [vmem:[%s7947 + $0x10] sm:$0xff]
    %v7951 = vld [vmem:[%s7947 + $0x18] sm:$0xff]
    %v7952 = vld [vmem:[%s7947 + $0x20] sm:$0xff]
    %v7953 = vld [vmem:[%s7947 + $0x28] sm:$0xff]
    %v7954 = vld [vmem:[%s7947 + $0x30] sm:$0xff]
    %v7955 = vld [vmem:[%s7947 + $0x38] sm:$0xff]
    %v7956 = vld [vmem:[%s7947 + $0x40] sm:$0xff]
    %v7957 = vld [vmem:[%s7947 + $0x48] sm:$0xff]
    %v7958 = vld [vmem:[%s7947 + $0x50] sm:$0xff]
    %v7959 = vld [vmem:[%s7947 + $0x58] sm:$0xff]
    %v7960 = vld [vmem:[%s7947 + $0x60] sm:$0xff]
    %v7961 = vld [vmem:[%s7947 + $0x68] sm:$0xff]
    %v7962 = vld [vmem:[%s7947 + $0x70] sm:$0xff]
    %v7963 = vld [vmem:[%s7947 + $0x78] sm:$0xff]
    %7964 = vmatpush.msra.mxu0 %v7963
    %7965 = vmatpush.msra.mxu0 %v7962
    %7966 = vmatpush.msra.mxu0 %v7961
    %7967 = vmatpush.msra.mxu0 %v7960
    %7968 = vmatpush.msra.mxu0 %v7959
    %7969 = vmatpush.msra.mxu0 %v7958
    %7970 = vmatpush.msra.mxu0 %v7957
    %7971 = vmatpush.msra.mxu0 %v7956
    %7972 = vmatpush.msra.mxu0 %v7955
    %7973 = vmatpush.msra.mxu0 %v7954
    %7974 = vmatpush.msra.mxu0 %v7953
    %7975 = vmatpush.msra.mxu0 %v7952
    %7976 = vmatpush.msra.mxu0 %v7951
    %7977 = vmatpush.msra.mxu0 %v7950
    %7978 = vmatpush.msra.mxu0 %v7949
    %7979 = vmatpush.msra.mxu0 %v7948
    %7980 = vmatmul.f32.gmra.mxu0 %v7942
    %v7981 = vpop.f32.mrf.mxu0
    %v7982 = vadd.f32 0.0, %v7981
    %7983 = vmatmul.f32.gmra.mxu0 %v7943
    %v7984 = vpop.f32.mrf.mxu0
    %v7985 = vadd.f32 0.0, %v7984
    %7986 = vmatmul.f32.gmra.mxu0 %v7944
    %v7987 = vpop.f32.mrf.mxu0
    %v7988 = vadd.f32 0.0, %v7987
    %7989 = vmatmul.f32.gmra.mxu0 %v7945
    %v7990 = vpop.f32.mrf.mxu0
    %v7991 = vadd.f32 0.0, %v7990
    %7992 = vmatmul.f32.gmra.mxu0 %v7946
    %v7993 = vpop.f32.mrf.mxu0
    %v7994 = vadd.f32 0.0, %v7993
    %7995 = vdwg.mxu0
    %v7996 = vadd.f32 %v7937, %v7982
    %v7997 = vadd.f32 %v7938, %v7985
    %v7998 = vadd.f32 %v7939, %v7988
    %v7999 = vadd.f32 %v7940, %v7991
    %v8000 = vadd.f32 %v7941, %v7994
    %v8001 = vld [vmem:[#allocation3 + $0x17] sm:$0xff]
    %v8002 = vld [vmem:[#allocation3 + $0x1f] sm:$0xff]
    %v8003 = vld [vmem:[#allocation3 + $0x27] sm:$0xff]
    %v8004 = vld [vmem:[#allocation3 + $0x2f] sm:$0xff]
    %v8005 = vld [vmem:[#allocation3 + $0x37] sm:$0x1f]
    %s8006 = scalar_lea.vmem [#allocation15], 2944
    %v8007 = vld [vmem:[%s8006] sm:$0xff]
    %v8008 = vld [vmem:[%s8006 + $0x8] sm:$0xff]
    %v8009 = vld [vmem:[%s8006 + $0x10] sm:$0xff]
    %v8010 = vld [vmem:[%s8006 + $0x18] sm:$0xff]
    %v8011 = vld [vmem:[%s8006 + $0x20] sm:$0xff]
    %v8012 = vld [vmem:[%s8006 + $0x28] sm:$0xff]
    %v8013 = vld [vmem:[%s8006 + $0x30] sm:$0xff]
    %v8014 = vld [vmem:[%s8006 + $0x38] sm:$0xff]
    %v8015 = vld [vmem:[%s8006 + $0x40] sm:$0xff]
    %v8016 = vld [vmem:[%s8006 + $0x48] sm:$0xff]
    %v8017 = vld [vmem:[%s8006 + $0x50] sm:$0xff]
    %v8018 = vld [vmem:[%s8006 + $0x58] sm:$0xff]
    %v8019 = vld [vmem:[%s8006 + $0x60] sm:$0xff]
    %v8020 = vld [vmem:[%s8006 + $0x68] sm:$0xff]
    %v8021 = vld [vmem:[%s8006 + $0x70] sm:$0xff]
    %v8022 = vld [vmem:[%s8006 + $0x78] sm:$0xff]
    %8023 = vmatpush.msra.mxu0 %v8022
    %8024 = vmatpush.msra.mxu0 %v8021
    %8025 = vmatpush.msra.mxu0 %v8020
    %8026 = vmatpush.msra.mxu0 %v8019
    %8027 = vmatpush.msra.mxu0 %v8018
    %8028 = vmatpush.msra.mxu0 %v8017
    %8029 = vmatpush.msra.mxu0 %v8016
    %8030 = vmatpush.msra.mxu0 %v8015
    %8031 = vmatpush.msra.mxu0 %v8014
    %8032 = vmatpush.msra.mxu0 %v8013
    %8033 = vmatpush.msra.mxu0 %v8012
    %8034 = vmatpush.msra.mxu0 %v8011
    %8035 = vmatpush.msra.mxu0 %v8010
    %8036 = vmatpush.msra.mxu0 %v8009
    %8037 = vmatpush.msra.mxu0 %v8008
    %8038 = vmatpush.msra.mxu0 %v8007
    %8039 = vmatmul.f32.gmra.mxu0 %v8001
    %v8040 = vpop.f32.mrf.mxu0
    %v8041 = vadd.f32 0.0, %v8040
    %8042 = vmatmul.f32.gmra.mxu0 %v8002
    %v8043 = vpop.f32.mrf.mxu0
    %v8044 = vadd.f32 0.0, %v8043
    %8045 = vmatmul.f32.gmra.mxu0 %v8003
    %v8046 = vpop.f32.mrf.mxu0
    %v8047 = vadd.f32 0.0, %v8046
    %8048 = vmatmul.f32.gmra.mxu0 %v8004
    %v8049 = vpop.f32.mrf.mxu0
    %v8050 = vadd.f32 0.0, %v8049
    %8051 = vmatmul.f32.gmra.mxu0 %v8005
    %v8052 = vpop.f32.mrf.mxu0
    %v8053 = vadd.f32 0.0, %v8052
    %8054 = vdwg.mxu0
    %v8055 = vadd.f32 %v7996, %v8041
    %v8056 = vadd.f32 %v7997, %v8044
    %v8057 = vadd.f32 %v7998, %v8047
    %v8058 = vadd.f32 %v7999, %v8050
    %v8059 = vadd.f32 %v8000, %v8053
    %v8060 = vld [vmem:[#allocation3 + $0x18] sm:$0xff]
    %v8061 = vld [vmem:[#allocation3 + $0x20] sm:$0xff]
    %v8062 = vld [vmem:[#allocation3 + $0x28] sm:$0xff]
    %v8063 = vld [vmem:[#allocation3 + $0x30] sm:$0xff]
    %v8064 = vld [vmem:[#allocation3 + $0x38] sm:$0x1f]
    %s8065 = scalar_lea.vmem [#allocation15], 3072
    %v8066 = vld [vmem:[%s8065] sm:$0xff]
    %v8067 = vld [vmem:[%s8065 + $0x8] sm:$0xff]
    %v8068 = vld [vmem:[%s8065 + $0x10] sm:$0xff]
    %v8069 = vld [vmem:[%s8065 + $0x18] sm:$0xff]
    %v8070 = vld [vmem:[%s8065 + $0x20] sm:$0xff]
    %v8071 = vld [vmem:[%s8065 + $0x28] sm:$0xff]
    %v8072 = vld [vmem:[%s8065 + $0x30] sm:$0xff]
    %v8073 = vld [vmem:[%s8065 + $0x38] sm:$0xff]
    %v8074 = vld [vmem:[%s8065 + $0x40] sm:$0xff]
    %v8075 = vld [vmem:[%s8065 + $0x48] sm:$0xff]
    %v8076 = vld [vmem:[%s8065 + $0x50] sm:$0xff]
    %v8077 = vld [vmem:[%s8065 + $0x58] sm:$0xff]
    %v8078 = vld [vmem:[%s8065 + $0x60] sm:$0xff]
    %v8079 = vld [vmem:[%s8065 + $0x68] sm:$0xff]
    %v8080 = vld [vmem:[%s8065 + $0x70] sm:$0xff]
    %v8081 = vld [vmem:[%s8065 + $0x78] sm:$0xff]
    %8082 = vmatpush.msra.mxu0 %v8081
    %8083 = vmatpush.msra.mxu0 %v8080
    %8084 = vmatpush.msra.mxu0 %v8079
    %8085 = vmatpush.msra.mxu0 %v8078
    %8086 = vmatpush.msra.mxu0 %v8077
    %8087 = vmatpush.msra.mxu0 %v8076
    %8088 = vmatpush.msra.mxu0 %v8075
    %8089 = vmatpush.msra.mxu0 %v8074
    %8090 = vmatpush.msra.mxu0 %v8073
    %8091 = vmatpush.msra.mxu0 %v8072
    %8092 = vmatpush.msra.mxu0 %v8071
    %8093 = vmatpush.msra.mxu0 %v8070
    %8094 = vmatpush.msra.mxu0 %v8069
    %8095 = vmatpush.msra.mxu0 %v8068
    %8096 = vmatpush.msra.mxu0 %v8067
    %8097 = vmatpush.msra.mxu0 %v8066
    %8098 = vmatmul.f32.gmra.mxu0 %v8060
    %v8099 = vpop.f32.mrf.mxu0
    %v8100 = vadd.f32 0.0, %v8099
    %8101 = vmatmul.f32.gmra.mxu0 %v8061
    %v8102 = vpop.f32.mrf.mxu0
    %v8103 = vadd.f32 0.0, %v8102
    %8104 = vmatmul.f32.gmra.mxu0 %v8062
    %v8105 = vpop.f32.mrf.mxu0
    %v8106 = vadd.f32 0.0, %v8105
    %8107 = vmatmul.f32.gmra.mxu0 %v8063
    %v8108 = vpop.f32.mrf.mxu0
    %v8109 = vadd.f32 0.0, %v8108
    %8110 = vmatmul.f32.gmra.mxu0 %v8064
    %v8111 = vpop.f32.mrf.mxu0
    %v8112 = vadd.f32 0.0, %v8111
    %8113 = vdwg.mxu0
    %v8114 = vadd.f32 %v8055, %v8100
    %v8115 = vadd.f32 %v8056, %v8103
    %v8116 = vadd.f32 %v8057, %v8106
    %v8117 = vadd.f32 %v8058, %v8109
    %v8118 = vadd.f32 %v8059, %v8112
    %v8119 = vld [vmem:[#allocation3 + $0x19] sm:$0xff]
    %v8120 = vld [vmem:[#allocation3 + $0x21] sm:$0xff]
    %v8121 = vld [vmem:[#allocation3 + $0x29] sm:$0xff]
    %v8122 = vld [vmem:[#allocation3 + $0x31] sm:$0xff]
    %v8123 = vld [vmem:[#allocation3 + $0x39] sm:$0x1f]
    %s8124 = scalar_lea.vmem [#allocation15], 3200
    %v8125 = vld [vmem:[%s8124] sm:$0xff]
    %v8126 = vld [vmem:[%s8124 + $0x8] sm:$0xff]
    %v8127 = vld [vmem:[%s8124 + $0x10] sm:$0xff]
    %v8128 = vld [vmem:[%s8124 + $0x18] sm:$0xff]
    %v8129 = vld [vmem:[%s8124 + $0x20] sm:$0xff]
    %v8130 = vld [vmem:[%s8124 + $0x28] sm:$0xff]
    %v8131 = vld [vmem:[%s8124 + $0x30] sm:$0xff]
    %v8132 = vld [vmem:[%s8124 + $0x38] sm:$0xff]
    %v8133 = vld [vmem:[%s8124 + $0x40] sm:$0xff]
    %v8134 = vld [vmem:[%s8124 + $0x48] sm:$0xff]
    %v8135 = vld [vmem:[%s8124 + $0x50] sm:$0xff]
    %v8136 = vld [vmem:[%s8124 + $0x58] sm:$0xff]
    %v8137 = vld [vmem:[%s8124 + $0x60] sm:$0xff]
    %v8138 = vld [vmem:[%s8124 + $0x68] sm:$0xff]
    %v8139 = vld [vmem:[%s8124 + $0x70] sm:$0xff]
    %v8140 = vld [vmem:[%s8124 + $0x78] sm:$0xff]
    %8141 = vmatpush.msra.mxu0 %v8140
    %8142 = vmatpush.msra.mxu0 %v8139
    %8143 = vmatpush.msra.mxu0 %v8138
    %8144 = vmatpush.msra.mxu0 %v8137
    %8145 = vmatpush.msra.mxu0 %v8136
    %8146 = vmatpush.msra.mxu0 %v8135
    %8147 = vmatpush.msra.mxu0 %v8134
    %8148 = vmatpush.msra.mxu0 %v8133
    %8149 = vmatpush.msra.mxu0 %v8132
    %8150 = vmatpush.msra.mxu0 %v8131
    %8151 = vmatpush.msra.mxu0 %v8130
    %8152 = vmatpush.msra.mxu0 %v8129
    %8153 = vmatpush.msra.mxu0 %v8128
    %8154 = vmatpush.msra.mxu0 %v8127
    %8155 = vmatpush.msra.mxu0 %v8126
    %8156 = vmatpush.msra.mxu0 %v8125
    %8157 = vmatmul.f32.gmra.mxu0 %v8119
    %v8158 = vpop.f32.mrf.mxu0
    %v8159 = vadd.f32 0.0, %v8158
    %8160 = vmatmul.f32.gmra.mxu0 %v8120
    %v8161 = vpop.f32.mrf.mxu0
    %v8162 = vadd.f32 0.0, %v8161
    %8163 = vmatmul.f32.gmra.mxu0 %v8121
    %v8164 = vpop.f32.mrf.mxu0
    %v8165 = vadd.f32 0.0, %v8164
    %8166 = vmatmul.f32.gmra.mxu0 %v8122
    %v8167 = vpop.f32.mrf.mxu0
    %v8168 = vadd.f32 0.0, %v8167
    %8169 = vmatmul.f32.gmra.mxu0 %v8123
    %v8170 = vpop.f32.mrf.mxu0
    %v8171 = vadd.f32 0.0, %v8170
    %8172 = vdwg.mxu0
    %v8173 = vadd.f32 %v8114, %v8159
    %v8174 = vadd.f32 %v8115, %v8162
    %v8175 = vadd.f32 %v8116, %v8165
    %v8176 = vadd.f32 %v8117, %v8168
    %v8177 = vadd.f32 %v8118, %v8171
    %v8178 = vld [vmem:[#allocation3 + $0x1a] sm:$0xff]
    %v8179 = vld [vmem:[#allocation3 + $0x22] sm:$0xff]
    %v8180 = vld [vmem:[#allocation3 + $0x2a] sm:$0xff]
    %v8181 = vld [vmem:[#allocation3 + $0x32] sm:$0xff]
    %v8182 = vld [vmem:[#allocation3 + $0x3a] sm:$0x1f]
    %s8183 = scalar_lea.vmem [#allocation15], 3328
    %v8184 = vld [vmem:[%s8183] sm:$0xff]
    %v8185 = vld [vmem:[%s8183 + $0x8] sm:$0xff]
    %v8186 = vld [vmem:[%s8183 + $0x10] sm:$0xff]
    %v8187 = vld [vmem:[%s8183 + $0x18] sm:$0xff]
    %v8188 = vld [vmem:[%s8183 + $0x20] sm:$0xff]
    %v8189 = vld [vmem:[%s8183 + $0x28] sm:$0xff]
    %v8190 = vld [vmem:[%s8183 + $0x30] sm:$0xff]
    %v8191 = vld [vmem:[%s8183 + $0x38] sm:$0xff]
    %v8192 = vld [vmem:[%s8183 + $0x40] sm:$0xff]
    %v8193 = vld [vmem:[%s8183 + $0x48] sm:$0xff]
    %v8194 = vld [vmem:[%s8183 + $0x50] sm:$0xff]
    %v8195 = vld [vmem:[%s8183 + $0x58] sm:$0xff]
    %v8196 = vld [vmem:[%s8183 + $0x60] sm:$0xff]
    %v8197 = vld [vmem:[%s8183 + $0x68] sm:$0xff]
    %v8198 = vld [vmem:[%s8183 + $0x70] sm:$0xff]
    %v8199 = vld [vmem:[%s8183 + $0x78] sm:$0xff]
    %8200 = vmatpush.msra.mxu0 %v8199
    %8201 = vmatpush.msra.mxu0 %v8198
    %8202 = vmatpush.msra.mxu0 %v8197
    %8203 = vmatpush.msra.mxu0 %v8196
    %8204 = vmatpush.msra.mxu0 %v8195
    %8205 = vmatpush.msra.mxu0 %v8194
    %8206 = vmatpush.msra.mxu0 %v8193
    %8207 = vmatpush.msra.mxu0 %v8192
    %8208 = vmatpush.msra.mxu0 %v8191
    %8209 = vmatpush.msra.mxu0 %v8190
    %8210 = vmatpush.msra.mxu0 %v8189
    %8211 = vmatpush.msra.mxu0 %v8188
    %8212 = vmatpush.msra.mxu0 %v8187
    %8213 = vmatpush.msra.mxu0 %v8186
    %8214 = vmatpush.msra.mxu0 %v8185
    %8215 = vmatpush.msra.mxu0 %v8184
    %8216 = vmatmul.f32.gmra.mxu0 %v8178
    %v8217 = vpop.f32.mrf.mxu0
    %v8218 = vadd.f32 0.0, %v8217
    %8219 = vmatmul.f32.gmra.mxu0 %v8179
    %v8220 = vpop.f32.mrf.mxu0
    %v8221 = vadd.f32 0.0, %v8220
    %8222 = vmatmul.f32.gmra.mxu0 %v8180
    %v8223 = vpop.f32.mrf.mxu0
    %v8224 = vadd.f32 0.0, %v8223
    %8225 = vmatmul.f32.gmra.mxu0 %v8181
    %v8226 = vpop.f32.mrf.mxu0
    %v8227 = vadd.f32 0.0, %v8226
    %8228 = vmatmul.f32.gmra.mxu0 %v8182
    %v8229 = vpop.f32.mrf.mxu0
    %v8230 = vadd.f32 0.0, %v8229
    %8231 = vdwg.mxu0
    %v8232 = vadd.f32 %v8173, %v8218
    %v8233 = vadd.f32 %v8174, %v8221
    %v8234 = vadd.f32 %v8175, %v8224
    %v8235 = vadd.f32 %v8176, %v8227
    %v8236 = vadd.f32 %v8177, %v8230
    %v8237 = vld [vmem:[#allocation3 + $0x1b] sm:$0xff]
    %v8238 = vld [vmem:[#allocation3 + $0x23] sm:$0xff]
    %v8239 = vld [vmem:[#allocation3 + $0x2b] sm:$0xff]
    %v8240 = vld [vmem:[#allocation3 + $0x33] sm:$0xff]
    %v8241 = vld [vmem:[#allocation3 + $0x3b] sm:$0x1f]
    %s8242 = scalar_lea.vmem [#allocation15], 3456
    %v8243 = vld [vmem:[%s8242] sm:$0xff]
    %v8244 = vld [vmem:[%s8242 + $0x8] sm:$0xff]
    %v8245 = vld [vmem:[%s8242 + $0x10] sm:$0xff]
    %v8246 = vld [vmem:[%s8242 + $0x18] sm:$0xff]
    %v8247 = vld [vmem:[%s8242 + $0x20] sm:$0xff]
    %v8248 = vld [vmem:[%s8242 + $0x28] sm:$0xff]
    %v8249 = vld [vmem:[%s8242 + $0x30] sm:$0xff]
    %v8250 = vld [vmem:[%s8242 + $0x38] sm:$0xff]
    %v8251 = vld [vmem:[%s8242 + $0x40] sm:$0xff]
    %v8252 = vld [vmem:[%s8242 + $0x48] sm:$0xff]
    %v8253 = vld [vmem:[%s8242 + $0x50] sm:$0xff]
    %v8254 = vld [vmem:[%s8242 + $0x58] sm:$0xff]
    %v8255 = vld [vmem:[%s8242 + $0x60] sm:$0xff]
    %v8256 = vld [vmem:[%s8242 + $0x68] sm:$0xff]
    %v8257 = vld [vmem:[%s8242 + $0x70] sm:$0xff]
    %v8258 = vld [vmem:[%s8242 + $0x78] sm:$0xff]
    %8259 = vmatpush.msra.mxu0 %v8258
    %8260 = vmatpush.msra.mxu0 %v8257
    %8261 = vmatpush.msra.mxu0 %v8256
    %8262 = vmatpush.msra.mxu0 %v8255
    %8263 = vmatpush.msra.mxu0 %v8254
    %8264 = vmatpush.msra.mxu0 %v8253
    %8265 = vmatpush.msra.mxu0 %v8252
    %8266 = vmatpush.msra.mxu0 %v8251
    %8267 = vmatpush.msra.mxu0 %v8250
    %8268 = vmatpush.msra.mxu0 %v8249
    %8269 = vmatpush.msra.mxu0 %v8248
    %8270 = vmatpush.msra.mxu0 %v8247
    %8271 = vmatpush.msra.mxu0 %v8246
    %8272 = vmatpush.msra.mxu0 %v8245
    %8273 = vmatpush.msra.mxu0 %v8244
    %8274 = vmatpush.msra.mxu0 %v8243
    %8275 = vmatmul.f32.gmra.mxu0 %v8237
    %v8276 = vpop.f32.mrf.mxu0
    %v8277 = vadd.f32 0.0, %v8276
    %8278 = vmatmul.f32.gmra.mxu0 %v8238
    %v8279 = vpop.f32.mrf.mxu0
    %v8280 = vadd.f32 0.0, %v8279
    %8281 = vmatmul.f32.gmra.mxu0 %v8239
    %v8282 = vpop.f32.mrf.mxu0
    %v8283 = vadd.f32 0.0, %v8282
    %8284 = vmatmul.f32.gmra.mxu0 %v8240
    %v8285 = vpop.f32.mrf.mxu0
    %v8286 = vadd.f32 0.0, %v8285
    %8287 = vmatmul.f32.gmra.mxu0 %v8241
    %v8288 = vpop.f32.mrf.mxu0
    %v8289 = vadd.f32 0.0, %v8288
    %8290 = vdwg.mxu0
    %v8291 = vadd.f32 %v8232, %v8277
    %v8292 = vadd.f32 %v8233, %v8280
    %v8293 = vadd.f32 %v8234, %v8283
    %v8294 = vadd.f32 %v8235, %v8286
    %v8295 = vadd.f32 %v8236, %v8289
    %v8296 = vld [vmem:[#allocation3 + $0x1c] sm:$0xff]
    %v8297 = vld [vmem:[#allocation3 + $0x24] sm:$0xff]
    %v8298 = vld [vmem:[#allocation3 + $0x2c] sm:$0xff]
    %v8299 = vld [vmem:[#allocation3 + $0x34] sm:$0xff]
    %v8300 = vld [vmem:[#allocation3 + $0x3c] sm:$0x1f]
    %s8301 = scalar_lea.vmem [#allocation15], 3584
    %v8302 = vld [vmem:[%s8301] sm:$0xff]
    %v8303 = vld [vmem:[%s8301 + $0x8] sm:$0xff]
    %v8304 = vld [vmem:[%s8301 + $0x10] sm:$0xff]
    %v8305 = vld [vmem:[%s8301 + $0x18] sm:$0xff]
    %v8306 = vld [vmem:[%s8301 + $0x20] sm:$0xff]
    %v8307 = vld [vmem:[%s8301 + $0x28] sm:$0xff]
    %v8308 = vld [vmem:[%s8301 + $0x30] sm:$0xff]
    %v8309 = vld [vmem:[%s8301 + $0x38] sm:$0xff]
    %v8310 = vld [vmem:[%s8301 + $0x40] sm:$0xff]
    %v8311 = vld [vmem:[%s8301 + $0x48] sm:$0xff]
    %v8312 = vld [vmem:[%s8301 + $0x50] sm:$0xff]
    %v8313 = vld [vmem:[%s8301 + $0x58] sm:$0xff]
    %v8314 = vld [vmem:[%s8301 + $0x60] sm:$0xff]
    %v8315 = vld [vmem:[%s8301 + $0x68] sm:$0xff]
    %v8316 = vld [vmem:[%s8301 + $0x70] sm:$0xff]
    %v8317 = vld [vmem:[%s8301 + $0x78] sm:$0xff]
    %8318 = vmatpush.msra.mxu0 %v8317
    %8319 = vmatpush.msra.mxu0 %v8316
    %8320 = vmatpush.msra.mxu0 %v8315
    %8321 = vmatpush.msra.mxu0 %v8314
    %8322 = vmatpush.msra.mxu0 %v8313
    %8323 = vmatpush.msra.mxu0 %v8312
    %8324 = vmatpush.msra.mxu0 %v8311
    %8325 = vmatpush.msra.mxu0 %v8310
    %8326 = vmatpush.msra.mxu0 %v8309
    %8327 = vmatpush.msra.mxu0 %v8308
    %8328 = vmatpush.msra.mxu0 %v8307
    %8329 = vmatpush.msra.mxu0 %v8306
    %8330 = vmatpush.msra.mxu0 %v8305
    %8331 = vmatpush.msra.mxu0 %v8304
    %8332 = vmatpush.msra.mxu0 %v8303
    %8333 = vmatpush.msra.mxu0 %v8302
    %8334 = vmatmul.f32.gmra.mxu0 %v8296
    %v8335 = vpop.f32.mrf.mxu0
    %v8336 = vadd.f32 0.0, %v8335
    %8337 = vmatmul.f32.gmra.mxu0 %v8297
    %v8338 = vpop.f32.mrf.mxu0
    %v8339 = vadd.f32 0.0, %v8338
    %8340 = vmatmul.f32.gmra.mxu0 %v8298
    %v8341 = vpop.f32.mrf.mxu0
    %v8342 = vadd.f32 0.0, %v8341
    %8343 = vmatmul.f32.gmra.mxu0 %v8299
    %v8344 = vpop.f32.mrf.mxu0
    %v8345 = vadd.f32 0.0, %v8344
    %8346 = vmatmul.f32.gmra.mxu0 %v8300
    %v8347 = vpop.f32.mrf.mxu0
    %v8348 = vadd.f32 0.0, %v8347
    %8349 = vdwg.mxu0
    %v8350 = vadd.f32 %v8291, %v8336
    %v8351 = vadd.f32 %v8292, %v8339
    %v8352 = vadd.f32 %v8293, %v8342
    %v8353 = vadd.f32 %v8294, %v8345
    %v8354 = vadd.f32 %v8295, %v8348
    %v8355 = vld [vmem:[#allocation3 + $0x1d] sm:$0xff]
    %v8356 = vld [vmem:[#allocation3 + $0x25] sm:$0xff]
    %v8357 = vld [vmem:[#allocation3 + $0x2d] sm:$0xff]
    %v8358 = vld [vmem:[#allocation3 + $0x35] sm:$0xff]
    %v8359 = vld [vmem:[#allocation3 + $0x3d] sm:$0x1f]
    %s8360 = scalar_lea.vmem [#allocation15], 3712
    %v8361 = vld [vmem:[%s8360] sm:$0xff]
    %v8362 = vld [vmem:[%s8360 + $0x8] sm:$0xff]
    %v8363 = vld [vmem:[%s8360 + $0x10] sm:$0xff]
    %v8364 = vld [vmem:[%s8360 + $0x18] sm:$0xff]
    %v8365 = vld [vmem:[%s8360 + $0x20] sm:$0xff]
    %v8366 = vld [vmem:[%s8360 + $0x28] sm:$0xff]
    %v8367 = vld [vmem:[%s8360 + $0x30] sm:$0xff]
    %v8368 = vld [vmem:[%s8360 + $0x38] sm:$0xff]
    %v8369 = vld [vmem:[%s8360 + $0x40] sm:$0xff]
    %v8370 = vld [vmem:[%s8360 + $0x48] sm:$0xff]
    %v8371 = vld [vmem:[%s8360 + $0x50] sm:$0xff]
    %v8372 = vld [vmem:[%s8360 + $0x58] sm:$0xff]
    %v8373 = vld [vmem:[%s8360 + $0x60] sm:$0xff]
    %v8374 = vld [vmem:[%s8360 + $0x68] sm:$0xff]
    %v8375 = vld [vmem:[%s8360 + $0x70] sm:$0xff]
    %v8376 = vld [vmem:[%s8360 + $0x78] sm:$0xff]
    %8377 = vmatpush.msra.mxu0 %v8376
    %8378 = vmatpush.msra.mxu0 %v8375
    %8379 = vmatpush.msra.mxu0 %v8374
    %8380 = vmatpush.msra.mxu0 %v8373
    %8381 = vmatpush.msra.mxu0 %v8372
    %8382 = vmatpush.msra.mxu0 %v8371
    %8383 = vmatpush.msra.mxu0 %v8370
    %8384 = vmatpush.msra.mxu0 %v8369
    %8385 = vmatpush.msra.mxu0 %v8368
    %8386 = vmatpush.msra.mxu0 %v8367
    %8387 = vmatpush.msra.mxu0 %v8366
    %8388 = vmatpush.msra.mxu0 %v8365
    %8389 = vmatpush.msra.mxu0 %v8364
    %8390 = vmatpush.msra.mxu0 %v8363
    %8391 = vmatpush.msra.mxu0 %v8362
    %8392 = vmatpush.msra.mxu0 %v8361
    %8393 = vmatmul.f32.gmra.mxu0 %v8355
    %v8394 = vpop.f32.mrf.mxu0
    %v8395 = vadd.f32 0.0, %v8394
    %8396 = vmatmul.f32.gmra.mxu0 %v8356
    %v8397 = vpop.f32.mrf.mxu0
    %v8398 = vadd.f32 0.0, %v8397
    %8399 = vmatmul.f32.gmra.mxu0 %v8357
    %v8400 = vpop.f32.mrf.mxu0
    %v8401 = vadd.f32 0.0, %v8400
    %8402 = vmatmul.f32.gmra.mxu0 %v8358
    %v8403 = vpop.f32.mrf.mxu0
    %v8404 = vadd.f32 0.0, %v8403
    %8405 = vmatmul.f32.gmra.mxu0 %v8359
    %v8406 = vpop.f32.mrf.mxu0
    %v8407 = vadd.f32 0.0, %v8406
    %8408 = vdwg.mxu0
    %v8409 = vadd.f32 %v8350, %v8395
    %v8410 = vadd.f32 %v8351, %v8398
    %v8411 = vadd.f32 %v8352, %v8401
    %v8412 = vadd.f32 %v8353, %v8404
    %v8413 = vadd.f32 %v8354, %v8407
    %v8414 = vld [vmem:[#allocation3 + $0x1e] sm:$0xff]
    %v8415 = vld [vmem:[#allocation3 + $0x26] sm:$0xff]
    %v8416 = vld [vmem:[#allocation3 + $0x2e] sm:$0xff]
    %v8417 = vld [vmem:[#allocation3 + $0x36] sm:$0xff]
    %v8418 = vld [vmem:[#allocation3 + $0x3e] sm:$0x1f]
    %s8419 = scalar_lea.vmem [#allocation15], 3840
    %v8420 = vld [vmem:[%s8419] sm:$0xff]
    %v8421 = vld [vmem:[%s8419 + $0x8] sm:$0xff]
    %v8422 = vld [vmem:[%s8419 + $0x10] sm:$0xff]
    %v8423 = vld [vmem:[%s8419 + $0x18] sm:$0xff]
    %v8424 = vld [vmem:[%s8419 + $0x20] sm:$0xff]
    %v8425 = vld [vmem:[%s8419 + $0x28] sm:$0xff]
    %v8426 = vld [vmem:[%s8419 + $0x30] sm:$0xff]
    %v8427 = vld [vmem:[%s8419 + $0x38] sm:$0xff]
    %v8428 = vld [vmem:[%s8419 + $0x40] sm:$0xff]
    %v8429 = vld [vmem:[%s8419 + $0x48] sm:$0xff]
    %v8430 = vld [vmem:[%s8419 + $0x50] sm:$0xff]
    %v8431 = vld [vmem:[%s8419 + $0x58] sm:$0xff]
    %v8432 = vld [vmem:[%s8419 + $0x60] sm:$0xff]
    %v8433 = vld [vmem:[%s8419 + $0x68] sm:$0xff]
    %v8434 = vld [vmem:[%s8419 + $0x70] sm:$0xff]
    %v8435 = vld [vmem:[%s8419 + $0x78] sm:$0xff]
    %8436 = vmatpush.msra.mxu0 %v8435
    %8437 = vmatpush.msra.mxu0 %v8434
    %8438 = vmatpush.msra.mxu0 %v8433
    %8439 = vmatpush.msra.mxu0 %v8432
    %8440 = vmatpush.msra.mxu0 %v8431
    %8441 = vmatpush.msra.mxu0 %v8430
    %8442 = vmatpush.msra.mxu0 %v8429
    %8443 = vmatpush.msra.mxu0 %v8428
    %8444 = vmatpush.msra.mxu0 %v8427
    %8445 = vmatpush.msra.mxu0 %v8426
    %8446 = vmatpush.msra.mxu0 %v8425
    %8447 = vmatpush.msra.mxu0 %v8424
    %8448 = vmatpush.msra.mxu0 %v8423
    %8449 = vmatpush.msra.mxu0 %v8422
    %8450 = vmatpush.msra.mxu0 %v8421
    %8451 = vmatpush.msra.mxu0 %v8420
    %8452 = vmatmul.f32.gmra.mxu0 %v8414
    %v8453 = vpop.f32.mrf.mxu0
    %v8454 = vadd.f32 0.0, %v8453
    %8455 = vmatmul.f32.gmra.mxu0 %v8415
    %v8456 = vpop.f32.mrf.mxu0
    %v8457 = vadd.f32 0.0, %v8456
    %8458 = vmatmul.f32.gmra.mxu0 %v8416
    %v8459 = vpop.f32.mrf.mxu0
    %v8460 = vadd.f32 0.0, %v8459
    %8461 = vmatmul.f32.gmra.mxu0 %v8417
    %v8462 = vpop.f32.mrf.mxu0
    %v8463 = vadd.f32 0.0, %v8462
    %8464 = vmatmul.f32.gmra.mxu0 %v8418
    %v8465 = vpop.f32.mrf.mxu0
    %v8466 = vadd.f32 0.0, %v8465
    %8467 = vdwg.mxu0
    %v8468 = vadd.f32 %v8409, %v8454
    %v8469 = vadd.f32 %v8410, %v8457
    %v8470 = vadd.f32 %v8411, %v8460
    %v8471 = vadd.f32 %v8412, %v8463
    %v8472 = vadd.f32 %v8413, %v8466
    %v8473 = vld [vmem:[#allocation3 + $0x1f] sm:$0xff]
    %v8474 = vld [vmem:[#allocation3 + $0x27] sm:$0xff]
    %v8475 = vld [vmem:[#allocation3 + $0x2f] sm:$0xff]
    %v8476 = vld [vmem:[#allocation3 + $0x37] sm:$0xff]
    %v8477 = vld [vmem:[#allocation3 + $0x3f] sm:$0x1f]
    %s8478 = scalar_lea.vmem [#allocation15], 3968
    %v8479 = vld [vmem:[%s8478] sm:$0xff]
    %v8480 = vld [vmem:[%s8478 + $0x8] sm:$0xff]
    %v8481 = vld [vmem:[%s8478 + $0x10] sm:$0xff]
    %v8482 = vld [vmem:[%s8478 + $0x18] sm:$0xff]
    %v8483 = vld [vmem:[%s8478 + $0x20] sm:$0xff]
    %v8484 = vld [vmem:[%s8478 + $0x28] sm:$0xff]
    %v8485 = vld [vmem:[%s8478 + $0x30] sm:$0xff]
    %v8486 = vld [vmem:[%s8478 + $0x38] sm:$0xff]
    %v8487 = vld [vmem:[%s8478 + $0x40] sm:$0xff]
    %v8488 = vld [vmem:[%s8478 + $0x48] sm:$0xff]
    %v8489 = vld [vmem:[%s8478 + $0x50] sm:$0xff]
    %v8490 = vld [vmem:[%s8478 + $0x58] sm:$0xff]
    %v8491 = vld [vmem:[%s8478 + $0x60] sm:$0xff]
    %v8492 = vld [vmem:[%s8478 + $0x68] sm:$0xff]
    %v8493 = vld [vmem:[%s8478 + $0x70] sm:$0xff]
    %v8494 = vld [vmem:[%s8478 + $0x78] sm:$0xff]
    %8495 = vmatpush.msra.mxu0 %v8494
    %8496 = vmatpush.msra.mxu0 %v8493
    %8497 = vmatpush.msra.mxu0 %v8492
    %8498 = vmatpush.msra.mxu0 %v8491
    %8499 = vmatpush.msra.mxu0 %v8490
    %8500 = vmatpush.msra.mxu0 %v8489
    %8501 = vmatpush.msra.mxu0 %v8488
    %8502 = vmatpush.msra.mxu0 %v8487
    %8503 = vmatpush.msra.mxu0 %v8486
    %8504 = vmatpush.msra.mxu0 %v8485
    %8505 = vmatpush.msra.mxu0 %v8484
    %8506 = vmatpush.msra.mxu0 %v8483
    %8507 = vmatpush.msra.mxu0 %v8482
    %8508 = vmatpush.msra.mxu0 %v8481
    %8509 = vmatpush.msra.mxu0 %v8480
    %8510 = vmatpush.msra.mxu0 %v8479
    %8511 = vmatmul.f32.gmra.mxu0 %v8473
    %v8512 = vpop.f32.mrf.mxu0
    %v8513 = vadd.f32 0.0, %v8512
    %8514 = vmatmul.f32.gmra.mxu0 %v8474
    %v8515 = vpop.f32.mrf.mxu0
    %v8516 = vadd.f32 0.0, %v8515
    %8517 = vmatmul.f32.gmra.mxu0 %v8475
    %v8518 = vpop.f32.mrf.mxu0
    %v8519 = vadd.f32 0.0, %v8518
    %8520 = vmatmul.f32.gmra.mxu0 %v8476
    %v8521 = vpop.f32.mrf.mxu0
    %v8522 = vadd.f32 0.0, %v8521
    %8523 = vmatmul.f32.gmra.mxu0 %v8477
    %v8524 = vpop.f32.mrf.mxu0
    %v8525 = vadd.f32 0.0, %v8524
    %8526 = vdwg.mxu0
    %v8527 = vadd.f32 %v8468, %v8513
    %v8528 = vadd.f32 %v8469, %v8516
    %v8529 = vadd.f32 %v8470, %v8519
    %v8530 = vadd.f32 %v8471, %v8522
    %v8531 = vadd.f32 %v8472, %v8525
    %v8532 = vld [vmem:[#allocation3 + $0x20] sm:$0xff]
    %v8533 = vld [vmem:[#allocation3 + $0x28] sm:$0xff]
    %v8534 = vld [vmem:[#allocation3 + $0x30] sm:$0xff]
    %v8535 = vld [vmem:[#allocation3 + $0x38] sm:$0xff]
    %v8536 = vld [vmem:[#allocation3 + $0x40] sm:$0x1f]
    %s8537 = scalar_lea.vmem [#allocation15], 4096
    %v8538 = vld [vmem:[%s8537] sm:$0xff]
    %v8539 = vld [vmem:[%s8537 + $0x8] sm:$0xff]
    %v8540 = vld [vmem:[%s8537 + $0x10] sm:$0xff]
    %v8541 = vld [vmem:[%s8537 + $0x18] sm:$0xff]
    %v8542 = vld [vmem:[%s8537 + $0x20] sm:$0xff]
    %v8543 = vld [vmem:[%s8537 + $0x28] sm:$0xff]
    %v8544 = vld [vmem:[%s8537 + $0x30] sm:$0xff]
    %v8545 = vld [vmem:[%s8537 + $0x38] sm:$0xff]
    %v8546 = vld [vmem:[%s8537 + $0x40] sm:$0xff]
    %v8547 = vld [vmem:[%s8537 + $0x48] sm:$0xff]
    %v8548 = vld [vmem:[%s8537 + $0x50] sm:$0xff]
    %v8549 = vld [vmem:[%s8537 + $0x58] sm:$0xff]
    %v8550 = vld [vmem:[%s8537 + $0x60] sm:$0xff]
    %v8551 = vld [vmem:[%s8537 + $0x68] sm:$0xff]
    %v8552 = vld [vmem:[%s8537 + $0x70] sm:$0xff]
    %v8553 = vld [vmem:[%s8537 + $0x78] sm:$0xff]
    %8554 = vmatpush.msra.mxu0 %v8553
    %8555 = vmatpush.msra.mxu0 %v8552
    %8556 = vmatpush.msra.mxu0 %v8551
    %8557 = vmatpush.msra.mxu0 %v8550
    %8558 = vmatpush.msra.mxu0 %v8549
    %8559 = vmatpush.msra.mxu0 %v8548
    %8560 = vmatpush.msra.mxu0 %v8547
    %8561 = vmatpush.msra.mxu0 %v8546
    %8562 = vmatpush.msra.mxu0 %v8545
    %8563 = vmatpush.msra.mxu0 %v8544
    %8564 = vmatpush.msra.mxu0 %v8543
    %8565 = vmatpush.msra.mxu0 %v8542
    %8566 = vmatpush.msra.mxu0 %v8541
    %8567 = vmatpush.msra.mxu0 %v8540
    %8568 = vmatpush.msra.mxu0 %v8539
    %8569 = vmatpush.msra.mxu0 %v8538
    %8570 = vmatmul.f32.gmra.mxu0 %v8532
    %v8571 = vpop.f32.mrf.mxu0
    %v8572 = vadd.f32 0.0, %v8571
    %8573 = vmatmul.f32.gmra.mxu0 %v8533
    %v8574 = vpop.f32.mrf.mxu0
    %v8575 = vadd.f32 0.0, %v8574
    %8576 = vmatmul.f32.gmra.mxu0 %v8534
    %v8577 = vpop.f32.mrf.mxu0
    %v8578 = vadd.f32 0.0, %v8577
    %8579 = vmatmul.f32.gmra.mxu0 %v8535
    %v8580 = vpop.f32.mrf.mxu0
    %v8581 = vadd.f32 0.0, %v8580
    %8582 = vmatmul.f32.gmra.mxu0 %v8536
    %v8583 = vpop.f32.mrf.mxu0
    %v8584 = vadd.f32 0.0, %v8583
    %8585 = vdwg.mxu0
    %v8586 = vadd.f32 %v8527, %v8572
    %v8587 = vadd.f32 %v8528, %v8575
    %v8588 = vadd.f32 %v8529, %v8578
    %v8589 = vadd.f32 %v8530, %v8581
    %v8590 = vadd.f32 %v8531, %v8584
    %v8591 = vld [vmem:[#allocation3 + $0x21] sm:$0xff]
    %v8592 = vld [vmem:[#allocation3 + $0x29] sm:$0xff]
    %v8593 = vld [vmem:[#allocation3 + $0x31] sm:$0xff]
    %v8594 = vld [vmem:[#allocation3 + $0x39] sm:$0xff]
    %v8595 = vld [vmem:[#allocation3 + $0x41] sm:$0x1f]
    %s8596 = scalar_lea.vmem [#allocation15], 4224
    %v8597 = vld [vmem:[%s8596] sm:$0xff]
    %v8598 = vld [vmem:[%s8596 + $0x8] sm:$0xff]
    %v8599 = vld [vmem:[%s8596 + $0x10] sm:$0xff]
    %v8600 = vld [vmem:[%s8596 + $0x18] sm:$0xff]
    %v8601 = vld [vmem:[%s8596 + $0x20] sm:$0xff]
    %v8602 = vld [vmem:[%s8596 + $0x28] sm:$0xff]
    %v8603 = vld [vmem:[%s8596 + $0x30] sm:$0xff]
    %v8604 = vld [vmem:[%s8596 + $0x38] sm:$0xff]
    %v8605 = vld [vmem:[%s8596 + $0x40] sm:$0xff]
    %v8606 = vld [vmem:[%s8596 + $0x48] sm:$0xff]
    %v8607 = vld [vmem:[%s8596 + $0x50] sm:$0xff]
    %v8608 = vld [vmem:[%s8596 + $0x58] sm:$0xff]
    %v8609 = vld [vmem:[%s8596 + $0x60] sm:$0xff]
    %v8610 = vld [vmem:[%s8596 + $0x68] sm:$0xff]
    %v8611 = vld [vmem:[%s8596 + $0x70] sm:$0xff]
    %v8612 = vld [vmem:[%s8596 + $0x78] sm:$0xff]
    %8613 = vmatpush.msra.mxu0 %v8612
    %8614 = vmatpush.msra.mxu0 %v8611
    %8615 = vmatpush.msra.mxu0 %v8610
    %8616 = vmatpush.msra.mxu0 %v8609
    %8617 = vmatpush.msra.mxu0 %v8608
    %8618 = vmatpush.msra.mxu0 %v8607
    %8619 = vmatpush.msra.mxu0 %v8606
    %8620 = vmatpush.msra.mxu0 %v8605
    %8621 = vmatpush.msra.mxu0 %v8604
    %8622 = vmatpush.msra.mxu0 %v8603
    %8623 = vmatpush.msra.mxu0 %v8602
    %8624 = vmatpush.msra.mxu0 %v8601
    %8625 = vmatpush.msra.mxu0 %v8600
    %8626 = vmatpush.msra.mxu0 %v8599
    %8627 = vmatpush.msra.mxu0 %v8598
    %8628 = vmatpush.msra.mxu0 %v8597
    %8629 = vmatmul.f32.gmra.mxu0 %v8591
    %v8630 = vpop.f32.mrf.mxu0
    %v8631 = vadd.f32 0.0, %v8630
    %8632 = vmatmul.f32.gmra.mxu0 %v8592
    %v8633 = vpop.f32.mrf.mxu0
    %v8634 = vadd.f32 0.0, %v8633
    %8635 = vmatmul.f32.gmra.mxu0 %v8593
    %v8636 = vpop.f32.mrf.mxu0
    %v8637 = vadd.f32 0.0, %v8636
    %8638 = vmatmul.f32.gmra.mxu0 %v8594
    %v8639 = vpop.f32.mrf.mxu0
    %v8640 = vadd.f32 0.0, %v8639
    %8641 = vmatmul.f32.gmra.mxu0 %v8595
    %v8642 = vpop.f32.mrf.mxu0
    %v8643 = vadd.f32 0.0, %v8642
    %8644 = vdwg.mxu0
    %v8645 = vadd.f32 %v8586, %v8631
    %v8646 = vadd.f32 %v8587, %v8634
    %v8647 = vadd.f32 %v8588, %v8637
    %v8648 = vadd.f32 %v8589, %v8640
    %v8649 = vadd.f32 %v8590, %v8643
    %v8650 = vld [vmem:[#allocation3 + $0x22] sm:$0xff]
    %v8651 = vld [vmem:[#allocation3 + $0x2a] sm:$0xff]
    %v8652 = vld [vmem:[#allocation3 + $0x32] sm:$0xff]
    %v8653 = vld [vmem:[#allocation3 + $0x3a] sm:$0xff]
    %v8654 = vld [vmem:[#allocation3 + $0x42] sm:$0x1f]
    %s8655 = scalar_lea.vmem [#allocation15], 4352
    %v8656 = vld [vmem:[%s8655] sm:$0xff]
    %v8657 = vld [vmem:[%s8655 + $0x8] sm:$0xff]
    %v8658 = vld [vmem:[%s8655 + $0x10] sm:$0xff]
    %v8659 = vld [vmem:[%s8655 + $0x18] sm:$0xff]
    %v8660 = vld [vmem:[%s8655 + $0x20] sm:$0xff]
    %v8661 = vld [vmem:[%s8655 + $0x28] sm:$0xff]
    %v8662 = vld [vmem:[%s8655 + $0x30] sm:$0xff]
    %v8663 = vld [vmem:[%s8655 + $0x38] sm:$0xff]
    %v8664 = vld [vmem:[%s8655 + $0x40] sm:$0xff]
    %v8665 = vld [vmem:[%s8655 + $0x48] sm:$0xff]
    %v8666 = vld [vmem:[%s8655 + $0x50] sm:$0xff]
    %v8667 = vld [vmem:[%s8655 + $0x58] sm:$0xff]
    %v8668 = vld [vmem:[%s8655 + $0x60] sm:$0xff]
    %v8669 = vld [vmem:[%s8655 + $0x68] sm:$0xff]
    %v8670 = vld [vmem:[%s8655 + $0x70] sm:$0xff]
    %v8671 = vld [vmem:[%s8655 + $0x78] sm:$0xff]
    %8672 = vmatpush.msra.mxu0 %v8671
    %8673 = vmatpush.msra.mxu0 %v8670
    %8674 = vmatpush.msra.mxu0 %v8669
    %8675 = vmatpush.msra.mxu0 %v8668
    %8676 = vmatpush.msra.mxu0 %v8667
    %8677 = vmatpush.msra.mxu0 %v8666
    %8678 = vmatpush.msra.mxu0 %v8665
    %8679 = vmatpush.msra.mxu0 %v8664
    %8680 = vmatpush.msra.mxu0 %v8663
    %8681 = vmatpush.msra.mxu0 %v8662
    %8682 = vmatpush.msra.mxu0 %v8661
    %8683 = vmatpush.msra.mxu0 %v8660
    %8684 = vmatpush.msra.mxu0 %v8659
    %8685 = vmatpush.msra.mxu0 %v8658
    %8686 = vmatpush.msra.mxu0 %v8657
    %8687 = vmatpush.msra.mxu0 %v8656
    %8688 = vmatmul.f32.gmra.mxu0 %v8650
    %v8689 = vpop.f32.mrf.mxu0
    %v8690 = vadd.f32 0.0, %v8689
    %8691 = vmatmul.f32.gmra.mxu0 %v8651
    %v8692 = vpop.f32.mrf.mxu0
    %v8693 = vadd.f32 0.0, %v8692
    %8694 = vmatmul.f32.gmra.mxu0 %v8652
    %v8695 = vpop.f32.mrf.mxu0
    %v8696 = vadd.f32 0.0, %v8695
    %8697 = vmatmul.f32.gmra.mxu0 %v8653
    %v8698 = vpop.f32.mrf.mxu0
    %v8699 = vadd.f32 0.0, %v8698
    %8700 = vmatmul.f32.gmra.mxu0 %v8654
    %v8701 = vpop.f32.mrf.mxu0
    %v8702 = vadd.f32 0.0, %v8701
    %8703 = vdwg.mxu0
    %v8704 = vadd.f32 %v8645, %v8690
    %v8705 = vadd.f32 %v8646, %v8693
    %v8706 = vadd.f32 %v8647, %v8696
    %v8707 = vadd.f32 %v8648, %v8699
    %v8708 = vadd.f32 %v8649, %v8702
    %v8709 = vld [vmem:[#allocation3 + $0x23] sm:$0xff]
    %v8710 = vld [vmem:[#allocation3 + $0x2b] sm:$0xff]
    %v8711 = vld [vmem:[#allocation3 + $0x33] sm:$0xff]
    %v8712 = vld [vmem:[#allocation3 + $0x3b] sm:$0xff]
    %v8713 = vld [vmem:[#allocation3 + $0x43] sm:$0x1f]
    %s8714 = scalar_lea.vmem [#allocation15], 4480
    %v8715 = vld [vmem:[%s8714] sm:$0xff]
    %v8716 = vld [vmem:[%s8714 + $0x8] sm:$0xff]
    %v8717 = vld [vmem:[%s8714 + $0x10] sm:$0xff]
    %v8718 = vld [vmem:[%s8714 + $0x18] sm:$0xff]
    %v8719 = vld [vmem:[%s8714 + $0x20] sm:$0xff]
    %v8720 = vld [vmem:[%s8714 + $0x28] sm:$0xff]
    %v8721 = vld [vmem:[%s8714 + $0x30] sm:$0xff]
    %v8722 = vld [vmem:[%s8714 + $0x38] sm:$0xff]
    %v8723 = vld [vmem:[%s8714 + $0x40] sm:$0xff]
    %v8724 = vld [vmem:[%s8714 + $0x48] sm:$0xff]
    %v8725 = vld [vmem:[%s8714 + $0x50] sm:$0xff]
    %v8726 = vld [vmem:[%s8714 + $0x58] sm:$0xff]
    %v8727 = vld [vmem:[%s8714 + $0x60] sm:$0xff]
    %v8728 = vld [vmem:[%s8714 + $0x68] sm:$0xff]
    %v8729 = vld [vmem:[%s8714 + $0x70] sm:$0xff]
    %v8730 = vld [vmem:[%s8714 + $0x78] sm:$0xff]
    %8731 = vmatpush.msra.mxu0 %v8730
    %8732 = vmatpush.msra.mxu0 %v8729
    %8733 = vmatpush.msra.mxu0 %v8728
    %8734 = vmatpush.msra.mxu0 %v8727
    %8735 = vmatpush.msra.mxu0 %v8726
    %8736 = vmatpush.msra.mxu0 %v8725
    %8737 = vmatpush.msra.mxu0 %v8724
    %8738 = vmatpush.msra.mxu0 %v8723
    %8739 = vmatpush.msra.mxu0 %v8722
    %8740 = vmatpush.msra.mxu0 %v8721
    %8741 = vmatpush.msra.mxu0 %v8720
    %8742 = vmatpush.msra.mxu0 %v8719
    %8743 = vmatpush.msra.mxu0 %v8718
    %8744 = vmatpush.msra.mxu0 %v8717
    %8745 = vmatpush.msra.mxu0 %v8716
    %8746 = vmatpush.msra.mxu0 %v8715
    %8747 = vmatmul.f32.gmra.mxu0 %v8709
    %v8748 = vpop.f32.mrf.mxu0
    %v8749 = vadd.f32 0.0, %v8748
    %8750 = vmatmul.f32.gmra.mxu0 %v8710
    %v8751 = vpop.f32.mrf.mxu0
    %v8752 = vadd.f32 0.0, %v8751
    %8753 = vmatmul.f32.gmra.mxu0 %v8711
    %v8754 = vpop.f32.mrf.mxu0
    %v8755 = vadd.f32 0.0, %v8754
    %8756 = vmatmul.f32.gmra.mxu0 %v8712
    %v8757 = vpop.f32.mrf.mxu0
    %v8758 = vadd.f32 0.0, %v8757
    %8759 = vmatmul.f32.gmra.mxu0 %v8713
    %v8760 = vpop.f32.mrf.mxu0
    %v8761 = vadd.f32 0.0, %v8760
    %8762 = vdwg.mxu0
    %v8763 = vadd.f32 %v8704, %v8749
    %v8764 = vadd.f32 %v8705, %v8752
    %v8765 = vadd.f32 %v8706, %v8755
    %v8766 = vadd.f32 %v8707, %v8758
    %v8767 = vadd.f32 %v8708, %v8761
    %v8768 = vld [vmem:[#allocation18] sm:$0x3]
    %v8769 = vld [vmem:[#allocation16] sm:$0x1]
    %v8771 = vperm.slane %v8769, 0
    %vm8773 = vcmask 302080
    %v8775 = vsel %vm8773, %v8768, 0
    %vm8777 = vcmask 1044480
    %v8779 = vsel %vm8777, %v8767, 0
    %8781 = vmatpush.msra.mxu0 0.0
    %8782 = vmatpush.msra.mxu0 0.0
    %8783 = vmatpush.msra.mxu0 0.0
    %8784 = vmatpush.msra.mxu0 0.0
    %8785 = vmatpush.msra.mxu0 0.0
    %8786 = vmatpush.msra.mxu0 0.0
    %8787 = vmatpush.msra.mxu0 0.0
    %8788 = vmatpush.msra.mxu0 0.0
    %8789 = vmatpush.msra.mxu0 0.0
    %8790 = vmatpush.msra.mxu0 0.0
    %8791 = vmatpush.msra.mxu0 0.0
    %8792 = vmatpush.msra.mxu0 %v8779
    %8793 = vmatpush.msra.mxu0 %v8766
    %8794 = vmatpush.msra.mxu0 %v8765
    %8795 = vmatpush.msra.mxu0 %v8764
    %8796 = vmatpush.msra.mxu0 %v8763
    %8797 = vmatmul.f32.gmra.mxu0 %v8775
    %v8798 = vpop.f32.mrf.mxu0
    %v8799 = vadd.f32 %v8771, %v8798
    %8800 = vdwg.mxu0
    %8801 = vst [vmem:[#allocation19] sm:$0x3] %v8799
    // Predicated region
    $region78: #{net_forward.1} parent=1 // pred_check
      _
    $region79: #{net_forward.1} parent=1 // pred_check_branch
      %8803 = sbr.rel (0) target = $region81
    $region80: #{net_forward.1} parent=1 // pred_region
      %8805 = vsyncadd [#allocation6], 0
      %s8807 = sshll.u32 [#allocation19], 4
      %s8808 = int_to_ptr.vmem [resolvable:$true] %s8807
      %s8809 = sshll.u32 %s10, 4
      %s8810 = int_to_ptr.hbm [resolvable:$true] %s8809
      %8812 = dma.vmem_to_hbm [thread:$0]  %s8808, 32, %s8810, [#allocation6]
    $region81: #{net_forward.1} parent=1 // pred_fallthru
      _
    // Predicated region
    $region82: #{net_forward.1} parent=1 // pred_check
      _
    $region83: #{net_forward.1} parent=1 // pred_check_branch
      %8814 = sbr.rel (0) target = $region85
    $region84: #{net_forward.1} parent=1 // pred_region
      %8816 = dma.done [#allocation6], 32
    $region85: #{net_forward.1} parent=1 // pred_fallthru
      _
    %8817 = vsyncpa [#allocation5], 1
    %8818 = vsyncpa [#allocation8], 1
    %8819 = vsyncpa [#allocation11], 1
    %8820 = vsyncpa [#allocation14], 1
    %8821 = vsyncpa [#allocation17], 1
    %8822 = vsyncpa [#allocation6], 1

</llo_original>
